<compile_context>
chip_gen: v7x
topology: tpu7x:2x2x1
jax: 0.10.0
libtpu: 0.0.40
codegen_flags: <defaults>
</compile_context>

<pallas_src>
import functools

import jax
import jax.numpy as jnp
from jax import lax
from jax.experimental import pallas as pl
from jax.experimental.pallas import tpu as pltpu

LN_EPS = 1e-5  # nn.LayerNorm default


def _layer_norm(x, g, b):
    mu = jnp.mean(x, axis=-1, keepdims=True)
    var = jnp.mean(jnp.square(x - mu), axis=-1, keepdims=True)
    return (x - mu) * lax.rsqrt(var + LN_EPS) * g + b


# --------------------------------------------------------------------------
# Fused decoder kernel: grid = (B//Bt, L, F); activations resident in VMEM
# --------------------------------------------------------------------------

def _decoder_kernel(x_ref, cls_ref, pdw_ref, pdb_ref,
                    ln1g_ref, ln1b_ref, qkvw_ref, qkvb_ref, projw_ref, projb_ref,
                    ln2g_ref, ln2b_ref, fc1w_ref, fc1b_ref, fc2w_ref, fc2b_ref,
                    dng_ref, dnb_ref, ppw_ref, pcw_ref, mng_ref, mnb_ref,
                    o_ref, xs, ybuf,
                    *, batch_tile, n_heads, head_chunk, n_patches, n_cls_total):
    bf16 = jnp.bfloat16
    f32 = jnp.float32
    l = pl.program_id(1)
    f = pl.program_id(2)
    last_l = pl.num_programs(1) - 1
    last_f = pl.num_programs(2) - 1

    Bt = batch_tile
    S = n_patches + n_cls_total
    d = qkvw_ref.shape[1]
    hd = d // n_heads
    hc = head_chunk
    cw = hc * hd
    n_chunks = n_heads // hc
    scale = float(hd) ** -0.5

    # ---- (l==0, f==0): proj_dec + class-token concat into the resident slab
    @pl.when((l == 0) & (f == 0))
    def _init():
        for bi in range(Bt):
            base = bi * S
            xs[base:base + n_patches, :] = (
                jnp.dot(x_ref[bi], pdw_ref[...], preferred_element_type=f32)
                + pdb_ref[...])
            xs[base + n_patches:base + S, :] = cls_ref[...]

    # ---- (f==0): pre-norm MHSA sub-block, head-chunked ----
    @pl.when(f == 0)
    def _attention():
        x = xs[...]                                            # (Bt*S, D) f32
        y = _layer_norm(x, ln1g_ref[0], ln1b_ref[0]).astype(bf16)
        # bf16 qkv temp (halved vs f32); bias added in f32 then rounded once.
        qkv = (jnp.dot(y, qkvw_ref[0], preferred_element_type=f32)
               + qkvb_ref[0]).astype(bf16)                     # (Bt*S, 3D)
        for bi in range(Bt):
            base = bi * S
            for c in range(n_chunks):
                off = c * cw
                # scale folded into q before the QK matmul (S*D muls, not H*S^2)
                q = qkv[base:base + S, off:off + cw].reshape(S, hc, hd) * scale
                k = qkv[base:base + S, d + off:d + off + cw].reshape(S, hc, hd)
                v = qkv[base:base + S,
                        2 * d + off:2 * d + off + cw].reshape(S, hc, hd)
                s = jnp.einsum('qhd,khd->hqk', q, k,
                               preferred_element_type=f32)     # (hc, S, S) f32
                s = s - jnp.max(s, axis=-1, keepdims=True)
                p = jnp.exp(s)
                # deferred softmax denominator: normalize ctx, not p
                inv = pl.reciprocal(jnp.sum(p, axis=-1), approx=True)  # (hc, S)
                ctx = jnp.einsum('hqk,khd->qhd', p.astype(bf16), v,
                                 preferred_element_type=f32)   # (S, hc, hd)
                ctx = ctx * jnp.transpose(inv)[:, :, None]
                ybuf[base:base + S, off:off + cw] = (
                    ctx.reshape(S, cw).astype(bf16))
        x = x + (jnp.dot(ybuf[...], projw_ref[0], preferred_element_type=f32)
                 + projb_ref[0])
        # Snapshot LN2(x) once for all d_ff chunks; fold fc2 bias into the
        # residual now (addition commutes with the chunked accumulation).
        ybuf[...] = _layer_norm(x, ln2g_ref[0], ln2b_ref[0]).astype(bf16)
        xs[...] = x + fc2b_ref[0]

    # ---- every (l, f): one d_ff chunk of the MLP: xs += GELU(y @ W1_f) @ W2_f
    h = (jnp.dot(ybuf[...], fc1w_ref[0], preferred_element_type=f32)
         + fc1b_ref[0])
    # TODO(synk): PyTorch nn.GELU defaults to the exact erf GELU; the tanh
    # approximation is used since erf lowering support in Mosaic varies.
    h = jax.nn.gelu(h, approximate=True)
    xs[...] = xs[...] + jnp.dot(h.astype(bf16), fc2w_ref[0],
                                preferred_element_type=f32)

    # ---- (l==L-1, f==F-1): decoder_norm + mask head, lane-dense (C, N) out
    @pl.when((l == last_l) & (f == last_f))
    def _head():
        for bi in range(Bt):
            base = bi * S
            z = _layer_norm(xs[base:base + S, :], dng_ref[...], dnb_ref[...])
            patches = jnp.dot(z[:n_patches].astype(bf16), ppw_ref[...],
                              preferred_element_type=f32)
            clsf = jnp.dot(z[n_patches:].astype(bf16), pcw_ref[...],
                           preferred_element_type=f32)
            patches = patches * lax.rsqrt(
                jnp.sum(patches * patches, axis=-1, keepdims=True))
            clsf = clsf * lax.rsqrt(
                jnp.sum(clsf * clsf, axis=-1, keepdims=True))
            # (C, N) layout: contract last dims of both operands -> no transpose.
            masks = 0.5 * lax.dot_general(
                clsf.astype(bf16), patches.astype(bf16),
                (((1,), (1,)), ((), ())), preferred_element_type=f32)  # (C, N)
            # mask_norm = LayerNorm over classes, i.e. axis 0 in this layout.
            mu = jnp.mean(masks, axis=0, keepdims=True)
            var = jnp.mean(jnp.square(masks - mu), axis=0, keepdims=True)
            o_ref[bi] = ((masks - mu) * lax.rsqrt(var + LN_EPS)
                         * mng_ref[...] + mnb_ref[...])


# --------------------------------------------------------------------------
# Parameters (deterministic synthetic init mirroring the PyTorch __init__;
# per-layer weights stacked along a leading (L, ...) axis for the layer grid)
# --------------------------------------------------------------------------

def init_params(key, *, n_cls, d_encoder, d_model, d_ff, n_layers):
    total = sum(n_cls)
    scale = d_model ** (-0.5)
    ks = iter(jax.random.split(key, 8))
    L = n_layers

    def tn(k, shape, std=0.02):  # trunc_normal_-like (plain normal * std)
        return (std * jax.random.normal(k, shape)).astype(jnp.float32)

    return {
        "cls_emb": tn(next(ks), (total, d_model)),
        "proj_dec_w": tn(next(ks), (d_encoder, d_model)),
        "proj_dec_b": jnp.zeros((1, d_model), jnp.float32),
        "ln1_g": jnp.ones((L, 1, d_model), jnp.float32),
        "ln1_b": jnp.zeros((L, 1, d_model), jnp.float32),
        "qkv_w": tn(next(ks), (L, d_model, 3 * d_model)),
        "qkv_b": jnp.zeros((L, 1, 3 * d_model), jnp.float32),
        "proj_w": tn(next(ks), (L, d_model, d_model)),
        "proj_b": jnp.zeros((L, 1, d_model), jnp.float32),
        "ln2_g": jnp.ones((L, 1, d_model), jnp.float32),
        "ln2_b": jnp.zeros((L, 1, d_model), jnp.float32),
        "fc1_w": tn(next(ks), (L, d_model, d_ff)),
        "fc1_b": jnp.zeros((L, 1, d_ff), jnp.float32),
        "fc2_w": tn(next(ks), (L, d_ff, d_model)),
        "fc2_b": jnp.zeros((L, 1, d_model), jnp.float32),
        "dec_norm_g": jnp.ones((1, d_model), jnp.float32),
        "dec_norm_b": jnp.zeros((1, d_model), jnp.float32),
        "proj_patch": (scale * jax.random.normal(next(ks), (d_model, d_model))).astype(jnp.float32),
        "proj_classes": (scale * jax.random.normal(next(ks), (d_model, d_model))).astype(jnp.float32),
        "mask_norm_g": jnp.ones((total, 1), jnp.float32),
        "mask_norm_b": jnp.zeros((total, 1), jnp.float32),
    }


# --------------------------------------------------------------------------
# Forward pass: one fused pallas_call over grid (B//Bt, L, F)
# --------------------------------------------------------------------------

def _pick_vmem_limit():
    # ~3/4 of physical VMEM, capped: ~96 MiB on v5e/v6e (128 MiB physical),
    # ~48 MiB on v7x (64 MiB physical).
    try:
        cap = int(pltpu.get_tpu_info().vmem_capacity_bytes)
    except Exception:
        cap = 64 * 1024 * 1024
    return max(32 * 1024 * 1024, min((cap * 3) // 4, 100 * 1024 * 1024))


def mask_transformer_forward(params, x, im_size, *, patch_size, n_heads, n_cls,
                             batch_tile=None, head_chunk=None, ff_block=512):
    H, W = im_size
    GS = H // patch_size
    n_patches = GS * GS
    total = sum(n_cls)
    B, n_tok, d_enc = x.shape
    assert n_tok == n_patches
    d_model = params["proj_dec_w"].shape[1]
    d_ff = params["fc1_w"].shape[2]
    L = params["qkv_w"].shape[0]
    S = n_patches + total
    hd = d_model // n_heads
    bf16 = jnp.bfloat16

    # Batch tile (amortizes per-layer weight streaming across Bt images).
    # TODO(synk): at B == 1 on v7x the second TensorCore stays idle; a
    #   query-row parallel axis would be needed to use both cores.
    if batch_tile is None:
        batch_tile = 2 if B % 2 == 0 else 1
    assert B % batch_tile == 0
    Bt = batch_tile

    # Head chunk: aim for ~128-lane-wide q/k/v/ctx slices (pairs at hd=64).
    if head_chunk is None:
        head_chunk = min(n_heads, max(1, 128 // hd))
        while n_heads % head_chunk:
            head_chunk -= 1
    assert n_heads % head_chunk == 0

    # d_ff chunk size: must keep BlockSpec shapes 128-lane aligned (or full).
    if ff_block < d_ff and d_ff % ff_block == 0 and ff_block % 128 == 0:
        ffc = ff_block
    else:
        ffc = d_ff
    F = d_ff // ffc

    def full_spec(a):                       # constant-index weight
        nd = a.ndim
        return pl.BlockSpec(a.shape, lambda gb, l, f, nd=nd: (0,) * nd)

    def layer_spec(a):                      # (L, r, c) stacked per-layer weight
        nd = a.ndim
        return pl.BlockSpec((1,) + a.shape[1:],
                            lambda gb, l, f, nd=nd: (l,) + (0,) * (nd - 1))

    operands = [
        x.astype(bf16),
        params["cls_emb"],
        params["proj_dec_w"].astype(bf16), params["proj_dec_b"],
        params["ln1_g"], params["ln1_b"],
        params["qkv_w"].astype(bf16), params["qkv_b"],
        params["proj_w"].astype(bf16), params["proj_b"],
        params["ln2_g"], params["ln2_b"],
        params["fc1_w"].astype(bf16), params["fc1_b"],
        params["fc2_w"].astype(bf16), params["fc2_b"],
        params["dec_norm_g"], params["dec_norm_b"],
        params["proj_patch"].astype(bf16), params["proj_classes"].astype(bf16),
        params["mask_norm_g"], params["mask_norm_b"],
    ]
    in_specs = [pl.BlockSpec((Bt, n_patches, d_enc),
                             lambda gb, l, f: (gb, 0, 0))]
    in_specs += [full_spec(a) for a in operands[1:4]]      # cls_emb, proj_dec
    in_specs += [layer_spec(a) for a in operands[4:12]]    # ln1, qkv, proj, ln2
    in_specs += [                                          # d_ff-chunked MLP
        pl.BlockSpec((1, d_model, ffc), lambda gb, l, f: (l, 0, f)),   # fc1_w
        pl.BlockSpec((1, 1, ffc),       lambda gb, l, f: (l, 0, f)),   # fc1_b
        pl.BlockSpec((1, ffc, d_model), lambda gb, l, f: (l, f, 0)),   # fc2_w
        layer_spec(params["fc2_b"]),                                   # fc2_b
    ]
    in_specs += [full_spec(a) for a in operands[16:22]]    # mask head weights

    kernel = functools.partial(_decoder_kernel,
                               batch_tile=Bt, n_heads=n_heads,
                               head_chunk=head_chunk,
                               n_patches=n_patches, n_cls_total=total)

    masks_cn = pl.pallas_call(
        kernel,
        out_shape=jax.ShapeDtypeStruct((B, total, n_patches), jnp.float32),
        grid_spec=pltpu.PrefetchScalarGridSpec(
            num_scalar_prefetch=0,
            grid=(B // Bt, L, F),
            in_specs=in_specs,
            out_specs=pl.BlockSpec((Bt, total, n_patches),
                                   lambda gb, l, f: (gb, 0, 0)),
            scratch_shapes=[
                pltpu.VMEM((Bt * S, d_model), jnp.float32),   # residual slab
                pltpu.VMEM((Bt * S, d_model), jnp.bfloat16),  # ctx / LN2 snap
            ],
        ),
        compiler_params=pltpu.CompilerParams(
            dimension_semantics=("parallel", "arbitrary", "arbitrary"),
            vmem_limit_bytes=_pick_vmem_limit(),
        ),
    )(*operands)

    # 'b (h w) n -> b n h w' is a pure reshape in the (C, N) layout.
    return masks_cn.reshape(B, total, GS, GS)


# --------------------------------------------------------------------------
# Pure-JAX reference (same bf16 matmul discipline) for a sanity check
# --------------------------------------------------------------------------

def _reference_forward(params, x, im_size, *, patch_size, n_heads, n_cls):
    bf16 = jnp.bfloat16
    f32 = jnp.float32
    H, W = im_size
    GS = H // patch_size
    n_patches = GS * GS
    total = sum(n_cls)
    B = x.shape[0]
    d_model = params["proj_dec_w"].shape[1]
    L = params["qkv_w"].shape[0]
    hd = d_model // n_heads

    def dot(a, b):
        return jnp.dot(a.astype(bf16), b.astype(bf16), preferred_element_type=f32)

    def ln(t, g, b):
        mu = jnp.mean(t, axis=-1, keepdims=True)
        var = jnp.mean(jnp.square(t - mu), axis=-1, keepdims=True)
        return (t - mu) / jnp.sqrt(var + LN_EPS) * g + b

    x = dot(x, params["proj_dec_w"]) + params["proj_dec_b"]
    cls = jnp.broadcast_to(params["cls_emb"], (B, total, d_model))
    x = jnp.concatenate([x, cls], axis=1)
    for i in range(L):
        y = ln(x, params["ln1_g"][i], params["ln1_b"][i])
        qkv = dot(y, params["qkv_w"][i]) + params["qkv_b"][i]
        q, k, v = jnp.split(qkv, 3, axis=-1)
        q = q.reshape(B, -1, n_heads, hd)
        k = k.reshape(B, -1, n_heads, hd)
        v = v.reshape(B, -1, n_heads, hd)
        s = jnp.einsum('bqhd,bkhd->bhqk', q.astype(bf16), k.astype(bf16),
                       preferred_element_type=f32) * hd ** -0.5
        p = jax.nn.softmax(s, axis=-1)
        ctx = jnp.einsum('bhqk,bkhd->bqhd', p.astype(bf16), v.astype(bf16),
                         preferred_element_type=f32).reshape(B, -1, d_model)
        x = x + dot(ctx, params["proj_w"][i]) + params["proj_b"][i]
        y = ln(x, params["ln2_g"][i], params["ln2_b"][i])
        h = jax.nn.gelu(dot(y, params["fc1_w"][i]) + params["fc1_b"][i],
                        approximate=True)
        x = x + dot(h, params["fc2_w"][i]) + params["fc2_b"][i]
    z = ln(x, params["dec_norm_g"], params["dec_norm_b"])
    patches, cls_feat = z[:, :n_patches], z[:, n_patches:]
    patches = dot(patches, params["proj_patch"])
    cls_feat = dot(cls_feat, params["proj_classes"])
    patches = patches / jnp.linalg.norm(patches, axis=-1, keepdims=True)
    cls_feat = cls_feat / jnp.linalg.norm(cls_feat, axis=-1, keepdims=True)
    masks = 0.5 * jnp.einsum('bnd,bcd->bnc', patches.astype(bf16),
                             cls_feat.astype(bf16), preferred_element_type=f32)
    masks = ln(masks, params["mask_norm_g"][:, 0], params["mask_norm_b"][:, 0])
    return masks.reshape(B, GS, GS, total).transpose(0, 3, 1, 2)


# --------------------------------------------------------------------------

if __name__ == "__main__":
    # small, module-consistent shapes (chosen so both the head-chunk loop and
    # the d_ff-chunk grid axis are exercised with >1 iterations)
    n_cls = (3, 5)            # total_classes = 8
    patch_size = 4
    d_encoder = 32
    n_layers = 2
    n_heads = 4
    d_model = 64
    d_ff = 256
    B = 2
    im_size = (16, 16)
    GS = im_size[0] // patch_size
    n_patches = GS * GS       # 16

    key = jax.random.PRNGKey(0)
    pkey, xkey = jax.random.split(key)
    params = init_params(pkey, n_cls=n_cls, d_encoder=d_encoder,
                         d_model=d_model, d_ff=d_ff, n_layers=n_layers)
    x = jax.random.normal(xkey, (B, n_patches, d_encoder), jnp.float32)

    masks = mask_transformer_forward(params, x, im_size,
                                     patch_size=patch_size,
                                     n_heads=n_heads, n_cls=n_cls,
                                     batch_tile=2, head_chunk=2, ff_block=128)
    jax.block_until_ready(masks)
    assert masks.shape == (B, sum(n_cls), GS, GS), masks.shape
    assert masks.dtype == jnp.float32
    assert bool(jnp.all(jnp.isfinite(masks)))

    # sanity check against a matched-precision pure-JAX reference
    ref = _reference_forward(params, x, im_size, patch_size=patch_size,
                             n_heads=n_heads, n_cls=n_cls)
    max_err = float(jnp.max(jnp.abs(masks - ref)))
    assert max_err < 0.2, f"max abs error vs reference: {max_err}"

    print("KERNEL_OK")
</pallas_src>

<mosaic_0001>
module attributes {stable_mosaic.version = 11 : i64} {
  func.func @_decoder_kernel(%arg0: i32, %arg1: i32, %arg2: i32, %arg3: memref<2x16x32xbf16, #tpu.memory_space<vmem>>, %arg4: memref<8x64xf32, #tpu.memory_space<vmem>>, %arg5: memref<32x64xbf16, #tpu.memory_space<vmem>>, %arg6: memref<1x64xf32, #tpu.memory_space<vmem>>, %arg7: memref<1x1x64xf32, #tpu.memory_space<vmem>>, %arg8: memref<1x1x64xf32, #tpu.memory_space<vmem>>, %arg9: memref<1x64x192xbf16, #tpu.memory_space<vmem>>, %arg10: memref<1x1x192xf32, #tpu.memory_space<vmem>>, %arg11: memref<1x64x64xbf16, #tpu.memory_space<vmem>>, %arg12: memref<1x1x64xf32, #tpu.memory_space<vmem>>, %arg13: memref<1x1x64xf32, #tpu.memory_space<vmem>>, %arg14: memref<1x1x64xf32, #tpu.memory_space<vmem>>, %arg15: memref<1x64x128xbf16, #tpu.memory_space<vmem>>, %arg16: memref<1x1x128xf32, #tpu.memory_space<vmem>>, %arg17: memref<1x128x64xbf16, #tpu.memory_space<vmem>>, %arg18: memref<1x1x64xf32, #tpu.memory_space<vmem>>, %arg19: memref<1x64xf32, #tpu.memory_space<vmem>>, %arg20: memref<1x64xf32, #tpu.memory_space<vmem>>, %arg21: memref<64x64xbf16, #tpu.memory_space<vmem>>, %arg22: memref<64x64xbf16, #tpu.memory_space<vmem>>, %arg23: memref<8x1xf32, #tpu.memory_space<vmem>>, %arg24: memref<8x1xf32, #tpu.memory_space<vmem>>, %arg25: memref<2x8x16xf32, #tpu.memory_space<vmem>>, %arg26: memref<48x64xf32, #tpu.memory_space<vmem>>, %arg27: memref<48x64xbf16, #tpu.memory_space<vmem>>) attributes {dimension_semantics = [#tpu.dimension_semantics<parallel>, #tpu.dimension_semantics<arbitrary>, #tpu.dimension_semantics<arbitrary>], iteration_bounds = array<i64: 1, 2, 2>, scalar_prefetch = 0 : i64, scratch_operands = 2 : i64, tpu.core_type = #tpu.core_type<tc>, window_params = [{transform_indices = @transform_0, window_bounds = array<i64: 2, 16, 32>}, {pipeline_mode = #tpu.pipeline_mode<synchronous>, transform_indices = @transform_1, window_bounds = array<i64: 8, 64>}, {pipeline_mode = #tpu.pipeline_mode<synchronous>, transform_indices = @transform_2, window_bounds = array<i64: 32, 64>}, {pipeline_mode = #tpu.pipeline_mode<synchronous>, transform_indices = @transform_3, window_bounds = array<i64: 1, 64>}, {transform_indices = @transform_4, window_bounds = array<i64: 1, 1, 64>}, {transform_indices = @transform_5, window_bounds = array<i64: 1, 1, 64>}, {transform_indices = @transform_6, window_bounds = array<i64: 1, 64, 192>}, {transform_indices = @transform_7, window_bounds = array<i64: 1, 1, 192>}, {transform_indices = @transform_8, window_bounds = array<i64: 1, 64, 64>}, {transform_indices = @transform_9, window_bounds = array<i64: 1, 1, 64>}, {transform_indices = @transform_10, window_bounds = array<i64: 1, 1, 64>}, {transform_indices = @transform_11, window_bounds = array<i64: 1, 1, 64>}, {transform_indices = @transform_12, window_bounds = array<i64: 1, 64, 128>}, {transform_indices = @transform_13, window_bounds = array<i64: 1, 1, 128>}, {transform_indices = @transform_14, window_bounds = array<i64: 1, 128, 64>}, {transform_indices = @transform_15, window_bounds = array<i64: 1, 1, 64>}, {pipeline_mode = #tpu.pipeline_mode<synchronous>, transform_indices = @transform_16, window_bounds = array<i64: 1, 64>}, {pipeline_mode = #tpu.pipeline_mode<synchronous>, transform_indices = @transform_17, window_bounds = array<i64: 1, 64>}, {pipeline_mode = #tpu.pipeline_mode<synchronous>, transform_indices = @transform_18, window_bounds = array<i64: 64, 64>}, {pipeline_mode = #tpu.pipeline_mode<synchronous>, transform_indices = @transform_19, window_bounds = array<i64: 64, 64>}, {pipeline_mode = #tpu.pipeline_mode<synchronous>, transform_indices = @transform_20, window_bounds = array<i64: 8, 1>}, {pipeline_mode = #tpu.pipeline_mode<synchronous>, transform_indices = @transform_21, window_bounds = array<i64: 8, 1>}, {transform_indices = @transform_22, window_bounds = array<i64: 2, 8, 16>}]} {
    %c0_i32 = arith.constant 0 : i32
    %0 = arith.cmpi eq, %arg1, %c0_i32 : i32
    %c0_i32_0 = arith.constant 0 : i32
    %1 = arith.cmpi eq, %arg2, %c0_i32_0 : i32
    %2 = arith.andi %0, %1 : i1
    %3 = arith.extui %2 : i1 to i32
    %c0_i32_1 = arith.constant 0 : i32
    %4 = arith.cmpi ne, %3, %c0_i32_1 : i32
    scf.if %4 {
      %c0_25 = arith.constant 0 : index
      %c0_26 = arith.constant 0 : index
      %c0_27 = arith.constant 0 : index
      %41 = vector.load %arg3[%c0_25, %c0_26, %c0_27] : memref<2x16x32xbf16, #tpu.memory_space<vmem>>, vector<1x16x32xbf16>
      %42 = vector.shape_cast %41 : vector<1x16x32xbf16> to vector<16x32xbf16>
      %c0_28 = arith.constant 0 : index
      %c0_29 = arith.constant 0 : index
      %43 = vector.load %arg5[%c0_28, %c0_29] : memref<32x64xbf16, #tpu.memory_space<vmem>>, vector<32x64xbf16>
      %cst_30 = arith.constant dense<0.000000e+00> : vector<16x64xf32>
      %44 = tpu.matmul %42, %43, %cst_30 {dimension_numbers = #tpu.dot_dimension_numbers<[1], [0], [0], [1], [0, 0, 1, 1], [], []>} : vector<16x32xbf16>, vector<32x64xbf16>, vector<16x64xf32> -> vector<16x64xf32>
      %c0_31 = arith.constant 0 : index
      %c0_32 = arith.constant 0 : index
      %45 = vector.load %arg6[%c0_31, %c0_32] : memref<1x64xf32, #tpu.memory_space<vmem>>, vector<1x64xf32>
      %46 = vector.broadcast %45 : vector<1x64xf32> to vector<16x64xf32>
      %47 = arith.addf %44, %46 : vector<16x64xf32>
      %c0_33 = arith.constant 0 : index
      %c0_34 = arith.constant 0 : index
      %48 = vector.load %arg26[%c0_33, %c0_34] : memref<48x64xf32, #tpu.memory_space<vmem>>, vector<16x64xf32>
      tpu.vector_store %arg26[%c0_33, %c0_34], %47 {strides = array<i32>} : memref<48x64xf32, #tpu.memory_space<vmem>>, vector<16x64xf32>,
      %c0_35 = arith.constant 0 : index
      %c0_36 = arith.constant 0 : index
      %49 = vector.load %arg4[%c0_35, %c0_36] : memref<8x64xf32, #tpu.memory_space<vmem>>, vector<8x64xf32>
      %c16 = arith.constant 16 : index
      %c0_37 = arith.constant 0 : index
      %50 = vector.load %arg26[%c16, %c0_37] : memref<48x64xf32, #tpu.memory_space<vmem>>, vector<8x64xf32>
      tpu.vector_store %arg26[%c16, %c0_37], %49 {strides = array<i32>} : memref<48x64xf32, #tpu.memory_space<vmem>>, vector<8x64xf32>,
      %c1 = arith.constant 1 : index
      %c0_38 = arith.constant 0 : index
      %c0_39 = arith.constant 0 : index
      %51 = vector.load %arg3[%c1, %c0_38, %c0_39] : memref<2x16x32xbf16, #tpu.memory_space<vmem>>, vector<1x16x32xbf16>
      %52 = vector.shape_cast %51 : vector<1x16x32xbf16> to vector<16x32xbf16>
      %c0_40 = arith.constant 0 : index
      %c0_41 = arith.constant 0 : index
      %53 = vector.load %arg5[%c0_40, %c0_41] : memref<32x64xbf16, #tpu.memory_space<vmem>>, vector<32x64xbf16>
      %cst_42 = arith.constant dense<0.000000e+00> : vector<16x64xf32>
      %54 = tpu.matmul %52, %53, %cst_42 {dimension_numbers = #tpu.dot_dimension_numbers<[1], [0], [0], [1], [0, 0, 1, 1], [], []>} : vector<16x32xbf16>, vector<32x64xbf16>, vector<16x64xf32> -> vector<16x64xf32>
      %c0_43 = arith.constant 0 : index
      %c0_44 = arith.constant 0 : index
      %55 = vector.load %arg6[%c0_43, %c0_44] : memref<1x64xf32, #tpu.memory_space<vmem>>, vector<1x64xf32>
      %56 = vector.broadcast %55 : vector<1x64xf32> to vector<16x64xf32>
      %57 = arith.addf %54, %56 : vector<16x64xf32>
      %c24 = arith.constant 24 : index
      %c0_45 = arith.constant 0 : index
      %58 = vector.load %arg26[%c24, %c0_45] : memref<48x64xf32, #tpu.memory_space<vmem>>, vector<16x64xf32>
      tpu.vector_store %arg26[%c24, %c0_45], %57 {strides = array<i32>} : memref<48x64xf32, #tpu.memory_space<vmem>>, vector<16x64xf32>,
      %c0_46 = arith.constant 0 : index
      %c0_47 = arith.constant 0 : index
      %59 = vector.load %arg4[%c0_46, %c0_47] : memref<8x64xf32, #tpu.memory_space<vmem>>, vector<8x64xf32>
      %c40 = arith.constant 40 : index
      %c0_48 = arith.constant 0 : index
      %60 = vector.load %arg26[%c40, %c0_48] : memref<48x64xf32, #tpu.memory_space<vmem>>, vector<8x64xf32>
      tpu.vector_store %arg26[%c40, %c0_48], %59 {strides = array<i32>} : memref<48x64xf32, #tpu.memory_space<vmem>>, vector<8x64xf32>,
    } else {
    }
    %c0_i32_2 = arith.constant 0 : i32
    %5 = arith.cmpi eq, %arg2, %c0_i32_2 : i32
    %6 = arith.extui %5 : i1 to i32
    %c0_i32_3 = arith.constant 0 : i32
    %7 = arith.cmpi ne, %6, %c0_i32_3 : i32
    scf.if %7 {
      %c0_25 = arith.constant 0 : index
      %c0_26 = arith.constant 0 : index
      %41 = vector.load %arg26[%c0_25, %c0_26] : memref<48x64xf32, #tpu.memory_space<vmem>>, vector<48x64xf32>
      %c0_27 = arith.constant 0 : index
      %c0_28 = arith.constant 0 : index
      %c0_29 = arith.constant 0 : index
      %42 = vector.load %arg7[%c0_27, %c0_28, %c0_29] : memref<1x1x64xf32, #tpu.memory_space<vmem>>, vector<1x1x64xf32>
      %43 = vector.shape_cast %42 : vector<1x1x64xf32> to vector<1x64xf32>
      %c0_30 = arith.constant 0 : index
      %c0_31 = arith.constant 0 : index
      %c0_32 = arith.constant 0 : index
      %44 = vector.load %arg8[%c0_30, %c0_31, %c0_32] : memref<1x1x64xf32, #tpu.memory_space<vmem>>, vector<1x1x64xf32>
      %45 = vector.shape_cast %44 : vector<1x1x64xf32> to vector<1x64xf32>
      %cst_33 = arith.constant dense<0.000000e+00> : vector<48xf32>
      %46 = vector.multi_reduction <add>, %41, %cst_33 [1] : vector<48x64xf32> to vector<48xf32>
      %47 = vector.shape_cast %46 : vector<48xf32> to vector<48x1xf32>
      %cst_34 = arith.constant 6.400000e+01 : f32
      %48 = vector.broadcast %cst_34 : f32 to vector<48x1xf32>
      %49 = arith.divf %47, %48 : vector<48x1xf32>
      %50 = vector.broadcast %49 : vector<48x1xf32> to vector<48x64xf32>
      %51 = arith.subf %41, %50 : vector<48x64xf32>
      %52 = arith.mulf %51, %51 : vector<48x64xf32>
      %cst_35 = arith.constant dense<0.000000e+00> : vector<48xf32>
      %53 = vector.multi_reduction <add>, %52, %cst_35 [1] : vector<48x64xf32> to vector<48xf32>
      %54 = vector.shape_cast %53 : vector<48xf32> to vector<48x1xf32>
      %cst_36 = arith.constant 6.400000e+01 : f32
      %55 = vector.broadcast %cst_36 : f32 to vector<48x1xf32>
      %56 = arith.divf %54, %55 : vector<48x1xf32>
      %57 = vector.broadcast %49 : vector<48x1xf32> to vector<48x64xf32>
      %58 = arith.subf %41, %57 : vector<48x64xf32>
      %cst_37 = arith.constant 9.99999974E-6 : f32
      %59 = vector.broadcast %cst_37 : f32 to vector<48x1xf32>
      %60 = arith.addf %56, %59 : vector<48x1xf32>
      %61 = math.rsqrt %60 : vector<48x1xf32>
      %62 = vector.broadcast %61 : vector<48x1xf32> to vector<48x64xf32>
      %63 = arith.mulf %58, %62 : vector<48x64xf32>
      %64 = vector.broadcast %43 : vector<1x64xf32> to vector<48x64xf32>
      %65 = arith.mulf %63, %64 : vector<48x64xf32>
      %66 = vector.broadcast %45 : vector<1x64xf32> to vector<48x64xf32>
      %67 = arith.addf %65, %66 : vector<48x64xf32>
      %68 = arith.truncf %67 : vector<48x64xf32> to vector<48x64xbf16>
      %c0_38 = arith.constant 0 : index
      %c0_39 = arith.constant 0 : index
      %c0_40 = arith.constant 0 : index
      %69 = vector.load %arg9[%c0_38, %c0_39, %c0_40] : memref<1x64x192xbf16, #tpu.memory_space<vmem>>, vector<1x64x192xbf16>
      %70 = vector.shape_cast %69 : vector<1x64x192xbf16> to vector<64x192xbf16>
      %cst_41 = arith.constant dense<0.000000e+00> : vector<48x192xf32>
      %71 = tpu.matmul %68, %70, %cst_41 {dimension_numbers = #tpu.dot_dimension_numbers<[1], [0], [0], [1], [0, 0, 1, 1], [], []>} : vector<48x64xbf16>, vector<64x192xbf16>, vector<48x192xf32> -> vector<48x192xf32>
      %c0_42 = arith.constant 0 : index
      %c0_43 = arith.constant 0 : index
      %c0_44 = arith.constant 0 : index
      %72 = vector.load %arg10[%c0_42, %c0_43, %c0_44] : memref<1x1x192xf32, #tpu.memory_space<vmem>>, vector<1x1x192xf32>
      %73 = vector.shape_cast %72 : vector<1x1x192xf32> to vector<1x192xf32>
      %74 = vector.broadcast %73 : vector<1x192xf32> to vector<48x192xf32>
      %75 = arith.addf %71, %74 : vector<48x192xf32>
      %76 = arith.truncf %75 : vector<48x192xf32> to vector<48x192xbf16>
      %77 = vector.extract_strided_slice %76 {offsets = [0, 0], sizes = [24, 32], strides = [1, 1]} : vector<48x192xbf16> to vector<24x32xbf16>
      %78 = vector.shape_cast %77 : vector<24x32xbf16> to vector<24x2x16xbf16>
      %cst_45 = arith.constant 2.500000e-01 : bf16
      %79 = vector.broadcast %cst_45 : bf16 to vector<24x2x16xbf16>
      %80 = arith.mulf %78, %79 : vector<24x2x16xbf16>
      %81 = vector.extract_strided_slice %76 {offsets = [0, 64], sizes = [24, 32], strides = [1, 1]} : vector<48x192xbf16> to vector<24x32xbf16>
      %82 = vector.shape_cast %81 : vector<24x32xbf16> to vector<24x2x16xbf16>
      %83 = vector.extract_strided_slice %76 {offsets = [0, 128], sizes = [24, 32], strides = [1, 1]} : vector<48x192xbf16> to vector<24x32xbf16>
      %84 = vector.shape_cast %83 : vector<24x32xbf16> to vector<24x2x16xbf16>
      "tpu.trace_start"() <{level = 10 : i32, message = "qhd,khd->hqk"}> : () -> ()
      %cst_46 = arith.constant dense<0.000000e+00> : vector<2x24x24xf32>
      %85 = tpu.matmul %80, %82, %cst_46 {dimension_numbers = #tpu.dot_dimension_numbers<[2], [2], [0], [0], [0, 1, 0, 0, 1, 0], [1], [1]>} : vector<24x2x16xbf16>, vector<24x2x16xbf16>, vector<2x24x24xf32> -> vector<2x24x24xf32>
      "tpu.trace_stop"() : () -> ()
      %cst_47 = arith.constant dense<0xFF800000> : vector<2x24xf32>
      %86 = vector.multi_reduction <maximumf>, %85, %cst_47 [2] : vector<2x24x24xf32> to vector<2x24xf32>
      %87 = vector.shape_cast %86 : vector<2x24xf32> to vector<2x24x1xf32>
      %88 = vector.broadcast %87 : vector<2x24x1xf32> to vector<2x24x24xf32>
      %89 = arith.subf %85, %88 : vector<2x24x24xf32>
      %90 = math.exp %89 : vector<2x24x24xf32>
      %cst_48 = arith.constant dense<0.000000e+00> : vector<2x24xf32>
      %91 = vector.multi_reduction <add>, %90, %cst_48 [2] : vector<2x24x24xf32> to vector<2x24xf32>
      %92 = tpu.reciprocal %91 {approx = true} : vector<2x24xf32> -> vector<2x24xf32>
      %93 = arith.truncf %90 : vector<2x24x24xf32> to vector<2x24x24xbf16>
      "tpu.trace_start"() <{level = 10 : i32, message = "hqk,khd->qhd"}> : () -> ()
      %cst_49 = arith.constant dense<0.000000e+00> : vector<2x16x24xf32>
      %94 = tpu.matmul %84, %93, %cst_49 {dimension_numbers = #tpu.dot_dimension_numbers<[0], [2], [2], [1], [0, 1, 0, 2, 1, 1], [1], [0]>} : vector<24x2x16xbf16>, vector<2x24x24xbf16>, vector<2x16x24xf32> -> vector<2x16x24xf32>
      %95 = tpu.transpose %94, [2, 0, 1] : vector<2x16x24xf32> -> vector<24x2x16xf32>
      "tpu.trace_stop"() : () -> ()
      %96 = tpu.transpose %92, [1, 0] : vector<2x24xf32> -> vector<24x2xf32>
      %97 = vector.shape_cast %96 : vector<24x2xf32> to vector<24x2x1xf32>
      %98 = vector.broadcast %97 : vector<24x2x1xf32> to vector<24x2x16xf32>
      %99 = arith.mulf %95, %98 : vector<24x2x16xf32>
      %100 = vector.shape_cast %99 : vector<24x2x16xf32> to vector<24x32xf32>
      %101 = arith.truncf %100 : vector<24x32xf32> to vector<24x32xbf16>
      %c0_50 = arith.constant 0 : index
      %c0_51 = arith.constant 0 : index
      %102 = vector.load %arg27[%c0_50, %c0_51] : memref<48x64xbf16, #tpu.memory_space<vmem>>, vector<24x32xbf16>
      tpu.vector_store %arg27[%c0_50, %c0_51], %101 {strides = array<i32>} : memref<48x64xbf16, #tpu.memory_space<vmem>>, vector<24x32xbf16>,
      %103 = vector.extract_strided_slice %76 {offsets = [0, 32], sizes = [24, 32], strides = [1, 1]} : vector<48x192xbf16> to vector<24x32xbf16>
      %104 = vector.shape_cast %103 : vector<24x32xbf16> to vector<24x2x16xbf16>
      %cst_52 = arith.constant 2.500000e-01 : bf16
      %105 = vector.broadcast %cst_52 : bf16 to vector<24x2x16xbf16>
      %106 = arith.mulf %104, %105 : vector<24x2x16xbf16>
      %107 = vector.extract_strided_slice %76 {offsets = [0, 96], sizes = [24, 32], strides = [1, 1]} : vector<48x192xbf16> to vector<24x32xbf16>
      %108 = vector.shape_cast %107 : vector<24x32xbf16> to vector<24x2x16xbf16>
      %109 = vector.extract_strided_slice %76 {offsets = [0, 160], sizes = [24, 32], strides = [1, 1]} : vector<48x192xbf16> to vector<24x32xbf16>
      %110 = vector.shape_cast %109 : vector<24x32xbf16> to vector<24x2x16xbf16>
      "tpu.trace_start"() <{level = 10 : i32, message = "qhd,khd->hqk"}> : () -> ()
      %cst_53 = arith.constant dense<0.000000e+00> : vector<2x24x24xf32>
      %111 = tpu.matmul %106, %108, %cst_53 {dimension_numbers = #tpu.dot_dimension_numbers<[2], [2], [0], [0], [0, 1, 0, 0, 1, 0], [1], [1]>} : vector<24x2x16xbf16>, vector<24x2x16xbf16>, vector<2x24x24xf32> -> vector<2x24x24xf32>
      "tpu.trace_stop"() : () -> ()
      %cst_54 = arith.constant dense<0xFF800000> : vector<2x24xf32>
      %112 = vector.multi_reduction <maximumf>, %111, %cst_54 [2] : vector<2x24x24xf32> to vector<2x24xf32>
      %113 = vector.shape_cast %112 : vector<2x24xf32> to vector<2x24x1xf32>
      %114 = vector.broadcast %113 : vector<2x24x1xf32> to vector<2x24x24xf32>
      %115 = arith.subf %111, %114 : vector<2x24x24xf32>
      %116 = math.exp %115 : vector<2x24x24xf32>
      %cst_55 = arith.constant dense<0.000000e+00> : vector<2x24xf32>
      %117 = vector.multi_reduction <add>, %116, %cst_55 [2] : vector<2x24x24xf32> to vector<2x24xf32>
      %118 = tpu.reciprocal %117 {approx = true} : vector<2x24xf32> -> vector<2x24xf32>
      %119 = arith.truncf %116 : vector<2x24x24xf32> to vector<2x24x24xbf16>
      "tpu.trace_start"() <{level = 10 : i32, message = "hqk,khd->qhd"}> : () -> ()
      %cst_56 = arith.constant dense<0.000000e+00> : vector<2x16x24xf32>
      %120 = tpu.matmul %110, %119, %cst_56 {dimension_numbers = #tpu.dot_dimension_numbers<[0], [2], [2], [1], [0, 1, 0, 2, 1, 1], [1], [0]>} : vector<24x2x16xbf16>, vector<2x24x24xbf16>, vector<2x16x24xf32> -> vector<2x16x24xf32>
      %121 = tpu.transpose %120, [2, 0, 1] : vector<2x16x24xf32> -> vector<24x2x16xf32>
      "tpu.trace_stop"() : () -> ()
      %122 = tpu.transpose %118, [1, 0] : vector<2x24xf32> -> vector<24x2xf32>
      %123 = vector.shape_cast %122 : vector<24x2xf32> to vector<24x2x1xf32>
      %124 = vector.broadcast %123 : vector<24x2x1xf32> to vector<24x2x16xf32>
      %125 = arith.mulf %121, %124 : vector<24x2x16xf32>
      %126 = vector.shape_cast %125 : vector<24x2x16xf32> to vector<24x32xf32>
      %127 = arith.truncf %126 : vector<24x32xf32> to vector<24x32xbf16>
      %c0_57 = arith.constant 0 : index
      %c32 = arith.constant 32 : index
      %128 = vector.load %arg27[%c0_57, %c32] : memref<48x64xbf16, #tpu.memory_space<vmem>>, vector<24x32xbf16>
      tpu.vector_store %arg27[%c0_57, %c32], %127 {strides = array<i32>} : memref<48x64xbf16, #tpu.memory_space<vmem>>, vector<24x32xbf16>,
      %129 = vector.extract_strided_slice %76 {offsets = [24, 0], sizes = [24, 32], strides = [1, 1]} : vector<48x192xbf16> to vector<24x32xbf16>
      %130 = vector.shape_cast %129 : vector<24x32xbf16> to vector<24x2x16xbf16>
      %cst_58 = arith.constant 2.500000e-01 : bf16
      %131 = vector.broadcast %cst_58 : bf16 to vector<24x2x16xbf16>
      %132 = arith.mulf %130, %131 : vector<24x2x16xbf16>
      %133 = vector.extract_strided_slice %76 {offsets = [24, 64], sizes = [24, 32], strides = [1, 1]} : vector<48x192xbf16> to vector<24x32xbf16>
      %134 = vector.shape_cast %133 : vector<24x32xbf16> to vector<24x2x16xbf16>
      %135 = vector.extract_strided_slice %76 {offsets = [24, 128], sizes = [24, 32], strides = [1, 1]} : vector<48x192xbf16> to vector<24x32xbf16>
      %136 = vector.shape_cast %135 : vector<24x32xbf16> to vector<24x2x16xbf16>
      "tpu.trace_start"() <{level = 10 : i32, message = "qhd,khd->hqk"}> : () -> ()
      %cst_59 = arith.constant dense<0.000000e+00> : vector<2x24x24xf32>
      %137 = tpu.matmul %132, %134, %cst_59 {dimension_numbers = #tpu.dot_dimension_numbers<[2], [2], [0], [0], [0, 1, 0, 0, 1, 0], [1], [1]>} : vector<24x2x16xbf16>, vector<24x2x16xbf16>, vector<2x24x24xf32> -> vector<2x24x24xf32>
      "tpu.trace_stop"() : () -> ()
      %cst_60 = arith.constant dense<0xFF800000> : vector<2x24xf32>
      %138 = vector.multi_reduction <maximumf>, %137, %cst_60 [2] : vector<2x24x24xf32> to vector<2x24xf32>
      %139 = vector.shape_cast %138 : vector<2x24xf32> to vector<2x24x1xf32>
      %140 = vector.broadcast %139 : vector<2x24x1xf32> to vector<2x24x24xf32>
      %141 = arith.subf %137, %140 : vector<2x24x24xf32>
      %142 = math.exp %141 : vector<2x24x24xf32>
      %cst_61 = arith.constant dense<0.000000e+00> : vector<2x24xf32>
      %143 = vector.multi_reduction <add>, %142, %cst_61 [2] : vector<2x24x24xf32> to vector<2x24xf32>
      %144 = tpu.reciprocal %143 {approx = true} : vector<2x24xf32> -> vector<2x24xf32>
      %145 = arith.truncf %142 : vector<2x24x24xf32> to vector<2x24x24xbf16>
      "tpu.trace_start"() <{level = 10 : i32, message = "hqk,khd->qhd"}> : () -> ()
      %cst_62 = arith.constant dense<0.000000e+00> : vector<2x16x24xf32>
      %146 = tpu.matmul %136, %145, %cst_62 {dimension_numbers = #tpu.dot_dimension_numbers<[0], [2], [2], [1], [0, 1, 0, 2, 1, 1], [1], [0]>} : vector<24x2x16xbf16>, vector<2x24x24xbf16>, vector<2x16x24xf32> -> vector<2x16x24xf32>
      %147 = tpu.transpose %146, [2, 0, 1] : vector<2x16x24xf32> -> vector<24x2x16xf32>
      "tpu.trace_stop"() : () -> ()
      %148 = tpu.transpose %144, [1, 0] : vector<2x24xf32> -> vector<24x2xf32>
      %149 = vector.shape_cast %148 : vector<24x2xf32> to vector<24x2x1xf32>
      %150 = vector.broadcast %149 : vector<24x2x1xf32> to vector<24x2x16xf32>
      %151 = arith.mulf %147, %150 : vector<24x2x16xf32>
      %152 = vector.shape_cast %151 : vector<24x2x16xf32> to vector<24x32xf32>
      %153 = arith.truncf %152 : vector<24x32xf32> to vector<24x32xbf16>
      %c24 = arith.constant 24 : index
      %c0_63 = arith.constant 0 : index
      %154 = vector.load %arg27[%c24, %c0_63] : memref<48x64xbf16, #tpu.memory_space<vmem>>, vector<24x32xbf16>
      tpu.vector_store %arg27[%c24, %c0_63], %153 {strides = array<i32>} : memref<48x64xbf16, #tpu.memory_space<vmem>>, vector<24x32xbf16>,
      %155 = vector.extract_strided_slice %76 {offsets = [24, 32], sizes = [24, 32], strides = [1, 1]} : vector<48x192xbf16> to vector<24x32xbf16>
      %156 = vector.shape_cast %155 : vector<24x32xbf16> to vector<24x2x16xbf16>
      %cst_64 = arith.constant 2.500000e-01 : bf16
      %157 = vector.broadcast %cst_64 : bf16 to vector<24x2x16xbf16>
      %158 = arith.mulf %156, %157 : vector<24x2x16xbf16>
      %159 = vector.extract_strided_slice %76 {offsets = [24, 96], sizes = [24, 32], strides = [1, 1]} : vector<48x192xbf16> to vector<24x32xbf16>
      %160 = vector.shape_cast %159 : vector<24x32xbf16> to vector<24x2x16xbf16>
      %161 = vector.extract_strided_slice %76 {offsets = [24, 160], sizes = [24, 32], strides = [1, 1]} : vector<48x192xbf16> to vector<24x32xbf16>
      %162 = vector.shape_cast %161 : vector<24x32xbf16> to vector<24x2x16xbf16>
      "tpu.trace_start"() <{level = 10 : i32, message = "qhd,khd->hqk"}> : () -> ()
      %cst_65 = arith.constant dense<0.000000e+00> : vector<2x24x24xf32>
      %163 = tpu.matmul %158, %160, %cst_65 {dimension_numbers = #tpu.dot_dimension_numbers<[2], [2], [0], [0], [0, 1, 0, 0, 1, 0], [1], [1]>} : vector<24x2x16xbf16>, vector<24x2x16xbf16>, vector<2x24x24xf32> -> vector<2x24x24xf32>
      "tpu.trace_stop"() : () -> ()
      %cst_66 = arith.constant dense<0xFF800000> : vector<2x24xf32>
      %164 = vector.multi_reduction <maximumf>, %163, %cst_66 [2] : vector<2x24x24xf32> to vector<2x24xf32>
      %165 = vector.shape_cast %164 : vector<2x24xf32> to vector<2x24x1xf32>
      %166 = vector.broadcast %165 : vector<2x24x1xf32> to vector<2x24x24xf32>
      %167 = arith.subf %163, %166 : vector<2x24x24xf32>
      %168 = math.exp %167 : vector<2x24x24xf32>
      %cst_67 = arith.constant dense<0.000000e+00> : vector<2x24xf32>
      %169 = vector.multi_reduction <add>, %168, %cst_67 [2] : vector<2x24x24xf32> to vector<2x24xf32>
      %170 = tpu.reciprocal %169 {approx = true} : vector<2x24xf32> -> vector<2x24xf32>
      %171 = arith.truncf %168 : vector<2x24x24xf32> to vector<2x24x24xbf16>
      "tpu.trace_start"() <{level = 10 : i32, message = "hqk,khd->qhd"}> : () -> ()
      %cst_68 = arith.constant dense<0.000000e+00> : vector<2x16x24xf32>
      %172 = tpu.matmul %162, %171, %cst_68 {dimension_numbers = #tpu.dot_dimension_numbers<[0], [2], [2], [1], [0, 1, 0, 2, 1, 1], [1], [0]>} : vector<24x2x16xbf16>, vector<2x24x24xbf16>, vector<2x16x24xf32> -> vector<2x16x24xf32>
      %173 = tpu.transpose %172, [2, 0, 1] : vector<2x16x24xf32> -> vector<24x2x16xf32>
      "tpu.trace_stop"() : () -> ()
      %174 = tpu.transpose %170, [1, 0] : vector<2x24xf32> -> vector<24x2xf32>
      %175 = vector.shape_cast %174 : vector<24x2xf32> to vector<24x2x1xf32>
      %176 = vector.broadcast %175 : vector<24x2x1xf32> to vector<24x2x16xf32>
      %177 = arith.mulf %173, %176 : vector<24x2x16xf32>
      %178 = vector.shape_cast %177 : vector<24x2x16xf32> to vector<24x32xf32>
      %179 = arith.truncf %178 : vector<24x32xf32> to vector<24x32xbf16>
      %c24_69 = arith.constant 24 : index
      %c32_70 = arith.constant 32 : index
      %180 = vector.load %arg27[%c24_69, %c32_70] : memref<48x64xbf16, #tpu.memory_space<vmem>>, vector<24x32xbf16>
      tpu.vector_store %arg27[%c24_69, %c32_70], %179 {strides = array<i32>} : memref<48x64xbf16, #tpu.memory_space<vmem>>, vector<24x32xbf16>,
      %c0_71 = arith.constant 0 : index
      %c0_72 = arith.constant 0 : index
      %181 = vector.load %arg27[%c0_71, %c0_72] : memref<48x64xbf16, #tpu.memory_space<vmem>>, vector<48x64xbf16>
      %c0_73 = arith.constant 0 : index
      %c0_74 = arith.constant 0 : index
      %c0_75 = arith.constant 0 : index
      %182 = vector.load %arg11[%c0_73, %c0_74, %c0_75] : memref<1x64x64xbf16, #tpu.memory_space<vmem>>, vector<1x64x64xbf16>
      %183 = vector.shape_cast %182 : vector<1x64x64xbf16> to vector<64x64xbf16>
      %cst_76 = arith.constant dense<0.000000e+00> : vector<48x64xf32>
      %184 = tpu.matmul %181, %183, %cst_76 {dimension_numbers = #tpu.dot_dimension_numbers<[1], [0], [0], [1], [0, 0, 1, 1], [], []>} : vector<48x64xbf16>, vector<64x64xbf16>, vector<48x64xf32> -> vector<48x64xf32>
      %c0_77 = arith.constant 0 : index
      %c0_78 = arith.constant 0 : index
      %c0_79 = arith.constant 0 : index
      %185 = vector.load %arg12[%c0_77, %c0_78, %c0_79] : memref<1x1x64xf32, #tpu.memory_space<vmem>>, vector<1x1x64xf32>
      %186 = vector.shape_cast %185 : vector<1x1x64xf32> to vector<1x64xf32>
      %187 = vector.broadcast %186 : vector<1x64xf32> to vector<48x64xf32>
      %188 = arith.addf %184, %187 : vector<48x64xf32>
      %189 = arith.addf %41, %188 : vector<48x64xf32>
      %c0_80 = arith.constant 0 : index
      %c0_81 = arith.constant 0 : index
      %c0_82 = arith.constant 0 : index
      %190 = vector.load %arg13[%c0_80, %c0_81, %c0_82] : memref<1x1x64xf32, #tpu.memory_space<vmem>>, vector<1x1x64xf32>
      %191 = vector.shape_cast %190 : vector<1x1x64xf32> to vector<1x64xf32>
      %c0_83 = arith.constant 0 : index
      %c0_84 = arith.constant 0 : index
      %c0_85 = arith.constant 0 : index
      %192 = vector.load %arg14[%c0_83, %c0_84, %c0_85] : memref<1x1x64xf32, #tpu.memory_space<vmem>>, vector<1x1x64xf32>
      %193 = vector.shape_cast %192 : vector<1x1x64xf32> to vector<1x64xf32>
      %cst_86 = arith.constant dense<0.000000e+00> : vector<48xf32>
      %194 = vector.multi_reduction <add>, %189, %cst_86 [1] : vector<48x64xf32> to vector<48xf32>
      %195 = vector.shape_cast %194 : vector<48xf32> to vector<48x1xf32>
      %cst_87 = arith.constant 6.400000e+01 : f32
      %196 = vector.broadcast %cst_87 : f32 to vector<48x1xf32>
      %197 = arith.divf %195, %196 : vector<48x1xf32>
      %198 = vector.broadcast %197 : vector<48x1xf32> to vector<48x64xf32>
      %199 = arith.subf %189, %198 : vector<48x64xf32>
      %200 = arith.mulf %199, %199 : vector<48x64xf32>
      %cst_88 = arith.constant dense<0.000000e+00> : vector<48xf32>
      %201 = vector.multi_reduction <add>, %200, %cst_88 [1] : vector<48x64xf32> to vector<48xf32>
      %202 = vector.shape_cast %201 : vector<48xf32> to vector<48x1xf32>
      %cst_89 = arith.constant 6.400000e+01 : f32
      %203 = vector.broadcast %cst_89 : f32 to vector<48x1xf32>
      %204 = arith.divf %202, %203 : vector<48x1xf32>
      %205 = vector.broadcast %197 : vector<48x1xf32> to vector<48x64xf32>
      %206 = arith.subf %189, %205 : vector<48x64xf32>
      %cst_90 = arith.constant 9.99999974E-6 : f32
      %207 = vector.broadcast %cst_90 : f32 to vector<48x1xf32>
      %208 = arith.addf %204, %207 : vector<48x1xf32>
      %209 = math.rsqrt %208 : vector<48x1xf32>
      %210 = vector.broadcast %209 : vector<48x1xf32> to vector<48x64xf32>
      %211 = arith.mulf %206, %210 : vector<48x64xf32>
      %212 = vector.broadcast %191 : vector<1x64xf32> to vector<48x64xf32>
      %213 = arith.mulf %211, %212 : vector<48x64xf32>
      %214 = vector.broadcast %193 : vector<1x64xf32> to vector<48x64xf32>
      %215 = arith.addf %213, %214 : vector<48x64xf32>
      %216 = arith.truncf %215 : vector<48x64xf32> to vector<48x64xbf16>
      %c0_91 = arith.constant 0 : index
      %c0_92 = arith.constant 0 : index
      %217 = vector.load %arg27[%c0_91, %c0_92] : memref<48x64xbf16, #tpu.memory_space<vmem>>, vector<48x64xbf16>
      tpu.vector_store %arg27[%c0_91, %c0_92], %216 {strides = array<i32>} : memref<48x64xbf16, #tpu.memory_space<vmem>>, vector<48x64xbf16>,
      %c0_93 = arith.constant 0 : index
      %c0_94 = arith.constant 0 : index
      %c0_95 = arith.constant 0 : index
      %218 = vector.load %arg18[%c0_93, %c0_94, %c0_95] : memref<1x1x64xf32, #tpu.memory_space<vmem>>, vector<1x1x64xf32>
      %219 = vector.shape_cast %218 : vector<1x1x64xf32> to vector<1x64xf32>
      %220 = vector.broadcast %219 : vector<1x64xf32> to vector<48x64xf32>
      %221 = arith.addf %189, %220 : vector<48x64xf32>
      %c0_96 = arith.constant 0 : index
      %c0_97 = arith.constant 0 : index
      %222 = vector.load %arg26[%c0_96, %c0_97] : memref<48x64xf32, #tpu.memory_space<vmem>>, vector<48x64xf32>
      tpu.vector_store %arg26[%c0_96, %c0_97], %221 {strides = array<i32>} : memref<48x64xf32, #tpu.memory_space<vmem>>, vector<48x64xf32>,
    } else {
    }
    %c0 = arith.constant 0 : index
    %c0_4 = arith.constant 0 : index
    %8 = vector.load %arg27[%c0, %c0_4] : memref<48x64xbf16, #tpu.memory_space<vmem>>, vector<48x64xbf16>
    %c0_5 = arith.constant 0 : index
    %c0_6 = arith.constant 0 : index
    %c0_7 = arith.constant 0 : index
    %9 = vector.load %arg15[%c0_5, %c0_6, %c0_7] : memref<1x64x128xbf16, #tpu.memory_space<vmem>>, vector<1x64x128xbf16>
    %10 = vector.shape_cast %9 : vector<1x64x128xbf16> to vector<64x128xbf16>
    %cst = arith.constant dense<0.000000e+00> : vector<48x128xf32>
    %11 = tpu.matmul %8, %10, %cst {dimension_numbers = #tpu.dot_dimension_numbers<[1], [0], [0], [1], [0, 0, 1, 1], [], []>} : vector<48x64xbf16>, vector<64x128xbf16>, vector<48x128xf32> -> vector<48x128xf32>
    %c0_8 = arith.constant 0 : index
    %c0_9 = arith.constant 0 : index
    %c0_10 = arith.constant 0 : index
    %12 = vector.load %arg16[%c0_8, %c0_9, %c0_10] : memref<1x1x128xf32, #tpu.memory_space<vmem>>, vector<1x1x128xf32>
    %13 = vector.shape_cast %12 : vector<1x1x128xf32> to vector<1x128xf32>
    %14 = vector.broadcast %13 : vector<1x128xf32> to vector<48x128xf32>
    %15 = arith.addf %11, %14 : vector<48x128xf32>
    %16 = arith.mulf %15, %15 : vector<48x128xf32>
    %17 = arith.mulf %15, %16 : vector<48x128xf32>
    %cst_11 = arith.constant 4.471500e-02 : f32
    %18 = vector.broadcast %cst_11 : f32 to vector<48x128xf32>
    %19 = arith.mulf %18, %17 : vector<48x128xf32>
    %20 = arith.addf %15, %19 : vector<48x128xf32>
    %cst_12 = arith.constant 0.797884583 : f32
    %21 = vector.broadcast %cst_12 : f32 to vector<48x128xf32>
    %22 = arith.mulf %21, %20 : vector<48x128xf32>
    %23 = math.tanh %22 : vector<48x128xf32>
    %cst_13 = arith.constant 1.000000e+00 : f32
    %24 = vector.broadcast %cst_13 : f32 to vector<48x128xf32>
    %25 = arith.addf %24, %23 : vector<48x128xf32>
    %cst_14 = arith.constant 5.000000e-01 : f32
    %26 = vector.broadcast %cst_14 : f32 to vector<48x128xf32>
    %27 = arith.mulf %26, %25 : vector<48x128xf32>
    %28 = arith.mulf %15, %27 : vector<48x128xf32>
    %c0_15 = arith.constant 0 : index
    %c0_16 = arith.constant 0 : index
    %29 = vector.load %arg26[%c0_15, %c0_16] : memref<48x64xf32, #tpu.memory_space<vmem>>, vector<48x64xf32>
    %30 = arith.truncf %28 : vector<48x128xf32> to vector<48x128xbf16>
    %c0_17 = arith.constant 0 : index
    %c0_18 = arith.constant 0 : index
    %c0_19 = arith.constant 0 : index
    %31 = vector.load %arg17[%c0_17, %c0_18, %c0_19] : memref<1x128x64xbf16, #tpu.memory_space<vmem>>, vector<1x128x64xbf16>
    %32 = vector.shape_cast %31 : vector<1x128x64xbf16> to vector<128x64xbf16>
    %cst_20 = arith.constant dense<0.000000e+00> : vector<48x64xf32>
    %33 = tpu.matmul %30, %32, %cst_20 {dimension_numbers = #tpu.dot_dimension_numbers<[1], [0], [0], [1], [0, 0, 1, 1], [], []>} : vector<48x128xbf16>, vector<128x64xbf16>, vector<48x64xf32> -> vector<48x64xf32>
    %34 = arith.addf %29, %33 : vector<48x64xf32>
    %c0_21 = arith.constant 0 : index
    %c0_22 = arith.constant 0 : index
    %35 = vector.load %arg26[%c0_21, %c0_22] : memref<48x64xf32, #tpu.memory_space<vmem>>, vector<48x64xf32>
    tpu.vector_store %arg26[%c0_21, %c0_22], %34 {strides = array<i32>} : memref<48x64xf32, #tpu.memory_space<vmem>>, vector<48x64xf32>,
    %c1_i32 = arith.constant 1 : i32
    %36 = arith.cmpi eq, %arg1, %c1_i32 : i32
    %c1_i32_23 = arith.constant 1 : i32
    %37 = arith.cmpi eq, %arg2, %c1_i32_23 : i32
    %38 = arith.andi %36, %37 : i1
    %39 = arith.extui %38 : i1 to i32
    %c0_i32_24 = arith.constant 0 : i32
    %40 = arith.cmpi ne, %39, %c0_i32_24 : i32
    scf.if %40 {
      %c0_25 = arith.constant 0 : index
      %c0_26 = arith.constant 0 : index
      %41 = vector.load %arg26[%c0_25, %c0_26] : memref<48x64xf32, #tpu.memory_space<vmem>>, vector<24x64xf32>
      %c0_27 = arith.constant 0 : index
      %c0_28 = arith.constant 0 : index
      %42 = vector.load %arg19[%c0_27, %c0_28] : memref<1x64xf32, #tpu.memory_space<vmem>>, vector<1x64xf32>
      %c0_29 = arith.constant 0 : index
      %c0_30 = arith.constant 0 : index
      %43 = vector.load %arg20[%c0_29, %c0_30] : memref<1x64xf32, #tpu.memory_space<vmem>>, vector<1x64xf32>
      %cst_31 = arith.constant dense<0.000000e+00> : vector<24xf32>
      %44 = vector.multi_reduction <add>, %41, %cst_31 [1] : vector<24x64xf32> to vector<24xf32>
      %45 = vector.shape_cast %44 : vector<24xf32> to vector<24x1xf32>
      %cst_32 = arith.constant 6.400000e+01 : f32
      %46 = vector.broadcast %cst_32 : f32 to vector<24x1xf32>
      %47 = arith.divf %45, %46 : vector<24x1xf32>
      %48 = vector.broadcast %47 : vector<24x1xf32> to vector<24x64xf32>
      %49 = arith.subf %41, %48 : vector<24x64xf32>
      %50 = arith.mulf %49, %49 : vector<24x64xf32>
      %cst_33 = arith.constant dense<0.000000e+00> : vector<24xf32>
      %51 = vector.multi_reduction <add>, %50, %cst_33 [1] : vector<24x64xf32> to vector<24xf32>
      %52 = vector.shape_cast %51 : vector<24xf32> to vector<24x1xf32>
      %cst_34 = arith.constant 6.400000e+01 : f32
      %53 = vector.broadcast %cst_34 : f32 to vector<24x1xf32>
      %54 = arith.divf %52, %53 : vector<24x1xf32>
      %55 = vector.broadcast %47 : vector<24x1xf32> to vector<24x64xf32>
      %56 = arith.subf %41, %55 : vector<24x64xf32>
      %cst_35 = arith.constant 9.99999974E-6 : f32
      %57 = vector.broadcast %cst_35 : f32 to vector<24x1xf32>
      %58 = arith.addf %54, %57 : vector<24x1xf32>
      %59 = math.rsqrt %58 : vector<24x1xf32>
      %60 = vector.broadcast %59 : vector<24x1xf32> to vector<24x64xf32>
      %61 = arith.mulf %56, %60 : vector<24x64xf32>
      %62 = vector.broadcast %42 : vector<1x64xf32> to vector<24x64xf32>
      %63 = arith.mulf %61, %62 : vector<24x64xf32>
      %64 = vector.broadcast %43 : vector<1x64xf32> to vector<24x64xf32>
      %65 = arith.addf %63, %64 : vector<24x64xf32>
      %66 = vector.extract_strided_slice %65 {offsets = [0, 0], sizes = [16, 64], strides = [1, 1]} : vector<24x64xf32> to vector<16x64xf32>
      %67 = arith.truncf %66 : vector<16x64xf32> to vector<16x64xbf16>
      %c0_36 = arith.constant 0 : index
      %c0_37 = arith.constant 0 : index
      %68 = vector.load %arg21[%c0_36, %c0_37] : memref<64x64xbf16, #tpu.memory_space<vmem>>, vector<64x64xbf16>
      %cst_38 = arith.constant dense<0.000000e+00> : vector<16x64xf32>
      %69 = tpu.matmul %67, %68, %cst_38 {dimension_numbers = #tpu.dot_dimension_numbers<[1], [0], [0], [1], [0, 0, 1, 1], [], []>} : vector<16x64xbf16>, vector<64x64xbf16>, vector<16x64xf32> -> vector<16x64xf32>
      %70 = vector.extract_strided_slice %65 {offsets = [16, 0], sizes = [8, 64], strides = [1, 1]} : vector<24x64xf32> to vector<8x64xf32>
      %71 = arith.truncf %70 : vector<8x64xf32> to vector<8x64xbf16>
      %c0_39 = arith.constant 0 : index
      %c0_40 = arith.constant 0 : index
      %72 = vector.load %arg22[%c0_39, %c0_40] : memref<64x64xbf16, #tpu.memory_space<vmem>>, vector<64x64xbf16>
      %cst_41 = arith.constant dense<0.000000e+00> : vector<8x64xf32>
      %73 = tpu.matmul %71, %72, %cst_41 {dimension_numbers = #tpu.dot_dimension_numbers<[1], [0], [0], [1], [0, 0, 1, 1], [], []>} : vector<8x64xbf16>, vector<64x64xbf16>, vector<8x64xf32> -> vector<8x64xf32>
      %74 = arith.mulf %69, %69 : vector<16x64xf32>
      %cst_42 = arith.constant dense<0.000000e+00> : vector<16xf32>
      %75 = vector.multi_reduction <add>, %74, %cst_42 [1] : vector<16x64xf32> to vector<16xf32>
      %76 = vector.shape_cast %75 : vector<16xf32> to vector<16x1xf32>
      %77 = math.rsqrt %76 : vector<16x1xf32>
      %78 = vector.broadcast %77 : vector<16x1xf32> to vector<16x64xf32>
      %79 = arith.mulf %69, %78 : vector<16x64xf32>
      %80 = arith.mulf %73, %73 : vector<8x64xf32>
      %cst_43 = arith.constant dense<0.000000e+00> : vector<8xf32>
      %81 = vector.multi_reduction <add>, %80, %cst_43 [1] : vector<8x64xf32> to vector<8xf32>
      %82 = vector.shape_cast %81 : vector<8xf32> to vector<8x1xf32>
      %83 = math.rsqrt %82 : vector<8x1xf32>
      %84 = vector.broadcast %83 : vector<8x1xf32> to vector<8x64xf32>
      %85 = arith.mulf %73, %84 : vector<8x64xf32>
      %86 = arith.truncf %85 : vector<8x64xf32> to vector<8x64xbf16>
      %87 = arith.truncf %79 : vector<16x64xf32> to vector<16x64xbf16>
      %cst_44 = arith.constant dense<0.000000e+00> : vector<8x16xf32>
      %88 = tpu.matmul %86, %87, %cst_44 {dimension_numbers = #tpu.dot_dimension_numbers<[1], [1], [0], [0], [0, 0, 1, 0], [], []>} : vector<8x64xbf16>, vector<16x64xbf16>, vector<8x16xf32> -> vector<8x16xf32>
      %cst_45 = arith.constant 5.000000e-01 : f32
      %89 = vector.broadcast %cst_45 : f32 to vector<8x16xf32>
      %90 = arith.mulf %89, %88 : vector<8x16xf32>
      %cst_46 = arith.constant dense<0.000000e+00> : vector<16xf32>
      %91 = vector.multi_reduction <add>, %90, %cst_46 [0] : vector<8x16xf32> to vector<16xf32>
      %92 = vector.shape_cast %91 : vector<16xf32> to vector<1x16xf32>
      %cst_47 = arith.constant 8.000000e+00 : f32
      %93 = vector.broadcast %cst_47 : f32 to vector<1x16xf32>
      %94 = arith.divf %92, %93 : vector<1x16xf32>
      %95 = vector.broadcast %94 : vector<1x16xf32> to vector<8x16xf32>
      %96 = arith.subf %90, %95 : vector<8x16xf32>
      %97 = arith.mulf %96, %96 : vector<8x16xf32>
      %cst_48 = arith.constant dense<0.000000e+00> : vector<16xf32>
      %98 = vector.multi_reduction <add>, %97, %cst_48 [0] : vector<8x16xf32> to vector<16xf32>
      %99 = vector.shape_cast %98 : vector<16xf32> to vector<1x16xf32>
      %cst_49 = arith.constant 8.000000e+00 : f32
      %100 = vector.broadcast %cst_49 : f32 to vector<1x16xf32>
      %101 = arith.divf %99, %100 : vector<1x16xf32>
      %102 = vector.broadcast %94 : vector<1x16xf32> to vector<8x16xf32>
      %103 = arith.subf %90, %102 : vector<8x16xf32>
      %cst_50 = arith.constant 9.99999974E-6 : f32
      %104 = vector.broadcast %cst_50 : f32 to vector<1x16xf32>
      %105 = arith.addf %101, %104 : vector<1x16xf32>
      %106 = math.rsqrt %105 : vector<1x16xf32>
      %107 = vector.broadcast %106 : vector<1x16xf32> to vector<8x16xf32>
      %108 = arith.mulf %103, %107 : vector<8x16xf32>
      %c0_51 = arith.constant 0 : index
      %c0_52 = arith.constant 0 : index
      %109 = vector.load %arg23[%c0_51, %c0_52] : memref<8x1xf32, #tpu.memory_space<vmem>>, vector<8x1xf32>
      %110 = vector.broadcast %109 : vector<8x1xf32> to vector<8x16xf32>
      %111 = arith.mulf %108, %110 : vector<8x16xf32>
      %c0_53 = arith.constant 0 : index
      %c0_54 = arith.constant 0 : index
      %112 = vector.load %arg24[%c0_53, %c0_54] : memref<8x1xf32, #tpu.memory_space<vmem>>, vector<8x1xf32>
      %113 = vector.broadcast %112 : vector<8x1xf32> to vector<8x16xf32>
      %114 = arith.addf %111, %113 : vector<8x16xf32>
      %c0_55 = arith.constant 0 : index
      %c0_56 = arith.constant 0 : index
      %c0_57 = arith.constant 0 : index
      %115 = vector.load %arg25[%c0_55, %c0_56, %c0_57] : memref<2x8x16xf32, #tpu.memory_space<vmem>>, vector<1x8x16xf32>
      %116 = vector.shape_cast %115 : vector<1x8x16xf32> to vector<8x16xf32>
      %117 = vector.shape_cast %114 : vector<8x16xf32> to vector<1x8x16xf32>
      tpu.vector_store %arg25[%c0_55, %c0_56, %c0_57], %117 {strides = array<i32>} : memref<2x8x16xf32, #tpu.memory_space<vmem>>, vector<1x8x16xf32>,
      %c24 = arith.constant 24 : index
      %c0_58 = arith.constant 0 : index
      %118 = vector.load %arg26[%c24, %c0_58] : memref<48x64xf32, #tpu.memory_space<vmem>>, vector<24x64xf32>
      %c0_59 = arith.constant 0 : index
      %c0_60 = arith.constant 0 : index
      %119 = vector.load %arg19[%c0_59, %c0_60] : memref<1x64xf32, #tpu.memory_space<vmem>>, vector<1x64xf32>
      %c0_61 = arith.constant 0 : index
      %c0_62 = arith.constant 0 : index
      %120 = vector.load %arg20[%c0_61, %c0_62] : memref<1x64xf32, #tpu.memory_space<vmem>>, vector<1x64xf32>
      %cst_63 = arith.constant dense<0.000000e+00> : vector<24xf32>
      %121 = vector.multi_reduction <add>, %118, %cst_63 [1] : vector<24x64xf32> to vector<24xf32>
      %122 = vector.shape_cast %121 : vector<24xf32> to vector<24x1xf32>
      %cst_64 = arith.constant 6.400000e+01 : f32
      %123 = vector.broadcast %cst_64 : f32 to vector<24x1xf32>
      %124 = arith.divf %122, %123 : vector<24x1xf32>
      %125 = vector.broadcast %124 : vector<24x1xf32> to vector<24x64xf32>
      %126 = arith.subf %118, %125 : vector<24x64xf32>
      %127 = arith.mulf %126, %126 : vector<24x64xf32>
      %cst_65 = arith.constant dense<0.000000e+00> : vector<24xf32>
      %128 = vector.multi_reduction <add>, %127, %cst_65 [1] : vector<24x64xf32> to vector<24xf32>
      %129 = vector.shape_cast %128 : vector<24xf32> to vector<24x1xf32>
      %cst_66 = arith.constant 6.400000e+01 : f32
      %130 = vector.broadcast %cst_66 : f32 to vector<24x1xf32>
      %131 = arith.divf %129, %130 : vector<24x1xf32>
      %132 = vector.broadcast %124 : vector<24x1xf32> to vector<24x64xf32>
      %133 = arith.subf %118, %132 : vector<24x64xf32>
      %cst_67 = arith.constant 9.99999974E-6 : f32
      %134 = vector.broadcast %cst_67 : f32 to vector<24x1xf32>
      %135 = arith.addf %131, %134 : vector<24x1xf32>
      %136 = math.rsqrt %135 : vector<24x1xf32>
      %137 = vector.broadcast %136 : vector<24x1xf32> to vector<24x64xf32>
      %138 = arith.mulf %133, %137 : vector<24x64xf32>
      %139 = vector.broadcast %119 : vector<1x64xf32> to vector<24x64xf32>
      %140 = arith.mulf %138, %139 : vector<24x64xf32>
      %141 = vector.broadcast %120 : vector<1x64xf32> to vector<24x64xf32>
      %142 = arith.addf %140, %141 : vector<24x64xf32>
      %143 = vector.extract_strided_slice %142 {offsets = [0, 0], sizes = [16, 64], strides = [1, 1]} : vector<24x64xf32> to vector<16x64xf32>
      %144 = arith.truncf %143 : vector<16x64xf32> to vector<16x64xbf16>
      %c0_68 = arith.constant 0 : index
      %c0_69 = arith.constant 0 : index
      %145 = vector.load %arg21[%c0_68, %c0_69] : memref<64x64xbf16, #tpu.memory_space<vmem>>, vector<64x64xbf16>
      %cst_70 = arith.constant dense<0.000000e+00> : vector<16x64xf32>
      %146 = tpu.matmul %144, %145, %cst_70 {dimension_numbers = #tpu.dot_dimension_numbers<[1], [0], [0], [1], [0, 0, 1, 1], [], []>} : vector<16x64xbf16>, vector<64x64xbf16>, vector<16x64xf32> -> vector<16x64xf32>
      %147 = vector.extract_strided_slice %142 {offsets = [16, 0], sizes = [8, 64], strides = [1, 1]} : vector<24x64xf32> to vector<8x64xf32>
      %148 = arith.truncf %147 : vector<8x64xf32> to vector<8x64xbf16>
      %c0_71 = arith.constant 0 : index
      %c0_72 = arith.constant 0 : index
      %149 = vector.load %arg22[%c0_71, %c0_72] : memref<64x64xbf16, #tpu.memory_space<vmem>>, vector<64x64xbf16>
      %cst_73 = arith.constant dense<0.000000e+00> : vector<8x64xf32>
      %150 = tpu.matmul %148, %149, %cst_73 {dimension_numbers = #tpu.dot_dimension_numbers<[1], [0], [0], [1], [0, 0, 1, 1], [], []>} : vector<8x64xbf16>, vector<64x64xbf16>, vector<8x64xf32> -> vector<8x64xf32>
      %151 = arith.mulf %146, %146 : vector<16x64xf32>
      %cst_74 = arith.constant dense<0.000000e+00> : vector<16xf32>
      %152 = vector.multi_reduction <add>, %151, %cst_74 [1] : vector<16x64xf32> to vector<16xf32>
      %153 = vector.shape_cast %152 : vector<16xf32> to vector<16x1xf32>
      %154 = math.rsqrt %153 : vector<16x1xf32>
      %155 = vector.broadcast %154 : vector<16x1xf32> to vector<16x64xf32>
      %156 = arith.mulf %146, %155 : vector<16x64xf32>
      %157 = arith.mulf %150, %150 : vector<8x64xf32>
      %cst_75 = arith.constant dense<0.000000e+00> : vector<8xf32>
      %158 = vector.multi_reduction <add>, %157, %cst_75 [1] : vector<8x64xf32> to vector<8xf32>
      %159 = vector.shape_cast %158 : vector<8xf32> to vector<8x1xf32>
      %160 = math.rsqrt %159 : vector<8x1xf32>
      %161 = vector.broadcast %160 : vector<8x1xf32> to vector<8x64xf32>
      %162 = arith.mulf %150, %161 : vector<8x64xf32>
      %163 = arith.truncf %162 : vector<8x64xf32> to vector<8x64xbf16>
      %164 = arith.truncf %156 : vector<16x64xf32> to vector<16x64xbf16>
      %cst_76 = arith.constant dense<0.000000e+00> : vector<8x16xf32>
      %165 = tpu.matmul %163, %164, %cst_76 {dimension_numbers = #tpu.dot_dimension_numbers<[1], [1], [0], [0], [0, 0, 1, 0], [], []>} : vector<8x64xbf16>, vector<16x64xbf16>, vector<8x16xf32> -> vector<8x16xf32>
      %cst_77 = arith.constant 5.000000e-01 : f32
      %166 = vector.broadcast %cst_77 : f32 to vector<8x16xf32>
      %167 = arith.mulf %166, %165 : vector<8x16xf32>
      %cst_78 = arith.constant dense<0.000000e+00> : vector<16xf32>
      %168 = vector.multi_reduction <add>, %167, %cst_78 [0] : vector<8x16xf32> to vector<16xf32>
      %169 = vector.shape_cast %168 : vector<16xf32> to vector<1x16xf32>
      %cst_79 = arith.constant 8.000000e+00 : f32
      %170 = vector.broadcast %cst_79 : f32 to vector<1x16xf32>
      %171 = arith.divf %169, %170 : vector<1x16xf32>
      %172 = vector.broadcast %171 : vector<1x16xf32> to vector<8x16xf32>
      %173 = arith.subf %167, %172 : vector<8x16xf32>
      %174 = arith.mulf %173, %173 : vector<8x16xf32>
      %cst_80 = arith.constant dense<0.000000e+00> : vector<16xf32>
      %175 = vector.multi_reduction <add>, %174, %cst_80 [0] : vector<8x16xf32> to vector<16xf32>
      %176 = vector.shape_cast %175 : vector<16xf32> to vector<1x16xf32>
      %cst_81 = arith.constant 8.000000e+00 : f32
      %177 = vector.broadcast %cst_81 : f32 to vector<1x16xf32>
      %178 = arith.divf %176, %177 : vector<1x16xf32>
      %179 = vector.broadcast %171 : vector<1x16xf32> to vector<8x16xf32>
      %180 = arith.subf %167, %179 : vector<8x16xf32>
      %cst_82 = arith.constant 9.99999974E-6 : f32
      %181 = vector.broadcast %cst_82 : f32 to vector<1x16xf32>
      %182 = arith.addf %178, %181 : vector<1x16xf32>
      %183 = math.rsqrt %182 : vector<1x16xf32>
      %184 = vector.broadcast %183 : vector<1x16xf32> to vector<8x16xf32>
      %185 = arith.mulf %180, %184 : vector<8x16xf32>
      %c0_83 = arith.constant 0 : index
      %c0_84 = arith.constant 0 : index
      %186 = vector.load %arg23[%c0_83, %c0_84] : memref<8x1xf32, #tpu.memory_space<vmem>>, vector<8x1xf32>
      %187 = vector.broadcast %186 : vector<8x1xf32> to vector<8x16xf32>
      %188 = arith.mulf %185, %187 : vector<8x16xf32>
      %c0_85 = arith.constant 0 : index
      %c0_86 = arith.constant 0 : index
      %189 = vector.load %arg24[%c0_85, %c0_86] : memref<8x1xf32, #tpu.memory_space<vmem>>, vector<8x1xf32>
      %190 = vector.broadcast %189 : vector<8x1xf32> to vector<8x16xf32>
      %191 = arith.addf %188, %190 : vector<8x16xf32>
      %c1 = arith.constant 1 : index
      %c0_87 = arith.constant 0 : index
      %c0_88 = arith.constant 0 : index
      %192 = vector.load %arg25[%c1, %c0_87, %c0_88] : memref<2x8x16xf32, #tpu.memory_space<vmem>>, vector<1x8x16xf32>
      %193 = vector.shape_cast %192 : vector<1x8x16xf32> to vector<8x16xf32>
      %194 = vector.shape_cast %191 : vector<8x16xf32> to vector<1x8x16xf32>
      tpu.vector_store %arg25[%c1, %c0_87, %c0_88], %194 {strides = array<i32>} : memref<2x8x16xf32, #tpu.memory_space<vmem>>, vector<1x8x16xf32>,
    } else {
    }
    return
  }
  func.func @transform_0(%arg0: i32, %arg1: i32, %arg2: i32) -> (i32, i32, i32) {
    %c0_i32 = arith.constant 0 : i32
    %c0_i32_0 = arith.constant 0 : i32
    %c0_i32_1 = arith.constant 0 : i32
    return %arg0, %c0_i32, %c0_i32_0 : i32, i32, i32
  }
  func.func @transform_1(%arg0: i32, %arg1: i32, %arg2: i32) -> (i32, i32) {
    %c0_i32 = arith.constant 0 : i32
    %c0_i32_0 = arith.constant 0 : i32
    %c0_i32_1 = arith.constant 0 : i32
    return %c0_i32, %c0_i32_0 : i32, i32
  }
  func.func @transform_2(%arg0: i32, %arg1: i32, %arg2: i32) -> (i32, i32) {
    %c0_i32 = arith.constant 0 : i32
    %c0_i32_0 = arith.constant 0 : i32
    %c0_i32_1 = arith.constant 0 : i32
    return %c0_i32, %c0_i32_0 : i32, i32
  }
  func.func @transform_3(%arg0: i32, %arg1: i32, %arg2: i32) -> (i32, i32) {
    %c0_i32 = arith.constant 0 : i32
    %c0_i32_0 = arith.constant 0 : i32
    %c0_i32_1 = arith.constant 0 : i32
    return %c0_i32, %c0_i32_0 : i32, i32
  }
  func.func @transform_4(%arg0: i32, %arg1: i32, %arg2: i32) -> (i32, i32, i32) {
    %c0_i32 = arith.constant 0 : i32
    %c0_i32_0 = arith.constant 0 : i32
    %c0_i32_1 = arith.constant 0 : i32
    return %arg1, %c0_i32, %c0_i32_0 : i32, i32, i32
  }
  func.func @transform_5(%arg0: i32, %arg1: i32, %arg2: i32) -> (i32, i32, i32) {
    %c0_i32 = arith.constant 0 : i32
    %c0_i32_0 = arith.constant 0 : i32
    %c0_i32_1 = arith.constant 0 : i32
    return %arg1, %c0_i32, %c0_i32_0 : i32, i32, i32
  }
  func.func @transform_6(%arg0: i32, %arg1: i32, %arg2: i32) -> (i32, i32, i32) {
    %c0_i32 = arith.constant 0 : i32
    %c0_i32_0 = arith.constant 0 : i32
    %c0_i32_1 = arith.constant 0 : i32
    return %arg1, %c0_i32, %c0_i32_0 : i32, i32, i32
  }
  func.func @transform_7(%arg0: i32, %arg1: i32, %arg2: i32) -> (i32, i32, i32) {
    %c0_i32 = arith.constant 0 : i32
    %c0_i32_0 = arith.constant 0 : i32
    %c0_i32_1 = arith.constant 0 : i32
    return %arg1, %c0_i32, %c0_i32_0 : i32, i32, i32
  }
  func.func @transform_8(%arg0: i32, %arg1: i32, %arg2: i32) -> (i32, i32, i32) {
    %c0_i32 = arith.constant 0 : i32
    %c0_i32_0 = arith.constant 0 : i32
    %c0_i32_1 = arith.constant 0 : i32
    return %arg1, %c0_i32, %c0_i32_0 : i32, i32, i32
  }
  func.func @transform_9(%arg0: i32, %arg1: i32, %arg2: i32) -> (i32, i32, i32) {
    %c0_i32 = arith.constant 0 : i32
    %c0_i32_0 = arith.constant 0 : i32
    %c0_i32_1 = arith.constant 0 : i32
    return %arg1, %c0_i32, %c0_i32_0 : i32, i32, i32
  }
  func.func @transform_10(%arg0: i32, %arg1: i32, %arg2: i32) -> (i32, i32, i32) {
    %c0_i32 = arith.constant 0 : i32
    %c0_i32_0 = arith.constant 0 : i32
    %c0_i32_1 = arith.constant 0 : i32
    return %arg1, %c0_i32, %c0_i32_0 : i32, i32, i32
  }
  func.func @transform_11(%arg0: i32, %arg1: i32, %arg2: i32) -> (i32, i32, i32) {
    %c0_i32 = arith.constant 0 : i32
    %c0_i32_0 = arith.constant 0 : i32
    %c0_i32_1 = arith.constant 0 : i32
    return %arg1, %c0_i32, %c0_i32_0 : i32, i32, i32
  }
  func.func @transform_12(%arg0: i32, %arg1: i32, %arg2: i32) -> (i32, i32, i32) {
    %c0_i32 = arith.constant 0 : i32
    %c0_i32_0 = arith.constant 0 : i32
    return %arg1, %c0_i32, %arg2 : i32, i32, i32
  }
  func.func @transform_13(%arg0: i32, %arg1: i32, %arg2: i32) -> (i32, i32, i32) {
    %c0_i32 = arith.constant 0 : i32
    %c0_i32_0 = arith.constant 0 : i32
    return %arg1, %c0_i32, %arg2 : i32, i32, i32
  }
  func.func @transform_14(%arg0: i32, %arg1: i32, %arg2: i32) -> (i32, i32, i32) {
    %c0_i32 = arith.constant 0 : i32
    %c0_i32_0 = arith.constant 0 : i32
    return %arg1, %arg2, %c0_i32 : i32, i32, i32
  }
  func.func @transform_15(%arg0: i32, %arg1: i32, %arg2: i32) -> (i32, i32, i32) {
    %c0_i32 = arith.constant 0 : i32
    %c0_i32_0 = arith.constant 0 : i32
    %c0_i32_1 = arith.constant 0 : i32
    return %arg1, %c0_i32, %c0_i32_0 : i32, i32, i32
  }
  func.func @transform_16(%arg0: i32, %arg1: i32, %arg2: i32) -> (i32, i32) {
    %c0_i32 = arith.constant 0 : i32
    %c0_i32_0 = arith.constant 0 : i32
    %c0_i32_1 = arith.constant 0 : i32
    return %c0_i32, %c0_i32_0 : i32, i32
  }
  func.func @transform_17(%arg0: i32, %arg1: i32, %arg2: i32) -> (i32, i32) {
    %c0_i32 = arith.constant 0 : i32
    %c0_i32_0 = arith.constant 0 : i32
    %c0_i32_1 = arith.constant 0 : i32
    return %c0_i32, %c0_i32_0 : i32, i32
  }
  func.func @transform_18(%arg0: i32, %arg1: i32, %arg2: i32) -> (i32, i32) {
    %c0_i32 = arith.constant 0 : i32
    %c0_i32_0 = arith.constant 0 : i32
    %c0_i32_1 = arith.constant 0 : i32
    return %c0_i32, %c0_i32_0 : i32, i32
  }
  func.func @transform_19(%arg0: i32, %arg1: i32, %arg2: i32) -> (i32, i32) {
    %c0_i32 = arith.constant 0 : i32
    %c0_i32_0 = arith.constant 0 : i32
    %c0_i32_1 = arith.constant 0 : i32
    return %c0_i32, %c0_i32_0 : i32, i32
  }
  func.func @transform_20(%arg0: i32, %arg1: i32, %arg2: i32) -> (i32, i32) {
    %c0_i32 = arith.constant 0 : i32
    %c0_i32_0 = arith.constant 0 : i32
    %c0_i32_1 = arith.constant 0 : i32
    return %c0_i32, %c0_i32_0 : i32, i32
  }
  func.func @transform_21(%arg0: i32, %arg1: i32, %arg2: i32) -> (i32, i32) {
    %c0_i32 = arith.constant 0 : i32
    %c0_i32_0 = arith.constant 0 : i32
    %c0_i32_1 = arith.constant 0 : i32
    return %c0_i32, %c0_i32_0 : i32, i32
  }
  func.func @transform_22(%arg0: i32, %arg1: i32, %arg2: i32) -> (i32, i32, i32) {
    %c0_i32 = arith.constant 0 : i32
    %c0_i32_0 = arith.constant 0 : i32
    %c0_i32_1 = arith.constant 0 : i32
    return %arg0, %c0_i32, %c0_i32_0 : i32, i32, i32
  }
}

</mosaic_0001>

<llo_original>
// kernel: tpu_custom_call.1
$region0: #{tpu_custom_call.1}
  #allocation0 [shape = 'u32[]', space=smem, size = 0x4, offset = 0x4, fixed_abs, tag = 'smem constant byte address 0x4 - core index']
  #allocation1 [shape = 'u32[144,128]{1,0:T(1,128)}', space=vmem, size = 0x12000, scoped, tag = 'internal scratch']
  #allocation2 [shape = 'f32[48,64]{1,0:T(8,128)}', space=vmem, size = 0x6000, scoped, tag = 'scratch operand']
  #allocation3 [shape = 'bf16[48,64]{1,0:T(16,128)(2,1)}', space=vmem, size = 0x3000, scoped, tag = 'scratch operand']
  %s0 = inlined_call_operand.vmem [shape: bf16[2,16,32], index: 0, kind: input, shape index: {}]
  %s1 = inlined_call_operand.hbm [shape: f32[8,64], index: 1, kind: input, shape index: {}]
  %s2 = inlined_call_operand.hbm [shape: bf16[32,64], index: 2, kind: input, shape index: {}]
  %s3 = inlined_call_operand.vmem [shape: f32[1,64], index: 3, kind: input, shape index: {}]
  %s4 = inlined_call_operand.vmem [shape: f32[2,1,64], index: 4, kind: input, shape index: {}]
  %s5 = inlined_call_operand.vmem [shape: f32[2,1,64], index: 5, kind: input, shape index: {}]
  %s6 = inlined_call_operand.vmem [shape: bf16[2,64,192], index: 6, kind: input, shape index: {}]
  %s7 = inlined_call_operand.vmem [shape: f32[2,1,192], index: 7, kind: input, shape index: {}]
  %s8 = inlined_call_operand.vmem [shape: bf16[2,64,64], index: 8, kind: input, shape index: {}]
  %s9 = inlined_call_operand.vmem [shape: f32[2,1,64], index: 9, kind: input, shape index: {}]
  %s10 = inlined_call_operand.vmem [shape: f32[2,1,64], index: 10, kind: input, shape index: {}]
  %s11 = inlined_call_operand.vmem [shape: f32[2,1,64], index: 11, kind: input, shape index: {}]
  %s12 = inlined_call_operand.vmem [shape: bf16[2,64,256], index: 12, kind: input, shape index: {}]
  %s13 = inlined_call_operand.vmem [shape: f32[2,1,256], index: 13, kind: input, shape index: {}]
  %s14 = inlined_call_operand.vmem [shape: bf16[2,256,64], index: 14, kind: input, shape index: {}]
  %s15 = inlined_call_operand.vmem [shape: f32[2,1,64], index: 15, kind: input, shape index: {}]
  %s16 = inlined_call_operand.vmem [shape: f32[1,64], index: 16, kind: input, shape index: {}]
  %s17 = inlined_call_operand.vmem [shape: f32[1,64], index: 17, kind: input, shape index: {}]
  %s18 = inlined_call_operand.vmem [shape: bf16[64,64], index: 18, kind: input, shape index: {}]
  %s19 = inlined_call_operand.vmem [shape: bf16[64,64], index: 19, kind: input, shape index: {}]
  %s20 = inlined_call_operand.vmem [shape: f32[8,1], index: 20, kind: input, shape index: {}]
  %s21 = inlined_call_operand.vmem [shape: f32[8,1], index: 21, kind: input, shape index: {}]
  %s22 = inlined_call_operand.hbm [shape: f32[2,8,16], index: 22, kind: output, shape index: {}]
  %s23 = sld [smem:[#allocation0]]
  $region182: #{tpu_custom_call.1} parent=0
    _
  %s25 = ssub.s32 1, %s23
  %s26 = scalar_select 0, %s25, %s23
  $region1: #{tpu_custom_call.1} parent=0
    #allocation4 [shape = 'u8[4096]{0}', space=vmem, size = 0x1000, scoped, tag = 'input window, operand 1, single buffered']
    #allocation5 [shape = 's32[2]{0}', space=sflag, size = 0x8, scoped, tag = 'scoped memory for tpu_custom_call.1']
    #allocation6 [shape = 's32[2]{0}', space=sflag, size = 0x8, scoped, tag = 'scoped memory for tpu_custom_call.1']
    #allocation7 [shape = 'u8[8192]{0}', space=vmem, size = 0x2000, scoped, tag = 'input window, operand 2, single buffered']
    #allocation8 [shape = 's32[1]{0}', space=sflag, size = 0x4, scoped, tag = 'scoped memory for tpu_custom_call.1']
    #allocation9 [shape = 'u8[32768]{0}', space=vmem, size = 0x8000, scoped, tag = 'input window, operand 12']
    #allocation10 [shape = 'u8[8192]{0}', space=vmem, size = 0x2000, scoped, tag = 'output window, operand 0, single buffered']
    %27 = vsyncpa [#allocation5], 0
    %28 = vsyncpa [#allocation8], 0
    %29 = vsyncpa [#allocation6], 0
    loop: start=0, step=1, limit=6
    $region2: #{tpu_custom_call.1} parent=1 // loop_pre_header
      _
    $region3: #{tpu_custom_call.1} parent=1 // loop_header
      %s31 = sphi 0, %s35
      %p32 = scmp.ge.s32.totalorder %s31, 6
      %s38 = sphi 0, %s57
      %s39 = sphi 0, %s53
      %s40 = sphi 0, %s49
      %s41 = sphi 0, %s38
      %s42 = sphi 0, %s39
      %s43 = sphi 0, %s40
      %s44 = sphi 0, %s41
      %s45 = sphi 0, %s42
      %s46 = sphi 0, %s43
      %s60 = sphi 0, %s62
      %s63 = sphi 0, %s60
      %s64 = sphi 0, %s63
      %s80 = sphi 0, %s64
      %s84 = sphi 0, %s84
      %s86 = sphi 0, %s84
      %s87 = sphi 0, %s86
      %s101 = sphi 0, %s87
      %s105 = sphi 0, %s105
      %s107 = sphi 0, %s105
      %s108 = sphi 0, %s107
      %s122 = sphi 0, %s108
      %s126 = sphi 0, %s126
      %s128 = sphi 0, %s126
      %s129 = sphi 0, %s128
      %s143 = sphi 0, %s129
      %s149 = sphi 0, %s151
      %s152 = sphi 0, %s149
      %s153 = sphi 0, %s152
      %s169 = sphi 0, %s153
      %s175 = sphi 0, %s177
      %s178 = sphi 0, %s175
      %s179 = sphi 0, %s178
      %s195 = sphi 0, %s179
      %s201 = sphi 0, %s203
      %s204 = sphi 0, %s201
      %s205 = sphi 0, %s204
      %s221 = sphi 0, %s205
      %s227 = sphi 0, %s229
      %s230 = sphi 0, %s227
      %s231 = sphi 0, %s230
      %s247 = sphi 0, %s231
      %s253 = sphi 0, %s255
      %s256 = sphi 0, %s253
      %s257 = sphi 0, %s256
      %s273 = sphi 0, %s257
      %s279 = sphi 0, %s281
      %s282 = sphi 0, %s279
      %s283 = sphi 0, %s282
      %s299 = sphi 0, %s283
      %s305 = sphi 0, %s307
      %s308 = sphi 0, %s305
      %s309 = sphi 0, %s308
      %s325 = sphi 0, %s309
      %s331 = sphi 0, %s333
      %s334 = sphi 0, %s331
      %s335 = sphi 0, %s334
      %s351 = sphi 0, %s335
      %s359 = sphi 0, %s361
      %s362 = sphi 0, %s359
      %s363 = sphi 0, %s362
      %s379 = sphi 0, %s363
      %s387 = sphi 0, %s389
      %s390 = sphi 0, %s387
      %s391 = sphi 0, %s390
      %s407 = sphi 0, %s391
      %s415 = sphi 0, %s417
      %s418 = sphi 0, %s415
      %s419 = sphi 0, %s418
      %s435 = sphi 0, %s419
      %s441 = sphi 0, %s443
      %s444 = sphi 0, %s441
      %s445 = sphi 0, %s444
      %s461 = sphi 0, %s445
      %s465 = sphi 0, %s465
      %s467 = sphi 0, %s465
      %s468 = sphi 0, %s467
      %s482 = sphi 0, %s468
      %s486 = sphi 0, %s486
      %s488 = sphi 0, %s486
      %s489 = sphi 0, %s488
      %s503 = sphi 0, %s489
      %s507 = sphi 0, %s507
      %s509 = sphi 0, %s507
      %s510 = sphi 0, %s509
      %s524 = sphi 0, %s510
      %s528 = sphi 0, %s528
      %s530 = sphi 0, %s528
      %s531 = sphi 0, %s530
      %s545 = sphi 0, %s531
      %s549 = sphi 0, %s549
      %s551 = sphi 0, %s549
      %s552 = sphi 0, %s551
      %s566 = sphi 0, %s552
      %s570 = sphi 0, %s570
      %s572 = sphi 0, %s570
      %s573 = sphi 0, %s572
      %s587 = sphi 0, %s573
      %s593 = sphi 0, %s595
      %s596 = sphi 0, %s593
      %s597 = sphi 0, %s596
      %s613 = sphi 0, %s597
    $region4: #{tpu_custom_call.1} parent=1 // loop_header_branch
      %34 = sbr.rel (%p32) target = $region8
    $region5: #{tpu_custom_call.1} parent=1 // loop_body
      %s36 = ssub.s32 %s31, 1
      %s37 = ssub.s32 %s31, 2
      %s47 = sadd.s32 1, %s40
      %p48 = scmp.ge.s32.totalorder %s47, 2
      %s49 = scalar_select %p48, 0, %s47
      %s50 = sadd.s32 1, %s39
      %s51 = scalar_select %p48, %s50, %s39
      %p52 = scmp.ge.s32.totalorder %s51, 2
      %s53 = scalar_select %p52, 0, %s51
      %s54 = sadd.s32 1, %s38
      %s55 = scalar_select %p52, %s54, %s38
      %p56 = scmp.ge.s32.totalorder %s55, 1
      %s57 = scalar_select %p56, 0, %s55
      %s58 = ssub.s32 %s38, %s57
      %p59 = scmp.eq.s32.totalorder %s58, 0
      %s61 = sadd.s32 %s60, 1
      %s62 = scalar_select %p59, %s60, %s61
      %p65 = pneg %p59
      %p66 = scmp.eq.s32.totalorder %s31, 3
      %p67 = por %p65, %p66
      %p68 = scmp.ne.s32.totalorder %s60, %s63
      %p69 = scmp.eq.s32.totalorder %s31, 0
      %p70 = por %p68, %p69
      %p71 = scmp.ne.s32.totalorder %s60, %s63
      %p72 = scmp.eq.s32.totalorder %s36, 3
      %p73 = por %p71, %p72
      %p74 = scmp.ne.s32.totalorder %s63, %s64
      %p75 = scmp.eq.s32.totalorder %s36, 0
      %p76 = por %p74, %p75
      %p77 = scmp.ne.s32.totalorder %s63, %s64
      %p78 = scmp.eq.s32.totalorder %s37, 3
      %p79 = por %p77, %p78
      %p81 = scmp.ne.s32.totalorder %s64, %s80
      %p82 = scmp.eq.s32.totalorder %s37, 0
      %p83 = por %p81, %p82
      %s85 = sadd.s32 %s84, 1
      %p88 = scmp.eq.s32.totalorder %s31, 3
      %p89 = scmp.ne.s32.totalorder %s84, %s86
      %p90 = scmp.eq.s32.totalorder %s31, 0
      %p91 = por %p89, %p90
      %p92 = scmp.ne.s32.totalorder %s84, %s86
      %p93 = scmp.eq.s32.totalorder %s36, 3
      %p94 = por %p92, %p93
      %p95 = scmp.ne.s32.totalorder %s86, %s87
      %p96 = scmp.eq.s32.totalorder %s36, 0
      %p97 = por %p95, %p96
      %p98 = scmp.ne.s32.totalorder %s86, %s87
      %p99 = scmp.eq.s32.totalorder %s37, 3
      %p100 = por %p98, %p99
      %p102 = scmp.ne.s32.totalorder %s87, %s101
      %p103 = scmp.eq.s32.totalorder %s37, 0
      %p104 = por %p102, %p103
      %s106 = sadd.s32 %s105, 1
      %p109 = scmp.eq.s32.totalorder %s31, 3
      %p110 = scmp.ne.s32.totalorder %s105, %s107
      %p111 = scmp.eq.s32.totalorder %s31, 0
      %p112 = por %p110, %p111
      %p113 = scmp.ne.s32.totalorder %s105, %s107
      %p114 = scmp.eq.s32.totalorder %s36, 3
      %p115 = por %p113, %p114
      %p116 = scmp.ne.s32.totalorder %s107, %s108
      %p117 = scmp.eq.s32.totalorder %s36, 0
      %p118 = por %p116, %p117
      %p119 = scmp.ne.s32.totalorder %s107, %s108
      %p120 = scmp.eq.s32.totalorder %s37, 3
      %p121 = por %p119, %p120
      %p123 = scmp.ne.s32.totalorder %s108, %s122
      %p124 = scmp.eq.s32.totalorder %s37, 0
      %p125 = por %p123, %p124
      %s127 = sadd.s32 %s126, 1
      %p130 = scmp.eq.s32.totalorder %s31, 3
      %p131 = scmp.ne.s32.totalorder %s126, %s128
      %p132 = scmp.eq.s32.totalorder %s31, 0
      %p133 = por %p131, %p132
      %p134 = scmp.ne.s32.totalorder %s126, %s128
      %p135 = scmp.eq.s32.totalorder %s36, 3
      %p136 = por %p134, %p135
      %p137 = scmp.ne.s32.totalorder %s128, %s129
      %p138 = scmp.eq.s32.totalorder %s36, 0
      %p139 = por %p137, %p138
      %p140 = scmp.ne.s32.totalorder %s128, %s129
      %p141 = scmp.eq.s32.totalorder %s37, 3
      %p142 = por %p140, %p141
      %p144 = scmp.ne.s32.totalorder %s129, %s143
      %p145 = scmp.eq.s32.totalorder %s37, 0
      %p146 = por %p144, %p145
      %s147 = ssub.s32 %s39, %s53
      %p148 = scmp.eq.s32.totalorder %s147, 0
      %s150 = sadd.s32 %s149, 1
      %s151 = scalar_select %p148, %s149, %s150
      %p154 = pneg %p148
      %p155 = scmp.eq.s32.totalorder %s31, 3
      %p156 = por %p154, %p155
      %p157 = scmp.ne.s32.totalorder %s149, %s152
      %p158 = scmp.eq.s32.totalorder %s31, 0
      %p159 = por %p157, %p158
      %p160 = scmp.ne.s32.totalorder %s149, %s152
      %p161 = scmp.eq.s32.totalorder %s36, 3
      %p162 = por %p160, %p161
      %p163 = scmp.ne.s32.totalorder %s152, %s153
      %p164 = scmp.eq.s32.totalorder %s36, 0
      %p165 = por %p163, %p164
      %p166 = scmp.ne.s32.totalorder %s152, %s153
      %p167 = scmp.eq.s32.totalorder %s37, 3
      %p168 = por %p166, %p167
      %p170 = scmp.ne.s32.totalorder %s153, %s169
      %p171 = scmp.eq.s32.totalorder %s37, 0
      %p172 = por %p170, %p171
      %s173 = ssub.s32 %s39, %s53
      %p174 = scmp.eq.s32.totalorder %s173, 0
      %s176 = sadd.s32 %s175, 1
      %s177 = scalar_select %p174, %s175, %s176
      %p180 = pneg %p174
      %p181 = scmp.eq.s32.totalorder %s31, 3
      %p182 = por %p180, %p181
      %p183 = scmp.ne.s32.totalorder %s175, %s178
      %p184 = scmp.eq.s32.totalorder %s31, 0
      %p185 = por %p183, %p184
      %p186 = scmp.ne.s32.totalorder %s175, %s178
      %p187 = scmp.eq.s32.totalorder %s36, 3
      %p188 = por %p186, %p187
      %p189 = scmp.ne.s32.totalorder %s178, %s179
      %p190 = scmp.eq.s32.totalorder %s36, 0
      %p191 = por %p189, %p190
      %p192 = scmp.ne.s32.totalorder %s178, %s179
      %p193 = scmp.eq.s32.totalorder %s37, 3
      %p194 = por %p192, %p193
      %p196 = scmp.ne.s32.totalorder %s179, %s195
      %p197 = scmp.eq.s32.totalorder %s37, 0
      %p198 = por %p196, %p197
      %s199 = ssub.s32 %s39, %s53
      %p200 = scmp.eq.s32.totalorder %s199, 0
      %s202 = sadd.s32 %s201, 1
      %s203 = scalar_select %p200, %s201, %s202
      %p206 = pneg %p200
      %p207 = scmp.eq.s32.totalorder %s31, 3
      %p208 = por %p206, %p207
      %p209 = scmp.ne.s32.totalorder %s201, %s204
      %p210 = scmp.eq.s32.totalorder %s31, 0
      %p211 = por %p209, %p210
      %p212 = scmp.ne.s32.totalorder %s201, %s204
      %p213 = scmp.eq.s32.totalorder %s36, 3
      %p214 = por %p212, %p213
      %p215 = scmp.ne.s32.totalorder %s204, %s205
      %p216 = scmp.eq.s32.totalorder %s36, 0
      %p217 = por %p215, %p216
      %p218 = scmp.ne.s32.totalorder %s204, %s205
      %p219 = scmp.eq.s32.totalorder %s37, 3
      %p220 = por %p218, %p219
      %p222 = scmp.ne.s32.totalorder %s205, %s221
      %p223 = scmp.eq.s32.totalorder %s37, 0
      %p224 = por %p222, %p223
      %s225 = ssub.s32 %s39, %s53
      %p226 = scmp.eq.s32.totalorder %s225, 0
      %s228 = sadd.s32 %s227, 1
      %s229 = scalar_select %p226, %s227, %s228
      %p232 = pneg %p226
      %p233 = scmp.eq.s32.totalorder %s31, 3
      %p234 = por %p232, %p233
      %p235 = scmp.ne.s32.totalorder %s227, %s230
      %p236 = scmp.eq.s32.totalorder %s31, 0
      %p237 = por %p235, %p236
      %p238 = scmp.ne.s32.totalorder %s227, %s230
      %p239 = scmp.eq.s32.totalorder %s36, 3
      %p240 = por %p238, %p239
      %p241 = scmp.ne.s32.totalorder %s230, %s231
      %p242 = scmp.eq.s32.totalorder %s36, 0
      %p243 = por %p241, %p242
      %p244 = scmp.ne.s32.totalorder %s230, %s231
      %p245 = scmp.eq.s32.totalorder %s37, 3
      %p246 = por %p244, %p245
      %p248 = scmp.ne.s32.totalorder %s231, %s247
      %p249 = scmp.eq.s32.totalorder %s37, 0
      %p250 = por %p248, %p249
      %s251 = ssub.s32 %s39, %s53
      %p252 = scmp.eq.s32.totalorder %s251, 0
      %s254 = sadd.s32 %s253, 1
      %s255 = scalar_select %p252, %s253, %s254
      %p258 = pneg %p252
      %p259 = scmp.eq.s32.totalorder %s31, 3
      %p260 = por %p258, %p259
      %p261 = scmp.ne.s32.totalorder %s253, %s256
      %p262 = scmp.eq.s32.totalorder %s31, 0
      %p263 = por %p261, %p262
      %p264 = scmp.ne.s32.totalorder %s253, %s256
      %p265 = scmp.eq.s32.totalorder %s36, 3
      %p266 = por %p264, %p265
      %p267 = scmp.ne.s32.totalorder %s256, %s257
      %p268 = scmp.eq.s32.totalorder %s36, 0
      %p269 = por %p267, %p268
      %p270 = scmp.ne.s32.totalorder %s256, %s257
      %p271 = scmp.eq.s32.totalorder %s37, 3
      %p272 = por %p270, %p271
      %p274 = scmp.ne.s32.totalorder %s257, %s273
      %p275 = scmp.eq.s32.totalorder %s37, 0
      %p276 = por %p274, %p275
      %s277 = ssub.s32 %s39, %s53
      %p278 = scmp.eq.s32.totalorder %s277, 0
      %s280 = sadd.s32 %s279, 1
      %s281 = scalar_select %p278, %s279, %s280
      %p284 = pneg %p278
      %p285 = scmp.eq.s32.totalorder %s31, 3
      %p286 = por %p284, %p285
      %p287 = scmp.ne.s32.totalorder %s279, %s282
      %p288 = scmp.eq.s32.totalorder %s31, 0
      %p289 = por %p287, %p288
      %p290 = scmp.ne.s32.totalorder %s279, %s282
      %p291 = scmp.eq.s32.totalorder %s36, 3
      %p292 = por %p290, %p291
      %p293 = scmp.ne.s32.totalorder %s282, %s283
      %p294 = scmp.eq.s32.totalorder %s36, 0
      %p295 = por %p293, %p294
      %p296 = scmp.ne.s32.totalorder %s282, %s283
      %p297 = scmp.eq.s32.totalorder %s37, 3
      %p298 = por %p296, %p297
      %p300 = scmp.ne.s32.totalorder %s283, %s299
      %p301 = scmp.eq.s32.totalorder %s37, 0
      %p302 = por %p300, %p301
      %s303 = ssub.s32 %s39, %s53
      %p304 = scmp.eq.s32.totalorder %s303, 0
      %s306 = sadd.s32 %s305, 1
      %s307 = scalar_select %p304, %s305, %s306
      %p310 = pneg %p304
      %p311 = scmp.eq.s32.totalorder %s31, 3
      %p312 = por %p310, %p311
      %p313 = scmp.ne.s32.totalorder %s305, %s308
      %p314 = scmp.eq.s32.totalorder %s31, 0
      %p315 = por %p313, %p314
      %p316 = scmp.ne.s32.totalorder %s305, %s308
      %p317 = scmp.eq.s32.totalorder %s36, 3
      %p318 = por %p316, %p317
      %p319 = scmp.ne.s32.totalorder %s308, %s309
      %p320 = scmp.eq.s32.totalorder %s36, 0
      %p321 = por %p319, %p320
      %p322 = scmp.ne.s32.totalorder %s308, %s309
      %p323 = scmp.eq.s32.totalorder %s37, 3
      %p324 = por %p322, %p323
      %p326 = scmp.ne.s32.totalorder %s309, %s325
      %p327 = scmp.eq.s32.totalorder %s37, 0
      %p328 = por %p326, %p327
      %s329 = ssub.s32 %s39, %s53
      %p330 = scmp.eq.s32.totalorder %s329, 0
      %s332 = sadd.s32 %s331, 1
      %s333 = scalar_select %p330, %s331, %s332
      %p336 = pneg %p330
      %p337 = scmp.eq.s32.totalorder %s31, 3
      %p338 = por %p336, %p337
      %p339 = scmp.ne.s32.totalorder %s331, %s334
      %p340 = scmp.eq.s32.totalorder %s31, 0
      %p341 = por %p339, %p340
      %p342 = scmp.ne.s32.totalorder %s331, %s334
      %p343 = scmp.eq.s32.totalorder %s36, 3
      %p344 = por %p342, %p343
      %p345 = scmp.ne.s32.totalorder %s334, %s335
      %p346 = scmp.eq.s32.totalorder %s36, 0
      %p347 = por %p345, %p346
      %p348 = scmp.ne.s32.totalorder %s334, %s335
      %p349 = scmp.eq.s32.totalorder %s37, 3
      %p350 = por %p348, %p349
      %p352 = scmp.ne.s32.totalorder %s335, %s351
      %p353 = scmp.eq.s32.totalorder %s37, 0
      %p354 = por %p352, %p353
      %s355 = ssub.s32 %s39, %s53
      %s356 = ssub.s32 %s40, %s49
      %s357 = sor.u32 %s355, %s356
      %p358 = scmp.eq.s32.totalorder %s357, 0
      %s360 = sadd.s32 %s359, 1
      %s361 = scalar_select %p358, %s359, %s360
      %p364 = pneg %p358
      %p365 = scmp.eq.s32.totalorder %s31, 3
      %p366 = por %p364, %p365
      %p367 = scmp.ne.s32.totalorder %s359, %s362
      %p368 = scmp.eq.s32.totalorder %s31, 0
      %p369 = por %p367, %p368
      %p370 = scmp.ne.s32.totalorder %s359, %s362
      %p371 = scmp.eq.s32.totalorder %s36, 3
      %p372 = por %p370, %p371
      %p373 = scmp.ne.s32.totalorder %s362, %s363
      %p374 = scmp.eq.s32.totalorder %s36, 0
      %p375 = por %p373, %p374
      %p376 = scmp.ne.s32.totalorder %s362, %s363
      %p377 = scmp.eq.s32.totalorder %s37, 3
      %p378 = por %p376, %p377
      %p380 = scmp.ne.s32.totalorder %s363, %s379
      %p381 = scmp.eq.s32.totalorder %s37, 0
      %p382 = por %p380, %p381
      %s383 = ssub.s32 %s39, %s53
      %s384 = ssub.s32 %s40, %s49
      %s385 = sor.u32 %s383, %s384
      %p386 = scmp.eq.s32.totalorder %s385, 0
      %s388 = sadd.s32 %s387, 1
      %s389 = scalar_select %p386, %s387, %s388
      %p392 = pneg %p386
      %p393 = scmp.eq.s32.totalorder %s31, 3
      %p394 = por %p392, %p393
      %p395 = scmp.ne.s32.totalorder %s387, %s390
      %p396 = scmp.eq.s32.totalorder %s31, 0
      %p397 = por %p395, %p396
      %p398 = scmp.ne.s32.totalorder %s387, %s390
      %p399 = scmp.eq.s32.totalorder %s36, 3
      %p400 = por %p398, %p399
      %p401 = scmp.ne.s32.totalorder %s390, %s391
      %p402 = scmp.eq.s32.totalorder %s36, 0
      %p403 = por %p401, %p402
      %p404 = scmp.ne.s32.totalorder %s390, %s391
      %p405 = scmp.eq.s32.totalorder %s37, 3
      %p406 = por %p404, %p405
      %p408 = scmp.ne.s32.totalorder %s391, %s407
      %p409 = scmp.eq.s32.totalorder %s37, 0
      %p410 = por %p408, %p409
      %s411 = ssub.s32 %s39, %s53
      %s412 = ssub.s32 %s40, %s49
      %s413 = sor.u32 %s411, %s412
      %p414 = scmp.eq.s32.totalorder %s413, 0
      %s416 = sadd.s32 %s415, 1
      %s417 = scalar_select %p414, %s415, %s416
      %p420 = pneg %p414
      %p421 = scmp.eq.s32.totalorder %s31, 3
      %p422 = por %p420, %p421
      %p423 = scmp.ne.s32.totalorder %s415, %s418
      %p424 = scmp.eq.s32.totalorder %s31, 0
      %p425 = por %p423, %p424
      %p426 = scmp.ne.s32.totalorder %s415, %s418
      %p427 = scmp.eq.s32.totalorder %s36, 3
      %p428 = por %p426, %p427
      %p429 = scmp.ne.s32.totalorder %s418, %s419
      %p430 = scmp.eq.s32.totalorder %s36, 0
      %p431 = por %p429, %p430
      %p432 = scmp.ne.s32.totalorder %s418, %s419
      %p433 = scmp.eq.s32.totalorder %s37, 3
      %p434 = por %p432, %p433
      %p436 = scmp.ne.s32.totalorder %s419, %s435
      %p437 = scmp.eq.s32.totalorder %s37, 0
      %p438 = por %p436, %p437
      %s439 = ssub.s32 %s39, %s53
      %p440 = scmp.eq.s32.totalorder %s439, 0
      %s442 = sadd.s32 %s441, 1
      %s443 = scalar_select %p440, %s441, %s442
      %p446 = pneg %p440
      %p447 = scmp.eq.s32.totalorder %s31, 3
      %p448 = por %p446, %p447
      %p449 = scmp.ne.s32.totalorder %s441, %s444
      %p450 = scmp.eq.s32.totalorder %s31, 0
      %p451 = por %p449, %p450
      %p452 = scmp.ne.s32.totalorder %s441, %s444
      %p453 = scmp.eq.s32.totalorder %s36, 3
      %p454 = por %p452, %p453
      %p455 = scmp.ne.s32.totalorder %s444, %s445
      %p456 = scmp.eq.s32.totalorder %s36, 0
      %p457 = por %p455, %p456
      %p458 = scmp.ne.s32.totalorder %s444, %s445
      %p459 = scmp.eq.s32.totalorder %s37, 3
      %p460 = por %p458, %p459
      %p462 = scmp.ne.s32.totalorder %s445, %s461
      %p463 = scmp.eq.s32.totalorder %s37, 0
      %p464 = por %p462, %p463
      %s466 = sadd.s32 %s465, 1
      %p469 = scmp.eq.s32.totalorder %s31, 3
      %p470 = scmp.ne.s32.totalorder %s465, %s467
      %p471 = scmp.eq.s32.totalorder %s31, 0
      %p472 = por %p470, %p471
      %p473 = scmp.ne.s32.totalorder %s465, %s467
      %p474 = scmp.eq.s32.totalorder %s36, 3
      %p475 = por %p473, %p474
      %p476 = scmp.ne.s32.totalorder %s467, %s468
      %p477 = scmp.eq.s32.totalorder %s36, 0
      %p478 = por %p476, %p477
      %p479 = scmp.ne.s32.totalorder %s467, %s468
      %p480 = scmp.eq.s32.totalorder %s37, 3
      %p481 = por %p479, %p480
      %p483 = scmp.ne.s32.totalorder %s468, %s482
      %p484 = scmp.eq.s32.totalorder %s37, 0
      %p485 = por %p483, %p484
      %s487 = sadd.s32 %s486, 1
      %p490 = scmp.eq.s32.totalorder %s31, 3
      %p491 = scmp.ne.s32.totalorder %s486, %s488
      %p492 = scmp.eq.s32.totalorder %s31, 0
      %p493 = por %p491, %p492
      %p494 = scmp.ne.s32.totalorder %s486, %s488
      %p495 = scmp.eq.s32.totalorder %s36, 3
      %p496 = por %p494, %p495
      %p497 = scmp.ne.s32.totalorder %s488, %s489
      %p498 = scmp.eq.s32.totalorder %s36, 0
      %p499 = por %p497, %p498
      %p500 = scmp.ne.s32.totalorder %s488, %s489
      %p501 = scmp.eq.s32.totalorder %s37, 3
      %p502 = por %p500, %p501
      %p504 = scmp.ne.s32.totalorder %s489, %s503
      %p505 = scmp.eq.s32.totalorder %s37, 0
      %p506 = por %p504, %p505
      %s508 = sadd.s32 %s507, 1
      %p511 = scmp.eq.s32.totalorder %s31, 3
      %p512 = scmp.ne.s32.totalorder %s507, %s509
      %p513 = scmp.eq.s32.totalorder %s31, 0
      %p514 = por %p512, %p513
      %p515 = scmp.ne.s32.totalorder %s507, %s509
      %p516 = scmp.eq.s32.totalorder %s36, 3
      %p517 = por %p515, %p516
      %p518 = scmp.ne.s32.totalorder %s509, %s510
      %p519 = scmp.eq.s32.totalorder %s36, 0
      %p520 = por %p518, %p519
      %p521 = scmp.ne.s32.totalorder %s509, %s510
      %p522 = scmp.eq.s32.totalorder %s37, 3
      %p523 = por %p521, %p522
      %p525 = scmp.ne.s32.totalorder %s510, %s524
      %p526 = scmp.eq.s32.totalorder %s37, 0
      %p527 = por %p525, %p526
      %s529 = sadd.s32 %s528, 1
      %p532 = scmp.eq.s32.totalorder %s31, 3
      %p533 = scmp.ne.s32.totalorder %s528, %s530
      %p534 = scmp.eq.s32.totalorder %s31, 0
      %p535 = por %p533, %p534
      %p536 = scmp.ne.s32.totalorder %s528, %s530
      %p537 = scmp.eq.s32.totalorder %s36, 3
      %p538 = por %p536, %p537
      %p539 = scmp.ne.s32.totalorder %s530, %s531
      %p540 = scmp.eq.s32.totalorder %s36, 0
      %p541 = por %p539, %p540
      %p542 = scmp.ne.s32.totalorder %s530, %s531
      %p543 = scmp.eq.s32.totalorder %s37, 3
      %p544 = por %p542, %p543
      %p546 = scmp.ne.s32.totalorder %s531, %s545
      %p547 = scmp.eq.s32.totalorder %s37, 0
      %p548 = por %p546, %p547
      %s550 = sadd.s32 %s549, 1
      %p553 = scmp.eq.s32.totalorder %s31, 3
      %p554 = scmp.ne.s32.totalorder %s549, %s551
      %p555 = scmp.eq.s32.totalorder %s31, 0
      %p556 = por %p554, %p555
      %p557 = scmp.ne.s32.totalorder %s549, %s551
      %p558 = scmp.eq.s32.totalorder %s36, 3
      %p559 = por %p557, %p558
      %p560 = scmp.ne.s32.totalorder %s551, %s552
      %p561 = scmp.eq.s32.totalorder %s36, 0
      %p562 = por %p560, %p561
      %p563 = scmp.ne.s32.totalorder %s551, %s552
      %p564 = scmp.eq.s32.totalorder %s37, 3
      %p565 = por %p563, %p564
      %p567 = scmp.ne.s32.totalorder %s552, %s566
      %p568 = scmp.eq.s32.totalorder %s37, 0
      %p569 = por %p567, %p568
      %s571 = sadd.s32 %s570, 1
      %p574 = scmp.eq.s32.totalorder %s31, 3
      %p575 = scmp.ne.s32.totalorder %s570, %s572
      %p576 = scmp.eq.s32.totalorder %s31, 0
      %p577 = por %p575, %p576
      %p578 = scmp.ne.s32.totalorder %s570, %s572
      %p579 = scmp.eq.s32.totalorder %s36, 3
      %p580 = por %p578, %p579
      %p581 = scmp.ne.s32.totalorder %s572, %s573
      %p582 = scmp.eq.s32.totalorder %s36, 0
      %p583 = por %p581, %p582
      %p584 = scmp.ne.s32.totalorder %s572, %s573
      %p585 = scmp.eq.s32.totalorder %s37, 3
      %p586 = por %p584, %p585
      %p588 = scmp.ne.s32.totalorder %s573, %s587
      %p589 = scmp.eq.s32.totalorder %s37, 0
      %p590 = por %p588, %p589
      %s591 = ssub.s32 %s38, %s57
      %p592 = scmp.eq.s32.totalorder %s591, 0
      %s594 = sadd.s32 %s593, 1
      %s595 = scalar_select %p592, %s593, %s594
      %p598 = pneg %p592
      %p599 = scmp.eq.s32.totalorder %s31, 3
      %p600 = por %p598, %p599
      %p601 = scmp.ne.s32.totalorder %s593, %s596
      %p602 = scmp.eq.s32.totalorder %s31, 0
      %p603 = por %p601, %p602
      %p604 = scmp.ne.s32.totalorder %s593, %s596
      %p605 = scmp.eq.s32.totalorder %s36, 3
      %p606 = por %p604, %p605
      %p607 = scmp.ne.s32.totalorder %s596, %s597
      %p608 = scmp.eq.s32.totalorder %s36, 0
      %p609 = por %p607, %p608
      %p610 = scmp.ne.s32.totalorder %s596, %s597
      %p611 = scmp.eq.s32.totalorder %s37, 3
      %p612 = por %p610, %p611
      %p614 = scmp.ne.s32.totalorder %s597, %s613
      %p615 = scmp.eq.s32.totalorder %s37, 0
      %p616 = por %p614, %p615
      %p617 = scmp.le.s32.totalorder 1, %s31
      %p618 = scmp.lt.s32.totalorder %s31, 5
      %p619 = pnand %p617, %p618
      %p620 = pneg %p619
      // Predicated region
      $region9: #{tpu_custom_call.1} parent=5 // pred_check
        _
      $region10: #{tpu_custom_call.1} parent=5 // pred_check_branch
        %622 = sbr.rel (%p619) target = $region12
      $region11: #{tpu_custom_call.1} parent=5 // pred_region
        %s623 = ssub.s32 %s31, 1
        // Predicated region
        $region13: #{tpu_custom_call.1} parent=11 // pred_check
          %p624 = pneg %p76
        $region14: #{tpu_custom_call.1} parent=11 // pred_check_branch
          %626 = sbr.rel (%p624) target = $region16
        $region15: #{tpu_custom_call.1} parent=11 // pred_region
          %s627 = smul.u32 2, %s41
          %p628 = scmp.lt.s32.totalorder %s627, 1
          %s629 = scalar_select %p628, %s627, 1
          %s630 = smul.addr %s629, 2
          %s631 = smul.addr %s630, 4
          %s632 = scalar_lea.vmem %s0, %s631
          %s633 = smul.u32 2, %s41
        $region16: #{tpu_custom_call.1} parent=11 // pred_fallthru
          _
        // Predicated region
        $region17: #{tpu_custom_call.1} parent=11 // pred_check
          %p634 = pneg %p97
        $region18: #{tpu_custom_call.1} parent=11 // pred_check_branch
          %636 = sbr.rel (%p634) target = $region20
        $region19: #{tpu_custom_call.1} parent=11 // pred_region
          %s638 = ssub.s32 128, 128
          %639 = vsyncadd [#allocation5], %s638
          %s641 = sshll.u32 [#allocation4], 4
          %s642 = int_to_ptr.vmem [resolvable:$true] %s641
          %644 = dma.hbm_to_vmem [thread:$0]  %s1, 128, %s642, [#allocation5]
        $region20: #{tpu_custom_call.1} parent=11 // pred_fallthru
          _
        // Predicated region
        $region21: #{tpu_custom_call.1} parent=11 // pred_check
          %p645 = pneg %p118
        $region22: #{tpu_custom_call.1} parent=11 // pred_check_branch
          %647 = sbr.rel (%p645) target = $region24
        $region23: #{tpu_custom_call.1} parent=11 // pred_region
          %s649 = ssub.s32 256, 256
          %650 = vsyncadd [#allocation8], %s649
          %s651 = sshll.u32 [#allocation7], 4
          %s652 = int_to_ptr.vmem [resolvable:$true] %s651
          %657 = dma.hbm_to_vmem [thread:$0]  %s2, 256, %s652, [#allocation8], 64, 64, 4
        $region24: #{tpu_custom_call.1} parent=11 // pred_fallthru
          _
        // Predicated region
        $region25: #{tpu_custom_call.1} parent=11 // pred_check
          %p658 = pneg %p139
        $region26: #{tpu_custom_call.1} parent=11 // pred_check_branch
          %660 = sbr.rel (%p658) target = $region28
        $region27: #{tpu_custom_call.1} parent=11 // pred_region
          _
        $region28: #{tpu_custom_call.1} parent=11 // pred_fallthru
          _
        // Predicated region
        $region29: #{tpu_custom_call.1} parent=11 // pred_check
          %p661 = pneg %p478
        $region30: #{tpu_custom_call.1} parent=11 // pred_check_branch
          %663 = sbr.rel (%p661) target = $region32
        $region31: #{tpu_custom_call.1} parent=11 // pred_region
          _
        $region32: #{tpu_custom_call.1} parent=11 // pred_fallthru
          _
        // Predicated region
        $region33: #{tpu_custom_call.1} parent=11 // pred_check
          %p664 = pneg %p499
        $region34: #{tpu_custom_call.1} parent=11 // pred_check_branch
          %666 = sbr.rel (%p664) target = $region36
        $region35: #{tpu_custom_call.1} parent=11 // pred_region
          _
        $region36: #{tpu_custom_call.1} parent=11 // pred_fallthru
          _
        // Predicated region
        $region37: #{tpu_custom_call.1} parent=11 // pred_check
          %p667 = pneg %p520
        $region38: #{tpu_custom_call.1} parent=11 // pred_check_branch
          %669 = sbr.rel (%p667) target = $region40
        $region39: #{tpu_custom_call.1} parent=11 // pred_region
          _
        $region40: #{tpu_custom_call.1} parent=11 // pred_fallthru
          _
        // Predicated region
        $region41: #{tpu_custom_call.1} parent=11 // pred_check
          %p670 = pneg %p541
        $region42: #{tpu_custom_call.1} parent=11 // pred_check_branch
          %672 = sbr.rel (%p670) target = $region44
        $region43: #{tpu_custom_call.1} parent=11 // pred_region
          _
        $region44: #{tpu_custom_call.1} parent=11 // pred_fallthru
          _
        // Predicated region
        $region45: #{tpu_custom_call.1} parent=11 // pred_check
          %p673 = pneg %p562
        $region46: #{tpu_custom_call.1} parent=11 // pred_check_branch
          %675 = sbr.rel (%p673) target = $region48
        $region47: #{tpu_custom_call.1} parent=11 // pred_region
          _
        $region48: #{tpu_custom_call.1} parent=11 // pred_fallthru
          _
        // Predicated region
        $region49: #{tpu_custom_call.1} parent=11 // pred_check
          %p676 = pneg %p583
        $region50: #{tpu_custom_call.1} parent=11 // pred_check_branch
          %678 = sbr.rel (%p676) target = $region52
        $region51: #{tpu_custom_call.1} parent=11 // pred_region
          _
        $region52: #{tpu_custom_call.1} parent=11 // pred_fallthru
          _
      $region12: #{tpu_custom_call.1} parent=5 // pred_fallthru
        _
      %p679 = scmp.lt.s32.totalorder %s31, 4
      // Predicated region
      $region53: #{tpu_custom_call.1} parent=5 // pred_check
        %p680 = pneg %p679
      $region54: #{tpu_custom_call.1} parent=5 // pred_check_branch
        %682 = sbr.rel (%p680) target = $region56
      $region55: #{tpu_custom_call.1} parent=5 // pred_region
        // Predicated region
        $region57: #{tpu_custom_call.1} parent=55 // pred_check
          %p683 = pneg %p159
        $region58: #{tpu_custom_call.1} parent=55 // pred_check_branch
          %685 = sbr.rel (%p683) target = $region60
        $region59: #{tpu_custom_call.1} parent=55 // pred_region
          %p686 = scmp.lt.s32.totalorder %s39, 1
          %s687 = scalar_select %p686, %s39, 1
          %s688 = scalar_lea.vmem %s4, %s687
        $region60: #{tpu_custom_call.1} parent=55 // pred_fallthru
          _
        // Predicated region
        $region61: #{tpu_custom_call.1} parent=55 // pred_check
          %p689 = pneg %p185
        $region62: #{tpu_custom_call.1} parent=55 // pred_check_branch
          %691 = sbr.rel (%p689) target = $region64
        $region63: #{tpu_custom_call.1} parent=55 // pred_region
          %p692 = scmp.lt.s32.totalorder %s39, 1
          %s693 = scalar_select %p692, %s39, 1
          %s694 = scalar_lea.vmem %s5, %s693
        $region64: #{tpu_custom_call.1} parent=55 // pred_fallthru
          _
        // Predicated region
        $region65: #{tpu_custom_call.1} parent=55 // pred_check
          %p695 = pneg %p211
        $region66: #{tpu_custom_call.1} parent=55 // pred_check_branch
          %697 = sbr.rel (%p695) target = $region68
        $region67: #{tpu_custom_call.1} parent=55 // pred_region
          %p698 = scmp.lt.s32.totalorder %s39, 1
          %s699 = scalar_select %p698, %s39, 1
          %s700 = smul.addr %s699, 16
          %s701 = smul.addr %s700, 4
          %s702 = scalar_lea.vmem %s6, %s701
        $region68: #{tpu_custom_call.1} parent=55 // pred_fallthru
          _
        // Predicated region
        $region69: #{tpu_custom_call.1} parent=55 // pred_check
          %p703 = pneg %p237
        $region70: #{tpu_custom_call.1} parent=55 // pred_check_branch
          %705 = sbr.rel (%p703) target = $region72
        $region71: #{tpu_custom_call.1} parent=55 // pred_region
          %p706 = scmp.lt.s32.totalorder %s39, 1
          %s707 = scalar_select %p706, %s39, 1
          %s708 = smul.addr %s707, 2
          %s709 = scalar_lea.vmem %s7, %s708
        $region72: #{tpu_custom_call.1} parent=55 // pred_fallthru
          _
        // Predicated region
        $region73: #{tpu_custom_call.1} parent=55 // pred_check
          %p710 = pneg %p263
        $region74: #{tpu_custom_call.1} parent=55 // pred_check_branch
          %712 = sbr.rel (%p710) target = $region76
        $region75: #{tpu_custom_call.1} parent=55 // pred_region
          %p713 = scmp.lt.s32.totalorder %s39, 1
          %s714 = scalar_select %p713, %s39, 1
          %s715 = smul.addr %s714, 8
          %s716 = smul.addr %s715, 4
          %s717 = scalar_lea.vmem %s8, %s716
        $region76: #{tpu_custom_call.1} parent=55 // pred_fallthru
          _
        // Predicated region
        $region77: #{tpu_custom_call.1} parent=55 // pred_check
          %p718 = pneg %p289
        $region78: #{tpu_custom_call.1} parent=55 // pred_check_branch
          %720 = sbr.rel (%p718) target = $region80
        $region79: #{tpu_custom_call.1} parent=55 // pred_region
          %p721 = scmp.lt.s32.totalorder %s39, 1
          %s722 = scalar_select %p721, %s39, 1
          %s723 = scalar_lea.vmem %s9, %s722
        $region80: #{tpu_custom_call.1} parent=55 // pred_fallthru
          _
        // Predicated region
        $region81: #{tpu_custom_call.1} parent=55 // pred_check
          %p724 = pneg %p315
        $region82: #{tpu_custom_call.1} parent=55 // pred_check_branch
          %726 = sbr.rel (%p724) target = $region84
        $region83: #{tpu_custom_call.1} parent=55 // pred_region
          %p727 = scmp.lt.s32.totalorder %s39, 1
          %s728 = scalar_select %p727, %s39, 1
          %s729 = scalar_lea.vmem %s10, %s728
        $region84: #{tpu_custom_call.1} parent=55 // pred_fallthru
          _
        // Predicated region
        $region85: #{tpu_custom_call.1} parent=55 // pred_check
          %p730 = pneg %p341
        $region86: #{tpu_custom_call.1} parent=55 // pred_check_branch
          %732 = sbr.rel (%p730) target = $region88
        $region87: #{tpu_custom_call.1} parent=55 // pred_region
          %p733 = scmp.lt.s32.totalorder %s39, 1
          %s734 = scalar_select %p733, %s39, 1
          %s735 = scalar_lea.vmem %s11, %s734
        $region88: #{tpu_custom_call.1} parent=55 // pred_fallthru
          _
        // Predicated region
        $region89: #{tpu_custom_call.1} parent=55 // pred_check
          %p736 = pneg %p369
        $region90: #{tpu_custom_call.1} parent=55 // pred_check_branch
          %738 = sbr.rel (%p736) target = $region92
        $region91: #{tpu_custom_call.1} parent=55 // pred_region
          %s739 = sand.u32 %s359, 1
          %s740 = sand.u32 %s359, 1
          %s741 = smul.addr %s740, 32
          %s742 = scalar_lea.vmem [#allocation9], %s741
          %s743 = smul.addr %s39, 16
          %s744 = sadd.s32 %s40, %s743
          %s745 = smul.addr %s744, 4
          %s746 = scalar_lea.vmem %s12, %s745
          // Predicated region
          $region93: #{tpu_custom_call.1} parent=91 // pred_check
            _
          $region94: #{tpu_custom_call.1} parent=91 // pred_check_branch
            %748 = sbr.rel (0) target = $region96
          $region95: #{tpu_custom_call.1} parent=91 // pred_region
            // Predicated region
            $region97: #{tpu_custom_call.1} parent=95 // pred_check
              _
            $region98: #{tpu_custom_call.1} parent=95 // pred_check_branch
              %750 = sbr.rel target = $region100
            $region99: #{tpu_custom_call.1} parent=95 // pred_region
              // Predicated region
              $region112: #{tpu_custom_call.1} parent=99 // pred_check
                _
              $region113: #{tpu_custom_call.1} parent=99 // pred_check_branch
                %779 = sbr.rel (0) target = $region115
              $region114: #{tpu_custom_call.1} parent=99 // pred_region
                loop: start=0, step=1, limit=1
                $region116: #{tpu_custom_call.1} parent=114 // loop_pre_header
                  _
                $region117: #{tpu_custom_call.1} parent=114 // loop_header
                  %s781 = sphi 0, %s785
                  %p782 = scmp.ge.s32.totalorder %s781, 1
                  %s786 = sphi %s746, %s746
                  %s787 = sphi %s742, %s742
                $region118: #{tpu_custom_call.1} parent=114 // loop_header_branch
                  %784 = sbr.rel (%p782) target = $region122
                $region119: #{tpu_custom_call.1} parent=114 // loop_body
                  _
                $region120: #{tpu_custom_call.1} parent=114 // loop_footer
                  %s785 = sadd.s32 1, %s781
                $region121: #{tpu_custom_call.1} parent=114 // loop_footer_branch
                  %780 = sbr.rel target = $region117
                $region122: #{tpu_custom_call.1} parent=114 // loop_exit
                  _
                loop: start=0, step=1, limit=1
                $region123: #{tpu_custom_call.1} parent=114 // loop_pre_header
                  _
                $region124: #{tpu_custom_call.1} parent=114 // loop_header
                  %s790 = sphi 0, %s794
                  %p791 = scmp.ge.s32.totalorder %s790, 1
                  %s795 = sphi %s746, %s746
                  %s796 = sphi %s742, %s742
                $region125: #{tpu_custom_call.1} parent=114 // loop_header_branch
                  %793 = sbr.rel (%p791) target = $region129
                $region126: #{tpu_custom_call.1} parent=114 // loop_body
                  %v797 = vld [vmem:[%s795] sm:$0xf]
                  %798 = vst [vmem:[%s796] sm:$0xf] %v797
                  %v799 = vld [vmem:[%s795 + $0x8] sm:$0xf]
                  %800 = vst [vmem:[%s796 + $0x4] sm:$0xf] %v799
                  %v801 = vld [vmem:[%s795 + $0x10] sm:$0xf]
                  %802 = vst [vmem:[%s796 + $0x8] sm:$0xf] %v801
                  %v803 = vld [vmem:[%s795 + $0x18] sm:$0xf]
                  %804 = vst [vmem:[%s796 + $0xc] sm:$0xf] %v803
                  %v805 = vld [vmem:[%s795 + $0x20] sm:$0xf]
                  %806 = vst [vmem:[%s796 + $0x10] sm:$0xf] %v805
                  %v807 = vld [vmem:[%s795 + $0x28] sm:$0xf]
                  %808 = vst [vmem:[%s796 + $0x14] sm:$0xf] %v807
                  %v809 = vld [vmem:[%s795 + $0x30] sm:$0xf]
                  %810 = vst [vmem:[%s796 + $0x18] sm:$0xf] %v809
                  %v811 = vld [vmem:[%s795 + $0x38] sm:$0xf]
                  %812 = vst [vmem:[%s796 + $0x1c] sm:$0xf] %v811
                $region127: #{tpu_custom_call.1} parent=114 // loop_footer
                  %s794 = sadd.s32 1, %s790
                $region128: #{tpu_custom_call.1} parent=114 // loop_footer_branch
                  %789 = sbr.rel target = $region124
                $region129: #{tpu_custom_call.1} parent=114 // loop_exit
                  _
              $region115: #{tpu_custom_call.1} parent=99 // pred_fallthru
                _
            $region100: #{tpu_custom_call.1} parent=95 // pred_fallthru
              _
            // Predicated region
            $region101: #{tpu_custom_call.1} parent=95 // pred_check
              _
            $region102: #{tpu_custom_call.1} parent=95 // pred_check_branch
              %752 = sbr.rel (0) target = $region104
            $region103: #{tpu_custom_call.1} parent=95 // pred_region
              loop: start=0, step=1, limit=1
              $region105: #{tpu_custom_call.1} parent=103 // loop_pre_header
                _
              $region106: #{tpu_custom_call.1} parent=103 // loop_header
                %s755 = sphi 0, %s759
                %p756 = scmp.ge.s32.totalorder %s755, 1
                %s760 = sphi %s746, %s746
                %s761 = sphi %s742, %s742
              $region107: #{tpu_custom_call.1} parent=103 // loop_header_branch
                %758 = sbr.rel (%p756) target = $region111
              $region108: #{tpu_custom_call.1} parent=103 // loop_body
                %v762 = vld [vmem:[%s760] sm:$0xf]
                %763 = vst [vmem:[%s761] sm:$0xf] %v762
                %v764 = vld [vmem:[%s760 + $0x8] sm:$0xf]
                %765 = vst [vmem:[%s761 + $0x4] sm:$0xf] %v764
                %v766 = vld [vmem:[%s760 + $0x10] sm:$0xf]
                %767 = vst [vmem:[%s761 + $0x8] sm:$0xf] %v766
                %v768 = vld [vmem:[%s760 + $0x18] sm:$0xf]
                %769 = vst [vmem:[%s761 + $0xc] sm:$0xf] %v768
                %v770 = vld [vmem:[%s760 + $0x20] sm:$0xf]
                %771 = vst [vmem:[%s761 + $0x10] sm:$0xf] %v770
                %v772 = vld [vmem:[%s760 + $0x28] sm:$0xf]
                %773 = vst [vmem:[%s761 + $0x14] sm:$0xf] %v772
                %v774 = vld [vmem:[%s760 + $0x30] sm:$0xf]
                %775 = vst [vmem:[%s761 + $0x18] sm:$0xf] %v774
                %v776 = vld [vmem:[%s760 + $0x38] sm:$0xf]
                %777 = vst [vmem:[%s761 + $0x1c] sm:$0xf] %v776
              $region109: #{tpu_custom_call.1} parent=103 // loop_footer
                %s759 = sadd.s32 1, %s755
              $region110: #{tpu_custom_call.1} parent=103 // loop_footer_branch
                %754 = sbr.rel target = $region106
              $region111: #{tpu_custom_call.1} parent=103 // loop_exit
                _
            $region104: #{tpu_custom_call.1} parent=95 // pred_fallthru
              _
          $region96: #{tpu_custom_call.1} parent=91 // pred_fallthru
            _
          %813 = vnop
        $region92: #{tpu_custom_call.1} parent=55 // pred_fallthru
          _
        // Predicated region
        $region130: #{tpu_custom_call.1} parent=55 // pred_check
          %p814 = pneg %p397
        $region131: #{tpu_custom_call.1} parent=55 // pred_check_branch
          %816 = sbr.rel (%p814) target = $region133
        $region132: #{tpu_custom_call.1} parent=55 // pred_region
          %p817 = scmp.lt.s32.totalorder %s39, 1
          %s818 = scalar_select %p817, %s39, 1
          %p819 = scmp.lt.s32.totalorder %s40, 1
          %s820 = scalar_select %p819, %s40, 1
          %s821 = smul.addr %s818, 2
          %s822 = sadd.s32 %s820, %s821
          %s823 = scalar_lea.vmem %s13, %s822
        $region133: #{tpu_custom_call.1} parent=55 // pred_fallthru
          _
        // Predicated region
        $region134: #{tpu_custom_call.1} parent=55 // pred_check
          %p824 = pneg %p425
        $region135: #{tpu_custom_call.1} parent=55 // pred_check_branch
          %826 = sbr.rel (%p824) target = $region137
        $region136: #{tpu_custom_call.1} parent=55 // pred_region
          %s827 = smul.u32 16, %s40
          %p828 = scmp.lt.s32.totalorder %s39, 1
          %s829 = scalar_select %p828, %s39, 1
          %p830 = scmp.lt.s32.totalorder %s827, 31
          %s831 = scalar_select %p830, %s827, 31
          %s832 = smul.addr %s829, 32
          %s833 = sadd.s32 %s831, %s832
          %s834 = smul.addr %s833, 4
          %s835 = scalar_lea.vmem %s14, %s834
          %s836 = smul.u32 16, %s40
        $region137: #{tpu_custom_call.1} parent=55 // pred_fallthru
          _
        // Predicated region
        $region138: #{tpu_custom_call.1} parent=55 // pred_check
          %p837 = pneg %p451
        $region139: #{tpu_custom_call.1} parent=55 // pred_check_branch
          %839 = sbr.rel (%p837) target = $region141
        $region140: #{tpu_custom_call.1} parent=55 // pred_region
          %p840 = scmp.lt.s32.totalorder %s39, 1
          %s841 = scalar_select %p840, %s39, 1
          %s842 = scalar_lea.vmem %s15, %s841
        $region141: #{tpu_custom_call.1} parent=55 // pred_fallthru
          _
      $region56: #{tpu_custom_call.1} parent=5 // pred_fallthru
        _
      %p843 = scmp.le.s32.totalorder 1, %s31
      %p844 = scmp.lt.s32.totalorder %s31, 5
      %p845 = pnand %p843, %p844
      %p846 = pneg %p845
      // Predicated region
      $region142: #{tpu_custom_call.1} parent=5 // pred_check
        _
      $region143: #{tpu_custom_call.1} parent=5 // pred_check_branch
        %848 = sbr.rel (%p845) target = $region145
      $region144: #{tpu_custom_call.1} parent=5 // pred_region
        %s849 = ssub.s32 %s31, 1
        // Predicated region
        $region146: #{tpu_custom_call.1} parent=144 // pred_check
          %p850 = pneg %p97
        $region147: #{tpu_custom_call.1} parent=144 // pred_check_branch
          %852 = sbr.rel (%p850) target = $region149
        $region148: #{tpu_custom_call.1} parent=144 // pred_region
          %853 = dma.done [#allocation5], 128
        $region149: #{tpu_custom_call.1} parent=144 // pred_fallthru
          _
        // Predicated region
        $region150: #{tpu_custom_call.1} parent=144 // pred_check
          %p854 = pneg %p118
        $region151: #{tpu_custom_call.1} parent=144 // pred_check_branch
          %856 = sbr.rel (%p854) target = $region153
        $region152: #{tpu_custom_call.1} parent=144 // pred_region
          %857 = dma.done [#allocation8], 256
        $region153: #{tpu_custom_call.1} parent=144 // pred_fallthru
          _
        %s858 = sand.u32 %s362, 1
        %s859 = sand.u32 %s362, 1
        %s860 = smul.addr %s859, 32
        %s861 = scalar_lea.vmem [#allocation9], %s860
        // Predicated region
        $region154: #{tpu_custom_call.1} parent=144 // pred_check
          %p862 = pneg %p375
        $region155: #{tpu_custom_call.1} parent=144 // pred_check_branch
          %864 = sbr.rel (%p862) target = $region157
        $region156: #{tpu_custom_call.1} parent=144 // pred_region
          _
        $region157: #{tpu_custom_call.1} parent=144 // pred_fallthru
          _
        %s865 = smul.u32 2, %s41
        %p866 = scmp.lt.s32.totalorder %s865, 1
        %s867 = scalar_select %p866, %s865, 1
        %s868 = smul.addr %s867, 2
        %s869 = smul.addr %s868, 4
        %s870 = scalar_lea.vmem %s0, %s869
        %p871 = pneg %p76
        %p872 = pneg %p73
        %p873 = pneg %p97
        %p874 = pneg %p94
        %p875 = pneg %p118
        %p876 = pneg %p115
        %p877 = pneg %p139
        %p878 = pneg %p136
        %p879 = scmp.lt.s32.totalorder %s42, 1
        %s880 = scalar_select %p879, %s42, 1
        %s881 = scalar_lea.vmem %s4, %s880
        %p882 = pneg %p165
        %p883 = pneg %p162
        %p884 = scmp.lt.s32.totalorder %s42, 1
        %s885 = scalar_select %p884, %s42, 1
        %s886 = scalar_lea.vmem %s5, %s885
        %p887 = pneg %p191
        %p888 = pneg %p188
        %p889 = scmp.lt.s32.totalorder %s42, 1
        %s890 = scalar_select %p889, %s42, 1
        %s891 = smul.addr %s890, 16
        %s892 = smul.addr %s891, 4
        %s893 = scalar_lea.vmem %s6, %s892
        %p894 = pneg %p217
        %p895 = pneg %p214
        %p896 = scmp.lt.s32.totalorder %s42, 1
        %s897 = scalar_select %p896, %s42, 1
        %s898 = smul.addr %s897, 2
        %s899 = scalar_lea.vmem %s7, %s898
        %p900 = pneg %p243
        %p901 = pneg %p240
        %p902 = scmp.lt.s32.totalorder %s42, 1
        %s903 = scalar_select %p902, %s42, 1
        %s904 = smul.addr %s903, 8
        %s905 = smul.addr %s904, 4
        %s906 = scalar_lea.vmem %s8, %s905
        %p907 = pneg %p269
        %p908 = pneg %p266
        %p909 = scmp.lt.s32.totalorder %s42, 1
        %s910 = scalar_select %p909, %s42, 1
        %s911 = scalar_lea.vmem %s9, %s910
        %p912 = pneg %p295
        %p913 = pneg %p292
        %p914 = scmp.lt.s32.totalorder %s42, 1
        %s915 = scalar_select %p914, %s42, 1
        %s916 = scalar_lea.vmem %s10, %s915
        %p917 = pneg %p321
        %p918 = pneg %p318
        %p919 = scmp.lt.s32.totalorder %s42, 1
        %s920 = scalar_select %p919, %s42, 1
        %s921 = scalar_lea.vmem %s11, %s920
        %p922 = pneg %p347
        %p923 = pneg %p344
        %s924 = sand.u32 %s362, 1
        %s925 = sand.u32 %s362, 1
        %s926 = smul.addr %s925, 32
        %s927 = scalar_lea.vmem [#allocation9], %s926
        %p928 = pneg %p375
        %p929 = pneg %p372
        %p930 = scmp.lt.s32.totalorder %s42, 1
        %s931 = scalar_select %p930, %s42, 1
        %p932 = scmp.lt.s32.totalorder %s43, 1
        %s933 = scalar_select %p932, %s43, 1
        %s934 = smul.addr %s931, 2
        %s935 = sadd.s32 %s933, %s934
        %s936 = scalar_lea.vmem %s13, %s935
        %p937 = pneg %p403
        %p938 = pneg %p400
        %s939 = smul.u32 16, %s43
        %p940 = scmp.lt.s32.totalorder %s42, 1
        %s941 = scalar_select %p940, %s42, 1
        %p942 = scmp.lt.s32.totalorder %s939, 31
        %s943 = scalar_select %p942, %s939, 31
        %s944 = smul.addr %s941, 32
        %s945 = sadd.s32 %s943, %s944
        %s946 = smul.addr %s945, 4
        %s947 = scalar_lea.vmem %s14, %s946
        %p948 = pneg %p431
        %p949 = pneg %p428
        %p950 = scmp.lt.s32.totalorder %s42, 1
        %s951 = scalar_select %p950, %s42, 1
        %s952 = scalar_lea.vmem %s15, %s951
        %p953 = pneg %p457
        %p954 = pneg %p454
        %p955 = pneg %p478
        %p956 = pneg %p475
        %p957 = pneg %p499
        %p958 = pneg %p496
        %p959 = pneg %p520
        %p960 = pneg %p517
        %p961 = pneg %p541
        %p962 = pneg %p538
        %p963 = pneg %p562
        %p964 = pneg %p559
        %p965 = pneg %p583
        %p966 = pneg %p580
        %p967 = pneg %p609
        %p968 = pneg %p606
        %s969 = smul.u32 2, %s41
        %p970 = scmp.lt.s32.totalorder %s969, 1
        %s971 = scalar_select %p970, %s969, 1
        %s972 = smul.addr %s971, 2
        %s973 = smul.addr %s972, 4
        %s974 = scalar_lea.vmem %s0, %s973
        %s975 = smul.u32 2, %s41
        %p976 = scmp.lt.s32.totalorder %s42, 1
        %s977 = scalar_select %p976, %s42, 1
        %s978 = scalar_lea.vmem %s4, %s977
        %p979 = scmp.lt.s32.totalorder %s42, 1
        %s980 = scalar_select %p979, %s42, 1
        %s981 = scalar_lea.vmem %s5, %s980
        %p982 = scmp.lt.s32.totalorder %s42, 1
        %s983 = scalar_select %p982, %s42, 1
        %s984 = smul.addr %s983, 16
        %s985 = smul.addr %s984, 4
        %s986 = scalar_lea.vmem %s6, %s985
        %p987 = scmp.lt.s32.totalorder %s42, 1
        %s988 = scalar_select %p987, %s42, 1
        %s989 = smul.addr %s988, 2
        %s990 = scalar_lea.vmem %s7, %s989
        %p991 = scmp.lt.s32.totalorder %s42, 1
        %s992 = scalar_select %p991, %s42, 1
        %s993 = smul.addr %s992, 8
        %s994 = smul.addr %s993, 4
        %s995 = scalar_lea.vmem %s8, %s994
        %p996 = scmp.lt.s32.totalorder %s42, 1
        %s997 = scalar_select %p996, %s42, 1
        %s998 = scalar_lea.vmem %s9, %s997
        %p999 = scmp.lt.s32.totalorder %s42, 1
        %s1000 = scalar_select %p999, %s42, 1
        %s1001 = scalar_lea.vmem %s10, %s1000
        %p1002 = scmp.lt.s32.totalorder %s42, 1
        %s1003 = scalar_select %p1002, %s42, 1
        %s1004 = scalar_lea.vmem %s11, %s1003
        %p1005 = scmp.lt.s32.totalorder %s42, 1
        %s1006 = scalar_select %p1005, %s42, 1
        %p1007 = scmp.lt.s32.totalorder %s43, 1
        %s1008 = scalar_select %p1007, %s43, 1
        %s1009 = smul.addr %s1006, 2
        %s1010 = sadd.s32 %s1008, %s1009
        %s1011 = scalar_lea.vmem %s13, %s1010
        %s1012 = smul.u32 16, %s43
        %p1013 = scmp.lt.s32.totalorder %s42, 1
        %s1014 = scalar_select %p1013, %s42, 1
        %p1015 = scmp.lt.s32.totalorder %s1012, 31
        %s1016 = scalar_select %p1015, %s1012, 31
        %s1017 = smul.addr %s1014, 32
        %s1018 = sadd.s32 %s1016, %s1017
        %s1019 = smul.addr %s1018, 4
        %s1020 = scalar_lea.vmem %s14, %s1019
        %s1021 = smul.u32 16, %s43
        %p1022 = scmp.lt.s32.totalorder %s42, 1
        %s1023 = scalar_select %p1022, %s42, 1
        %s1024 = scalar_lea.vmem %s15, %s1023
        %s1025 = smul.u32 2, %s41
        %p1028 = scmp.eq.s32.totalorder %s42, 0
        %p1029 = scmp.eq.s32.totalorder %s43, 0
        %p1030 = pnand %p1028, %p1029
        %p1031 = pneg %p1030
        // Predicated region
        $region158: #{tpu_custom_call.1} parent=144 // pred_check
          _
        $region159: #{tpu_custom_call.1} parent=144 // pred_check_branch
          %1033 = sbr.rel (%p1030) target = $region161
        $region160: #{tpu_custom_call.1} parent=144 // pred_region
          %v1034 = vld [vmem:[%s974] sm:$0xf]
          %v1035 = vld [vmem:[%s974 + $0x4] sm:$0xf]
          %v1036 = vld [vmem:[#allocation7] sm:$0xf]
          %v1037 = vld [vmem:[#allocation7 + $0x4] sm:$0xf]
          %v1038 = vld [vmem:[#allocation7 + $0x8] sm:$0xf]
          %v1039 = vld [vmem:[#allocation7 + $0xc] sm:$0xf]
          %v1040 = vld [vmem:[%s3] sm:$0x1]
          %v1042 = vlaneseq
          %v1043 = vshrl.u32 %v1042, 7
          %v1044 = vsub.s32 0, %v1043
          %v1045 = vrot.slane %v1040, %v1044
          %v1049 = vunpack.c.l.b16 %v1034
          %v1050 = vunpack.c.l.b16 %v1035
          %v1051 = vpack.c.b16 %v1050, %v1049
          %v1056 = vunpack.c.l.b16 %v1036
          %v1057 = vunpack.c.l.b16 %v1037
          %v1058 = vunpack.c.l.b16 %v1038
          %v1059 = vunpack.c.l.b16 %v1039
          %v1060 = vpack.c.b16 %v1057, %v1056
          %v1061 = vpack.c.b16 %v1059, %v1058
          %vm1064 = vcmask 261120
          %v1066 = vsel %vm1064, %v1051, 0
          %1068 = vmatprep.subr.bf16.mxu0 0
          %1069 = vmatpush1.bf16.msra.mxu0 %v1060
          %1070 = vmatprep.subr.bf16.mxu0 0
          %1071 = vmatpush1.bf16.msra.mxu0 %v1061
          %1072 = vmatprep.subr.bf16.mxu0 0
          %1073 = vmatpush1.bf16.msra.mxu0 0
          %1074 = vmatprep.subr.bf16.mxu0 0
          %1075 = vmatpush1.bf16.msra.mxu0 0
          %1076 = vmatprep.subr.bf16.mxu0 0
          %1077 = vmatpush1.bf16.msra.mxu0 0
          %1078 = vmatprep.subr.bf16.mxu0 0
          %1079 = vmatpush1.bf16.msra.mxu0 0
          %1080 = vmatprep.subr.bf16.mxu0 0
          %1081 = vmatpush1.bf16.msra.mxu0 0
          %1082 = vmatprep.subr.bf16.mxu0 0
          %1083 = vmatpush1.bf16.msra.mxu0 0
          %1084 = vmatprep.subr.bf16.mxu0 0
          %1085 = vmatpush1.bf16.msra.mxu0 0
          %1086 = vmatprep.subr.bf16.mxu0 0
          %1087 = vmatpush1.bf16.msra.mxu0 0
          %1088 = vmatprep.subr.bf16.mxu0 0
          %1089 = vmatpush1.bf16.msra.mxu0 0
          %1090 = vmatprep.subr.bf16.mxu0 0
          %1091 = vmatpush1.bf16.msra.mxu0 0
          %1092 = vmatprep.subr.bf16.mxu0 0
          %1093 = vmatpush1.bf16.msra.mxu0 0
          %1094 = vmatprep.subr.bf16.mxu0 0
          %1095 = vmatpush1.bf16.msra.mxu0 0
          %1096 = vmatprep.subr.bf16.mxu0 0
          %1097 = vmatpush1.bf16.msra.mxu0 0
          %1098 = vmatprep.subr.bf16.mxu0 0
          %1099 = vmatpush1.bf16.msra.mxu0 0
          %1100 = vmatprep.mubr.bf16.mxu0 0
          %1101 = vmatmul.mubr.bf16.gmra.mrb[0].mxu0 %v1066
          %v1102 = vpop.f32.mrb[0].mxu0
          %v1103 = vadd.f32 %v1045, %v1102
          %v1104 = vpop.f32.mrb[0].mxu0
          %v1105 = vpop.f32.mrb[0].mxu0
          %v1106 = vadd.f32 %v1045, %v1105
          %v1107 = vpop.f32.mrb[0].mxu0
          %1108 = vdwg.mxu0
          %vm1109 = vcmask 523264
          %1110 = vst.msk [vmem:[#allocation2] sm:$0xff] %vm1109, %v1103
          %1111 = vst.msk [vmem:[#allocation2 + $0x8] sm:$0xff] %vm1109, %v1106
          %v1112 = vld [vmem:[#allocation4] sm:$0xff]
          %1113 = vst.msk [vmem:[#allocation2 + $0x10] sm:$0xff] %vm1109, %v1112
          %s1114 = scalar_lea.vmem %s974, 8
          %v1115 = vld [vmem:[%s1114] sm:$0xf]
          %v1116 = vld [vmem:[%s1114 + $0x4] sm:$0xf]
          %v1117 = vld [vmem:[#allocation7] sm:$0xf]
          %v1118 = vld [vmem:[#allocation7 + $0x4] sm:$0xf]
          %v1119 = vld [vmem:[#allocation7 + $0x8] sm:$0xf]
          %v1120 = vld [vmem:[#allocation7 + $0xc] sm:$0xf]
          %v1121 = vld [vmem:[%s3] sm:$0x1]
          %v1123 = vlaneseq
          %v1124 = vshrl.u32 %v1123, 7
          %v1125 = vsub.s32 0, %v1124
          %v1126 = vrot.slane %v1121, %v1125
          %v1130 = vunpack.c.l.b16 %v1115
          %v1131 = vunpack.c.l.b16 %v1116
          %v1132 = vpack.c.b16 %v1131, %v1130
          %v1137 = vunpack.c.l.b16 %v1117
          %v1138 = vunpack.c.l.b16 %v1118
          %v1139 = vunpack.c.l.b16 %v1119
          %v1140 = vunpack.c.l.b16 %v1120
          %v1141 = vpack.c.b16 %v1138, %v1137
          %v1142 = vpack.c.b16 %v1140, %v1139
          %v1146 = vsel %vm1064, %v1132, 0
          %1148 = vmatprep.subr.bf16.mxu0 0
          %1149 = vmatpush1.bf16.msra.mxu0 %v1141
          %1150 = vmatprep.subr.bf16.mxu0 0
          %1151 = vmatpush1.bf16.msra.mxu0 %v1142
          %1152 = vmatprep.subr.bf16.mxu0 0
          %1153 = vmatpush1.bf16.msra.mxu0 0
          %1154 = vmatprep.subr.bf16.mxu0 0
          %1155 = vmatpush1.bf16.msra.mxu0 0
          %1156 = vmatprep.subr.bf16.mxu0 0
          %1157 = vmatpush1.bf16.msra.mxu0 0
          %1158 = vmatprep.subr.bf16.mxu0 0
          %1159 = vmatpush1.bf16.msra.mxu0 0
          %1160 = vmatprep.subr.bf16.mxu0 0
          %1161 = vmatpush1.bf16.msra.mxu0 0
          %1162 = vmatprep.subr.bf16.mxu0 0
          %1163 = vmatpush1.bf16.msra.mxu0 0
          %1164 = vmatprep.subr.bf16.mxu0 0
          %1165 = vmatpush1.bf16.msra.mxu0 0
          %1166 = vmatprep.subr.bf16.mxu0 0
          %1167 = vmatpush1.bf16.msra.mxu0 0
          %1168 = vmatprep.subr.bf16.mxu0 0
          %1169 = vmatpush1.bf16.msra.mxu0 0
          %1170 = vmatprep.subr.bf16.mxu0 0
          %1171 = vmatpush1.bf16.msra.mxu0 0
          %1172 = vmatprep.subr.bf16.mxu0 0
          %1173 = vmatpush1.bf16.msra.mxu0 0
          %1174 = vmatprep.subr.bf16.mxu0 0
          %1175 = vmatpush1.bf16.msra.mxu0 0
          %1176 = vmatprep.subr.bf16.mxu0 0
          %1177 = vmatpush1.bf16.msra.mxu0 0
          %1178 = vmatprep.subr.bf16.mxu0 0
          %1179 = vmatpush1.bf16.msra.mxu0 0
          %1180 = vmatprep.mubr.bf16.mxu0 0
          %1181 = vmatmul.mubr.bf16.gmra.mrb[0].mxu0 %v1146
          %v1182 = vpop.f32.mrb[0].mxu0
          %v1183 = vadd.f32 %v1126, %v1182
          %v1184 = vpop.f32.mrb[0].mxu0
          %v1185 = vpop.f32.mrb[0].mxu0
          %v1186 = vadd.f32 %v1126, %v1185
          %v1187 = vpop.f32.mrb[0].mxu0
          %1188 = vdwg.mxu0
          %1189 = vst.msk [vmem:[#allocation2 + $0x18] sm:$0xff] %vm1109, %v1183
          %1190 = vst.msk [vmem:[#allocation2 + $0x20] sm:$0xff] %vm1109, %v1186
          %v1191 = vld [vmem:[#allocation4] sm:$0xff]
          %1192 = vst.msk [vmem:[#allocation2 + $0x28] sm:$0xff] %vm1109, %v1191
        $region161: #{tpu_custom_call.1} parent=144 // pred_fallthru
          _
        // Predicated region
        $region162: #{tpu_custom_call.1} parent=144 // pred_check
          %p1193 = pneg %p1029
        $region163: #{tpu_custom_call.1} parent=144 // pred_check_branch
          %1195 = sbr.rel (%p1193) target = $region165
        $region164: #{tpu_custom_call.1} parent=144 // pred_region
          %v1196 = vld [vmem:[#allocation2] sm:$0xff]
          %v1197 = vld [vmem:[#allocation2 + $0x8] sm:$0xff]
          %v1198 = vld [vmem:[#allocation2 + $0x10] sm:$0xff]
          %v1199 = vld [vmem:[#allocation2 + $0x18] sm:$0xff]
          %v1200 = vld [vmem:[#allocation2 + $0x20] sm:$0xff]
          %v1201 = vld [vmem:[#allocation2 + $0x28] sm:$0xff]
          %v1202 = vld [vmem:[%s978] sm:$0x1]
          %v1203 = vld [vmem:[%s981] sm:$0x1]
          %vm1204 = vcmask 523264
          %v1205 = vsel %vm1204, %v1196, 0.0
          %1206 = vadd.xlane.f32.xlu0 %v1205
          %v1207 = vpop.xlane.xlu0 %1206
          %v1208 = vsel %vm1204, %v1197, 0.0
          %1209 = vadd.xlane.f32.xlu0 %v1208
          %v1210 = vpop.xlane.xlu0 %1209
          %v1211 = vsel %vm1204, %v1198, 0.0
          %1212 = vadd.xlane.f32.xlu0 %v1211
          %v1213 = vpop.xlane.xlu0 %1212
          %v1214 = vsel %vm1204, %v1199, 0.0
          %1215 = vadd.xlane.f32.xlu0 %v1214
          %v1216 = vpop.xlane.xlu0 %1215
          %v1217 = vsel %vm1204, %v1200, 0.0
          %1218 = vadd.xlane.f32.xlu0 %v1217
          %v1219 = vpop.xlane.xlu0 %1218
          %v1220 = vsel %vm1204, %v1201, 0.0
          %1221 = vadd.xlane.f32.xlu0 %v1220
          %v1222 = vpop.xlane.xlu0 %1221
          %v1223 = vrcp.pop 64.0
          %v1224 = vmul.f32 %v1207, %v1223
          %v1225 = vmul.f32 %v1210, %v1223
          %v1226 = vmul.f32 %v1213, %v1223
          %v1227 = vmul.f32 %v1216, %v1223
          %v1228 = vmul.f32 %v1219, %v1223
          %v1229 = vmul.f32 %v1222, %v1223
          %v1230 = vsub.f32 %v1196, %v1224
          %v1231 = vsub.f32 %v1197, %v1225
          %v1232 = vsub.f32 %v1198, %v1226
          %v1233 = vsub.f32 %v1199, %v1227
          %v1234 = vsub.f32 %v1200, %v1228
          %v1235 = vsub.f32 %v1201, %v1229
          %v1236 = vmul.f32 %v1230, %v1230
          %v1237 = vmul.f32 %v1231, %v1231
          %v1238 = vmul.f32 %v1232, %v1232
          %v1239 = vmul.f32 %v1233, %v1233
          %v1240 = vmul.f32 %v1234, %v1234
          %v1241 = vmul.f32 %v1235, %v1235
          %v1242 = vsel %vm1204, %v1236, 0.0
          %1243 = vadd.xlane.f32.xlu0 %v1242
          %v1244 = vpop.xlane.xlu0 %1243
          %v1245 = vsel %vm1204, %v1237, 0.0
          %1246 = vadd.xlane.f32.xlu0 %v1245
          %v1247 = vpop.xlane.xlu0 %1246
          %v1248 = vsel %vm1204, %v1238, 0.0
          %1249 = vadd.xlane.f32.xlu0 %v1248
          %v1250 = vpop.xlane.xlu0 %1249
          %v1251 = vsel %vm1204, %v1239, 0.0
          %1252 = vadd.xlane.f32.xlu0 %v1251
          %v1253 = vpop.xlane.xlu0 %1252
          %v1254 = vsel %vm1204, %v1240, 0.0
          %1255 = vadd.xlane.f32.xlu0 %v1254
          %v1256 = vpop.xlane.xlu0 %1255
          %v1257 = vsel %vm1204, %v1241, 0.0
          %1258 = vadd.xlane.f32.xlu0 %v1257
          %v1259 = vpop.xlane.xlu0 %1258
          %v1260 = vmul.f32 %v1244, %v1223
          %v1261 = vmul.f32 %v1247, %v1223
          %v1262 = vmul.f32 %v1250, %v1223
          %v1263 = vmul.f32 %v1253, %v1223
          %v1264 = vmul.f32 %v1256, %v1223
          %v1265 = vmul.f32 %v1259, %v1223
          %v1266 = vadd.f32 %v1260, 1e-05
          %v1267 = vadd.f32 %v1261, 1e-05
          %v1268 = vadd.f32 %v1262, 1e-05
          %v1269 = vadd.f32 %v1263, 1e-05
          %v1270 = vadd.f32 %v1264, 1e-05
          %v1271 = vadd.f32 %v1265, 1e-05
          %v1272 = vrsqrt.pop %v1266
          %v1273 = vrsqrt.pop %v1267
          %v1274 = vrsqrt.pop %v1268
          %v1275 = vrsqrt.pop %v1269
          %v1276 = vrsqrt.pop %v1270
          %v1277 = vrsqrt.pop %v1271
          %v1278 = vmul.f32 %v1230, %v1272
          %v1279 = vmul.f32 %v1231, %v1273
          %v1280 = vmul.f32 %v1232, %v1274
          %v1281 = vmul.f32 %v1233, %v1275
          %v1282 = vmul.f32 %v1234, %v1276
          %v1283 = vmul.f32 %v1235, %v1277
          %v1285 = vlaneseq
          %v1286 = vshrl.u32 %v1285, 7
          %v1287 = vsub.s32 0, %v1286
          %v1288 = vrot.slane %v1202, %v1287
          %v1290 = vmul.f32 %v1278, %v1288
          %v1291 = vmul.f32 %v1279, %v1288
          %v1292 = vmul.f32 %v1280, %v1288
          %v1293 = vmul.f32 %v1281, %v1288
          %v1294 = vmul.f32 %v1282, %v1288
          %v1295 = vmul.f32 %v1283, %v1288
          %v1297 = vlaneseq
          %v1298 = vshrl.u32 %v1297, 7
          %v1299 = vsub.s32 0, %v1298
          %v1300 = vrot.slane %v1203, %v1299
          %v1302 = vadd.f32 %v1290, %v1300
          %v1303 = vadd.f32 %v1291, %v1300
          %v1304 = vadd.f32 %v1292, %v1300
          %v1305 = vadd.f32 %v1293, %v1300
          %v1306 = vadd.f32 %v1294, %v1300
          %v1307 = vadd.f32 %v1295, %v1300
          %v1308 = vpack.c.bf16 %v1303, %v1302
          %v1309 = vpack.c.bf16 %v1305, %v1304
          %v1310 = vpack.c.bf16 %v1307, %v1306
          %v1311 = vld [vmem:[%s986] sm:$0xff]
          %v1312 = vld [vmem:[%s986 + $0x8] sm:$0xff]
          %v1313 = vld [vmem:[%s986 + $0x10] sm:$0xff]
          %v1314 = vld [vmem:[%s986 + $0x18] sm:$0xff]
          %v1315 = vld [vmem:[%s986 + $0x20] sm:$0xff]
          %v1316 = vld [vmem:[%s986 + $0x28] sm:$0xff]
          %v1317 = vld [vmem:[%s986 + $0x30] sm:$0xff]
          %v1318 = vld [vmem:[%s986 + $0x38] sm:$0xff]
          %v1319 = vld [vmem:[%s990] sm:$0x3]
          %v1321 = vlaneseq
          %v1322 = vshrl.u32 %v1321, 7
          %v1323 = vsub.s32 0, %v1322
          %v1324 = vrot.slane %v1319, %v1323
          %v1325 = vlaneseq
          %v1326 = vshrl.u32 %v1325, 7
          %v1327 = vsub.s32 1, %v1326
          %v1328 = vrot.slane %v1319, %v1327
          %v1339 = vunpack.c.l.b16 %v1311
          %v1340 = vunpack.c.h.b16 %v1311
          %v1341 = vunpack.c.l.b16 %v1312
          %v1342 = vunpack.c.h.b16 %v1312
          %v1343 = vunpack.c.l.b16 %v1313
          %v1344 = vunpack.c.h.b16 %v1313
          %v1345 = vunpack.c.l.b16 %v1314
          %v1346 = vunpack.c.h.b16 %v1314
          %v1347 = vunpack.c.l.b16 %v1315
          %v1348 = vunpack.c.h.b16 %v1315
          %v1349 = vunpack.c.l.b16 %v1316
          %v1350 = vunpack.c.h.b16 %v1316
          %v1351 = vunpack.c.l.b16 %v1317
          %v1352 = vunpack.c.h.b16 %v1317
          %v1353 = vunpack.c.l.b16 %v1318
          %v1354 = vunpack.c.h.b16 %v1318
          %v1355 = vpack.c.b16 %v1341, %v1339
          %v1356 = vpack.c.b16 %v1342, %v1340
          %v1357 = vpack.c.b16 %v1345, %v1343
          %v1358 = vpack.c.b16 %v1346, %v1344
          %v1359 = vpack.c.b16 %v1349, %v1347
          %v1360 = vpack.c.b16 %v1350, %v1348
          %v1361 = vpack.c.b16 %v1353, %v1351
          %v1362 = vpack.c.b16 %v1354, %v1352
          %v1372 = vsel %vm1204, %v1308, 0
          %v1375 = vsel %vm1204, %v1309, 0
          %v1378 = vsel %vm1204, %v1310, 0
          %1380 = vmatprep.subr.bf16.mxu0 %v1356
          %1381 = vmatpush1.bf16.msra.mxu0 %v1355
          %1382 = vmatprep.subr.bf16.mxu0 %v1358
          %1383 = vmatpush1.bf16.msra.mxu0 %v1357
          %1384 = vmatprep.subr.bf16.mxu0 %v1360
          %1385 = vmatpush1.bf16.msra.mxu0 %v1359
          %1386 = vmatprep.subr.bf16.mxu0 %v1362
          %1387 = vmatpush1.bf16.msra.mxu0 %v1361
          %1388 = vmatprep.subr.bf16.mxu0 0
          %1389 = vmatpush1.bf16.msra.mxu0 0
          %1390 = vmatprep.subr.bf16.mxu0 0
          %1391 = vmatpush1.bf16.msra.mxu0 0
          %1392 = vmatprep.subr.bf16.mxu0 0
          %1393 = vmatpush1.bf16.msra.mxu0 0
          %1394 = vmatprep.subr.bf16.mxu0 0
          %1395 = vmatpush1.bf16.msra.mxu0 0
          %1396 = vmatprep.subr.bf16.mxu0 0
          %1397 = vmatpush1.bf16.msra.mxu0 0
          %1398 = vmatprep.subr.bf16.mxu0 0
          %1399 = vmatpush1.bf16.msra.mxu0 0
          %1400 = vmatprep.subr.bf16.mxu0 0
          %1401 = vmatpush1.bf16.msra.mxu0 0
          %1402 = vmatprep.subr.bf16.mxu0 0
          %1403 = vmatpush1.bf16.msra.mxu0 0
          %1404 = vmatprep.subr.bf16.mxu0 0
          %1405 = vmatpush1.bf16.msra.mxu0 0
          %1406 = vmatprep.subr.bf16.mxu0 0
          %1407 = vmatpush1.bf16.msra.mxu0 0
          %1408 = vmatprep.subr.bf16.mxu0 0
          %1409 = vmatpush1.bf16.msra.mxu0 0
          %1410 = vmatprep.subr.bf16.mxu0 0
          %1411 = vmatpush1.bf16.msra.mxu0 0
          %1412 = vmatprep.mubr.bf16.mxu0 0
          %1413 = vmatmul.mubr.bf16.gmra.mrb[0].mxu0 %v1372
          %v1414 = vpop.f32.mrb[0].mxu0
          %v1415 = vadd.f32 %v1324, %v1414
          %v1416 = vpop.f32.mrb[0].mxu0
          %v1417 = vadd.f32 %v1328, %v1416
          %v1418 = vpop.f32.mrb[0].mxu0
          %v1419 = vadd.f32 %v1324, %v1418
          %v1420 = vpop.f32.mrb[0].mxu0
          %v1421 = vadd.f32 %v1328, %v1420
          %1422 = vmatprep.mubr.bf16.mxu0 0
          %1423 = vmatmul.mubr.bf16.gmra.mrb[0].mxu0 %v1375
          %v1424 = vpop.f32.mrb[0].mxu0
          %v1425 = vadd.f32 %v1324, %v1424
          %v1426 = vpop.f32.mrb[0].mxu0
          %v1427 = vadd.f32 %v1328, %v1426
          %v1428 = vpop.f32.mrb[0].mxu0
          %v1429 = vadd.f32 %v1324, %v1428
          %v1430 = vpop.f32.mrb[0].mxu0
          %v1431 = vadd.f32 %v1328, %v1430
          %1432 = vmatprep.mubr.bf16.mxu0 0
          %1433 = vmatmul.mubr.bf16.gmra.mrb[0].mxu0 %v1378
          %v1434 = vpop.f32.mrb[0].mxu0
          %v1435 = vadd.f32 %v1324, %v1434
          %v1436 = vpop.f32.mrb[0].mxu0
          %v1437 = vadd.f32 %v1328, %v1436
          %v1438 = vpop.f32.mrb[0].mxu0
          %v1439 = vadd.f32 %v1324, %v1438
          %v1440 = vpop.f32.mrb[0].mxu0
          %v1441 = vadd.f32 %v1328, %v1440
          %1442 = vdwg.mxu0
          %v1443 = vpack.c.bf16 %v1419, %v1415
          %v1444 = vpack.c.bf16 %v1421, %v1417
          %v1445 = vpack.c.bf16 %v1429, %v1425
          %v1446 = vpack.c.bf16 %v1431, %v1427
          %v1447 = vpack.c.bf16 %v1439, %v1435
          %v1448 = vpack.c.bf16 %v1441, %v1437
          %1451 = vrot.lane.b32.xlu0 %v1443, 112
          %v1452 = vpop.permute.xlu0 %1451
          %1453 = vrot.lane.b32.xlu0 %v1445, 112
          %v1454 = vpop.permute.xlu0 %1453
          %v1456 = vcombine.high %v1443, 0
          %v1458 = vunpack.c.l.s4 1983009808
          %v1459 = vunpack.c.0.s8 %v1458
          %v1460 = vlaneseq
          %v1461 = vshrl.u32 %v1460, 7
          %v1462 = vsub.s32 %v1459, %v1461
          %v1463 = vrot.slane %v1443, %v1462
          %v1465 = vunpack.c.l.s4 1983009808
          %v1466 = vunpack.c.0.s8 %v1465
          %v1467 = vlaneseq
          %v1468 = vshrl.u32 %v1467, 7
          %v1469 = vsub.s32 %v1466, %v1468
          %v1470 = vrot.slane %v1456, %v1469
          %v1471 = vcombine.high %v1463, 0
          %v1473 = vunpack.c.l.s4 1934713408
          %v1474 = vunpack.c.0.s8 %v1473
          %v1475 = vlaneseq
          %v1476 = vshrl.u32 %v1475, 7
          %v1477 = vsub.s32 %v1474, %v1476
          %v1478 = vrot.slane %v1463, %v1477
          %v1480 = vunpack.c.l.s4 1934713408
          %v1481 = vunpack.c.0.s8 %v1480
          %v1482 = vlaneseq
          %v1483 = vshrl.u32 %v1482, 7
          %v1484 = vsub.s32 %v1481, %v1483
          %v1485 = vrot.slane %v1471, %v1484
          %v1486 = vcombine.high %v1470, 0
          %v1488 = vunpack.c.l.s4 1934713408
          %v1489 = vunpack.c.0.s8 %v1488
          %v1490 = vlaneseq
          %v1491 = vshrl.u32 %v1490, 7
          %v1492 = vsub.s32 %v1489, %v1491
          %v1493 = vrot.slane %v1470, %v1492
          %v1495 = vunpack.c.l.s4 1934713408
          %v1496 = vunpack.c.0.s8 %v1495
          %v1497 = vlaneseq
          %v1498 = vshrl.u32 %v1497, 7
          %v1499 = vsub.s32 %v1496, %v1498
          %v1500 = vrot.slane %v1486, %v1499
          %v1501 = vcombine.high %v1478, 0
          %v1502 = vcombine.high %v1485, 0
          %v1503 = vcombine.high %v1493, 0
          %v1504 = vcombine.high %v1500, 0
          %v1505 = vcombine.high %v1452, 0
          %v1507 = vunpack.c.l.s4 1983009808
          %v1508 = vunpack.c.0.s8 %v1507
          %v1509 = vlaneseq
          %v1510 = vshrl.u32 %v1509, 7
          %v1511 = vsub.s32 %v1508, %v1510
          %v1512 = vrot.slane %v1452, %v1511
          %v1514 = vunpack.c.l.s4 1983009808
          %v1515 = vunpack.c.0.s8 %v1514
          %v1516 = vlaneseq
          %v1517 = vshrl.u32 %v1516, 7
          %v1518 = vsub.s32 %v1515, %v1517
          %v1519 = vrot.slane %v1505, %v1518
          %v1520 = vcombine.high %v1512, 0
          %v1522 = vunpack.c.l.s4 1934713408
          %v1523 = vunpack.c.0.s8 %v1522
          %v1524 = vlaneseq
          %v1525 = vshrl.u32 %v1524, 7
          %v1526 = vsub.s32 %v1523, %v1525
          %v1527 = vrot.slane %v1512, %v1526
          %v1529 = vunpack.c.l.s4 1934713408
          %v1530 = vunpack.c.0.s8 %v1529
          %v1531 = vlaneseq
          %v1532 = vshrl.u32 %v1531, 7
          %v1533 = vsub.s32 %v1530, %v1532
          %v1534 = vrot.slane %v1520, %v1533
          %v1535 = vcombine.high %v1519, 0
          %v1537 = vunpack.c.l.s4 1934713408
          %v1538 = vunpack.c.0.s8 %v1537
          %v1539 = vlaneseq
          %v1540 = vshrl.u32 %v1539, 7
          %v1541 = vsub.s32 %v1538, %v1540
          %v1542 = vrot.slane %v1519, %v1541
          %v1544 = vunpack.c.l.s4 1934713408
          %v1545 = vunpack.c.0.s8 %v1544
          %v1546 = vlaneseq
          %v1547 = vshrl.u32 %v1546, 7
          %v1548 = vsub.s32 %v1545, %v1547
          %v1549 = vrot.slane %v1535, %v1548
          %v1550 = vcombine.high %v1527, 0
          %v1551 = vcombine.high %v1534, 0
          %v1552 = vcombine.high %v1542, 0
          %v1553 = vcombine.high %v1549, 0
          %v1555 = vunpack.c.l.s4 1983009808
          %v1556 = vunpack.c.0.s8 %v1555
          %v1557 = vlaneseq
          %v1558 = vshrl.u32 %v1557, 7
          %v1559 = vsub.s32 %v1556, %v1558
          %v1560 = vrot.slane %v1445, %v1559
          %v1561 = vcombine.high %v1560, 0
          %v1563 = vunpack.c.l.s4 1934713408
          %v1564 = vunpack.c.0.s8 %v1563
          %v1565 = vlaneseq
          %v1566 = vshrl.u32 %v1565, 7
          %v1567 = vsub.s32 %v1564, %v1566
          %v1568 = vrot.slane %v1560, %v1567
          %v1570 = vunpack.c.l.s4 1934713408
          %v1571 = vunpack.c.0.s8 %v1570
          %v1572 = vlaneseq
          %v1573 = vshrl.u32 %v1572, 7
          %v1574 = vsub.s32 %v1571, %v1573
          %v1575 = vrot.slane %v1561, %v1574
          %v1576 = vcombine.high %v1568, 0
          %v1577 = vcombine.high %v1575, 0
          %v1580 = vunpack.c.l.s4 1983009808
          %v1581 = vunpack.c.0.s8 %v1580
          %v1582 = vlaneseq
          %v1583 = vshrl.u32 %v1582, 7
          %v1584 = vsub.s32 %v1581, %v1583
          %v1585 = vrot.slane %v1454, %v1584
          %v1586 = vcombine.high %v1585, 0
          %v1588 = vunpack.c.l.s4 1934713408
          %v1589 = vunpack.c.0.s8 %v1588
          %v1590 = vlaneseq
          %v1591 = vshrl.u32 %v1590, 7
          %v1592 = vsub.s32 %v1589, %v1591
          %v1593 = vrot.slane %v1585, %v1592
          %v1595 = vunpack.c.l.s4 1934713408
          %v1596 = vunpack.c.0.s8 %v1595
          %v1597 = vlaneseq
          %v1598 = vshrl.u32 %v1597, 7
          %v1599 = vsub.s32 %v1596, %v1598
          %v1600 = vrot.slane %v1586, %v1599
          %v1601 = vcombine.high %v1593, 0
          %v1602 = vcombine.high %v1600, 0
          %v1605 = vpack.i.b16 %v1527, %v1478
          %v1607 = vshrl.u32 %v1478, 16
          %v1608 = vshrl.u32 %v1527, 16
          %v1609 = vpack.i.b16 %v1608, %v1607
          %v1613 = vpack.i.b16 %v1550, %v1501
          %v1615 = vshrl.u32 %v1501, 16
          %v1616 = vshrl.u32 %v1550, 16
          %v1617 = vpack.i.b16 %v1616, %v1615
          %v1621 = vpack.i.b16 %v1534, %v1485
          %v1623 = vshrl.u32 %v1485, 16
          %v1624 = vshrl.u32 %v1534, 16
          %v1625 = vpack.i.b16 %v1624, %v1623
          %v1629 = vpack.i.b16 %v1551, %v1502
          %v1631 = vshrl.u32 %v1502, 16
          %v1632 = vshrl.u32 %v1551, 16
          %v1633 = vpack.i.b16 %v1632, %v1631
          %v1637 = vpack.i.b16 %v1542, %v1493
          %v1639 = vshrl.u32 %v1493, 16
          %v1640 = vshrl.u32 %v1542, 16
          %v1641 = vpack.i.b16 %v1640, %v1639
          %v1645 = vpack.i.b16 %v1552, %v1503
          %v1647 = vshrl.u32 %v1503, 16
          %v1648 = vshrl.u32 %v1552, 16
          %v1649 = vpack.i.b16 %v1648, %v1647
          %v1653 = vpack.i.b16 %v1549, %v1500
          %v1655 = vshrl.u32 %v1500, 16
          %v1656 = vshrl.u32 %v1549, 16
          %v1657 = vpack.i.b16 %v1656, %v1655
          %v1661 = vpack.i.b16 %v1553, %v1504
          %v1663 = vshrl.u32 %v1504, 16
          %v1664 = vshrl.u32 %v1553, 16
          %v1665 = vpack.i.b16 %v1664, %v1663
          %v1669 = vpack.i.b16 %v1593, %v1568
          %v1671 = vshrl.u32 %v1568, 16
          %v1672 = vshrl.u32 %v1593, 16
          %v1673 = vpack.i.b16 %v1672, %v1671
          %v1677 = vpack.i.b16 %v1601, %v1576
          %v1679 = vshrl.u32 %v1576, 16
          %v1680 = vshrl.u32 %v1601, 16
          %v1681 = vpack.i.b16 %v1680, %v1679
          %v1685 = vpack.i.b16 %v1600, %v1575
          %v1687 = vshrl.u32 %v1575, 16
          %v1688 = vshrl.u32 %v1600, 16
          %v1689 = vpack.i.b16 %v1688, %v1687
          %v1693 = vpack.i.b16 %v1602, %v1577
          %v1695 = vshrl.u32 %v1577, 16
          %v1696 = vshrl.u32 %v1602, 16
          %v1697 = vpack.i.b16 %v1696, %v1695
          %v1699 = vmul.bf16 %v1605, 1048592000
          %v1700 = vmul.bf16 %v1609, 1048592000
          %v1701 = vmul.bf16 %v1613, 1048592000
          %v1702 = vmul.bf16 %v1617, 1048592000
          %v1703 = vmul.bf16 %v1621, 1048592000
          %v1704 = vmul.bf16 %v1625, 1048592000
          %v1705 = vmul.bf16 %v1629, 1048592000
          %v1706 = vmul.bf16 %v1633, 1048592000
          %v1707 = vmul.bf16 %v1637, 1048592000
          %v1708 = vmul.bf16 %v1641, 1048592000
          %v1709 = vmul.bf16 %v1645, 1048592000
          %v1710 = vmul.bf16 %v1649, 1048592000
          %v1711 = vmul.bf16 %v1653, 1048592000
          %v1712 = vmul.bf16 %v1657, 1048592000
          %v1713 = vmul.bf16 %v1661, 1048592000
          %v1714 = vmul.bf16 %v1665, 1048592000
          %v1715 = vmul.bf16 %v1669, 1048592000
          %v1716 = vmul.bf16 %v1673, 1048592000
          %v1717 = vmul.bf16 %v1677, 1048592000
          %v1718 = vmul.bf16 %v1681, 1048592000
          %v1719 = vmul.bf16 %v1685, 1048592000
          %v1720 = vmul.bf16 %v1689, 1048592000
          %v1721 = vmul.bf16 %v1693, 1048592000
          %v1722 = vmul.bf16 %v1697, 1048592000
          %1725 = vrot.lane.b32.xlu0 %v1444, 112
          %v1726 = vpop.permute.xlu0 %1725
          %1727 = vrot.lane.b32.xlu0 %v1446, 112
          %v1728 = vpop.permute.xlu0 %1727
          %v1731 = vcombine.low %v1699, %v1703
          %v1733 = vunpack.c.l.s4 1983009808
          %v1734 = vunpack.c.0.s8 %v1733
          %v1735 = vlaneseq
          %v1736 = vshrl.u32 %v1735, 7
          %v1737 = vsub.s32 %v1734, %v1736
          %v1738 = vrot.slane %v1731, %v1737
          %v1739 = vcombine.low %v1701, %v1705
          %v1741 = vunpack.c.l.s4 1983009808
          %v1742 = vunpack.c.0.s8 %v1741
          %v1743 = vlaneseq
          %v1744 = vshrl.u32 %v1743, 7
          %v1745 = vsub.s32 %v1742, %v1744
          %v1746 = vrot.slane %v1739, %v1745
          %v1747 = vcombine.low %v1707, %v1711
          %v1749 = vunpack.c.l.s4 1983009808
          %v1750 = vunpack.c.0.s8 %v1749
          %v1751 = vlaneseq
          %v1752 = vshrl.u32 %v1751, 7
          %v1753 = vsub.s32 %v1750, %v1752
          %v1754 = vrot.slane %v1747, %v1753
          %v1755 = vcombine.low %v1709, %v1713
          %v1757 = vunpack.c.l.s4 1983009808
          %v1758 = vunpack.c.0.s8 %v1757
          %v1759 = vlaneseq
          %v1760 = vshrl.u32 %v1759, 7
          %v1761 = vsub.s32 %v1758, %v1760
          %v1762 = vrot.slane %v1755, %v1761
          %v1763 = vcombine.low %v1738, %v1746
          %v1765 = vunpack.c.l.s4 1934713408
          %v1766 = vunpack.c.0.s8 %v1765
          %v1767 = vlaneseq
          %v1768 = vshrl.u32 %v1767, 7
          %v1769 = vsub.s32 %v1766, %v1768
          %v1770 = vrot.slane %v1763, %v1769
          %v1771 = vcombine.low %v1754, %v1762
          %v1773 = vunpack.c.l.s4 1934713408
          %v1774 = vunpack.c.0.s8 %v1773
          %v1775 = vlaneseq
          %v1776 = vshrl.u32 %v1775, 7
          %v1777 = vsub.s32 %v1774, %v1776
          %v1778 = vrot.slane %v1771, %v1777
          %v1779 = vcombine.low %v1770, %v1778
          %v1780 = vcombine.low %v1700, %v1704
          %v1782 = vunpack.c.l.s4 1983009808
          %v1783 = vunpack.c.0.s8 %v1782
          %v1784 = vlaneseq
          %v1785 = vshrl.u32 %v1784, 7
          %v1786 = vsub.s32 %v1783, %v1785
          %v1787 = vrot.slane %v1780, %v1786
          %v1788 = vcombine.low %v1702, %v1706
          %v1790 = vunpack.c.l.s4 1983009808
          %v1791 = vunpack.c.0.s8 %v1790
          %v1792 = vlaneseq
          %v1793 = vshrl.u32 %v1792, 7
          %v1794 = vsub.s32 %v1791, %v1793
          %v1795 = vrot.slane %v1788, %v1794
          %v1796 = vcombine.low %v1708, %v1712
          %v1798 = vunpack.c.l.s4 1983009808
          %v1799 = vunpack.c.0.s8 %v1798
          %v1800 = vlaneseq
          %v1801 = vshrl.u32 %v1800, 7
          %v1802 = vsub.s32 %v1799, %v1801
          %v1803 = vrot.slane %v1796, %v1802
          %v1804 = vcombine.low %v1710, %v1714
          %v1806 = vunpack.c.l.s4 1983009808
          %v1807 = vunpack.c.0.s8 %v1806
          %v1808 = vlaneseq
          %v1809 = vshrl.u32 %v1808, 7
          %v1810 = vsub.s32 %v1807, %v1809
          %v1811 = vrot.slane %v1804, %v1810
          %v1812 = vcombine.low %v1787, %v1795
          %v1814 = vunpack.c.l.s4 1934713408
          %v1815 = vunpack.c.0.s8 %v1814
          %v1816 = vlaneseq
          %v1817 = vshrl.u32 %v1816, 7
          %v1818 = vsub.s32 %v1815, %v1817
          %v1819 = vrot.slane %v1812, %v1818
          %v1820 = vcombine.low %v1803, %v1811
          %v1822 = vunpack.c.l.s4 1934713408
          %v1823 = vunpack.c.0.s8 %v1822
          %v1824 = vlaneseq
          %v1825 = vshrl.u32 %v1824, 7
          %v1826 = vsub.s32 %v1823, %v1825
          %v1827 = vrot.slane %v1820, %v1826
          %v1828 = vcombine.low %v1819, %v1827
          %v1829 = vcombine.low %v1715, %v1719
          %v1831 = vunpack.c.l.s4 1983009808
          %v1832 = vunpack.c.0.s8 %v1831
          %v1833 = vlaneseq
          %v1834 = vshrl.u32 %v1833, 7
          %v1835 = vsub.s32 %v1832, %v1834
          %v1836 = vrot.slane %v1829, %v1835
          %v1837 = vcombine.low %v1717, %v1721
          %v1839 = vunpack.c.l.s4 1983009808
          %v1840 = vunpack.c.0.s8 %v1839
          %v1841 = vlaneseq
          %v1842 = vshrl.u32 %v1841, 7
          %v1843 = vsub.s32 %v1840, %v1842
          %v1844 = vrot.slane %v1837, %v1843
          %v1845 = vcombine.low %v1836, %v1844
          %v1847 = vunpack.c.l.s4 1934713408
          %v1848 = vunpack.c.0.s8 %v1847
          %v1849 = vlaneseq
          %v1850 = vshrl.u32 %v1849, 7
          %v1851 = vsub.s32 %v1848, %v1850
          %v1852 = vrot.slane %v1845, %v1851
          %v1853 = vcombine.low %v1716, %v1720
          %v1855 = vunpack.c.l.s4 1983009808
          %v1856 = vunpack.c.0.s8 %v1855
          %v1857 = vlaneseq
          %v1858 = vshrl.u32 %v1857, 7
          %v1859 = vsub.s32 %v1856, %v1858
          %v1860 = vrot.slane %v1853, %v1859
          %v1861 = vcombine.low %v1718, %v1722
          %v1863 = vunpack.c.l.s4 1983009808
          %v1864 = vunpack.c.0.s8 %v1863
          %v1865 = vlaneseq
          %v1866 = vshrl.u32 %v1865, 7
          %v1867 = vsub.s32 %v1864, %v1866
          %v1868 = vrot.slane %v1861, %v1867
          %v1869 = vcombine.low %v1860, %v1868
          %v1871 = vunpack.c.l.s4 1934713408
          %v1872 = vunpack.c.0.s8 %v1871
          %v1873 = vlaneseq
          %v1874 = vshrl.u32 %v1873, 7
          %v1875 = vsub.s32 %v1872, %v1874
          %v1876 = vrot.slane %v1869, %v1875
          %v1879 = vpack.i.b16 %v1828, %v1779
          %v1880 = vshrl.u32 %v1779, 16
          %v1881 = vshrl.u32 %v1828, 16
          %v1882 = vpack.i.b16 %v1881, %v1880
          %v1885 = vpack.i.b16 %v1876, %v1852
          %v1886 = vshrl.u32 %v1852, 16
          %v1887 = vshrl.u32 %v1876, 16
          %v1888 = vpack.i.b16 %v1887, %v1886
          %1889 = vrot.lane.b32.xlu0 %v1443, 64
          %v1890 = vpop.permute.xlu0 %1889
          %1891 = vrot.lane.b32.xlu0 %v1445, 64
          %v1892 = vpop.permute.xlu0 %1891
          %1893 = vrot.lane.b32.xlu0 %v1452, 64
          %v1894 = vpop.permute.xlu0 %1893
          %1895 = vrot.lane.b32.xlu0 %v1454, 64
          %v1896 = vpop.permute.xlu0 %1895
          %1901 = vxpose.xlu0.c.b16.start [1/8] %v1890, 128
          %1902 = vxpose.xlu0.c.b16.cont [2/8] %v1892, 128
          %1903 = vxpose.xlu0.c.b16.cont [3/8] 0, 128
          %1904 = vxpose.xlu0.c.b16.cont [4/8] 0, 128
          %1905 = vxpose.xlu0.c.b16.cont [5/8] 0, 128
          %1906 = vxpose.xlu0.c.b16.cont [6/8] 0, 128
          %1907 = vxpose.xlu0.c.b16.cont [7/8] 0, 128
          %1908 = vxpose.xlu0.c.b16.end [8/8] 0, 128
          %v1909 = vpop.trf.xlu0
          %v1910 = vpop.trf.xlu0
          %v1911 = vpop.trf.xlu0
          %v1912 = vpop.trf.xlu0
          %v1913 = vpop.trf.xlu0
          %v1914 = vpop.trf.xlu0
          %v1915 = vpop.trf.xlu0
          %v1916 = vpop.trf.xlu0
          %1917 = vxpose.xlu0.c.b16.start [1/8] %v1894, 128
          %1918 = vxpose.xlu0.c.b16.cont [2/8] %v1896, 128
          %1919 = vxpose.xlu0.c.b16.cont [3/8] 0, 128
          %1920 = vxpose.xlu0.c.b16.cont [4/8] 0, 128
          %1921 = vxpose.xlu0.c.b16.cont [5/8] 0, 128
          %1922 = vxpose.xlu0.c.b16.cont [6/8] 0, 128
          %1923 = vxpose.xlu0.c.b16.cont [7/8] 0, 128
          %1924 = vxpose.xlu0.c.b16.end [8/8] 0, 128
          %v1925 = vpop.trf.xlu0
          %v1926 = vpop.trf.xlu0
          %v1927 = vpop.trf.xlu0
          %v1928 = vpop.trf.xlu0
          %v1929 = vpop.trf.xlu0
          %v1930 = vpop.trf.xlu0
          %v1931 = vpop.trf.xlu0
          %v1932 = vpop.trf.xlu0
          %vm1933 = vcmask 130048
          %v1935 = vsel %vm1933, %v1879, 0
          %v1938 = vsel %vm1933, %v1885, 0
          %1940 = vmatprep.subr.bf16.mxu0 0
          %1941 = vmatpush1.bf16.msra.mxu0 %v1909
          %1942 = vmatprep.subr.bf16.mxu0 0
          %1943 = vmatpush1.bf16.msra.mxu0 0
          %1944 = vmatprep.subr.bf16.mxu0 0
          %1945 = vmatpush1.bf16.msra.mxu0 0
          %1946 = vmatprep.subr.bf16.mxu0 0
          %1947 = vmatpush1.bf16.msra.mxu0 0
          %1948 = vmatprep.subr.bf16.mxu0 0
          %1949 = vmatpush1.bf16.msra.mxu0 0
          %1950 = vmatprep.subr.bf16.mxu0 0
          %1951 = vmatpush1.bf16.msra.mxu0 0
          %1952 = vmatprep.subr.bf16.mxu0 0
          %1953 = vmatpush1.bf16.msra.mxu0 0
          %1954 = vmatprep.subr.bf16.mxu0 0
          %1955 = vmatpush1.bf16.msra.mxu0 0
          %1956 = vmatprep.subr.bf16.mxu0 0
          %1957 = vmatpush1.bf16.msra.mxu0 0
          %1958 = vmatprep.subr.bf16.mxu0 0
          %1959 = vmatpush1.bf16.msra.mxu0 0
          %1960 = vmatprep.subr.bf16.mxu0 0
          %1961 = vmatpush1.bf16.msra.mxu0 0
          %1962 = vmatprep.subr.bf16.mxu0 0
          %1963 = vmatpush1.bf16.msra.mxu0 0
          %1964 = vmatprep.subr.bf16.mxu0 0
          %1965 = vmatpush1.bf16.msra.mxu0 0
          %1966 = vmatprep.subr.bf16.mxu0 0
          %1967 = vmatpush1.bf16.msra.mxu0 0
          %1968 = vmatprep.subr.bf16.mxu0 0
          %1969 = vmatpush1.bf16.msra.mxu0 0
          %1970 = vmatprep.subr.bf16.mxu0 0
          %1971 = vmatpush1.bf16.msra.mxu0 0
          %1972 = vmatprep.mubr.bf16.mxu0 0
          %1973 = vmatmul.mubr.bf16.gmra.mrb[0].mxu0 %v1935
          %v1974 = vpop.f32.mrb[0].mxu0
          %v1975 = vadd.f32 0.0, %v1974
          %v1976 = vpop.f32.mrb[0].mxu0
          %v1977 = vpop.f32.mrb[0].mxu0
          %v1978 = vadd.f32 0.0, %v1977
          %v1979 = vpop.f32.mrb[0].mxu0
          %1980 = vmatprep.mubr.bf16.mxu0 0
          %1981 = vmatmul.mubr.bf16.gmra.mrb[0].mxu0 %v1938
          %v1982 = vpop.f32.mrb[0].mxu0
          %v1983 = vadd.f32 0.0, %v1982
          %v1984 = vpop.f32.mrb[0].mxu0
          %v1985 = vpop.f32.mrb[0].mxu0
          %v1986 = vpop.f32.mrb[0].mxu0
          %1987 = vdwg.mxu0
          %v1989 = vsel %vm1933, %v1882, 0
          %v1992 = vsel %vm1933, %v1888, 0
          %1994 = vmatprep.subr.bf16.mxu0 0
          %1995 = vmatpush1.bf16.msra.mxu0 %v1925
          %1996 = vmatprep.subr.bf16.mxu0 0
          %1997 = vmatpush1.bf16.msra.mxu0 0
          %1998 = vmatprep.subr.bf16.mxu0 0
          %1999 = vmatpush1.bf16.msra.mxu0 0
          %2000 = vmatprep.subr.bf16.mxu0 0
          %2001 = vmatpush1.bf16.msra.mxu0 0
          %2002 = vmatprep.subr.bf16.mxu0 0
          %2003 = vmatpush1.bf16.msra.mxu0 0
          %2004 = vmatprep.subr.bf16.mxu0 0
          %2005 = vmatpush1.bf16.msra.mxu0 0
          %2006 = vmatprep.subr.bf16.mxu0 0
          %2007 = vmatpush1.bf16.msra.mxu0 0
          %2008 = vmatprep.subr.bf16.mxu0 0
          %2009 = vmatpush1.bf16.msra.mxu0 0
          %2010 = vmatprep.subr.bf16.mxu0 0
          %2011 = vmatpush1.bf16.msra.mxu0 0
          %2012 = vmatprep.subr.bf16.mxu0 0
          %2013 = vmatpush1.bf16.msra.mxu0 0
          %2014 = vmatprep.subr.bf16.mxu0 0
          %2015 = vmatpush1.bf16.msra.mxu0 0
          %2016 = vmatprep.subr.bf16.mxu0 0
          %2017 = vmatpush1.bf16.msra.mxu0 0
          %2018 = vmatprep.subr.bf16.mxu0 0
          %2019 = vmatpush1.bf16.msra.mxu0 0
          %2020 = vmatprep.subr.bf16.mxu0 0
          %2021 = vmatpush1.bf16.msra.mxu0 0
          %2022 = vmatprep.subr.bf16.mxu0 0
          %2023 = vmatpush1.bf16.msra.mxu0 0
          %2024 = vmatprep.subr.bf16.mxu0 0
          %2025 = vmatpush1.bf16.msra.mxu0 0
          %2026 = vmatprep.mubr.bf16.mxu0 0
          %2027 = vmatmul.mubr.bf16.gmra.mrb[0].mxu0 %v1989
          %v2028 = vpop.f32.mrb[0].mxu0
          %v2029 = vadd.f32 0.0, %v2028
          %v2030 = vpop.f32.mrb[0].mxu0
          %v2031 = vpop.f32.mrb[0].mxu0
          %v2032 = vadd.f32 0.0, %v2031
          %v2033 = vpop.f32.mrb[0].mxu0
          %2034 = vmatprep.mubr.bf16.mxu0 0
          %2035 = vmatmul.mubr.bf16.gmra.mrb[0].mxu0 %v1992
          %v2036 = vpop.f32.mrb[0].mxu0
          %v2037 = vadd.f32 0.0, %v2036
          %v2038 = vpop.f32.mrb[0].mxu0
          %v2039 = vpop.f32.mrb[0].mxu0
          %v2040 = vpop.f32.mrb[0].mxu0
          %2041 = vdwg.mxu0
          %vm2042 = vcmask 195584
          %v2043 = vsel %vm2042, %v1975, -inf
          %2044 = vmax.xlane.f32.xlu0 %v2043
          %v2045 = vpop.xlane.xlu0 %2044
          %v2046 = vsel %vm2042, %v1978, -inf
          %2047 = vmax.xlane.f32.xlu0 %v2046
          %v2048 = vpop.xlane.xlu0 %2047
          %v2049 = vsel %vm2042, %v1983, -inf
          %2050 = vmax.xlane.f32.xlu0 %v2049
          %v2051 = vpop.xlane.xlu0 %2050
          %v2052 = vsel %vm2042, %v2029, -inf
          %2053 = vmax.xlane.f32.xlu0 %v2052
          %v2054 = vpop.xlane.xlu0 %2053
          %v2055 = vsel %vm2042, %v2032, -inf
          %2056 = vmax.xlane.f32.xlu0 %v2055
          %v2057 = vpop.xlane.xlu0 %2056
          %v2058 = vsel %vm2042, %v2037, -inf
          %2059 = vmax.xlane.f32.xlu0 %v2058
          %v2060 = vpop.xlane.xlu0 %2059
          %v2061 = vsub.f32 %v1975, %v2045
          %v2062 = vsub.f32 %v1978, %v2048
          %v2063 = vsub.f32 %v1983, %v2051
          %v2064 = vsub.f32 %v2029, %v2054
          %v2065 = vsub.f32 %v2032, %v2057
          %v2066 = vsub.f32 %v2037, %v2060
          %v2067 = vmul.f32 %v2061, 1.442695
          %v2068 = vpow.pop %v2067
          %v2069 = vmul.f32 %v2062, 1.442695
          %v2070 = vpow.pop %v2069
          %v2071 = vmul.f32 %v2063, 1.442695
          %v2072 = vpow.pop %v2071
          %v2073 = vmul.f32 %v2064, 1.442695
          %v2074 = vpow.pop %v2073
          %v2075 = vmul.f32 %v2065, 1.442695
          %v2076 = vpow.pop %v2075
          %v2077 = vmul.f32 %v2066, 1.442695
          %v2078 = vpow.pop %v2077
          %v2079 = vsel %vm2042, %v2068, 0.0
          %2080 = vadd.xlane.f32.xlu0 %v2079
          %v2081 = vpop.xlane.xlu0 %2080
          %v2082 = vsel %vm2042, %v2070, 0.0
          %2083 = vadd.xlane.f32.xlu0 %v2082
          %v2084 = vpop.xlane.xlu0 %2083
          %v2085 = vsel %vm2042, %v2072, 0.0
          %2086 = vadd.xlane.f32.xlu0 %v2085
          %v2087 = vpop.xlane.xlu0 %2086
          %v2088 = vsel %vm2042, %v2074, 0.0
          %2089 = vadd.xlane.f32.xlu0 %v2088
          %v2090 = vpop.xlane.xlu0 %2089
          %v2091 = vsel %vm2042, %v2076, 0.0
          %2092 = vadd.xlane.f32.xlu0 %v2091
          %v2093 = vpop.xlane.xlu0 %2092
          %v2094 = vsel %vm2042, %v2078, 0.0
          %2095 = vadd.xlane.f32.xlu0 %v2094
          %v2096 = vpop.xlane.xlu0 %2095
          %v2097 = vrcp.pop %v2081
          %v2098 = vrcp.pop %v2084
          %v2099 = vrcp.pop %v2087
          %v2100 = vrcp.pop %v2090
          %v2101 = vrcp.pop %v2093
          %v2102 = vrcp.pop %v2096
          %v2103 = vpack.c.bf16 %v2070, %v2068
          %v2104 = vpack.c.bf16 %v2072, %v2072
          %v2105 = vpack.c.bf16 %v2076, %v2074
          %v2106 = vpack.c.bf16 %v2078, %v2078
          %2107 = vxpose.xlu0.c.b16.start [1/8] %v1444, 128
          %2108 = vxpose.xlu0.c.b16.cont [2/8] %v1446, 128
          %2109 = vxpose.xlu0.c.b16.cont [3/8] 0, 128
          %2110 = vxpose.xlu0.c.b16.cont [4/8] 0, 128
          %2111 = vxpose.xlu0.c.b16.cont [5/8] 0, 128
          %2112 = vxpose.xlu0.c.b16.cont [6/8] 0, 128
          %2113 = vxpose.xlu0.c.b16.cont [7/8] 0, 128
          %2114 = vxpose.xlu0.c.b16.end [8/8] 0, 128
          %v2115 = vpop.trf.xlu0
          %v2116 = vpop.trf.xlu0
          %v2117 = vpop.trf.xlu0
          %v2118 = vpop.trf.xlu0
          %v2119 = vpop.trf.xlu0
          %v2120 = vpop.trf.xlu0
          %v2121 = vpop.trf.xlu0
          %v2122 = vpop.trf.xlu0
          %2123 = vxpose.xlu0.c.b16.start [1/8] %v1726, 128
          %2124 = vxpose.xlu0.c.b16.cont [2/8] %v1728, 128
          %2125 = vxpose.xlu0.c.b16.cont [3/8] 0, 128
          %2126 = vxpose.xlu0.c.b16.cont [4/8] 0, 128
          %2127 = vxpose.xlu0.c.b16.cont [5/8] 0, 128
          %2128 = vxpose.xlu0.c.b16.cont [6/8] 0, 128
          %2129 = vxpose.xlu0.c.b16.cont [7/8] 0, 128
          %2130 = vxpose.xlu0.c.b16.end [8/8] 0, 128
          %v2131 = vpop.trf.xlu0
          %v2132 = vpop.trf.xlu0
          %v2133 = vpop.trf.xlu0
          %v2134 = vpop.trf.xlu0
          %v2135 = vpop.trf.xlu0
          %v2136 = vpop.trf.xlu0
          %v2137 = vpop.trf.xlu0
          %v2138 = vpop.trf.xlu0
          %v2140 = vsel %vm2042, %v2115, 0
          %v2143 = vsel %vm2042, %v2103, 0
          %v2146 = vsel %vm2042, %v2104, 0
          %2148 = vmatprep.subr.bf16.mxu0 0
          %2149 = vmatpush1.bf16.xpose.msra.mxu0 %v2143
          %2150 = vmatprep.subr.bf16.mxu0 0
          %2151 = vmatpush1.bf16.xpose.msra.mxu0 %v2146
          %2152 = vmatprep.subr.bf16.mxu0 0
          %2153 = vmatpush1.bf16.xpose.msra.mxu0 0
          %2154 = vmatprep.subr.bf16.mxu0 0
          %2155 = vmatpush1.bf16.xpose.msra.mxu0 0
          %2156 = vmatprep.subr.bf16.mxu0 0
          %2157 = vmatpush1.bf16.xpose.msra.mxu0 0
          %2158 = vmatprep.subr.bf16.mxu0 0
          %2159 = vmatpush1.bf16.xpose.msra.mxu0 0
          %2160 = vmatprep.subr.bf16.mxu0 0
          %2161 = vmatpush1.bf16.xpose.msra.mxu0 0
          %2162 = vmatprep.subr.bf16.mxu0 0
          %2163 = vmatpush1.bf16.xpose.msra.mxu0 0
          %2164 = vmatprep.subr.bf16.mxu0 0
          %2165 = vmatpush1.bf16.xpose.msra.mxu0 0
          %2166 = vmatprep.subr.bf16.mxu0 0
          %2167 = vmatpush1.bf16.xpose.msra.mxu0 0
          %2168 = vmatprep.subr.bf16.mxu0 0
          %2169 = vmatpush1.bf16.xpose.msra.mxu0 0
          %2170 = vmatprep.subr.bf16.mxu0 0
          %2171 = vmatpush1.bf16.xpose.msra.mxu0 0
          %2172 = vmatprep.subr.bf16.mxu0 0
          %2173 = vmatpush1.bf16.xpose.msra.mxu0 0
          %2174 = vmatprep.subr.bf16.mxu0 0
          %2175 = vmatpush1.bf16.xpose.msra.mxu0 0
          %2176 = vmatprep.subr.bf16.mxu0 0
          %2177 = vmatpush1.bf16.xpose.msra.mxu0 0
          %2178 = vmatprep.subr.bf16.mxu0 0
          %2179 = vmatpush1.bf16.xpose.msra.mxu0 0
          %2180 = vmatprep.mubr.bf16.mxu0 0
          %2181 = vmatmul.mubr.bf16.gmra.mrb[0].mxu0 %v2140
          %v2182 = vpop.f32.mrb[0].mxu0
          %v2183 = vadd.f32 0.0, %v2182
          %v2184 = vpop.f32.mrb[0].mxu0
          %v2185 = vpop.f32.mrb[0].mxu0
          %v2186 = vadd.f32 0.0, %v2185
          %v2187 = vpop.f32.mrb[0].mxu0
          %2188 = vdwg.mxu0
          %v2190 = vsel %vm2042, %v2131, 0
          %v2193 = vsel %vm2042, %v2105, 0
          %v2196 = vsel %vm2042, %v2106, 0
          %2198 = vmatprep.subr.bf16.mxu0 0
          %2199 = vmatpush1.bf16.xpose.msra.mxu0 %v2193
          %2200 = vmatprep.subr.bf16.mxu0 0
          %2201 = vmatpush1.bf16.xpose.msra.mxu0 %v2196
          %2202 = vmatprep.subr.bf16.mxu0 0
          %2203 = vmatpush1.bf16.xpose.msra.mxu0 0
          %2204 = vmatprep.subr.bf16.mxu0 0
          %2205 = vmatpush1.bf16.xpose.msra.mxu0 0
          %2206 = vmatprep.subr.bf16.mxu0 0
          %2207 = vmatpush1.bf16.xpose.msra.mxu0 0
          %2208 = vmatprep.subr.bf16.mxu0 0
          %2209 = vmatpush1.bf16.xpose.msra.mxu0 0
          %2210 = vmatprep.subr.bf16.mxu0 0
          %2211 = vmatpush1.bf16.xpose.msra.mxu0 0
          %2212 = vmatprep.subr.bf16.mxu0 0
          %2213 = vmatpush1.bf16.xpose.msra.mxu0 0
          %2214 = vmatprep.subr.bf16.mxu0 0
          %2215 = vmatpush1.bf16.xpose.msra.mxu0 0
          %2216 = vmatprep.subr.bf16.mxu0 0
          %2217 = vmatpush1.bf16.xpose.msra.mxu0 0
          %2218 = vmatprep.subr.bf16.mxu0 0
          %2219 = vmatpush1.bf16.xpose.msra.mxu0 0
          %2220 = vmatprep.subr.bf16.mxu0 0
          %2221 = vmatpush1.bf16.xpose.msra.mxu0 0
          %2222 = vmatprep.subr.bf16.mxu0 0
          %2223 = vmatpush1.bf16.xpose.msra.mxu0 0
          %2224 = vmatprep.subr.bf16.mxu0 0
          %2225 = vmatpush1.bf16.xpose.msra.mxu0 0
          %2226 = vmatprep.subr.bf16.mxu0 0
          %2227 = vmatpush1.bf16.xpose.msra.mxu0 0
          %2228 = vmatprep.subr.bf16.mxu0 0
          %2229 = vmatpush1.bf16.xpose.msra.mxu0 0
          %2230 = vmatprep.mubr.bf16.mxu0 0
          %2231 = vmatmul.mubr.bf16.gmra.mrb[0].mxu0 %v2190
          %v2232 = vpop.f32.mrb[0].mxu0
          %v2233 = vadd.f32 0.0, %v2232
          %v2234 = vpop.f32.mrb[0].mxu0
          %v2235 = vpop.f32.mrb[0].mxu0
          %v2236 = vadd.f32 0.0, %v2235
          %v2237 = vpop.f32.mrb[0].mxu0
          %2238 = vdwg.mxu0
          %2239 = vxpose.xlu0.b32.start [1/16] %v2183, 128
          %2240 = vxpose.xlu0.b32.cont [2/16] %v2186, 128
          %2241 = vxpose.xlu0.b32.cont [3/16] 0.0, 128
          %2242 = vxpose.xlu0.b32.cont [4/16] 0.0, 128
          %2243 = vxpose.xlu0.b32.cont [5/16] 0.0, 128
          %2244 = vxpose.xlu0.b32.cont [6/16] 0.0, 128
          %2245 = vxpose.xlu0.b32.cont [7/16] 0.0, 128
          %2246 = vxpose.xlu0.b32.cont [8/16] 0.0, 128
          %2247 = vxpose.xlu0.b32.cont [9/16] 0.0, 128
          %2248 = vxpose.xlu0.b32.cont [10/16] 0.0, 128
          %2249 = vxpose.xlu0.b32.cont [11/16] 0.0, 128
          %2250 = vxpose.xlu0.b32.cont [12/16] 0.0, 128
          %2251 = vxpose.xlu0.b32.cont [13/16] 0.0, 128
          %2252 = vxpose.xlu0.b32.cont [14/16] 0.0, 128
          %2253 = vxpose.xlu0.b32.cont [15/16] 0.0, 128
          %2254 = vxpose.xlu0.b32.end [16/16] 0.0, 128
          %v2255 = vpop.trf.xlu0
          %v2256 = vpop.trf.xlu0
          %v2257 = vpop.trf.xlu0
          %v2258 = vpop.trf.xlu0
          %v2259 = vpop.trf.xlu0
          %v2260 = vpop.trf.xlu0
          %v2261 = vpop.trf.xlu0
          %v2262 = vpop.trf.xlu0
          %v2263 = vpop.trf.xlu0
          %v2264 = vpop.trf.xlu0
          %v2265 = vpop.trf.xlu0
          %v2266 = vpop.trf.xlu0
          %v2267 = vpop.trf.xlu0
          %v2268 = vpop.trf.xlu0
          %v2269 = vpop.trf.xlu0
          %v2270 = vpop.trf.xlu0
          %2271 = vxpose.xlu0.b32.start [1/16] %v2233, 128
          %2272 = vxpose.xlu0.b32.cont [2/16] %v2236, 128
          %2273 = vxpose.xlu0.b32.cont [3/16] 0.0, 128
          %2274 = vxpose.xlu0.b32.cont [4/16] 0.0, 128
          %2275 = vxpose.xlu0.b32.cont [5/16] 0.0, 128
          %2276 = vxpose.xlu0.b32.cont [6/16] 0.0, 128
          %2277 = vxpose.xlu0.b32.cont [7/16] 0.0, 128
          %2278 = vxpose.xlu0.b32.cont [8/16] 0.0, 128
          %2279 = vxpose.xlu0.b32.cont [9/16] 0.0, 128
          %2280 = vxpose.xlu0.b32.cont [10/16] 0.0, 128
          %2281 = vxpose.xlu0.b32.cont [11/16] 0.0, 128
          %2282 = vxpose.xlu0.b32.cont [12/16] 0.0, 128
          %2283 = vxpose.xlu0.b32.cont [13/16] 0.0, 128
          %2284 = vxpose.xlu0.b32.cont [14/16] 0.0, 128
          %2285 = vxpose.xlu0.b32.cont [15/16] 0.0, 128
          %2286 = vxpose.xlu0.b32.end [16/16] 0.0, 128
          %v2287 = vpop.trf.xlu0
          %v2288 = vpop.trf.xlu0
          %v2289 = vpop.trf.xlu0
          %v2290 = vpop.trf.xlu0
          %v2291 = vpop.trf.xlu0
          %v2292 = vpop.trf.xlu0
          %v2293 = vpop.trf.xlu0
          %v2294 = vpop.trf.xlu0
          %v2295 = vpop.trf.xlu0
          %v2296 = vpop.trf.xlu0
          %v2297 = vpop.trf.xlu0
          %v2298 = vpop.trf.xlu0
          %v2299 = vpop.trf.xlu0
          %v2300 = vpop.trf.xlu0
          %v2301 = vpop.trf.xlu0
          %v2302 = vpop.trf.xlu0
          %v2303 = vcombine.high %v2255, 0.0
          %v2305 = vunpack.c.l.s4 1983009808
          %v2306 = vunpack.c.0.s8 %v2305
          %v2307 = vlaneseq
          %v2308 = vshrl.u32 %v2307, 7
          %v2309 = vsub.s32 %v2306, %v2308
          %v2310 = vrot.slane %v2255, %v2309
          %v2312 = vunpack.c.l.s4 1983009808
          %v2313 = vunpack.c.0.s8 %v2312
          %v2314 = vlaneseq
          %v2315 = vshrl.u32 %v2314, 7
          %v2316 = vsub.s32 %v2313, %v2315
          %v2317 = vrot.slane %v2303, %v2316
          %v2318 = vcombine.high %v2287, 0.0
          %v2320 = vunpack.c.l.s4 1983009808
          %v2321 = vunpack.c.0.s8 %v2320
          %v2322 = vlaneseq
          %v2323 = vshrl.u32 %v2322, 7
          %v2324 = vsub.s32 %v2321, %v2323
          %v2325 = vrot.slane %v2287, %v2324
          %v2327 = vunpack.c.l.s4 1983009808
          %v2328 = vunpack.c.0.s8 %v2327
          %v2329 = vlaneseq
          %v2330 = vshrl.u32 %v2329, 7
          %v2331 = vsub.s32 %v2328, %v2330
          %v2332 = vrot.slane %v2318, %v2331
          %v2333 = vcombine.low %v2310, %v2325
          %v2334 = vcombine.high %v2310, %v2325
          %v2336 = vunpack.c.l.s4 1934713408
          %v2337 = vunpack.c.0.s8 %v2336
          %v2338 = vlaneseq
          %v2339 = vshrl.u32 %v2338, 7
          %v2340 = vsub.s32 %v2337, %v2339
          %v2341 = vrot.slane %v2333, %v2340
          %v2343 = vunpack.c.l.s4 1934713408
          %v2344 = vunpack.c.0.s8 %v2343
          %v2345 = vlaneseq
          %v2346 = vshrl.u32 %v2345, 7
          %v2347 = vsub.s32 %v2344, %v2346
          %v2348 = vrot.slane %v2334, %v2347
          %v2349 = vcombine.low %v2317, %v2332
          %v2350 = vcombine.high %v2317, %v2332
          %v2352 = vunpack.c.l.s4 1934713408
          %v2353 = vunpack.c.0.s8 %v2352
          %v2354 = vlaneseq
          %v2355 = vshrl.u32 %v2354, 7
          %v2356 = vsub.s32 %v2353, %v2355
          %v2357 = vrot.slane %v2349, %v2356
          %v2359 = vunpack.c.l.s4 1934713408
          %v2360 = vunpack.c.0.s8 %v2359
          %v2361 = vlaneseq
          %v2362 = vshrl.u32 %v2361, 7
          %v2363 = vsub.s32 %v2360, %v2362
          %v2364 = vrot.slane %v2350, %v2363
          %v2365 = vcombine.high %v2341, 0.0
          %v2366 = vcombine.high %v2348, 0.0
          %v2367 = vcombine.high %v2357, 0.0
          %v2368 = vcombine.high %v2364, 0.0
          %v2369 = vcombine.high %v2256, 0.0
          %v2371 = vunpack.c.l.s4 1983009808
          %v2372 = vunpack.c.0.s8 %v2371
          %v2373 = vlaneseq
          %v2374 = vshrl.u32 %v2373, 7
          %v2375 = vsub.s32 %v2372, %v2374
          %v2376 = vrot.slane %v2256, %v2375
          %v2378 = vunpack.c.l.s4 1983009808
          %v2379 = vunpack.c.0.s8 %v2378
          %v2380 = vlaneseq
          %v2381 = vshrl.u32 %v2380, 7
          %v2382 = vsub.s32 %v2379, %v2381
          %v2383 = vrot.slane %v2369, %v2382
          %v2384 = vcombine.high %v2288, 0.0
          %v2386 = vunpack.c.l.s4 1983009808
          %v2387 = vunpack.c.0.s8 %v2386
          %v2388 = vlaneseq
          %v2389 = vshrl.u32 %v2388, 7
          %v2390 = vsub.s32 %v2387, %v2389
          %v2391 = vrot.slane %v2288, %v2390
          %v2393 = vunpack.c.l.s4 1983009808
          %v2394 = vunpack.c.0.s8 %v2393
          %v2395 = vlaneseq
          %v2396 = vshrl.u32 %v2395, 7
          %v2397 = vsub.s32 %v2394, %v2396
          %v2398 = vrot.slane %v2384, %v2397
          %v2399 = vcombine.low %v2376, %v2391
          %v2400 = vcombine.high %v2376, %v2391
          %v2402 = vunpack.c.l.s4 1934713408
          %v2403 = vunpack.c.0.s8 %v2402
          %v2404 = vlaneseq
          %v2405 = vshrl.u32 %v2404, 7
          %v2406 = vsub.s32 %v2403, %v2405
          %v2407 = vrot.slane %v2399, %v2406
          %v2409 = vunpack.c.l.s4 1934713408
          %v2410 = vunpack.c.0.s8 %v2409
          %v2411 = vlaneseq
          %v2412 = vshrl.u32 %v2411, 7
          %v2413 = vsub.s32 %v2410, %v2412
          %v2414 = vrot.slane %v2400, %v2413
          %v2415 = vcombine.low %v2383, %v2398
          %v2416 = vcombine.high %v2383, %v2398
          %v2418 = vunpack.c.l.s4 1934713408
          %v2419 = vunpack.c.0.s8 %v2418
          %v2420 = vlaneseq
          %v2421 = vshrl.u32 %v2420, 7
          %v2422 = vsub.s32 %v2419, %v2421
          %v2423 = vrot.slane %v2415, %v2422
          %v2425 = vunpack.c.l.s4 1934713408
          %v2426 = vunpack.c.0.s8 %v2425
          %v2427 = vlaneseq
          %v2428 = vshrl.u32 %v2427, 7
          %v2429 = vsub.s32 %v2426, %v2428
          %v2430 = vrot.slane %v2416, %v2429
          %v2431 = vcombine.high %v2407, 0.0
          %v2432 = vcombine.high %v2414, 0.0
          %v2433 = vcombine.high %v2423, 0.0
          %v2434 = vcombine.high %v2430, 0.0
          %v2435 = vcombine.high %v2257, 0.0
          %v2437 = vunpack.c.l.s4 1983009808
          %v2438 = vunpack.c.0.s8 %v2437
          %v2439 = vlaneseq
          %v2440 = vshrl.u32 %v2439, 7
          %v2441 = vsub.s32 %v2438, %v2440
          %v2442 = vrot.slane %v2257, %v2441
          %v2444 = vunpack.c.l.s4 1983009808
          %v2445 = vunpack.c.0.s8 %v2444
          %v2446 = vlaneseq
          %v2447 = vshrl.u32 %v2446, 7
          %v2448 = vsub.s32 %v2445, %v2447
          %v2449 = vrot.slane %v2435, %v2448
          %v2450 = vcombine.high %v2289, 0.0
          %v2452 = vunpack.c.l.s4 1983009808
          %v2453 = vunpack.c.0.s8 %v2452
          %v2454 = vlaneseq
          %v2455 = vshrl.u32 %v2454, 7
          %v2456 = vsub.s32 %v2453, %v2455
          %v2457 = vrot.slane %v2289, %v2456
          %v2459 = vunpack.c.l.s4 1983009808
          %v2460 = vunpack.c.0.s8 %v2459
          %v2461 = vlaneseq
          %v2462 = vshrl.u32 %v2461, 7
          %v2463 = vsub.s32 %v2460, %v2462
          %v2464 = vrot.slane %v2450, %v2463
          %v2465 = vcombine.low %v2442, %v2457
          %v2466 = vcombine.high %v2442, %v2457
          %v2468 = vunpack.c.l.s4 1934713408
          %v2469 = vunpack.c.0.s8 %v2468
          %v2470 = vlaneseq
          %v2471 = vshrl.u32 %v2470, 7
          %v2472 = vsub.s32 %v2469, %v2471
          %v2473 = vrot.slane %v2465, %v2472
          %v2475 = vunpack.c.l.s4 1934713408
          %v2476 = vunpack.c.0.s8 %v2475
          %v2477 = vlaneseq
          %v2478 = vshrl.u32 %v2477, 7
          %v2479 = vsub.s32 %v2476, %v2478
          %v2480 = vrot.slane %v2466, %v2479
          %v2481 = vcombine.low %v2449, %v2464
          %v2482 = vcombine.high %v2449, %v2464
          %v2484 = vunpack.c.l.s4 1934713408
          %v2485 = vunpack.c.0.s8 %v2484
          %v2486 = vlaneseq
          %v2487 = vshrl.u32 %v2486, 7
          %v2488 = vsub.s32 %v2485, %v2487
          %v2489 = vrot.slane %v2481, %v2488
          %v2491 = vunpack.c.l.s4 1934713408
          %v2492 = vunpack.c.0.s8 %v2491
          %v2493 = vlaneseq
          %v2494 = vshrl.u32 %v2493, 7
          %v2495 = vsub.s32 %v2492, %v2494
          %v2496 = vrot.slane %v2482, %v2495
          %v2497 = vcombine.high %v2473, 0.0
          %v2498 = vcombine.high %v2480, 0.0
          %v2499 = vcombine.high %v2489, 0.0
          %v2500 = vcombine.high %v2496, 0.0
          %v2507 = vlaneseq
          %v2508 = vand.u32 %v2507, 127
          %v2509 = vlaneseq
          %v2510 = vshrl.u32 %v2509, 7
          %v2511 = vsub.s32 %v2508, %v2510
          %v2512 = vrot.slane %v2097, %v2511
          %v2513 = vadd.s32 %v2508, 4294967288
          %v2514 = vlaneseq
          %v2515 = vshrl.u32 %v2514, 7
          %v2516 = vsub.s32 %v2513, %v2515
          %v2517 = vrot.slane %v2098, %v2516
          %vm2518 = vcmask 130112
          %v2519 = vsel %vm2518, %v2517, %v2512
          %v2520 = vadd.s32 %v2508, 4294967280
          %v2521 = vlaneseq
          %v2522 = vshrl.u32 %v2521, 7
          %v2523 = vsub.s32 %v2520, %v2522
          %v2524 = vrot.slane %v2099, %v2523
          %vm2525 = vcmask 195712
          %v2526 = vsel %vm2525, %v2524, %v2519
          %v2527 = vlaneseq
          %v2528 = vshrl.u32 %v2527, 7
          %v2529 = vsub.s32 %v2508, %v2528
          %v2530 = vrot.slane %v2100, %v2529
          %v2531 = vlaneseq
          %v2532 = vshrl.u32 %v2531, 7
          %v2533 = vsub.s32 %v2513, %v2532
          %v2534 = vrot.slane %v2101, %v2533
          %v2535 = vsel %vm2518, %v2534, %v2530
          %v2536 = vlaneseq
          %v2537 = vshrl.u32 %v2536, 7
          %v2538 = vsub.s32 %v2520, %v2537
          %v2539 = vrot.slane %v2102, %v2538
          %v2540 = vsel %vm2525, %v2539, %v2535
          %vm2541 = vcmask 1041409
          %v2542 = vsel %vm2541, %v2540, %v2526
          %2544 = vxpose.xlu0.b32.start [1/16] %v2542, 128
          %2545 = vxpose.xlu0.b32.cont [2/16] 0.0, 128
          %2546 = vxpose.xlu0.b32.cont [3/16] 0.0, 128
          %2547 = vxpose.xlu0.b32.cont [4/16] 0.0, 128
          %2548 = vxpose.xlu0.b32.cont [5/16] 0.0, 128
          %2549 = vxpose.xlu0.b32.cont [6/16] 0.0, 128
          %2550 = vxpose.xlu0.b32.cont [7/16] 0.0, 128
          %2551 = vxpose.xlu0.b32.cont [8/16] 0.0, 128
          %2552 = vxpose.xlu0.b32.cont [9/16] 0.0, 128
          %2553 = vxpose.xlu0.b32.cont [10/16] 0.0, 128
          %2554 = vxpose.xlu0.b32.cont [11/16] 0.0, 128
          %2555 = vxpose.xlu0.b32.cont [12/16] 0.0, 128
          %2556 = vxpose.xlu0.b32.cont [13/16] 0.0, 128
          %2557 = vxpose.xlu0.b32.cont [14/16] 0.0, 128
          %2558 = vxpose.xlu0.b32.cont [15/16] 0.0, 128
          %2559 = vxpose.xlu0.b32.end [16/16] 0.0, 128
          %v2560 = vpop.trf.xlu0
          %v2561 = vpop.trf.xlu0
          %v2562 = vpop.trf.xlu0
          %v2563 = vpop.trf.xlu0
          %v2564 = vpop.trf.xlu0
          %v2565 = vpop.trf.xlu0
          %v2566 = vpop.trf.xlu0
          %v2567 = vpop.trf.xlu0
          %v2568 = vpop.trf.xlu0
          %v2569 = vpop.trf.xlu0
          %v2570 = vpop.trf.xlu0
          %v2571 = vpop.trf.xlu0
          %v2572 = vpop.trf.xlu0
          %v2573 = vpop.trf.xlu0
          %v2574 = vpop.trf.xlu0
          %v2575 = vpop.trf.xlu0
          %v2576 = vlaneseq
          %v2577 = vshrl.u32 %v2576, 7
          %v2578 = vsub.s32 0, %v2577
          %v2579 = vrot.slane %v2560, %v2578
          %2581 = vbcast.lane.b32.xlu0 %v2579, 256
          %v2582 = vpop.permute.xlu0 %2581
          %v2583 = vlaneseq
          %v2584 = vshrl.u32 %v2583, 7
          %v2585 = vsub.s32 1, %v2584
          %v2586 = vrot.slane %v2560, %v2585
          %2588 = vbcast.lane.b32.xlu0 %v2586, 256
          %v2589 = vpop.permute.xlu0 %2588
          %v2590 = vlaneseq
          %v2591 = vshrl.u32 %v2590, 7
          %v2592 = vsub.s32 2, %v2591
          %v2593 = vrot.slane %v2560, %v2592
          %2595 = vbcast.lane.b32.xlu0 %v2593, 256
          %v2596 = vpop.permute.xlu0 %2595
          %v2597 = vlaneseq
          %v2598 = vshrl.u32 %v2597, 7
          %v2599 = vsub.s32 3, %v2598
          %v2600 = vrot.slane %v2560, %v2599
          %2602 = vbcast.lane.b32.xlu0 %v2600, 256
          %v2603 = vpop.permute.xlu0 %2602
          %v2604 = vlaneseq
          %v2605 = vshrl.u32 %v2604, 7
          %v2606 = vsub.s32 4, %v2605
          %v2607 = vrot.slane %v2560, %v2606
          %2609 = vbcast.lane.b32.xlu0 %v2607, 256
          %v2610 = vpop.permute.xlu0 %2609
          %v2611 = vlaneseq
          %v2612 = vshrl.u32 %v2611, 7
          %v2613 = vsub.s32 5, %v2612
          %v2614 = vrot.slane %v2560, %v2613
          %2616 = vbcast.lane.b32.xlu0 %v2614, 256
          %v2617 = vpop.permute.xlu0 %2616
          %v2618 = vlaneseq
          %v2619 = vshrl.u32 %v2618, 7
          %v2620 = vsub.s32 6, %v2619
          %v2621 = vrot.slane %v2560, %v2620
          %2623 = vbcast.lane.b32.xlu0 %v2621, 256
          %v2624 = vpop.permute.xlu0 %2623
          %v2625 = vlaneseq
          %v2626 = vshrl.u32 %v2625, 7
          %v2627 = vsub.s32 7, %v2626
          %v2628 = vrot.slane %v2560, %v2627
          %2630 = vbcast.lane.b32.xlu0 %v2628, 256
          %v2631 = vpop.permute.xlu0 %2630
          %v2632 = vlaneseq
          %v2633 = vshrl.u32 %v2632, 7
          %v2634 = vsub.s32 0, %v2633
          %v2635 = vrot.slane %v2561, %v2634
          %2637 = vbcast.lane.b32.xlu0 %v2635, 256
          %v2638 = vpop.permute.xlu0 %2637
          %v2639 = vlaneseq
          %v2640 = vshrl.u32 %v2639, 7
          %v2641 = vsub.s32 1, %v2640
          %v2642 = vrot.slane %v2561, %v2641
          %2644 = vbcast.lane.b32.xlu0 %v2642, 256
          %v2645 = vpop.permute.xlu0 %2644
          %v2646 = vlaneseq
          %v2647 = vshrl.u32 %v2646, 7
          %v2648 = vsub.s32 2, %v2647
          %v2649 = vrot.slane %v2561, %v2648
          %2651 = vbcast.lane.b32.xlu0 %v2649, 256
          %v2652 = vpop.permute.xlu0 %2651
          %v2653 = vlaneseq
          %v2654 = vshrl.u32 %v2653, 7
          %v2655 = vsub.s32 3, %v2654
          %v2656 = vrot.slane %v2561, %v2655
          %2658 = vbcast.lane.b32.xlu0 %v2656, 256
          %v2659 = vpop.permute.xlu0 %2658
          %v2660 = vlaneseq
          %v2661 = vshrl.u32 %v2660, 7
          %v2662 = vsub.s32 4, %v2661
          %v2663 = vrot.slane %v2561, %v2662
          %2665 = vbcast.lane.b32.xlu0 %v2663, 256
          %v2666 = vpop.permute.xlu0 %2665
          %v2667 = vlaneseq
          %v2668 = vshrl.u32 %v2667, 7
          %v2669 = vsub.s32 5, %v2668
          %v2670 = vrot.slane %v2561, %v2669
          %2672 = vbcast.lane.b32.xlu0 %v2670, 256
          %v2673 = vpop.permute.xlu0 %2672
          %v2674 = vlaneseq
          %v2675 = vshrl.u32 %v2674, 7
          %v2676 = vsub.s32 6, %v2675
          %v2677 = vrot.slane %v2561, %v2676
          %2679 = vbcast.lane.b32.xlu0 %v2677, 256
          %v2680 = vpop.permute.xlu0 %2679
          %v2681 = vlaneseq
          %v2682 = vshrl.u32 %v2681, 7
          %v2683 = vsub.s32 7, %v2682
          %v2684 = vrot.slane %v2561, %v2683
          %2686 = vbcast.lane.b32.xlu0 %v2684, 256
          %v2687 = vpop.permute.xlu0 %2686
          %v2688 = vlaneseq
          %v2689 = vshrl.u32 %v2688, 7
          %v2690 = vsub.s32 0, %v2689
          %v2691 = vrot.slane %v2562, %v2690
          %2693 = vbcast.lane.b32.xlu0 %v2691, 256
          %v2694 = vpop.permute.xlu0 %2693
          %v2695 = vlaneseq
          %v2696 = vshrl.u32 %v2695, 7
          %v2697 = vsub.s32 1, %v2696
          %v2698 = vrot.slane %v2562, %v2697
          %2700 = vbcast.lane.b32.xlu0 %v2698, 256
          %v2701 = vpop.permute.xlu0 %2700
          %v2702 = vlaneseq
          %v2703 = vshrl.u32 %v2702, 7
          %v2704 = vsub.s32 2, %v2703
          %v2705 = vrot.slane %v2562, %v2704
          %2707 = vbcast.lane.b32.xlu0 %v2705, 256
          %v2708 = vpop.permute.xlu0 %2707
          %v2709 = vlaneseq
          %v2710 = vshrl.u32 %v2709, 7
          %v2711 = vsub.s32 3, %v2710
          %v2712 = vrot.slane %v2562, %v2711
          %2714 = vbcast.lane.b32.xlu0 %v2712, 256
          %v2715 = vpop.permute.xlu0 %2714
          %v2716 = vlaneseq
          %v2717 = vshrl.u32 %v2716, 7
          %v2718 = vsub.s32 4, %v2717
          %v2719 = vrot.slane %v2562, %v2718
          %2721 = vbcast.lane.b32.xlu0 %v2719, 256
          %v2722 = vpop.permute.xlu0 %2721
          %v2723 = vlaneseq
          %v2724 = vshrl.u32 %v2723, 7
          %v2725 = vsub.s32 5, %v2724
          %v2726 = vrot.slane %v2562, %v2725
          %2728 = vbcast.lane.b32.xlu0 %v2726, 256
          %v2729 = vpop.permute.xlu0 %2728
          %v2730 = vlaneseq
          %v2731 = vshrl.u32 %v2730, 7
          %v2732 = vsub.s32 6, %v2731
          %v2733 = vrot.slane %v2562, %v2732
          %2735 = vbcast.lane.b32.xlu0 %v2733, 256
          %v2736 = vpop.permute.xlu0 %2735
          %v2737 = vlaneseq
          %v2738 = vshrl.u32 %v2737, 7
          %v2739 = vsub.s32 7, %v2738
          %v2740 = vrot.slane %v2562, %v2739
          %2742 = vbcast.lane.b32.xlu0 %v2740, 256
          %v2743 = vpop.permute.xlu0 %2742
          %v2744 = vmul.f32 %v2341, %v2582
          %v2745 = vmul.f32 %v2365, %v2589
          %v2746 = vmul.f32 %v2348, %v2596
          %v2747 = vmul.f32 %v2366, %v2603
          %v2748 = vmul.f32 %v2357, %v2610
          %v2749 = vmul.f32 %v2367, %v2617
          %v2750 = vmul.f32 %v2364, %v2624
          %v2751 = vmul.f32 %v2368, %v2631
          %v2752 = vmul.f32 %v2407, %v2638
          %v2753 = vmul.f32 %v2431, %v2645
          %v2754 = vmul.f32 %v2414, %v2652
          %v2755 = vmul.f32 %v2432, %v2659
          %v2756 = vmul.f32 %v2423, %v2666
          %v2757 = vmul.f32 %v2433, %v2673
          %v2758 = vmul.f32 %v2430, %v2680
          %v2759 = vmul.f32 %v2434, %v2687
          %v2760 = vmul.f32 %v2473, %v2694
          %v2761 = vmul.f32 %v2497, %v2701
          %v2762 = vmul.f32 %v2480, %v2708
          %v2763 = vmul.f32 %v2498, %v2715
          %v2764 = vmul.f32 %v2489, %v2722
          %v2765 = vmul.f32 %v2499, %v2729
          %v2766 = vmul.f32 %v2496, %v2736
          %v2767 = vmul.f32 %v2500, %v2743
          %v2768 = vcombine.low %v2744, %v2746
          %v2770 = vunpack.c.l.s4 1983009808
          %v2771 = vunpack.c.0.s8 %v2770
          %v2772 = vlaneseq
          %v2773 = vshrl.u32 %v2772, 7
          %v2774 = vsub.s32 %v2771, %v2773
          %v2775 = vrot.slane %v2768, %v2774
          %v2776 = vcombine.low %v2745, %v2747
          %v2778 = vunpack.c.l.s4 1983009808
          %v2779 = vunpack.c.0.s8 %v2778
          %v2780 = vlaneseq
          %v2781 = vshrl.u32 %v2780, 7
          %v2782 = vsub.s32 %v2779, %v2781
          %v2783 = vrot.slane %v2776, %v2782
          %v2784 = vcombine.low %v2748, %v2750
          %v2786 = vunpack.c.l.s4 1983009808
          %v2787 = vunpack.c.0.s8 %v2786
          %v2788 = vlaneseq
          %v2789 = vshrl.u32 %v2788, 7
          %v2790 = vsub.s32 %v2787, %v2789
          %v2791 = vrot.slane %v2784, %v2790
          %v2792 = vcombine.low %v2749, %v2751
          %v2794 = vunpack.c.l.s4 1983009808
          %v2795 = vunpack.c.0.s8 %v2794
          %v2796 = vlaneseq
          %v2797 = vshrl.u32 %v2796, 7
          %v2798 = vsub.s32 %v2795, %v2797
          %v2799 = vrot.slane %v2792, %v2798
          %v2800 = vcombine.low %v2775, %v2783
          %v2802 = vunpack.c.l.s4 1934713408
          %v2803 = vunpack.c.0.s8 %v2802
          %v2804 = vlaneseq
          %v2805 = vshrl.u32 %v2804, 7
          %v2806 = vsub.s32 %v2803, %v2805
          %v2807 = vrot.slane %v2800, %v2806
          %v2808 = vcombine.low %v2791, %v2799
          %v2810 = vunpack.c.l.s4 1934713408
          %v2811 = vunpack.c.0.s8 %v2810
          %v2812 = vlaneseq
          %v2813 = vshrl.u32 %v2812, 7
          %v2814 = vsub.s32 %v2811, %v2813
          %v2815 = vrot.slane %v2808, %v2814
          %v2816 = vcombine.low %v2807, %v2815
          %v2817 = vcombine.high %v2807, %v2815
          %v2818 = vcombine.low %v2752, %v2754
          %v2820 = vunpack.c.l.s4 1983009808
          %v2821 = vunpack.c.0.s8 %v2820
          %v2822 = vlaneseq
          %v2823 = vshrl.u32 %v2822, 7
          %v2824 = vsub.s32 %v2821, %v2823
          %v2825 = vrot.slane %v2818, %v2824
          %v2826 = vcombine.low %v2753, %v2755
          %v2828 = vunpack.c.l.s4 1983009808
          %v2829 = vunpack.c.0.s8 %v2828
          %v2830 = vlaneseq
          %v2831 = vshrl.u32 %v2830, 7
          %v2832 = vsub.s32 %v2829, %v2831
          %v2833 = vrot.slane %v2826, %v2832
          %v2834 = vcombine.low %v2756, %v2758
          %v2836 = vunpack.c.l.s4 1983009808
          %v2837 = vunpack.c.0.s8 %v2836
          %v2838 = vlaneseq
          %v2839 = vshrl.u32 %v2838, 7
          %v2840 = vsub.s32 %v2837, %v2839
          %v2841 = vrot.slane %v2834, %v2840
          %v2842 = vcombine.low %v2757, %v2759
          %v2844 = vunpack.c.l.s4 1983009808
          %v2845 = vunpack.c.0.s8 %v2844
          %v2846 = vlaneseq
          %v2847 = vshrl.u32 %v2846, 7
          %v2848 = vsub.s32 %v2845, %v2847
          %v2849 = vrot.slane %v2842, %v2848
          %v2850 = vcombine.low %v2825, %v2833
          %v2852 = vunpack.c.l.s4 1934713408
          %v2853 = vunpack.c.0.s8 %v2852
          %v2854 = vlaneseq
          %v2855 = vshrl.u32 %v2854, 7
          %v2856 = vsub.s32 %v2853, %v2855
          %v2857 = vrot.slane %v2850, %v2856
          %v2858 = vcombine.low %v2841, %v2849
          %v2860 = vunpack.c.l.s4 1934713408
          %v2861 = vunpack.c.0.s8 %v2860
          %v2862 = vlaneseq
          %v2863 = vshrl.u32 %v2862, 7
          %v2864 = vsub.s32 %v2861, %v2863
          %v2865 = vrot.slane %v2858, %v2864
          %v2866 = vcombine.low %v2857, %v2865
          %v2867 = vcombine.high %v2857, %v2865
          %v2868 = vcombine.low %v2760, %v2762
          %v2870 = vunpack.c.l.s4 1983009808
          %v2871 = vunpack.c.0.s8 %v2870
          %v2872 = vlaneseq
          %v2873 = vshrl.u32 %v2872, 7
          %v2874 = vsub.s32 %v2871, %v2873
          %v2875 = vrot.slane %v2868, %v2874
          %v2876 = vcombine.low %v2761, %v2763
          %v2878 = vunpack.c.l.s4 1983009808
          %v2879 = vunpack.c.0.s8 %v2878
          %v2880 = vlaneseq
          %v2881 = vshrl.u32 %v2880, 7
          %v2882 = vsub.s32 %v2879, %v2881
          %v2883 = vrot.slane %v2876, %v2882
          %v2884 = vcombine.low %v2764, %v2766
          %v2886 = vunpack.c.l.s4 1983009808
          %v2887 = vunpack.c.0.s8 %v2886
          %v2888 = vlaneseq
          %v2889 = vshrl.u32 %v2888, 7
          %v2890 = vsub.s32 %v2887, %v2889
          %v2891 = vrot.slane %v2884, %v2890
          %v2892 = vcombine.low %v2765, %v2767
          %v2894 = vunpack.c.l.s4 1983009808
          %v2895 = vunpack.c.0.s8 %v2894
          %v2896 = vlaneseq
          %v2897 = vshrl.u32 %v2896, 7
          %v2898 = vsub.s32 %v2895, %v2897
          %v2899 = vrot.slane %v2892, %v2898
          %v2900 = vcombine.low %v2875, %v2883
          %v2902 = vunpack.c.l.s4 1934713408
          %v2903 = vunpack.c.0.s8 %v2902
          %v2904 = vlaneseq
          %v2905 = vshrl.u32 %v2904, 7
          %v2906 = vsub.s32 %v2903, %v2905
          %v2907 = vrot.slane %v2900, %v2906
          %v2908 = vcombine.low %v2891, %v2899
          %v2910 = vunpack.c.l.s4 1934713408
          %v2911 = vunpack.c.0.s8 %v2910
          %v2912 = vlaneseq
          %v2913 = vshrl.u32 %v2912, 7
          %v2914 = vsub.s32 %v2911, %v2913
          %v2915 = vrot.slane %v2908, %v2914
          %v2916 = vcombine.low %v2907, %v2915
          %v2917 = vcombine.high %v2907, %v2915
          %2921 = vrot.lane.b32.xlu0 %v2817, 16
          %v2922 = vpop.permute.xlu0 %2921
          %2923 = vrot.lane.b32.xlu0 %v2867, 16
          %v2924 = vpop.permute.xlu0 %2923
          %2925 = vrot.lane.b32.xlu0 %v2917, 16
          %v2926 = vpop.permute.xlu0 %2925
          %v2930 = vsel %vm1933, %v2816, %v2922
          %v2931 = vsel %vm1933, %v2866, %v2924
          %v2932 = vsel %vm1933, %v2916, %v2926
          %v2933 = vpack.c.bf16 %v2931, %v2930
          %v2934 = vpack.c.bf16 %v2932, %v2932
          %vm2935 = vcmask 261120
          %2936 = vst.msk [vmem:[#allocation3] sm:$0xff] %vm2935, %v2933
          %vm2937 = vcmask 257024
          %2938 = vst.msk [vmem:[#allocation3 + $0x8] sm:$0xf] %vm2937, %v2934
          %2939 = vrot.lane.b32.xlu0 %v1443, 96
          %v2940 = vpop.permute.xlu0 %2939
          %2941 = vrot.lane.b32.xlu0 %v1445, 96
          %v2942 = vpop.permute.xlu0 %2941
          %2943 = vrot.lane.b32.xlu0 %v1452, 96
          %v2944 = vpop.permute.xlu0 %2943
          %2945 = vrot.lane.b32.xlu0 %v1454, 96
          %v2946 = vpop.permute.xlu0 %2945
          %v2949 = vcombine.high %v2940, 0
          %v2951 = vunpack.c.l.s4 1983009808
          %v2952 = vunpack.c.0.s8 %v2951
          %v2953 = vlaneseq
          %v2954 = vshrl.u32 %v2953, 7
          %v2955 = vsub.s32 %v2952, %v2954
          %v2956 = vrot.slane %v2940, %v2955
          %v2958 = vunpack.c.l.s4 1983009808
          %v2959 = vunpack.c.0.s8 %v2958
          %v2960 = vlaneseq
          %v2961 = vshrl.u32 %v2960, 7
          %v2962 = vsub.s32 %v2959, %v2961
          %v2963 = vrot.slane %v2949, %v2962
          %v2964 = vcombine.high %v2956, 0
          %v2966 = vunpack.c.l.s4 1934713408
          %v2967 = vunpack.c.0.s8 %v2966
          %v2968 = vlaneseq
          %v2969 = vshrl.u32 %v2968, 7
          %v2970 = vsub.s32 %v2967, %v2969
          %v2971 = vrot.slane %v2956, %v2970
          %v2973 = vunpack.c.l.s4 1934713408
          %v2974 = vunpack.c.0.s8 %v2973
          %v2975 = vlaneseq
          %v2976 = vshrl.u32 %v2975, 7
          %v2977 = vsub.s32 %v2974, %v2976
          %v2978 = vrot.slane %v2964, %v2977
          %v2979 = vcombine.high %v2963, 0
          %v2981 = vunpack.c.l.s4 1934713408
          %v2982 = vunpack.c.0.s8 %v2981
          %v2983 = vlaneseq
          %v2984 = vshrl.u32 %v2983, 7
          %v2985 = vsub.s32 %v2982, %v2984
          %v2986 = vrot.slane %v2963, %v2985
          %v2988 = vunpack.c.l.s4 1934713408
          %v2989 = vunpack.c.0.s8 %v2988
          %v2990 = vlaneseq
          %v2991 = vshrl.u32 %v2990, 7
          %v2992 = vsub.s32 %v2989, %v2991
          %v2993 = vrot.slane %v2979, %v2992
          %v2994 = vcombine.high %v2971, 0
          %v2995 = vcombine.high %v2978, 0
          %v2996 = vcombine.high %v2986, 0
          %v2997 = vcombine.high %v2993, 0
          %v2998 = vcombine.high %v2944, 0
          %v3000 = vunpack.c.l.s4 1983009808
          %v3001 = vunpack.c.0.s8 %v3000
          %v3002 = vlaneseq
          %v3003 = vshrl.u32 %v3002, 7
          %v3004 = vsub.s32 %v3001, %v3003
          %v3005 = vrot.slane %v2944, %v3004
          %v3007 = vunpack.c.l.s4 1983009808
          %v3008 = vunpack.c.0.s8 %v3007
          %v3009 = vlaneseq
          %v3010 = vshrl.u32 %v3009, 7
          %v3011 = vsub.s32 %v3008, %v3010
          %v3012 = vrot.slane %v2998, %v3011
          %v3013 = vcombine.high %v3005, 0
          %v3015 = vunpack.c.l.s4 1934713408
          %v3016 = vunpack.c.0.s8 %v3015
          %v3017 = vlaneseq
          %v3018 = vshrl.u32 %v3017, 7
          %v3019 = vsub.s32 %v3016, %v3018
          %v3020 = vrot.slane %v3005, %v3019
          %v3022 = vunpack.c.l.s4 1934713408
          %v3023 = vunpack.c.0.s8 %v3022
          %v3024 = vlaneseq
          %v3025 = vshrl.u32 %v3024, 7
          %v3026 = vsub.s32 %v3023, %v3025
          %v3027 = vrot.slane %v3013, %v3026
          %v3028 = vcombine.high %v3012, 0
          %v3030 = vunpack.c.l.s4 1934713408
          %v3031 = vunpack.c.0.s8 %v3030
          %v3032 = vlaneseq
          %v3033 = vshrl.u32 %v3032, 7
          %v3034 = vsub.s32 %v3031, %v3033
          %v3035 = vrot.slane %v3012, %v3034
          %v3037 = vunpack.c.l.s4 1934713408
          %v3038 = vunpack.c.0.s8 %v3037
          %v3039 = vlaneseq
          %v3040 = vshrl.u32 %v3039, 7
          %v3041 = vsub.s32 %v3038, %v3040
          %v3042 = vrot.slane %v3028, %v3041
          %v3043 = vcombine.high %v3020, 0
          %v3044 = vcombine.high %v3027, 0
          %v3045 = vcombine.high %v3035, 0
          %v3046 = vcombine.high %v3042, 0
          %v3049 = vunpack.c.l.s4 1983009808
          %v3050 = vunpack.c.0.s8 %v3049
          %v3051 = vlaneseq
          %v3052 = vshrl.u32 %v3051, 7
          %v3053 = vsub.s32 %v3050, %v3052
          %v3054 = vrot.slane %v2942, %v3053
          %v3055 = vcombine.high %v3054, 0
          %v3057 = vunpack.c.l.s4 1934713408
          %v3058 = vunpack.c.0.s8 %v3057
          %v3059 = vlaneseq
          %v3060 = vshrl.u32 %v3059, 7
          %v3061 = vsub.s32 %v3058, %v3060
          %v3062 = vrot.slane %v3054, %v3061
          %v3064 = vunpack.c.l.s4 1934713408
          %v3065 = vunpack.c.0.s8 %v3064
          %v3066 = vlaneseq
          %v3067 = vshrl.u32 %v3066, 7
          %v3068 = vsub.s32 %v3065, %v3067
          %v3069 = vrot.slane %v3055, %v3068
          %v3070 = vcombine.high %v3062, 0
          %v3071 = vcombine.high %v3069, 0
          %v3074 = vunpack.c.l.s4 1983009808
          %v3075 = vunpack.c.0.s8 %v3074
          %v3076 = vlaneseq
          %v3077 = vshrl.u32 %v3076, 7
          %v3078 = vsub.s32 %v3075, %v3077
          %v3079 = vrot.slane %v2946, %v3078
          %v3080 = vcombine.high %v3079, 0
          %v3082 = vunpack.c.l.s4 1934713408
          %v3083 = vunpack.c.0.s8 %v3082
          %v3084 = vlaneseq
          %v3085 = vshrl.u32 %v3084, 7
          %v3086 = vsub.s32 %v3083, %v3085
          %v3087 = vrot.slane %v3079, %v3086
          %v3089 = vunpack.c.l.s4 1934713408
          %v3090 = vunpack.c.0.s8 %v3089
          %v3091 = vlaneseq
          %v3092 = vshrl.u32 %v3091, 7
          %v3093 = vsub.s32 %v3090, %v3092
          %v3094 = vrot.slane %v3080, %v3093
          %v3095 = vcombine.high %v3087, 0
          %v3096 = vcombine.high %v3094, 0
          %v3099 = vpack.i.b16 %v3020, %v2971
          %v3101 = vshrl.u32 %v2971, 16
          %v3102 = vshrl.u32 %v3020, 16
          %v3103 = vpack.i.b16 %v3102, %v3101
          %v3107 = vpack.i.b16 %v3043, %v2994
          %v3109 = vshrl.u32 %v2994, 16
          %v3110 = vshrl.u32 %v3043, 16
          %v3111 = vpack.i.b16 %v3110, %v3109
          %v3115 = vpack.i.b16 %v3027, %v2978
          %v3117 = vshrl.u32 %v2978, 16
          %v3118 = vshrl.u32 %v3027, 16
          %v3119 = vpack.i.b16 %v3118, %v3117
          %v3123 = vpack.i.b16 %v3044, %v2995
          %v3125 = vshrl.u32 %v2995, 16
          %v3126 = vshrl.u32 %v3044, 16
          %v3127 = vpack.i.b16 %v3126, %v3125
          %v3131 = vpack.i.b16 %v3035, %v2986
          %v3133 = vshrl.u32 %v2986, 16
          %v3134 = vshrl.u32 %v3035, 16
          %v3135 = vpack.i.b16 %v3134, %v3133
          %v3139 = vpack.i.b16 %v3045, %v2996
          %v3141 = vshrl.u32 %v2996, 16
          %v3142 = vshrl.u32 %v3045, 16
          %v3143 = vpack.i.b16 %v3142, %v3141
          %v3147 = vpack.i.b16 %v3042, %v2993
          %v3149 = vshrl.u32 %v2993, 16
          %v3150 = vshrl.u32 %v3042, 16
          %v3151 = vpack.i.b16 %v3150, %v3149
          %v3155 = vpack.i.b16 %v3046, %v2997
          %v3157 = vshrl.u32 %v2997, 16
          %v3158 = vshrl.u32 %v3046, 16
          %v3159 = vpack.i.b16 %v3158, %v3157
          %v3163 = vpack.i.b16 %v3087, %v3062
          %v3165 = vshrl.u32 %v3062, 16
          %v3166 = vshrl.u32 %v3087, 16
          %v3167 = vpack.i.b16 %v3166, %v3165
          %v3171 = vpack.i.b16 %v3095, %v3070
          %v3173 = vshrl.u32 %v3070, 16
          %v3174 = vshrl.u32 %v3095, 16
          %v3175 = vpack.i.b16 %v3174, %v3173
          %v3179 = vpack.i.b16 %v3094, %v3069
          %v3181 = vshrl.u32 %v3069, 16
          %v3182 = vshrl.u32 %v3094, 16
          %v3183 = vpack.i.b16 %v3182, %v3181
          %v3187 = vpack.i.b16 %v3096, %v3071
          %v3189 = vshrl.u32 %v3071, 16
          %v3190 = vshrl.u32 %v3096, 16
          %v3191 = vpack.i.b16 %v3190, %v3189
          %v3193 = vmul.bf16 %v3099, 1048592000
          %v3194 = vmul.bf16 %v3103, 1048592000
          %v3195 = vmul.bf16 %v3107, 1048592000
          %v3196 = vmul.bf16 %v3111, 1048592000
          %v3197 = vmul.bf16 %v3115, 1048592000
          %v3198 = vmul.bf16 %v3119, 1048592000
          %v3199 = vmul.bf16 %v3123, 1048592000
          %v3200 = vmul.bf16 %v3127, 1048592000
          %v3201 = vmul.bf16 %v3131, 1048592000
          %v3202 = vmul.bf16 %v3135, 1048592000
          %v3203 = vmul.bf16 %v3139, 1048592000
          %v3204 = vmul.bf16 %v3143, 1048592000
          %v3205 = vmul.bf16 %v3147, 1048592000
          %v3206 = vmul.bf16 %v3151, 1048592000
          %v3207 = vmul.bf16 %v3155, 1048592000
          %v3208 = vmul.bf16 %v3159, 1048592000
          %v3209 = vmul.bf16 %v3163, 1048592000
          %v3210 = vmul.bf16 %v3167, 1048592000
          %v3211 = vmul.bf16 %v3171, 1048592000
          %v3212 = vmul.bf16 %v3175, 1048592000
          %v3213 = vmul.bf16 %v3179, 1048592000
          %v3214 = vmul.bf16 %v3183, 1048592000
          %v3215 = vmul.bf16 %v3187, 1048592000
          %v3216 = vmul.bf16 %v3191, 1048592000
          %v3217 = vcombine.low %v3193, %v3197
          %v3219 = vunpack.c.l.s4 1983009808
          %v3220 = vunpack.c.0.s8 %v3219
          %v3221 = vlaneseq
          %v3222 = vshrl.u32 %v3221, 7
          %v3223 = vsub.s32 %v3220, %v3222
          %v3224 = vrot.slane %v3217, %v3223
          %v3225 = vcombine.low %v3195, %v3199
          %v3227 = vunpack.c.l.s4 1983009808
          %v3228 = vunpack.c.0.s8 %v3227
          %v3229 = vlaneseq
          %v3230 = vshrl.u32 %v3229, 7
          %v3231 = vsub.s32 %v3228, %v3230
          %v3232 = vrot.slane %v3225, %v3231
          %v3233 = vcombine.low %v3201, %v3205
          %v3235 = vunpack.c.l.s4 1983009808
          %v3236 = vunpack.c.0.s8 %v3235
          %v3237 = vlaneseq
          %v3238 = vshrl.u32 %v3237, 7
          %v3239 = vsub.s32 %v3236, %v3238
          %v3240 = vrot.slane %v3233, %v3239
          %v3241 = vcombine.low %v3203, %v3207
          %v3243 = vunpack.c.l.s4 1983009808
          %v3244 = vunpack.c.0.s8 %v3243
          %v3245 = vlaneseq
          %v3246 = vshrl.u32 %v3245, 7
          %v3247 = vsub.s32 %v3244, %v3246
          %v3248 = vrot.slane %v3241, %v3247
          %v3249 = vcombine.low %v3224, %v3232
          %v3251 = vunpack.c.l.s4 1934713408
          %v3252 = vunpack.c.0.s8 %v3251
          %v3253 = vlaneseq
          %v3254 = vshrl.u32 %v3253, 7
          %v3255 = vsub.s32 %v3252, %v3254
          %v3256 = vrot.slane %v3249, %v3255
          %v3257 = vcombine.low %v3240, %v3248
          %v3259 = vunpack.c.l.s4 1934713408
          %v3260 = vunpack.c.0.s8 %v3259
          %v3261 = vlaneseq
          %v3262 = vshrl.u32 %v3261, 7
          %v3263 = vsub.s32 %v3260, %v3262
          %v3264 = vrot.slane %v3257, %v3263
          %v3265 = vcombine.low %v3256, %v3264
          %v3266 = vcombine.low %v3194, %v3198
          %v3268 = vunpack.c.l.s4 1983009808
          %v3269 = vunpack.c.0.s8 %v3268
          %v3270 = vlaneseq
          %v3271 = vshrl.u32 %v3270, 7
          %v3272 = vsub.s32 %v3269, %v3271
          %v3273 = vrot.slane %v3266, %v3272
          %v3274 = vcombine.low %v3196, %v3200
          %v3276 = vunpack.c.l.s4 1983009808
          %v3277 = vunpack.c.0.s8 %v3276
          %v3278 = vlaneseq
          %v3279 = vshrl.u32 %v3278, 7
          %v3280 = vsub.s32 %v3277, %v3279
          %v3281 = vrot.slane %v3274, %v3280
          %v3282 = vcombine.low %v3202, %v3206
          %v3284 = vunpack.c.l.s4 1983009808
          %v3285 = vunpack.c.0.s8 %v3284
          %v3286 = vlaneseq
          %v3287 = vshrl.u32 %v3286, 7
          %v3288 = vsub.s32 %v3285, %v3287
          %v3289 = vrot.slane %v3282, %v3288
          %v3290 = vcombine.low %v3204, %v3208
          %v3292 = vunpack.c.l.s4 1983009808
          %v3293 = vunpack.c.0.s8 %v3292
          %v3294 = vlaneseq
          %v3295 = vshrl.u32 %v3294, 7
          %v3296 = vsub.s32 %v3293, %v3295
          %v3297 = vrot.slane %v3290, %v3296
          %v3298 = vcombine.low %v3273, %v3281
          %v3300 = vunpack.c.l.s4 1934713408
          %v3301 = vunpack.c.0.s8 %v3300
          %v3302 = vlaneseq
          %v3303 = vshrl.u32 %v3302, 7
          %v3304 = vsub.s32 %v3301, %v3303
          %v3305 = vrot.slane %v3298, %v3304
          %v3306 = vcombine.low %v3289, %v3297
          %v3308 = vunpack.c.l.s4 1934713408
          %v3309 = vunpack.c.0.s8 %v3308
          %v3310 = vlaneseq
          %v3311 = vshrl.u32 %v3310, 7
          %v3312 = vsub.s32 %v3309, %v3311
          %v3313 = vrot.slane %v3306, %v3312
          %v3314 = vcombine.low %v3305, %v3313
          %v3315 = vcombine.low %v3209, %v3213
          %v3317 = vunpack.c.l.s4 1983009808
          %v3318 = vunpack.c.0.s8 %v3317
          %v3319 = vlaneseq
          %v3320 = vshrl.u32 %v3319, 7
          %v3321 = vsub.s32 %v3318, %v3320
          %v3322 = vrot.slane %v3315, %v3321
          %v3323 = vcombine.low %v3211, %v3215
          %v3325 = vunpack.c.l.s4 1983009808
          %v3326 = vunpack.c.0.s8 %v3325
          %v3327 = vlaneseq
          %v3328 = vshrl.u32 %v3327, 7
          %v3329 = vsub.s32 %v3326, %v3328
          %v3330 = vrot.slane %v3323, %v3329
          %v3331 = vcombine.low %v3322, %v3330
          %v3333 = vunpack.c.l.s4 1934713408
          %v3334 = vunpack.c.0.s8 %v3333
          %v3335 = vlaneseq
          %v3336 = vshrl.u32 %v3335, 7
          %v3337 = vsub.s32 %v3334, %v3336
          %v3338 = vrot.slane %v3331, %v3337
          %v3339 = vcombine.low %v3210, %v3214
          %v3341 = vunpack.c.l.s4 1983009808
          %v3342 = vunpack.c.0.s8 %v3341
          %v3343 = vlaneseq
          %v3344 = vshrl.u32 %v3343, 7
          %v3345 = vsub.s32 %v3342, %v3344
          %v3346 = vrot.slane %v3339, %v3345
          %v3347 = vcombine.low %v3212, %v3216
          %v3349 = vunpack.c.l.s4 1983009808
          %v3350 = vunpack.c.0.s8 %v3349
          %v3351 = vlaneseq
          %v3352 = vshrl.u32 %v3351, 7
          %v3353 = vsub.s32 %v3350, %v3352
          %v3354 = vrot.slane %v3347, %v3353
          %v3355 = vcombine.low %v3346, %v3354
          %v3357 = vunpack.c.l.s4 1934713408
          %v3358 = vunpack.c.0.s8 %v3357
          %v3359 = vlaneseq
          %v3360 = vshrl.u32 %v3359, 7
          %v3361 = vsub.s32 %v3358, %v3360
          %v3362 = vrot.slane %v3355, %v3361
          %v3365 = vpack.i.b16 %v3314, %v3265
          %v3366 = vshrl.u32 %v3265, 16
          %v3367 = vshrl.u32 %v3314, 16
          %v3368 = vpack.i.b16 %v3367, %v3366
          %v3371 = vpack.i.b16 %v3362, %v3338
          %v3372 = vshrl.u32 %v3338, 16
          %v3373 = vshrl.u32 %v3362, 16
          %v3374 = vpack.i.b16 %v3373, %v3372
          %3375 = vrot.lane.b32.xlu0 %v1443, 32
          %v3376 = vpop.permute.xlu0 %3375
          %3377 = vrot.lane.b32.xlu0 %v1445, 32
          %v3378 = vpop.permute.xlu0 %3377
          %3379 = vrot.lane.b32.xlu0 %v1452, 32
          %v3380 = vpop.permute.xlu0 %3379
          %3381 = vrot.lane.b32.xlu0 %v1454, 32
          %v3382 = vpop.permute.xlu0 %3381
          %3387 = vxpose.xlu0.c.b16.start [1/8] %v3376, 128
          %3388 = vxpose.xlu0.c.b16.cont [2/8] %v3378, 128
          %3389 = vxpose.xlu0.c.b16.cont [3/8] 0, 128
          %3390 = vxpose.xlu0.c.b16.cont [4/8] 0, 128
          %3391 = vxpose.xlu0.c.b16.cont [5/8] 0, 128
          %3392 = vxpose.xlu0.c.b16.cont [6/8] 0, 128
          %3393 = vxpose.xlu0.c.b16.cont [7/8] 0, 128
          %3394 = vxpose.xlu0.c.b16.end [8/8] 0, 128
          %v3395 = vpop.trf.xlu0
          %v3396 = vpop.trf.xlu0
          %v3397 = vpop.trf.xlu0
          %v3398 = vpop.trf.xlu0
          %v3399 = vpop.trf.xlu0
          %v3400 = vpop.trf.xlu0
          %v3401 = vpop.trf.xlu0
          %v3402 = vpop.trf.xlu0
          %3403 = vxpose.xlu0.c.b16.start [1/8] %v3380, 128
          %3404 = vxpose.xlu0.c.b16.cont [2/8] %v3382, 128
          %3405 = vxpose.xlu0.c.b16.cont [3/8] 0, 128
          %3406 = vxpose.xlu0.c.b16.cont [4/8] 0, 128
          %3407 = vxpose.xlu0.c.b16.cont [5/8] 0, 128
          %3408 = vxpose.xlu0.c.b16.cont [6/8] 0, 128
          %3409 = vxpose.xlu0.c.b16.cont [7/8] 0, 128
          %3410 = vxpose.xlu0.c.b16.end [8/8] 0, 128
          %v3411 = vpop.trf.xlu0
          %v3412 = vpop.trf.xlu0
          %v3413 = vpop.trf.xlu0
          %v3414 = vpop.trf.xlu0
          %v3415 = vpop.trf.xlu0
          %v3416 = vpop.trf.xlu0
          %v3417 = vpop.trf.xlu0
          %v3418 = vpop.trf.xlu0
          %v3420 = vsel %vm1933, %v3365, 0
          %v3423 = vsel %vm1933, %v3371, 0
          %3425 = vmatprep.subr.bf16.mxu0 0
          %3426 = vmatpush1.bf16.msra.mxu0 %v3395
          %3427 = vmatprep.subr.bf16.mxu0 0
          %3428 = vmatpush1.bf16.msra.mxu0 0
          %3429 = vmatprep.subr.bf16.mxu0 0
          %3430 = vmatpush1.bf16.msra.mxu0 0
          %3431 = vmatprep.subr.bf16.mxu0 0
          %3432 = vmatpush1.bf16.msra.mxu0 0
          %3433 = vmatprep.subr.bf16.mxu0 0
          %3434 = vmatpush1.bf16.msra.mxu0 0
          %3435 = vmatprep.subr.bf16.mxu0 0
          %3436 = vmatpush1.bf16.msra.mxu0 0
          %3437 = vmatprep.subr.bf16.mxu0 0
          %3438 = vmatpush1.bf16.msra.mxu0 0
          %3439 = vmatprep.subr.bf16.mxu0 0
          %3440 = vmatpush1.bf16.msra.mxu0 0
          %3441 = vmatprep.subr.bf16.mxu0 0
          %3442 = vmatpush1.bf16.msra.mxu0 0
          %3443 = vmatprep.subr.bf16.mxu0 0
          %3444 = vmatpush1.bf16.msra.mxu0 0
          %3445 = vmatprep.subr.bf16.mxu0 0
          %3446 = vmatpush1.bf16.msra.mxu0 0
          %3447 = vmatprep.subr.bf16.mxu0 0
          %3448 = vmatpush1.bf16.msra.mxu0 0
          %3449 = vmatprep.subr.bf16.mxu0 0
          %3450 = vmatpush1.bf16.msra.mxu0 0
          %3451 = vmatprep.subr.bf16.mxu0 0
          %3452 = vmatpush1.bf16.msra.mxu0 0
          %3453 = vmatprep.subr.bf16.mxu0 0
          %3454 = vmatpush1.bf16.msra.mxu0 0
          %3455 = vmatprep.subr.bf16.mxu0 0
          %3456 = vmatpush1.bf16.msra.mxu0 0
          %3457 = vmatprep.mubr.bf16.mxu0 0
          %3458 = vmatmul.mubr.bf16.gmra.mrb[0].mxu0 %v3420
          %v3459 = vpop.f32.mrb[0].mxu0
          %v3460 = vadd.f32 0.0, %v3459
          %v3461 = vpop.f32.mrb[0].mxu0
          %v3462 = vpop.f32.mrb[0].mxu0
          %v3463 = vadd.f32 0.0, %v3462
          %v3464 = vpop.f32.mrb[0].mxu0
          %3465 = vmatprep.mubr.bf16.mxu0 0
          %3466 = vmatmul.mubr.bf16.gmra.mrb[0].mxu0 %v3423
          %v3467 = vpop.f32.mrb[0].mxu0
          %v3468 = vadd.f32 0.0, %v3467
          %v3469 = vpop.f32.mrb[0].mxu0
          %v3470 = vpop.f32.mrb[0].mxu0
          %v3471 = vpop.f32.mrb[0].mxu0
          %3472 = vdwg.mxu0
          %v3474 = vsel %vm1933, %v3368, 0
          %v3477 = vsel %vm1933, %v3374, 0
          %3479 = vmatprep.subr.bf16.mxu0 0
          %3480 = vmatpush1.bf16.msra.mxu0 %v3411
          %3481 = vmatprep.subr.bf16.mxu0 0
          %3482 = vmatpush1.bf16.msra.mxu0 0
          %3483 = vmatprep.subr.bf16.mxu0 0
          %3484 = vmatpush1.bf16.msra.mxu0 0
          %3485 = vmatprep.subr.bf16.mxu0 0
          %3486 = vmatpush1.bf16.msra.mxu0 0
          %3487 = vmatprep.subr.bf16.mxu0 0
          %3488 = vmatpush1.bf16.msra.mxu0 0
          %3489 = vmatprep.subr.bf16.mxu0 0
          %3490 = vmatpush1.bf16.msra.mxu0 0
          %3491 = vmatprep.subr.bf16.mxu0 0
          %3492 = vmatpush1.bf16.msra.mxu0 0
          %3493 = vmatprep.subr.bf16.mxu0 0
          %3494 = vmatpush1.bf16.msra.mxu0 0
          %3495 = vmatprep.subr.bf16.mxu0 0
          %3496 = vmatpush1.bf16.msra.mxu0 0
          %3497 = vmatprep.subr.bf16.mxu0 0
          %3498 = vmatpush1.bf16.msra.mxu0 0
          %3499 = vmatprep.subr.bf16.mxu0 0
          %3500 = vmatpush1.bf16.msra.mxu0 0
          %3501 = vmatprep.subr.bf16.mxu0 0
          %3502 = vmatpush1.bf16.msra.mxu0 0
          %3503 = vmatprep.subr.bf16.mxu0 0
          %3504 = vmatpush1.bf16.msra.mxu0 0
          %3505 = vmatprep.subr.bf16.mxu0 0
          %3506 = vmatpush1.bf16.msra.mxu0 0
          %3507 = vmatprep.subr.bf16.mxu0 0
          %3508 = vmatpush1.bf16.msra.mxu0 0
          %3509 = vmatprep.subr.bf16.mxu0 0
          %3510 = vmatpush1.bf16.msra.mxu0 0
          %3511 = vmatprep.mubr.bf16.mxu0 0
          %3512 = vmatmul.mubr.bf16.gmra.mrb[0].mxu0 %v3474
          %v3513 = vpop.f32.mrb[0].mxu0
          %v3514 = vadd.f32 0.0, %v3513
          %v3515 = vpop.f32.mrb[0].mxu0
          %v3516 = vpop.f32.mrb[0].mxu0
          %v3517 = vadd.f32 0.0, %v3516
          %v3518 = vpop.f32.mrb[0].mxu0
          %3519 = vmatprep.mubr.bf16.mxu0 0
          %3520 = vmatmul.mubr.bf16.gmra.mrb[0].mxu0 %v3477
          %v3521 = vpop.f32.mrb[0].mxu0
          %v3522 = vadd.f32 0.0, %v3521
          %v3523 = vpop.f32.mrb[0].mxu0
          %v3524 = vpop.f32.mrb[0].mxu0
          %v3525 = vpop.f32.mrb[0].mxu0
          %3526 = vdwg.mxu0
          %v3527 = vsel %vm2042, %v3460, -inf
          %3528 = vmax.xlane.f32.xlu0 %v3527
          %v3529 = vpop.xlane.xlu0 %3528
          %v3530 = vsel %vm2042, %v3463, -inf
          %3531 = vmax.xlane.f32.xlu0 %v3530
          %v3532 = vpop.xlane.xlu0 %3531
          %v3533 = vsel %vm2042, %v3468, -inf
          %3534 = vmax.xlane.f32.xlu0 %v3533
          %v3535 = vpop.xlane.xlu0 %3534
          %v3536 = vsel %vm2042, %v3514, -inf
          %3537 = vmax.xlane.f32.xlu0 %v3536
          %v3538 = vpop.xlane.xlu0 %3537
          %v3539 = vsel %vm2042, %v3517, -inf
          %3540 = vmax.xlane.f32.xlu0 %v3539
          %v3541 = vpop.xlane.xlu0 %3540
          %v3542 = vsel %vm2042, %v3522, -inf
          %3543 = vmax.xlane.f32.xlu0 %v3542
          %v3544 = vpop.xlane.xlu0 %3543
          %v3545 = vsub.f32 %v3460, %v3529
          %v3546 = vsub.f32 %v3463, %v3532
          %v3547 = vsub.f32 %v3468, %v3535
          %v3548 = vsub.f32 %v3514, %v3538
          %v3549 = vsub.f32 %v3517, %v3541
          %v3550 = vsub.f32 %v3522, %v3544
          %v3551 = vmul.f32 %v3545, 1.442695
          %v3552 = vpow.pop %v3551
          %v3553 = vmul.f32 %v3546, 1.442695
          %v3554 = vpow.pop %v3553
          %v3555 = vmul.f32 %v3547, 1.442695
          %v3556 = vpow.pop %v3555
          %v3557 = vmul.f32 %v3548, 1.442695
          %v3558 = vpow.pop %v3557
          %v3559 = vmul.f32 %v3549, 1.442695
          %v3560 = vpow.pop %v3559
          %v3561 = vmul.f32 %v3550, 1.442695
          %v3562 = vpow.pop %v3561
          %v3563 = vsel %vm2042, %v3552, 0.0
          %3564 = vadd.xlane.f32.xlu0 %v3563
          %v3565 = vpop.xlane.xlu0 %3564
          %v3566 = vsel %vm2042, %v3554, 0.0
          %3567 = vadd.xlane.f32.xlu0 %v3566
          %v3568 = vpop.xlane.xlu0 %3567
          %v3569 = vsel %vm2042, %v3556, 0.0
          %3570 = vadd.xlane.f32.xlu0 %v3569
          %v3571 = vpop.xlane.xlu0 %3570
          %v3572 = vsel %vm2042, %v3558, 0.0
          %3573 = vadd.xlane.f32.xlu0 %v3572
          %v3574 = vpop.xlane.xlu0 %3573
          %v3575 = vsel %vm2042, %v3560, 0.0
          %3576 = vadd.xlane.f32.xlu0 %v3575
          %v3577 = vpop.xlane.xlu0 %3576
          %v3578 = vsel %vm2042, %v3562, 0.0
          %3579 = vadd.xlane.f32.xlu0 %v3578
          %v3580 = vpop.xlane.xlu0 %3579
          %v3581 = vrcp.pop %v3565
          %v3582 = vrcp.pop %v3568
          %v3583 = vrcp.pop %v3571
          %v3584 = vrcp.pop %v3574
          %v3585 = vrcp.pop %v3577
          %v3586 = vrcp.pop %v3580
          %v3587 = vpack.c.bf16 %v3554, %v3552
          %v3588 = vpack.c.bf16 %v3556, %v3556
          %v3589 = vpack.c.bf16 %v3560, %v3558
          %v3590 = vpack.c.bf16 %v3562, %v3562
          %3591 = vrot.lane.b32.xlu0 %v1444, 96
          %v3592 = vpop.permute.xlu0 %3591
          %3593 = vrot.lane.b32.xlu0 %v1446, 96
          %v3594 = vpop.permute.xlu0 %3593
          %3595 = vrot.lane.b32.xlu0 %v1726, 96
          %v3596 = vpop.permute.xlu0 %3595
          %3597 = vrot.lane.b32.xlu0 %v1728, 96
          %v3598 = vpop.permute.xlu0 %3597
          %3603 = vxpose.xlu0.c.b16.start [1/8] %v3592, 128
          %3604 = vxpose.xlu0.c.b16.cont [2/8] %v3594, 128
          %3605 = vxpose.xlu0.c.b16.cont [3/8] 0, 128
          %3606 = vxpose.xlu0.c.b16.cont [4/8] 0, 128
          %3607 = vxpose.xlu0.c.b16.cont [5/8] 0, 128
          %3608 = vxpose.xlu0.c.b16.cont [6/8] 0, 128
          %3609 = vxpose.xlu0.c.b16.cont [7/8] 0, 128
          %3610 = vxpose.xlu0.c.b16.end [8/8] 0, 128
          %v3611 = vpop.trf.xlu0
          %v3612 = vpop.trf.xlu0
          %v3613 = vpop.trf.xlu0
          %v3614 = vpop.trf.xlu0
          %v3615 = vpop.trf.xlu0
          %v3616 = vpop.trf.xlu0
          %v3617 = vpop.trf.xlu0
          %v3618 = vpop.trf.xlu0
          %3619 = vxpose.xlu0.c.b16.start [1/8] %v3596, 128
          %3620 = vxpose.xlu0.c.b16.cont [2/8] %v3598, 128
          %3621 = vxpose.xlu0.c.b16.cont [3/8] 0, 128
          %3622 = vxpose.xlu0.c.b16.cont [4/8] 0, 128
          %3623 = vxpose.xlu0.c.b16.cont [5/8] 0, 128
          %3624 = vxpose.xlu0.c.b16.cont [6/8] 0, 128
          %3625 = vxpose.xlu0.c.b16.cont [7/8] 0, 128
          %3626 = vxpose.xlu0.c.b16.end [8/8] 0, 128
          %v3627 = vpop.trf.xlu0
          %v3628 = vpop.trf.xlu0
          %v3629 = vpop.trf.xlu0
          %v3630 = vpop.trf.xlu0
          %v3631 = vpop.trf.xlu0
          %v3632 = vpop.trf.xlu0
          %v3633 = vpop.trf.xlu0
          %v3634 = vpop.trf.xlu0
          %v3636 = vsel %vm2042, %v3611, 0
          %v3639 = vsel %vm2042, %v3587, 0
          %v3642 = vsel %vm2042, %v3588, 0
          %3644 = vmatprep.subr.bf16.mxu0 0
          %3645 = vmatpush1.bf16.xpose.msra.mxu0 %v3639
          %3646 = vmatprep.subr.bf16.mxu0 0
          %3647 = vmatpush1.bf16.xpose.msra.mxu0 %v3642
          %3648 = vmatprep.subr.bf16.mxu0 0
          %3649 = vmatpush1.bf16.xpose.msra.mxu0 0
          %3650 = vmatprep.subr.bf16.mxu0 0
          %3651 = vmatpush1.bf16.xpose.msra.mxu0 0
          %3652 = vmatprep.subr.bf16.mxu0 0
          %3653 = vmatpush1.bf16.xpose.msra.mxu0 0
          %3654 = vmatprep.subr.bf16.mxu0 0
          %3655 = vmatpush1.bf16.xpose.msra.mxu0 0
          %3656 = vmatprep.subr.bf16.mxu0 0
          %3657 = vmatpush1.bf16.xpose.msra.mxu0 0
          %3658 = vmatprep.subr.bf16.mxu0 0
          %3659 = vmatpush1.bf16.xpose.msra.mxu0 0
          %3660 = vmatprep.subr.bf16.mxu0 0
          %3661 = vmatpush1.bf16.xpose.msra.mxu0 0
          %3662 = vmatprep.subr.bf16.mxu0 0
          %3663 = vmatpush1.bf16.xpose.msra.mxu0 0
          %3664 = vmatprep.subr.bf16.mxu0 0
          %3665 = vmatpush1.bf16.xpose.msra.mxu0 0
          %3666 = vmatprep.subr.bf16.mxu0 0
          %3667 = vmatpush1.bf16.xpose.msra.mxu0 0
          %3668 = vmatprep.subr.bf16.mxu0 0
          %3669 = vmatpush1.bf16.xpose.msra.mxu0 0
          %3670 = vmatprep.subr.bf16.mxu0 0
          %3671 = vmatpush1.bf16.xpose.msra.mxu0 0
          %3672 = vmatprep.subr.bf16.mxu0 0
          %3673 = vmatpush1.bf16.xpose.msra.mxu0 0
          %3674 = vmatprep.subr.bf16.mxu0 0
          %3675 = vmatpush1.bf16.xpose.msra.mxu0 0
          %3676 = vmatprep.mubr.bf16.mxu0 0
          %3677 = vmatmul.mubr.bf16.gmra.mrb[0].mxu0 %v3636
          %v3678 = vpop.f32.mrb[0].mxu0
          %v3679 = vadd.f32 0.0, %v3678
          %v3680 = vpop.f32.mrb[0].mxu0
          %v3681 = vpop.f32.mrb[0].mxu0
          %v3682 = vadd.f32 0.0, %v3681
          %v3683 = vpop.f32.mrb[0].mxu0
          %3684 = vdwg.mxu0
          %v3686 = vsel %vm2042, %v3627, 0
          %v3689 = vsel %vm2042, %v3589, 0
          %v3692 = vsel %vm2042, %v3590, 0
          %3694 = vmatprep.subr.bf16.mxu0 0
          %3695 = vmatpush1.bf16.xpose.msra.mxu0 %v3689
          %3696 = vmatprep.subr.bf16.mxu0 0
          %3697 = vmatpush1.bf16.xpose.msra.mxu0 %v3692
          %3698 = vmatprep.subr.bf16.mxu0 0
          %3699 = vmatpush1.bf16.xpose.msra.mxu0 0
          %3700 = vmatprep.subr.bf16.mxu0 0
          %3701 = vmatpush1.bf16.xpose.msra.mxu0 0
          %3702 = vmatprep.subr.bf16.mxu0 0
          %3703 = vmatpush1.bf16.xpose.msra.mxu0 0
          %3704 = vmatprep.subr.bf16.mxu0 0
          %3705 = vmatpush1.bf16.xpose.msra.mxu0 0
          %3706 = vmatprep.subr.bf16.mxu0 0
          %3707 = vmatpush1.bf16.xpose.msra.mxu0 0
          %3708 = vmatprep.subr.bf16.mxu0 0
          %3709 = vmatpush1.bf16.xpose.msra.mxu0 0
          %3710 = vmatprep.subr.bf16.mxu0 0
          %3711 = vmatpush1.bf16.xpose.msra.mxu0 0
          %3712 = vmatprep.subr.bf16.mxu0 0
          %3713 = vmatpush1.bf16.xpose.msra.mxu0 0
          %3714 = vmatprep.subr.bf16.mxu0 0
          %3715 = vmatpush1.bf16.xpose.msra.mxu0 0
          %3716 = vmatprep.subr.bf16.mxu0 0
          %3717 = vmatpush1.bf16.xpose.msra.mxu0 0
          %3718 = vmatprep.subr.bf16.mxu0 0
          %3719 = vmatpush1.bf16.xpose.msra.mxu0 0
          %3720 = vmatprep.subr.bf16.mxu0 0
          %3721 = vmatpush1.bf16.xpose.msra.mxu0 0
          %3722 = vmatprep.subr.bf16.mxu0 0
          %3723 = vmatpush1.bf16.xpose.msra.mxu0 0
          %3724 = vmatprep.subr.bf16.mxu0 0
          %3725 = vmatpush1.bf16.xpose.msra.mxu0 0
          %3726 = vmatprep.mubr.bf16.mxu0 0
          %3727 = vmatmul.mubr.bf16.gmra.mrb[0].mxu0 %v3686
          %v3728 = vpop.f32.mrb[0].mxu0
          %v3729 = vadd.f32 0.0, %v3728
          %v3730 = vpop.f32.mrb[0].mxu0
          %v3731 = vpop.f32.mrb[0].mxu0
          %v3732 = vadd.f32 0.0, %v3731
          %v3733 = vpop.f32.mrb[0].mxu0
          %3734 = vdwg.mxu0
          %3735 = vxpose.xlu0.b32.start [1/16] %v3679, 128
          %3736 = vxpose.xlu0.b32.cont [2/16] %v3682, 128
          %3737 = vxpose.xlu0.b32.cont [3/16] 0.0, 128
          %3738 = vxpose.xlu0.b32.cont [4/16] 0.0, 128
          %3739 = vxpose.xlu0.b32.cont [5/16] 0.0, 128
          %3740 = vxpose.xlu0.b32.cont [6/16] 0.0, 128
          %3741 = vxpose.xlu0.b32.cont [7/16] 0.0, 128
          %3742 = vxpose.xlu0.b32.cont [8/16] 0.0, 128
          %3743 = vxpose.xlu0.b32.cont [9/16] 0.0, 128
          %3744 = vxpose.xlu0.b32.cont [10/16] 0.0, 128
          %3745 = vxpose.xlu0.b32.cont [11/16] 0.0, 128
          %3746 = vxpose.xlu0.b32.cont [12/16] 0.0, 128
          %3747 = vxpose.xlu0.b32.cont [13/16] 0.0, 128
          %3748 = vxpose.xlu0.b32.cont [14/16] 0.0, 128
          %3749 = vxpose.xlu0.b32.cont [15/16] 0.0, 128
          %3750 = vxpose.xlu0.b32.end [16/16] 0.0, 128
          %v3751 = vpop.trf.xlu0
          %v3752 = vpop.trf.xlu0
          %v3753 = vpop.trf.xlu0
          %v3754 = vpop.trf.xlu0
          %v3755 = vpop.trf.xlu0
          %v3756 = vpop.trf.xlu0
          %v3757 = vpop.trf.xlu0
          %v3758 = vpop.trf.xlu0
          %v3759 = vpop.trf.xlu0
          %v3760 = vpop.trf.xlu0
          %v3761 = vpop.trf.xlu0
          %v3762 = vpop.trf.xlu0
          %v3763 = vpop.trf.xlu0
          %v3764 = vpop.trf.xlu0
          %v3765 = vpop.trf.xlu0
          %v3766 = vpop.trf.xlu0
          %3767 = vxpose.xlu0.b32.start [1/16] %v3729, 128
          %3768 = vxpose.xlu0.b32.cont [2/16] %v3732, 128
          %3769 = vxpose.xlu0.b32.cont [3/16] 0.0, 128
          %3770 = vxpose.xlu0.b32.cont [4/16] 0.0, 128
          %3771 = vxpose.xlu0.b32.cont [5/16] 0.0, 128
          %3772 = vxpose.xlu0.b32.cont [6/16] 0.0, 128
          %3773 = vxpose.xlu0.b32.cont [7/16] 0.0, 128
          %3774 = vxpose.xlu0.b32.cont [8/16] 0.0, 128
          %3775 = vxpose.xlu0.b32.cont [9/16] 0.0, 128
          %3776 = vxpose.xlu0.b32.cont [10/16] 0.0, 128
          %3777 = vxpose.xlu0.b32.cont [11/16] 0.0, 128
          %3778 = vxpose.xlu0.b32.cont [12/16] 0.0, 128
          %3779 = vxpose.xlu0.b32.cont [13/16] 0.0, 128
          %3780 = vxpose.xlu0.b32.cont [14/16] 0.0, 128
          %3781 = vxpose.xlu0.b32.cont [15/16] 0.0, 128
          %3782 = vxpose.xlu0.b32.end [16/16] 0.0, 128
          %v3783 = vpop.trf.xlu0
          %v3784 = vpop.trf.xlu0
          %v3785 = vpop.trf.xlu0
          %v3786 = vpop.trf.xlu0
          %v3787 = vpop.trf.xlu0
          %v3788 = vpop.trf.xlu0
          %v3789 = vpop.trf.xlu0
          %v3790 = vpop.trf.xlu0
          %v3791 = vpop.trf.xlu0
          %v3792 = vpop.trf.xlu0
          %v3793 = vpop.trf.xlu0
          %v3794 = vpop.trf.xlu0
          %v3795 = vpop.trf.xlu0
          %v3796 = vpop.trf.xlu0
          %v3797 = vpop.trf.xlu0
          %v3798 = vpop.trf.xlu0
          %v3799 = vcombine.high %v3751, 0.0
          %v3801 = vunpack.c.l.s4 1983009808
          %v3802 = vunpack.c.0.s8 %v3801
          %v3803 = vlaneseq
          %v3804 = vshrl.u32 %v3803, 7
          %v3805 = vsub.s32 %v3802, %v3804
          %v3806 = vrot.slane %v3751, %v3805
          %v3808 = vunpack.c.l.s4 1983009808
          %v3809 = vunpack.c.0.s8 %v3808
          %v3810 = vlaneseq
          %v3811 = vshrl.u32 %v3810, 7
          %v3812 = vsub.s32 %v3809, %v3811
          %v3813 = vrot.slane %v3799, %v3812
          %v3814 = vcombine.high %v3783, 0.0
          %v3816 = vunpack.c.l.s4 1983009808
          %v3817 = vunpack.c.0.s8 %v3816
          %v3818 = vlaneseq
          %v3819 = vshrl.u32 %v3818, 7
          %v3820 = vsub.s32 %v3817, %v3819
          %v3821 = vrot.slane %v3783, %v3820
          %v3823 = vunpack.c.l.s4 1983009808
          %v3824 = vunpack.c.0.s8 %v3823
          %v3825 = vlaneseq
          %v3826 = vshrl.u32 %v3825, 7
          %v3827 = vsub.s32 %v3824, %v3826
          %v3828 = vrot.slane %v3814, %v3827
          %v3829 = vcombine.low %v3806, %v3821
          %v3830 = vcombine.high %v3806, %v3821
          %v3832 = vunpack.c.l.s4 1934713408
          %v3833 = vunpack.c.0.s8 %v3832
          %v3834 = vlaneseq
          %v3835 = vshrl.u32 %v3834, 7
          %v3836 = vsub.s32 %v3833, %v3835
          %v3837 = vrot.slane %v3829, %v3836
          %v3839 = vunpack.c.l.s4 1934713408
          %v3840 = vunpack.c.0.s8 %v3839
          %v3841 = vlaneseq
          %v3842 = vshrl.u32 %v3841, 7
          %v3843 = vsub.s32 %v3840, %v3842
          %v3844 = vrot.slane %v3830, %v3843
          %v3845 = vcombine.low %v3813, %v3828
          %v3846 = vcombine.high %v3813, %v3828
          %v3848 = vunpack.c.l.s4 1934713408
          %v3849 = vunpack.c.0.s8 %v3848
          %v3850 = vlaneseq
          %v3851 = vshrl.u32 %v3850, 7
          %v3852 = vsub.s32 %v3849, %v3851
          %v3853 = vrot.slane %v3845, %v3852
          %v3855 = vunpack.c.l.s4 1934713408
          %v3856 = vunpack.c.0.s8 %v3855
          %v3857 = vlaneseq
          %v3858 = vshrl.u32 %v3857, 7
          %v3859 = vsub.s32 %v3856, %v3858
          %v3860 = vrot.slane %v3846, %v3859
          %v3861 = vcombine.high %v3837, 0.0
          %v3862 = vcombine.high %v3844, 0.0
          %v3863 = vcombine.high %v3853, 0.0
          %v3864 = vcombine.high %v3860, 0.0
          %v3865 = vcombine.high %v3752, 0.0
          %v3867 = vunpack.c.l.s4 1983009808
          %v3868 = vunpack.c.0.s8 %v3867
          %v3869 = vlaneseq
          %v3870 = vshrl.u32 %v3869, 7
          %v3871 = vsub.s32 %v3868, %v3870
          %v3872 = vrot.slane %v3752, %v3871
          %v3874 = vunpack.c.l.s4 1983009808
          %v3875 = vunpack.c.0.s8 %v3874
          %v3876 = vlaneseq
          %v3877 = vshrl.u32 %v3876, 7
          %v3878 = vsub.s32 %v3875, %v3877
          %v3879 = vrot.slane %v3865, %v3878
          %v3880 = vcombine.high %v3784, 0.0
          %v3882 = vunpack.c.l.s4 1983009808
          %v3883 = vunpack.c.0.s8 %v3882
          %v3884 = vlaneseq
          %v3885 = vshrl.u32 %v3884, 7
          %v3886 = vsub.s32 %v3883, %v3885
          %v3887 = vrot.slane %v3784, %v3886
          %v3889 = vunpack.c.l.s4 1983009808
          %v3890 = vunpack.c.0.s8 %v3889
          %v3891 = vlaneseq
          %v3892 = vshrl.u32 %v3891, 7
          %v3893 = vsub.s32 %v3890, %v3892
          %v3894 = vrot.slane %v3880, %v3893
          %v3895 = vcombine.low %v3872, %v3887
          %v3896 = vcombine.high %v3872, %v3887
          %v3898 = vunpack.c.l.s4 1934713408
          %v3899 = vunpack.c.0.s8 %v3898
          %v3900 = vlaneseq
          %v3901 = vshrl.u32 %v3900, 7
          %v3902 = vsub.s32 %v3899, %v3901
          %v3903 = vrot.slane %v3895, %v3902
          %v3905 = vunpack.c.l.s4 1934713408
          %v3906 = vunpack.c.0.s8 %v3905
          %v3907 = vlaneseq
          %v3908 = vshrl.u32 %v3907, 7
          %v3909 = vsub.s32 %v3906, %v3908
          %v3910 = vrot.slane %v3896, %v3909
          %v3911 = vcombine.low %v3879, %v3894
          %v3912 = vcombine.high %v3879, %v3894
          %v3914 = vunpack.c.l.s4 1934713408
          %v3915 = vunpack.c.0.s8 %v3914
          %v3916 = vlaneseq
          %v3917 = vshrl.u32 %v3916, 7
          %v3918 = vsub.s32 %v3915, %v3917
          %v3919 = vrot.slane %v3911, %v3918
          %v3921 = vunpack.c.l.s4 1934713408
          %v3922 = vunpack.c.0.s8 %v3921
          %v3923 = vlaneseq
          %v3924 = vshrl.u32 %v3923, 7
          %v3925 = vsub.s32 %v3922, %v3924
          %v3926 = vrot.slane %v3912, %v3925
          %v3927 = vcombine.high %v3903, 0.0
          %v3928 = vcombine.high %v3910, 0.0
          %v3929 = vcombine.high %v3919, 0.0
          %v3930 = vcombine.high %v3926, 0.0
          %v3931 = vcombine.high %v3753, 0.0
          %v3933 = vunpack.c.l.s4 1983009808
          %v3934 = vunpack.c.0.s8 %v3933
          %v3935 = vlaneseq
          %v3936 = vshrl.u32 %v3935, 7
          %v3937 = vsub.s32 %v3934, %v3936
          %v3938 = vrot.slane %v3753, %v3937
          %v3940 = vunpack.c.l.s4 1983009808
          %v3941 = vunpack.c.0.s8 %v3940
          %v3942 = vlaneseq
          %v3943 = vshrl.u32 %v3942, 7
          %v3944 = vsub.s32 %v3941, %v3943
          %v3945 = vrot.slane %v3931, %v3944
          %v3946 = vcombine.high %v3785, 0.0
          %v3948 = vunpack.c.l.s4 1983009808
          %v3949 = vunpack.c.0.s8 %v3948
          %v3950 = vlaneseq
          %v3951 = vshrl.u32 %v3950, 7
          %v3952 = vsub.s32 %v3949, %v3951
          %v3953 = vrot.slane %v3785, %v3952
          %v3955 = vunpack.c.l.s4 1983009808
          %v3956 = vunpack.c.0.s8 %v3955
          %v3957 = vlaneseq
          %v3958 = vshrl.u32 %v3957, 7
          %v3959 = vsub.s32 %v3956, %v3958
          %v3960 = vrot.slane %v3946, %v3959
          %v3961 = vcombine.low %v3938, %v3953
          %v3962 = vcombine.high %v3938, %v3953
          %v3964 = vunpack.c.l.s4 1934713408
          %v3965 = vunpack.c.0.s8 %v3964
          %v3966 = vlaneseq
          %v3967 = vshrl.u32 %v3966, 7
          %v3968 = vsub.s32 %v3965, %v3967
          %v3969 = vrot.slane %v3961, %v3968
          %v3971 = vunpack.c.l.s4 1934713408
          %v3972 = vunpack.c.0.s8 %v3971
          %v3973 = vlaneseq
          %v3974 = vshrl.u32 %v3973, 7
          %v3975 = vsub.s32 %v3972, %v3974
          %v3976 = vrot.slane %v3962, %v3975
          %v3977 = vcombine.low %v3945, %v3960
          %v3978 = vcombine.high %v3945, %v3960
          %v3980 = vunpack.c.l.s4 1934713408
          %v3981 = vunpack.c.0.s8 %v3980
          %v3982 = vlaneseq
          %v3983 = vshrl.u32 %v3982, 7
          %v3984 = vsub.s32 %v3981, %v3983
          %v3985 = vrot.slane %v3977, %v3984
          %v3987 = vunpack.c.l.s4 1934713408
          %v3988 = vunpack.c.0.s8 %v3987
          %v3989 = vlaneseq
          %v3990 = vshrl.u32 %v3989, 7
          %v3991 = vsub.s32 %v3988, %v3990
          %v3992 = vrot.slane %v3978, %v3991
          %v3993 = vcombine.high %v3969, 0.0
          %v3994 = vcombine.high %v3976, 0.0
          %v3995 = vcombine.high %v3985, 0.0
          %v3996 = vcombine.high %v3992, 0.0
          %v4003 = vlaneseq
          %v4004 = vshrl.u32 %v4003, 7
          %v4005 = vsub.s32 %v2508, %v4004
          %v4006 = vrot.slane %v3581, %v4005
          %v4007 = vlaneseq
          %v4008 = vshrl.u32 %v4007, 7
          %v4009 = vsub.s32 %v2513, %v4008
          %v4010 = vrot.slane %v3582, %v4009
          %v4011 = vsel %vm2518, %v4010, %v4006
          %v4012 = vlaneseq
          %v4013 = vshrl.u32 %v4012, 7
          %v4014 = vsub.s32 %v2520, %v4013
          %v4015 = vrot.slane %v3583, %v4014
          %v4016 = vsel %vm2525, %v4015, %v4011
          %v4017 = vlaneseq
          %v4018 = vshrl.u32 %v4017, 7
          %v4019 = vsub.s32 %v2508, %v4018
          %v4020 = vrot.slane %v3584, %v4019
          %v4021 = vlaneseq
          %v4022 = vshrl.u32 %v4021, 7
          %v4023 = vsub.s32 %v2513, %v4022
          %v4024 = vrot.slane %v3585, %v4023
          %v4025 = vsel %vm2518, %v4024, %v4020
          %v4026 = vlaneseq
          %v4027 = vshrl.u32 %v4026, 7
          %v4028 = vsub.s32 %v2520, %v4027
          %v4029 = vrot.slane %v3586, %v4028
          %v4030 = vsel %vm2525, %v4029, %v4025
          %v4031 = vsel %vm2541, %v4030, %v4016
          %4033 = vxpose.xlu0.b32.start [1/16] %v4031, 128
          %4034 = vxpose.xlu0.b32.cont [2/16] 0.0, 128
          %4035 = vxpose.xlu0.b32.cont [3/16] 0.0, 128
          %4036 = vxpose.xlu0.b32.cont [4/16] 0.0, 128
          %4037 = vxpose.xlu0.b32.cont [5/16] 0.0, 128
          %4038 = vxpose.xlu0.b32.cont [6/16] 0.0, 128
          %4039 = vxpose.xlu0.b32.cont [7/16] 0.0, 128
          %4040 = vxpose.xlu0.b32.cont [8/16] 0.0, 128
          %4041 = vxpose.xlu0.b32.cont [9/16] 0.0, 128
          %4042 = vxpose.xlu0.b32.cont [10/16] 0.0, 128
          %4043 = vxpose.xlu0.b32.cont [11/16] 0.0, 128
          %4044 = vxpose.xlu0.b32.cont [12/16] 0.0, 128
          %4045 = vxpose.xlu0.b32.cont [13/16] 0.0, 128
          %4046 = vxpose.xlu0.b32.cont [14/16] 0.0, 128
          %4047 = vxpose.xlu0.b32.cont [15/16] 0.0, 128
          %4048 = vxpose.xlu0.b32.end [16/16] 0.0, 128
          %v4049 = vpop.trf.xlu0
          %v4050 = vpop.trf.xlu0
          %v4051 = vpop.trf.xlu0
          %v4052 = vpop.trf.xlu0
          %v4053 = vpop.trf.xlu0
          %v4054 = vpop.trf.xlu0
          %v4055 = vpop.trf.xlu0
          %v4056 = vpop.trf.xlu0
          %v4057 = vpop.trf.xlu0
          %v4058 = vpop.trf.xlu0
          %v4059 = vpop.trf.xlu0
          %v4060 = vpop.trf.xlu0
          %v4061 = vpop.trf.xlu0
          %v4062 = vpop.trf.xlu0
          %v4063 = vpop.trf.xlu0
          %v4064 = vpop.trf.xlu0
          %v4065 = vlaneseq
          %v4066 = vshrl.u32 %v4065, 7
          %v4067 = vsub.s32 0, %v4066
          %v4068 = vrot.slane %v4049, %v4067
          %4070 = vbcast.lane.b32.xlu0 %v4068, 256
          %v4071 = vpop.permute.xlu0 %4070
          %v4072 = vlaneseq
          %v4073 = vshrl.u32 %v4072, 7
          %v4074 = vsub.s32 1, %v4073
          %v4075 = vrot.slane %v4049, %v4074
          %4077 = vbcast.lane.b32.xlu0 %v4075, 256
          %v4078 = vpop.permute.xlu0 %4077
          %v4079 = vlaneseq
          %v4080 = vshrl.u32 %v4079, 7
          %v4081 = vsub.s32 2, %v4080
          %v4082 = vrot.slane %v4049, %v4081
          %4084 = vbcast.lane.b32.xlu0 %v4082, 256
          %v4085 = vpop.permute.xlu0 %4084
          %v4086 = vlaneseq
          %v4087 = vshrl.u32 %v4086, 7
          %v4088 = vsub.s32 3, %v4087
          %v4089 = vrot.slane %v4049, %v4088
          %4091 = vbcast.lane.b32.xlu0 %v4089, 256
          %v4092 = vpop.permute.xlu0 %4091
          %v4093 = vlaneseq
          %v4094 = vshrl.u32 %v4093, 7
          %v4095 = vsub.s32 4, %v4094
          %v4096 = vrot.slane %v4049, %v4095
          %4098 = vbcast.lane.b32.xlu0 %v4096, 256
          %v4099 = vpop.permute.xlu0 %4098
          %v4100 = vlaneseq
          %v4101 = vshrl.u32 %v4100, 7
          %v4102 = vsub.s32 5, %v4101
          %v4103 = vrot.slane %v4049, %v4102
          %4105 = vbcast.lane.b32.xlu0 %v4103, 256
          %v4106 = vpop.permute.xlu0 %4105
          %v4107 = vlaneseq
          %v4108 = vshrl.u32 %v4107, 7
          %v4109 = vsub.s32 6, %v4108
          %v4110 = vrot.slane %v4049, %v4109
          %4112 = vbcast.lane.b32.xlu0 %v4110, 256
          %v4113 = vpop.permute.xlu0 %4112
          %v4114 = vlaneseq
          %v4115 = vshrl.u32 %v4114, 7
          %v4116 = vsub.s32 7, %v4115
          %v4117 = vrot.slane %v4049, %v4116
          %4119 = vbcast.lane.b32.xlu0 %v4117, 256
          %v4120 = vpop.permute.xlu0 %4119
          %v4121 = vlaneseq
          %v4122 = vshrl.u32 %v4121, 7
          %v4123 = vsub.s32 0, %v4122
          %v4124 = vrot.slane %v4050, %v4123
          %4126 = vbcast.lane.b32.xlu0 %v4124, 256
          %v4127 = vpop.permute.xlu0 %4126
          %v4128 = vlaneseq
          %v4129 = vshrl.u32 %v4128, 7
          %v4130 = vsub.s32 1, %v4129
          %v4131 = vrot.slane %v4050, %v4130
          %4133 = vbcast.lane.b32.xlu0 %v4131, 256
          %v4134 = vpop.permute.xlu0 %4133
          %v4135 = vlaneseq
          %v4136 = vshrl.u32 %v4135, 7
          %v4137 = vsub.s32 2, %v4136
          %v4138 = vrot.slane %v4050, %v4137
          %4140 = vbcast.lane.b32.xlu0 %v4138, 256
          %v4141 = vpop.permute.xlu0 %4140
          %v4142 = vlaneseq
          %v4143 = vshrl.u32 %v4142, 7
          %v4144 = vsub.s32 3, %v4143
          %v4145 = vrot.slane %v4050, %v4144
          %4147 = vbcast.lane.b32.xlu0 %v4145, 256
          %v4148 = vpop.permute.xlu0 %4147
          %v4149 = vlaneseq
          %v4150 = vshrl.u32 %v4149, 7
          %v4151 = vsub.s32 4, %v4150
          %v4152 = vrot.slane %v4050, %v4151
          %4154 = vbcast.lane.b32.xlu0 %v4152, 256
          %v4155 = vpop.permute.xlu0 %4154
          %v4156 = vlaneseq
          %v4157 = vshrl.u32 %v4156, 7
          %v4158 = vsub.s32 5, %v4157
          %v4159 = vrot.slane %v4050, %v4158
          %4161 = vbcast.lane.b32.xlu0 %v4159, 256
          %v4162 = vpop.permute.xlu0 %4161
          %v4163 = vlaneseq
          %v4164 = vshrl.u32 %v4163, 7
          %v4165 = vsub.s32 6, %v4164
          %v4166 = vrot.slane %v4050, %v4165
          %4168 = vbcast.lane.b32.xlu0 %v4166, 256
          %v4169 = vpop.permute.xlu0 %4168
          %v4170 = vlaneseq
          %v4171 = vshrl.u32 %v4170, 7
          %v4172 = vsub.s32 7, %v4171
          %v4173 = vrot.slane %v4050, %v4172
          %4175 = vbcast.lane.b32.xlu0 %v4173, 256
          %v4176 = vpop.permute.xlu0 %4175
          %v4177 = vlaneseq
          %v4178 = vshrl.u32 %v4177, 7
          %v4179 = vsub.s32 0, %v4178
          %v4180 = vrot.slane %v4051, %v4179
          %4182 = vbcast.lane.b32.xlu0 %v4180, 256
          %v4183 = vpop.permute.xlu0 %4182
          %v4184 = vlaneseq
          %v4185 = vshrl.u32 %v4184, 7
          %v4186 = vsub.s32 1, %v4185
          %v4187 = vrot.slane %v4051, %v4186
          %4189 = vbcast.lane.b32.xlu0 %v4187, 256
          %v4190 = vpop.permute.xlu0 %4189
          %v4191 = vlaneseq
          %v4192 = vshrl.u32 %v4191, 7
          %v4193 = vsub.s32 2, %v4192
          %v4194 = vrot.slane %v4051, %v4193
          %4196 = vbcast.lane.b32.xlu0 %v4194, 256
          %v4197 = vpop.permute.xlu0 %4196
          %v4198 = vlaneseq
          %v4199 = vshrl.u32 %v4198, 7
          %v4200 = vsub.s32 3, %v4199
          %v4201 = vrot.slane %v4051, %v4200
          %4203 = vbcast.lane.b32.xlu0 %v4201, 256
          %v4204 = vpop.permute.xlu0 %4203
          %v4205 = vlaneseq
          %v4206 = vshrl.u32 %v4205, 7
          %v4207 = vsub.s32 4, %v4206
          %v4208 = vrot.slane %v4051, %v4207
          %4210 = vbcast.lane.b32.xlu0 %v4208, 256
          %v4211 = vpop.permute.xlu0 %4210
          %v4212 = vlaneseq
          %v4213 = vshrl.u32 %v4212, 7
          %v4214 = vsub.s32 5, %v4213
          %v4215 = vrot.slane %v4051, %v4214
          %4217 = vbcast.lane.b32.xlu0 %v4215, 256
          %v4218 = vpop.permute.xlu0 %4217
          %v4219 = vlaneseq
          %v4220 = vshrl.u32 %v4219, 7
          %v4221 = vsub.s32 6, %v4220
          %v4222 = vrot.slane %v4051, %v4221
          %4224 = vbcast.lane.b32.xlu0 %v4222, 256
          %v4225 = vpop.permute.xlu0 %4224
          %v4226 = vlaneseq
          %v4227 = vshrl.u32 %v4226, 7
          %v4228 = vsub.s32 7, %v4227
          %v4229 = vrot.slane %v4051, %v4228
          %4231 = vbcast.lane.b32.xlu0 %v4229, 256
          %v4232 = vpop.permute.xlu0 %4231
          %v4233 = vmul.f32 %v3837, %v4071
          %v4234 = vmul.f32 %v3861, %v4078
          %v4235 = vmul.f32 %v3844, %v4085
          %v4236 = vmul.f32 %v3862, %v4092
          %v4237 = vmul.f32 %v3853, %v4099
          %v4238 = vmul.f32 %v3863, %v4106
          %v4239 = vmul.f32 %v3860, %v4113
          %v4240 = vmul.f32 %v3864, %v4120
          %v4241 = vmul.f32 %v3903, %v4127
          %v4242 = vmul.f32 %v3927, %v4134
          %v4243 = vmul.f32 %v3910, %v4141
          %v4244 = vmul.f32 %v3928, %v4148
          %v4245 = vmul.f32 %v3919, %v4155
          %v4246 = vmul.f32 %v3929, %v4162
          %v4247 = vmul.f32 %v3926, %v4169
          %v4248 = vmul.f32 %v3930, %v4176
          %v4249 = vmul.f32 %v3969, %v4183
          %v4250 = vmul.f32 %v3993, %v4190
          %v4251 = vmul.f32 %v3976, %v4197
          %v4252 = vmul.f32 %v3994, %v4204
          %v4253 = vmul.f32 %v3985, %v4211
          %v4254 = vmul.f32 %v3995, %v4218
          %v4255 = vmul.f32 %v3992, %v4225
          %v4256 = vmul.f32 %v3996, %v4232
          %v4257 = vcombine.low %v4233, %v4235
          %v4259 = vunpack.c.l.s4 1983009808
          %v4260 = vunpack.c.0.s8 %v4259
          %v4261 = vlaneseq
          %v4262 = vshrl.u32 %v4261, 7
          %v4263 = vsub.s32 %v4260, %v4262
          %v4264 = vrot.slane %v4257, %v4263
          %v4265 = vcombine.low %v4234, %v4236
          %v4267 = vunpack.c.l.s4 1983009808
          %v4268 = vunpack.c.0.s8 %v4267
          %v4269 = vlaneseq
          %v4270 = vshrl.u32 %v4269, 7
          %v4271 = vsub.s32 %v4268, %v4270
          %v4272 = vrot.slane %v4265, %v4271
          %v4273 = vcombine.low %v4237, %v4239
          %v4275 = vunpack.c.l.s4 1983009808
          %v4276 = vunpack.c.0.s8 %v4275
          %v4277 = vlaneseq
          %v4278 = vshrl.u32 %v4277, 7
          %v4279 = vsub.s32 %v4276, %v4278
          %v4280 = vrot.slane %v4273, %v4279
          %v4281 = vcombine.low %v4238, %v4240
          %v4283 = vunpack.c.l.s4 1983009808
          %v4284 = vunpack.c.0.s8 %v4283
          %v4285 = vlaneseq
          %v4286 = vshrl.u32 %v4285, 7
          %v4287 = vsub.s32 %v4284, %v4286
          %v4288 = vrot.slane %v4281, %v4287
          %v4289 = vcombine.low %v4264, %v4272
          %v4291 = vunpack.c.l.s4 1934713408
          %v4292 = vunpack.c.0.s8 %v4291
          %v4293 = vlaneseq
          %v4294 = vshrl.u32 %v4293, 7
          %v4295 = vsub.s32 %v4292, %v4294
          %v4296 = vrot.slane %v4289, %v4295
          %v4297 = vcombine.low %v4280, %v4288
          %v4299 = vunpack.c.l.s4 1934713408
          %v4300 = vunpack.c.0.s8 %v4299
          %v4301 = vlaneseq
          %v4302 = vshrl.u32 %v4301, 7
          %v4303 = vsub.s32 %v4300, %v4302
          %v4304 = vrot.slane %v4297, %v4303
          %v4305 = vcombine.low %v4296, %v4304
          %v4306 = vcombine.high %v4296, %v4304
          %v4307 = vcombine.low %v4241, %v4243
          %v4309 = vunpack.c.l.s4 1983009808
          %v4310 = vunpack.c.0.s8 %v4309
          %v4311 = vlaneseq
          %v4312 = vshrl.u32 %v4311, 7
          %v4313 = vsub.s32 %v4310, %v4312
          %v4314 = vrot.slane %v4307, %v4313
          %v4315 = vcombine.low %v4242, %v4244
          %v4317 = vunpack.c.l.s4 1983009808
          %v4318 = vunpack.c.0.s8 %v4317
          %v4319 = vlaneseq
          %v4320 = vshrl.u32 %v4319, 7
          %v4321 = vsub.s32 %v4318, %v4320
          %v4322 = vrot.slane %v4315, %v4321
          %v4323 = vcombine.low %v4245, %v4247
          %v4325 = vunpack.c.l.s4 1983009808
          %v4326 = vunpack.c.0.s8 %v4325
          %v4327 = vlaneseq
          %v4328 = vshrl.u32 %v4327, 7
          %v4329 = vsub.s32 %v4326, %v4328
          %v4330 = vrot.slane %v4323, %v4329
          %v4331 = vcombine.low %v4246, %v4248
          %v4333 = vunpack.c.l.s4 1983009808
          %v4334 = vunpack.c.0.s8 %v4333
          %v4335 = vlaneseq
          %v4336 = vshrl.u32 %v4335, 7
          %v4337 = vsub.s32 %v4334, %v4336
          %v4338 = vrot.slane %v4331, %v4337
          %v4339 = vcombine.low %v4314, %v4322
          %v4341 = vunpack.c.l.s4 1934713408
          %v4342 = vunpack.c.0.s8 %v4341
          %v4343 = vlaneseq
          %v4344 = vshrl.u32 %v4343, 7
          %v4345 = vsub.s32 %v4342, %v4344
          %v4346 = vrot.slane %v4339, %v4345
          %v4347 = vcombine.low %v4330, %v4338
          %v4349 = vunpack.c.l.s4 1934713408
          %v4350 = vunpack.c.0.s8 %v4349
          %v4351 = vlaneseq
          %v4352 = vshrl.u32 %v4351, 7
          %v4353 = vsub.s32 %v4350, %v4352
          %v4354 = vrot.slane %v4347, %v4353
          %v4355 = vcombine.low %v4346, %v4354
          %v4356 = vcombine.high %v4346, %v4354
          %v4357 = vcombine.low %v4249, %v4251
          %v4359 = vunpack.c.l.s4 1983009808
          %v4360 = vunpack.c.0.s8 %v4359
          %v4361 = vlaneseq
          %v4362 = vshrl.u32 %v4361, 7
          %v4363 = vsub.s32 %v4360, %v4362
          %v4364 = vrot.slane %v4357, %v4363
          %v4365 = vcombine.low %v4250, %v4252
          %v4367 = vunpack.c.l.s4 1983009808
          %v4368 = vunpack.c.0.s8 %v4367
          %v4369 = vlaneseq
          %v4370 = vshrl.u32 %v4369, 7
          %v4371 = vsub.s32 %v4368, %v4370
          %v4372 = vrot.slane %v4365, %v4371
          %v4373 = vcombine.low %v4253, %v4255
          %v4375 = vunpack.c.l.s4 1983009808
          %v4376 = vunpack.c.0.s8 %v4375
          %v4377 = vlaneseq
          %v4378 = vshrl.u32 %v4377, 7
          %v4379 = vsub.s32 %v4376, %v4378
          %v4380 = vrot.slane %v4373, %v4379
          %v4381 = vcombine.low %v4254, %v4256
          %v4383 = vunpack.c.l.s4 1983009808
          %v4384 = vunpack.c.0.s8 %v4383
          %v4385 = vlaneseq
          %v4386 = vshrl.u32 %v4385, 7
          %v4387 = vsub.s32 %v4384, %v4386
          %v4388 = vrot.slane %v4381, %v4387
          %v4389 = vcombine.low %v4364, %v4372
          %v4391 = vunpack.c.l.s4 1934713408
          %v4392 = vunpack.c.0.s8 %v4391
          %v4393 = vlaneseq
          %v4394 = vshrl.u32 %v4393, 7
          %v4395 = vsub.s32 %v4392, %v4394
          %v4396 = vrot.slane %v4389, %v4395
          %v4397 = vcombine.low %v4380, %v4388
          %v4399 = vunpack.c.l.s4 1934713408
          %v4400 = vunpack.c.0.s8 %v4399
          %v4401 = vlaneseq
          %v4402 = vshrl.u32 %v4401, 7
          %v4403 = vsub.s32 %v4400, %v4402
          %v4404 = vrot.slane %v4397, %v4403
          %v4405 = vcombine.low %v4396, %v4404
          %v4406 = vcombine.high %v4396, %v4404
          %4410 = vrot.lane.b32.xlu0 %v4306, 16
          %v4411 = vpop.permute.xlu0 %4410
          %4412 = vrot.lane.b32.xlu0 %v4356, 16
          %v4413 = vpop.permute.xlu0 %4412
          %4414 = vrot.lane.b32.xlu0 %v4406, 16
          %v4415 = vpop.permute.xlu0 %4414
          %v4419 = vsel %vm1933, %v4305, %v4411
          %v4420 = vsel %vm1933, %v4355, %v4413
          %v4421 = vsel %vm1933, %v4405, %v4415
          %v4422 = vpack.c.bf16 %v4420, %v4419
          %v4423 = vpack.c.bf16 %v4421, %v4421
          %4426 = vrot.lane.b32.xlu0 %v4422, 32
          %v4427 = vpop.permute.xlu0 %4426
          %4428 = vrot.lane.b32.xlu0 %v4423, 32
          %v4429 = vpop.permute.xlu0 %4428
          %vm4432 = vcmask 523520
          %4433 = vst.msk [vmem:[#allocation3] sm:$0xff] %vm4432, %v4427
          %vm4434 = vcmask 519424
          %4435 = vst.msk [vmem:[#allocation3 + $0x8] sm:$0xf] %vm4434, %v4429
          %4437 = vrot.lane.b32.xlu0 %v1447, 112
          %v4438 = vpop.permute.xlu0 %4437
          %vm4439 = vcmask 1043456
          %v4440 = vrot.slane %v1445, 4
          %v4441 = vrot.slane %v1447, 4
          %v4442 = vsel %vm4439, %v4440, %v4441
          %v4443 = vrot.slane %v1454, 4
          %v4444 = vrot.slane %v4438, 4
          %v4445 = vsel %vm4439, %v4443, %v4444
          %v4448 = vcombine.high %v4442, 0
          %v4450 = vunpack.c.l.s4 1983009808
          %v4451 = vunpack.c.0.s8 %v4450
          %v4452 = vlaneseq
          %v4453 = vshrl.u32 %v4452, 7
          %v4454 = vsub.s32 %v4451, %v4453
          %v4455 = vrot.slane %v4442, %v4454
          %v4457 = vunpack.c.l.s4 1983009808
          %v4458 = vunpack.c.0.s8 %v4457
          %v4459 = vlaneseq
          %v4460 = vshrl.u32 %v4459, 7
          %v4461 = vsub.s32 %v4458, %v4460
          %v4462 = vrot.slane %v4448, %v4461
          %v4463 = vcombine.high %v4455, 0
          %v4465 = vunpack.c.l.s4 1934713408
          %v4466 = vunpack.c.0.s8 %v4465
          %v4467 = vlaneseq
          %v4468 = vshrl.u32 %v4467, 7
          %v4469 = vsub.s32 %v4466, %v4468
          %v4470 = vrot.slane %v4455, %v4469
          %v4472 = vunpack.c.l.s4 1934713408
          %v4473 = vunpack.c.0.s8 %v4472
          %v4474 = vlaneseq
          %v4475 = vshrl.u32 %v4474, 7
          %v4476 = vsub.s32 %v4473, %v4475
          %v4477 = vrot.slane %v4463, %v4476
          %v4478 = vcombine.high %v4462, 0
          %v4480 = vunpack.c.l.s4 1934713408
          %v4481 = vunpack.c.0.s8 %v4480
          %v4482 = vlaneseq
          %v4483 = vshrl.u32 %v4482, 7
          %v4484 = vsub.s32 %v4481, %v4483
          %v4485 = vrot.slane %v4462, %v4484
          %v4487 = vunpack.c.l.s4 1934713408
          %v4488 = vunpack.c.0.s8 %v4487
          %v4489 = vlaneseq
          %v4490 = vshrl.u32 %v4489, 7
          %v4491 = vsub.s32 %v4488, %v4490
          %v4492 = vrot.slane %v4478, %v4491
          %v4493 = vcombine.high %v4470, 0
          %v4494 = vcombine.high %v4477, 0
          %v4495 = vcombine.high %v4485, 0
          %v4496 = vcombine.high %v4492, 0
          %v4497 = vcombine.high %v4445, 0
          %v4499 = vunpack.c.l.s4 1983009808
          %v4500 = vunpack.c.0.s8 %v4499
          %v4501 = vlaneseq
          %v4502 = vshrl.u32 %v4501, 7
          %v4503 = vsub.s32 %v4500, %v4502
          %v4504 = vrot.slane %v4445, %v4503
          %v4506 = vunpack.c.l.s4 1983009808
          %v4507 = vunpack.c.0.s8 %v4506
          %v4508 = vlaneseq
          %v4509 = vshrl.u32 %v4508, 7
          %v4510 = vsub.s32 %v4507, %v4509
          %v4511 = vrot.slane %v4497, %v4510
          %v4512 = vcombine.high %v4504, 0
          %v4514 = vunpack.c.l.s4 1934713408
          %v4515 = vunpack.c.0.s8 %v4514
          %v4516 = vlaneseq
          %v4517 = vshrl.u32 %v4516, 7
          %v4518 = vsub.s32 %v4515, %v4517
          %v4519 = vrot.slane %v4504, %v4518
          %v4521 = vunpack.c.l.s4 1934713408
          %v4522 = vunpack.c.0.s8 %v4521
          %v4523 = vlaneseq
          %v4524 = vshrl.u32 %v4523, 7
          %v4525 = vsub.s32 %v4522, %v4524
          %v4526 = vrot.slane %v4512, %v4525
          %v4527 = vcombine.high %v4511, 0
          %v4529 = vunpack.c.l.s4 1934713408
          %v4530 = vunpack.c.0.s8 %v4529
          %v4531 = vlaneseq
          %v4532 = vshrl.u32 %v4531, 7
          %v4533 = vsub.s32 %v4530, %v4532
          %v4534 = vrot.slane %v4511, %v4533
          %v4536 = vunpack.c.l.s4 1934713408
          %v4537 = vunpack.c.0.s8 %v4536
          %v4538 = vlaneseq
          %v4539 = vshrl.u32 %v4538, 7
          %v4540 = vsub.s32 %v4537, %v4539
          %v4541 = vrot.slane %v4527, %v4540
          %v4542 = vcombine.high %v4519, 0
          %v4543 = vcombine.high %v4526, 0
          %v4544 = vcombine.high %v4534, 0
          %v4545 = vcombine.high %v4541, 0
          %v4548 = vunpack.c.l.s4 1983009808
          %v4549 = vunpack.c.0.s8 %v4548
          %v4550 = vlaneseq
          %v4551 = vshrl.u32 %v4550, 7
          %v4552 = vsub.s32 %v4549, %v4551
          %v4553 = vrot.slane %v4441, %v4552
          %v4554 = vcombine.high %v4553, 0
          %v4556 = vunpack.c.l.s4 1934713408
          %v4557 = vunpack.c.0.s8 %v4556
          %v4558 = vlaneseq
          %v4559 = vshrl.u32 %v4558, 7
          %v4560 = vsub.s32 %v4557, %v4559
          %v4561 = vrot.slane %v4553, %v4560
          %v4563 = vunpack.c.l.s4 1934713408
          %v4564 = vunpack.c.0.s8 %v4563
          %v4565 = vlaneseq
          %v4566 = vshrl.u32 %v4565, 7
          %v4567 = vsub.s32 %v4564, %v4566
          %v4568 = vrot.slane %v4554, %v4567
          %v4569 = vcombine.high %v4561, 0
          %v4570 = vcombine.high %v4568, 0
          %v4573 = vunpack.c.l.s4 1983009808
          %v4574 = vunpack.c.0.s8 %v4573
          %v4575 = vlaneseq
          %v4576 = vshrl.u32 %v4575, 7
          %v4577 = vsub.s32 %v4574, %v4576
          %v4578 = vrot.slane %v4444, %v4577
          %v4579 = vcombine.high %v4578, 0
          %v4581 = vunpack.c.l.s4 1934713408
          %v4582 = vunpack.c.0.s8 %v4581
          %v4583 = vlaneseq
          %v4584 = vshrl.u32 %v4583, 7
          %v4585 = vsub.s32 %v4582, %v4584
          %v4586 = vrot.slane %v4578, %v4585
          %v4588 = vunpack.c.l.s4 1934713408
          %v4589 = vunpack.c.0.s8 %v4588
          %v4590 = vlaneseq
          %v4591 = vshrl.u32 %v4590, 7
          %v4592 = vsub.s32 %v4589, %v4591
          %v4593 = vrot.slane %v4579, %v4592
          %v4594 = vcombine.high %v4586, 0
          %v4595 = vcombine.high %v4593, 0
          %v4598 = vpack.i.b16 %v4519, %v4470
          %v4600 = vshrl.u32 %v4470, 16
          %v4601 = vshrl.u32 %v4519, 16
          %v4602 = vpack.i.b16 %v4601, %v4600
          %v4606 = vpack.i.b16 %v4542, %v4493
          %v4608 = vshrl.u32 %v4493, 16
          %v4609 = vshrl.u32 %v4542, 16
          %v4610 = vpack.i.b16 %v4609, %v4608
          %v4614 = vpack.i.b16 %v4526, %v4477
          %v4616 = vshrl.u32 %v4477, 16
          %v4617 = vshrl.u32 %v4526, 16
          %v4618 = vpack.i.b16 %v4617, %v4616
          %v4622 = vpack.i.b16 %v4543, %v4494
          %v4624 = vshrl.u32 %v4494, 16
          %v4625 = vshrl.u32 %v4543, 16
          %v4626 = vpack.i.b16 %v4625, %v4624
          %v4630 = vpack.i.b16 %v4534, %v4485
          %v4632 = vshrl.u32 %v4485, 16
          %v4633 = vshrl.u32 %v4534, 16
          %v4634 = vpack.i.b16 %v4633, %v4632
          %v4638 = vpack.i.b16 %v4544, %v4495
          %v4640 = vshrl.u32 %v4495, 16
          %v4641 = vshrl.u32 %v4544, 16
          %v4642 = vpack.i.b16 %v4641, %v4640
          %v4646 = vpack.i.b16 %v4541, %v4492
          %v4648 = vshrl.u32 %v4492, 16
          %v4649 = vshrl.u32 %v4541, 16
          %v4650 = vpack.i.b16 %v4649, %v4648
          %v4654 = vpack.i.b16 %v4545, %v4496
          %v4656 = vshrl.u32 %v4496, 16
          %v4657 = vshrl.u32 %v4545, 16
          %v4658 = vpack.i.b16 %v4657, %v4656
          %v4662 = vpack.i.b16 %v4586, %v4561
          %v4664 = vshrl.u32 %v4561, 16
          %v4665 = vshrl.u32 %v4586, 16
          %v4666 = vpack.i.b16 %v4665, %v4664
          %v4670 = vpack.i.b16 %v4594, %v4569
          %v4672 = vshrl.u32 %v4569, 16
          %v4673 = vshrl.u32 %v4594, 16
          %v4674 = vpack.i.b16 %v4673, %v4672
          %v4678 = vpack.i.b16 %v4593, %v4568
          %v4680 = vshrl.u32 %v4568, 16
          %v4681 = vshrl.u32 %v4593, 16
          %v4682 = vpack.i.b16 %v4681, %v4680
          %v4686 = vpack.i.b16 %v4595, %v4570
          %v4688 = vshrl.u32 %v4570, 16
          %v4689 = vshrl.u32 %v4595, 16
          %v4690 = vpack.i.b16 %v4689, %v4688
          %v4692 = vmul.bf16 %v4598, 1048592000
          %v4693 = vmul.bf16 %v4602, 1048592000
          %v4694 = vmul.bf16 %v4606, 1048592000
          %v4695 = vmul.bf16 %v4610, 1048592000
          %v4696 = vmul.bf16 %v4614, 1048592000
          %v4697 = vmul.bf16 %v4618, 1048592000
          %v4698 = vmul.bf16 %v4622, 1048592000
          %v4699 = vmul.bf16 %v4626, 1048592000
          %v4700 = vmul.bf16 %v4630, 1048592000
          %v4701 = vmul.bf16 %v4634, 1048592000
          %v4702 = vmul.bf16 %v4638, 1048592000
          %v4703 = vmul.bf16 %v4642, 1048592000
          %v4704 = vmul.bf16 %v4646, 1048592000
          %v4705 = vmul.bf16 %v4650, 1048592000
          %v4706 = vmul.bf16 %v4654, 1048592000
          %v4707 = vmul.bf16 %v4658, 1048592000
          %v4708 = vmul.bf16 %v4662, 1048592000
          %v4709 = vmul.bf16 %v4666, 1048592000
          %v4710 = vmul.bf16 %v4670, 1048592000
          %v4711 = vmul.bf16 %v4674, 1048592000
          %v4712 = vmul.bf16 %v4678, 1048592000
          %v4713 = vmul.bf16 %v4682, 1048592000
          %v4714 = vmul.bf16 %v4686, 1048592000
          %v4715 = vmul.bf16 %v4690, 1048592000
          %4717 = vrot.lane.b32.xlu0 %v1448, 112
          %v4718 = vpop.permute.xlu0 %4717
          %v4719 = vcombine.low %v4692, %v4696
          %v4721 = vunpack.c.l.s4 1983009808
          %v4722 = vunpack.c.0.s8 %v4721
          %v4723 = vlaneseq
          %v4724 = vshrl.u32 %v4723, 7
          %v4725 = vsub.s32 %v4722, %v4724
          %v4726 = vrot.slane %v4719, %v4725
          %v4727 = vcombine.low %v4694, %v4698
          %v4729 = vunpack.c.l.s4 1983009808
          %v4730 = vunpack.c.0.s8 %v4729
          %v4731 = vlaneseq
          %v4732 = vshrl.u32 %v4731, 7
          %v4733 = vsub.s32 %v4730, %v4732
          %v4734 = vrot.slane %v4727, %v4733
          %v4735 = vcombine.low %v4700, %v4704
          %v4737 = vunpack.c.l.s4 1983009808
          %v4738 = vunpack.c.0.s8 %v4737
          %v4739 = vlaneseq
          %v4740 = vshrl.u32 %v4739, 7
          %v4741 = vsub.s32 %v4738, %v4740
          %v4742 = vrot.slane %v4735, %v4741
          %v4743 = vcombine.low %v4702, %v4706
          %v4745 = vunpack.c.l.s4 1983009808
          %v4746 = vunpack.c.0.s8 %v4745
          %v4747 = vlaneseq
          %v4748 = vshrl.u32 %v4747, 7
          %v4749 = vsub.s32 %v4746, %v4748
          %v4750 = vrot.slane %v4743, %v4749
          %v4751 = vcombine.low %v4726, %v4734
          %v4753 = vunpack.c.l.s4 1934713408
          %v4754 = vunpack.c.0.s8 %v4753
          %v4755 = vlaneseq
          %v4756 = vshrl.u32 %v4755, 7
          %v4757 = vsub.s32 %v4754, %v4756
          %v4758 = vrot.slane %v4751, %v4757
          %v4759 = vcombine.low %v4742, %v4750
          %v4761 = vunpack.c.l.s4 1934713408
          %v4762 = vunpack.c.0.s8 %v4761
          %v4763 = vlaneseq
          %v4764 = vshrl.u32 %v4763, 7
          %v4765 = vsub.s32 %v4762, %v4764
          %v4766 = vrot.slane %v4759, %v4765
          %v4767 = vcombine.low %v4758, %v4766
          %v4768 = vcombine.low %v4693, %v4697
          %v4770 = vunpack.c.l.s4 1983009808
          %v4771 = vunpack.c.0.s8 %v4770
          %v4772 = vlaneseq
          %v4773 = vshrl.u32 %v4772, 7
          %v4774 = vsub.s32 %v4771, %v4773
          %v4775 = vrot.slane %v4768, %v4774
          %v4776 = vcombine.low %v4695, %v4699
          %v4778 = vunpack.c.l.s4 1983009808
          %v4779 = vunpack.c.0.s8 %v4778
          %v4780 = vlaneseq
          %v4781 = vshrl.u32 %v4780, 7
          %v4782 = vsub.s32 %v4779, %v4781
          %v4783 = vrot.slane %v4776, %v4782
          %v4784 = vcombine.low %v4701, %v4705
          %v4786 = vunpack.c.l.s4 1983009808
          %v4787 = vunpack.c.0.s8 %v4786
          %v4788 = vlaneseq
          %v4789 = vshrl.u32 %v4788, 7
          %v4790 = vsub.s32 %v4787, %v4789
          %v4791 = vrot.slane %v4784, %v4790
          %v4792 = vcombine.low %v4703, %v4707
          %v4794 = vunpack.c.l.s4 1983009808
          %v4795 = vunpack.c.0.s8 %v4794
          %v4796 = vlaneseq
          %v4797 = vshrl.u32 %v4796, 7
          %v4798 = vsub.s32 %v4795, %v4797
          %v4799 = vrot.slane %v4792, %v4798
          %v4800 = vcombine.low %v4775, %v4783
          %v4802 = vunpack.c.l.s4 1934713408
          %v4803 = vunpack.c.0.s8 %v4802
          %v4804 = vlaneseq
          %v4805 = vshrl.u32 %v4804, 7
          %v4806 = vsub.s32 %v4803, %v4805
          %v4807 = vrot.slane %v4800, %v4806
          %v4808 = vcombine.low %v4791, %v4799
          %v4810 = vunpack.c.l.s4 1934713408
          %v4811 = vunpack.c.0.s8 %v4810
          %v4812 = vlaneseq
          %v4813 = vshrl.u32 %v4812, 7
          %v4814 = vsub.s32 %v4811, %v4813
          %v4815 = vrot.slane %v4808, %v4814
          %v4816 = vcombine.low %v4807, %v4815
          %v4817 = vcombine.low %v4708, %v4712
          %v4819 = vunpack.c.l.s4 1983009808
          %v4820 = vunpack.c.0.s8 %v4819
          %v4821 = vlaneseq
          %v4822 = vshrl.u32 %v4821, 7
          %v4823 = vsub.s32 %v4820, %v4822
          %v4824 = vrot.slane %v4817, %v4823
          %v4825 = vcombine.low %v4710, %v4714
          %v4827 = vunpack.c.l.s4 1983009808
          %v4828 = vunpack.c.0.s8 %v4827
          %v4829 = vlaneseq
          %v4830 = vshrl.u32 %v4829, 7
          %v4831 = vsub.s32 %v4828, %v4830
          %v4832 = vrot.slane %v4825, %v4831
          %v4833 = vcombine.low %v4824, %v4832
          %v4835 = vunpack.c.l.s4 1934713408
          %v4836 = vunpack.c.0.s8 %v4835
          %v4837 = vlaneseq
          %v4838 = vshrl.u32 %v4837, 7
          %v4839 = vsub.s32 %v4836, %v4838
          %v4840 = vrot.slane %v4833, %v4839
          %v4841 = vcombine.low %v4709, %v4713
          %v4843 = vunpack.c.l.s4 1983009808
          %v4844 = vunpack.c.0.s8 %v4843
          %v4845 = vlaneseq
          %v4846 = vshrl.u32 %v4845, 7
          %v4847 = vsub.s32 %v4844, %v4846
          %v4848 = vrot.slane %v4841, %v4847
          %v4849 = vcombine.low %v4711, %v4715
          %v4851 = vunpack.c.l.s4 1983009808
          %v4852 = vunpack.c.0.s8 %v4851
          %v4853 = vlaneseq
          %v4854 = vshrl.u32 %v4853, 7
          %v4855 = vsub.s32 %v4852, %v4854
          %v4856 = vrot.slane %v4849, %v4855
          %v4857 = vcombine.low %v4848, %v4856
          %v4859 = vunpack.c.l.s4 1934713408
          %v4860 = vunpack.c.0.s8 %v4859
          %v4861 = vlaneseq
          %v4862 = vshrl.u32 %v4861, 7
          %v4863 = vsub.s32 %v4860, %v4862
          %v4864 = vrot.slane %v4857, %v4863
          %v4867 = vpack.i.b16 %v4816, %v4767
          %v4868 = vshrl.u32 %v4767, 16
          %v4869 = vshrl.u32 %v4816, 16
          %v4870 = vpack.i.b16 %v4869, %v4868
          %v4873 = vpack.i.b16 %v4864, %v4840
          %v4874 = vshrl.u32 %v4840, 16
          %v4875 = vshrl.u32 %v4864, 16
          %v4876 = vpack.i.b16 %v4875, %v4874
          %4877 = vrot.lane.b32.xlu0 %v4442, 64
          %v4878 = vpop.permute.xlu0 %4877
          %4879 = vrot.lane.b32.xlu0 %v4441, 64
          %v4880 = vpop.permute.xlu0 %4879
          %4881 = vrot.lane.b32.xlu0 %v4445, 64
          %v4882 = vpop.permute.xlu0 %4881
          %4883 = vrot.lane.b32.xlu0 %v4444, 64
          %v4884 = vpop.permute.xlu0 %4883
          %4889 = vxpose.xlu0.c.b16.start [1/8] %v4878, 128
          %4890 = vxpose.xlu0.c.b16.cont [2/8] %v4880, 128
          %4891 = vxpose.xlu0.c.b16.cont [3/8] 0, 128
          %4892 = vxpose.xlu0.c.b16.cont [4/8] 0, 128
          %4893 = vxpose.xlu0.c.b16.cont [5/8] 0, 128
          %4894 = vxpose.xlu0.c.b16.cont [6/8] 0, 128
          %4895 = vxpose.xlu0.c.b16.cont [7/8] 0, 128
          %4896 = vxpose.xlu0.c.b16.end [8/8] 0, 128
          %v4897 = vpop.trf.xlu0
          %v4898 = vpop.trf.xlu0
          %v4899 = vpop.trf.xlu0
          %v4900 = vpop.trf.xlu0
          %v4901 = vpop.trf.xlu0
          %v4902 = vpop.trf.xlu0
          %v4903 = vpop.trf.xlu0
          %v4904 = vpop.trf.xlu0
          %4905 = vxpose.xlu0.c.b16.start [1/8] %v4882, 128
          %4906 = vxpose.xlu0.c.b16.cont [2/8] %v4884, 128
          %4907 = vxpose.xlu0.c.b16.cont [3/8] 0, 128
          %4908 = vxpose.xlu0.c.b16.cont [4/8] 0, 128
          %4909 = vxpose.xlu0.c.b16.cont [5/8] 0, 128
          %4910 = vxpose.xlu0.c.b16.cont [6/8] 0, 128
          %4911 = vxpose.xlu0.c.b16.cont [7/8] 0, 128
          %4912 = vxpose.xlu0.c.b16.end [8/8] 0, 128
          %v4913 = vpop.trf.xlu0
          %v4914 = vpop.trf.xlu0
          %v4915 = vpop.trf.xlu0
          %v4916 = vpop.trf.xlu0
          %v4917 = vpop.trf.xlu0
          %v4918 = vpop.trf.xlu0
          %v4919 = vpop.trf.xlu0
          %v4920 = vpop.trf.xlu0
          %v4922 = vsel %vm1933, %v4867, 0
          %v4925 = vsel %vm1933, %v4873, 0
          %4927 = vmatprep.subr.bf16.mxu0 0
          %4928 = vmatpush1.bf16.msra.mxu0 %v4897
          %4929 = vmatprep.subr.bf16.mxu0 0
          %4930 = vmatpush1.bf16.msra.mxu0 0
          %4931 = vmatprep.subr.bf16.mxu0 0
          %4932 = vmatpush1.bf16.msra.mxu0 0
          %4933 = vmatprep.subr.bf16.mxu0 0
          %4934 = vmatpush1.bf16.msra.mxu0 0
          %4935 = vmatprep.subr.bf16.mxu0 0
          %4936 = vmatpush1.bf16.msra.mxu0 0
          %4937 = vmatprep.subr.bf16.mxu0 0
          %4938 = vmatpush1.bf16.msra.mxu0 0
          %4939 = vmatprep.subr.bf16.mxu0 0
          %4940 = vmatpush1.bf16.msra.mxu0 0
          %4941 = vmatprep.subr.bf16.mxu0 0
          %4942 = vmatpush1.bf16.msra.mxu0 0
          %4943 = vmatprep.subr.bf16.mxu0 0
          %4944 = vmatpush1.bf16.msra.mxu0 0
          %4945 = vmatprep.subr.bf16.mxu0 0
          %4946 = vmatpush1.bf16.msra.mxu0 0
          %4947 = vmatprep.subr.bf16.mxu0 0
          %4948 = vmatpush1.bf16.msra.mxu0 0
          %4949 = vmatprep.subr.bf16.mxu0 0
          %4950 = vmatpush1.bf16.msra.mxu0 0
          %4951 = vmatprep.subr.bf16.mxu0 0
          %4952 = vmatpush1.bf16.msra.mxu0 0
          %4953 = vmatprep.subr.bf16.mxu0 0
          %4954 = vmatpush1.bf16.msra.mxu0 0
          %4955 = vmatprep.subr.bf16.mxu0 0
          %4956 = vmatpush1.bf16.msra.mxu0 0
          %4957 = vmatprep.subr.bf16.mxu0 0
          %4958 = vmatpush1.bf16.msra.mxu0 0
          %4959 = vmatprep.mubr.bf16.mxu0 0
          %4960 = vmatmul.mubr.bf16.gmra.mrb[0].mxu0 %v4922
          %v4961 = vpop.f32.mrb[0].mxu0
          %v4962 = vadd.f32 0.0, %v4961
          %v4963 = vpop.f32.mrb[0].mxu0
          %v4964 = vpop.f32.mrb[0].mxu0
          %v4965 = vadd.f32 0.0, %v4964
          %v4966 = vpop.f32.mrb[0].mxu0
          %4967 = vmatprep.mubr.bf16.mxu0 0
          %4968 = vmatmul.mubr.bf16.gmra.mrb[0].mxu0 %v4925
          %v4969 = vpop.f32.mrb[0].mxu0
          %v4970 = vadd.f32 0.0, %v4969
          %v4971 = vpop.f32.mrb[0].mxu0
          %v4972 = vpop.f32.mrb[0].mxu0
          %v4973 = vpop.f32.mrb[0].mxu0
          %4974 = vdwg.mxu0
          %v4976 = vsel %vm1933, %v4870, 0
          %v4979 = vsel %vm1933, %v4876, 0
          %4981 = vmatprep.subr.bf16.mxu0 0
          %4982 = vmatpush1.bf16.msra.mxu0 %v4913
          %4983 = vmatprep.subr.bf16.mxu0 0
          %4984 = vmatpush1.bf16.msra.mxu0 0
          %4985 = vmatprep.subr.bf16.mxu0 0
          %4986 = vmatpush1.bf16.msra.mxu0 0
          %4987 = vmatprep.subr.bf16.mxu0 0
          %4988 = vmatpush1.bf16.msra.mxu0 0
          %4989 = vmatprep.subr.bf16.mxu0 0
          %4990 = vmatpush1.bf16.msra.mxu0 0
          %4991 = vmatprep.subr.bf16.mxu0 0
          %4992 = vmatpush1.bf16.msra.mxu0 0
          %4993 = vmatprep.subr.bf16.mxu0 0
          %4994 = vmatpush1.bf16.msra.mxu0 0
          %4995 = vmatprep.subr.bf16.mxu0 0
          %4996 = vmatpush1.bf16.msra.mxu0 0
          %4997 = vmatprep.subr.bf16.mxu0 0
          %4998 = vmatpush1.bf16.msra.mxu0 0
          %4999 = vmatprep.subr.bf16.mxu0 0
          %5000 = vmatpush1.bf16.msra.mxu0 0
          %5001 = vmatprep.subr.bf16.mxu0 0
          %5002 = vmatpush1.bf16.msra.mxu0 0
          %5003 = vmatprep.subr.bf16.mxu0 0
          %5004 = vmatpush1.bf16.msra.mxu0 0
          %5005 = vmatprep.subr.bf16.mxu0 0
          %5006 = vmatpush1.bf16.msra.mxu0 0
          %5007 = vmatprep.subr.bf16.mxu0 0
          %5008 = vmatpush1.bf16.msra.mxu0 0
          %5009 = vmatprep.subr.bf16.mxu0 0
          %5010 = vmatpush1.bf16.msra.mxu0 0
          %5011 = vmatprep.subr.bf16.mxu0 0
          %5012 = vmatpush1.bf16.msra.mxu0 0
          %5013 = vmatprep.mubr.bf16.mxu0 0
          %5014 = vmatmul.mubr.bf16.gmra.mrb[0].mxu0 %v4976
          %v5015 = vpop.f32.mrb[0].mxu0
          %v5016 = vadd.f32 0.0, %v5015
          %v5017 = vpop.f32.mrb[0].mxu0
          %v5018 = vpop.f32.mrb[0].mxu0
          %v5019 = vadd.f32 0.0, %v5018
          %v5020 = vpop.f32.mrb[0].mxu0
          %5021 = vmatprep.mubr.bf16.mxu0 0
          %5022 = vmatmul.mubr.bf16.gmra.mrb[0].mxu0 %v4979
          %v5023 = vpop.f32.mrb[0].mxu0
          %v5024 = vadd.f32 0.0, %v5023
          %v5025 = vpop.f32.mrb[0].mxu0
          %v5026 = vpop.f32.mrb[0].mxu0
          %v5027 = vpop.f32.mrb[0].mxu0
          %5028 = vdwg.mxu0
          %v5029 = vsel %vm2042, %v4962, -inf
          %5030 = vmax.xlane.f32.xlu0 %v5029
          %v5031 = vpop.xlane.xlu0 %5030
          %v5032 = vsel %vm2042, %v4965, -inf
          %5033 = vmax.xlane.f32.xlu0 %v5032
          %v5034 = vpop.xlane.xlu0 %5033
          %v5035 = vsel %vm2042, %v4970, -inf
          %5036 = vmax.xlane.f32.xlu0 %v5035
          %v5037 = vpop.xlane.xlu0 %5036
          %v5038 = vsel %vm2042, %v5016, -inf
          %5039 = vmax.xlane.f32.xlu0 %v5038
          %v5040 = vpop.xlane.xlu0 %5039
          %v5041 = vsel %vm2042, %v5019, -inf
          %5042 = vmax.xlane.f32.xlu0 %v5041
          %v5043 = vpop.xlane.xlu0 %5042
          %v5044 = vsel %vm2042, %v5024, -inf
          %5045 = vmax.xlane.f32.xlu0 %v5044
          %v5046 = vpop.xlane.xlu0 %5045
          %v5047 = vsub.f32 %v4962, %v5031
          %v5048 = vsub.f32 %v4965, %v5034
          %v5049 = vsub.f32 %v4970, %v5037
          %v5050 = vsub.f32 %v5016, %v5040
          %v5051 = vsub.f32 %v5019, %v5043
          %v5052 = vsub.f32 %v5024, %v5046
          %v5053 = vmul.f32 %v5047, 1.442695
          %v5054 = vpow.pop %v5053
          %v5055 = vmul.f32 %v5048, 1.442695
          %v5056 = vpow.pop %v5055
          %v5057 = vmul.f32 %v5049, 1.442695
          %v5058 = vpow.pop %v5057
          %v5059 = vmul.f32 %v5050, 1.442695
          %v5060 = vpow.pop %v5059
          %v5061 = vmul.f32 %v5051, 1.442695
          %v5062 = vpow.pop %v5061
          %v5063 = vmul.f32 %v5052, 1.442695
          %v5064 = vpow.pop %v5063
          %v5065 = vsel %vm2042, %v5054, 0.0
          %5066 = vadd.xlane.f32.xlu0 %v5065
          %v5067 = vpop.xlane.xlu0 %5066
          %v5068 = vsel %vm2042, %v5056, 0.0
          %5069 = vadd.xlane.f32.xlu0 %v5068
          %v5070 = vpop.xlane.xlu0 %5069
          %v5071 = vsel %vm2042, %v5058, 0.0
          %5072 = vadd.xlane.f32.xlu0 %v5071
          %v5073 = vpop.xlane.xlu0 %5072
          %v5074 = vsel %vm2042, %v5060, 0.0
          %5075 = vadd.xlane.f32.xlu0 %v5074
          %v5076 = vpop.xlane.xlu0 %5075
          %v5077 = vsel %vm2042, %v5062, 0.0
          %5078 = vadd.xlane.f32.xlu0 %v5077
          %v5079 = vpop.xlane.xlu0 %5078
          %v5080 = vsel %vm2042, %v5064, 0.0
          %5081 = vadd.xlane.f32.xlu0 %v5080
          %v5082 = vpop.xlane.xlu0 %5081
          %v5083 = vrcp.pop %v5067
          %v5084 = vrcp.pop %v5070
          %v5085 = vrcp.pop %v5073
          %v5086 = vrcp.pop %v5076
          %v5087 = vrcp.pop %v5079
          %v5088 = vrcp.pop %v5082
          %v5089 = vpack.c.bf16 %v5056, %v5054
          %v5090 = vpack.c.bf16 %v5058, %v5058
          %v5091 = vpack.c.bf16 %v5062, %v5060
          %v5092 = vpack.c.bf16 %v5064, %v5064
          %v5093 = vrot.slane %v1446, 4
          %v5094 = vrot.slane %v1448, 4
          %v5095 = vsel %vm4439, %v5093, %v5094
          %v5096 = vrot.slane %v1728, 4
          %v5097 = vrot.slane %v4718, 4
          %v5098 = vsel %vm4439, %v5096, %v5097
          %5103 = vxpose.xlu0.c.b16.start [1/8] %v5095, 128
          %5104 = vxpose.xlu0.c.b16.cont [2/8] %v5094, 128
          %5105 = vxpose.xlu0.c.b16.cont [3/8] 0, 128
          %5106 = vxpose.xlu0.c.b16.cont [4/8] 0, 128
          %5107 = vxpose.xlu0.c.b16.cont [5/8] 0, 128
          %5108 = vxpose.xlu0.c.b16.cont [6/8] 0, 128
          %5109 = vxpose.xlu0.c.b16.cont [7/8] 0, 128
          %5110 = vxpose.xlu0.c.b16.end [8/8] 0, 128
          %v5111 = vpop.trf.xlu0
          %v5112 = vpop.trf.xlu0
          %v5113 = vpop.trf.xlu0
          %v5114 = vpop.trf.xlu0
          %v5115 = vpop.trf.xlu0
          %v5116 = vpop.trf.xlu0
          %v5117 = vpop.trf.xlu0
          %v5118 = vpop.trf.xlu0
          %5119 = vxpose.xlu0.c.b16.start [1/8] %v5098, 128
          %5120 = vxpose.xlu0.c.b16.cont [2/8] %v5097, 128
          %5121 = vxpose.xlu0.c.b16.cont [3/8] 0, 128
          %5122 = vxpose.xlu0.c.b16.cont [4/8] 0, 128
          %5123 = vxpose.xlu0.c.b16.cont [5/8] 0, 128
          %5124 = vxpose.xlu0.c.b16.cont [6/8] 0, 128
          %5125 = vxpose.xlu0.c.b16.cont [7/8] 0, 128
          %5126 = vxpose.xlu0.c.b16.end [8/8] 0, 128
          %v5127 = vpop.trf.xlu0
          %v5128 = vpop.trf.xlu0
          %v5129 = vpop.trf.xlu0
          %v5130 = vpop.trf.xlu0
          %v5131 = vpop.trf.xlu0
          %v5132 = vpop.trf.xlu0
          %v5133 = vpop.trf.xlu0
          %v5134 = vpop.trf.xlu0
          %v5136 = vsel %vm2042, %v5111, 0
          %v5139 = vsel %vm2042, %v5089, 0
          %v5142 = vsel %vm2042, %v5090, 0
          %5144 = vmatprep.subr.bf16.mxu0 0
          %5145 = vmatpush1.bf16.xpose.msra.mxu0 %v5139
          %5146 = vmatprep.subr.bf16.mxu0 0
          %5147 = vmatpush1.bf16.xpose.msra.mxu0 %v5142
          %5148 = vmatprep.subr.bf16.mxu0 0
          %5149 = vmatpush1.bf16.xpose.msra.mxu0 0
          %5150 = vmatprep.subr.bf16.mxu0 0
          %5151 = vmatpush1.bf16.xpose.msra.mxu0 0
          %5152 = vmatprep.subr.bf16.mxu0 0
          %5153 = vmatpush1.bf16.xpose.msra.mxu0 0
          %5154 = vmatprep.subr.bf16.mxu0 0
          %5155 = vmatpush1.bf16.xpose.msra.mxu0 0
          %5156 = vmatprep.subr.bf16.mxu0 0
          %5157 = vmatpush1.bf16.xpose.msra.mxu0 0
          %5158 = vmatprep.subr.bf16.mxu0 0
          %5159 = vmatpush1.bf16.xpose.msra.mxu0 0
          %5160 = vmatprep.subr.bf16.mxu0 0
          %5161 = vmatpush1.bf16.xpose.msra.mxu0 0
          %5162 = vmatprep.subr.bf16.mxu0 0
          %5163 = vmatpush1.bf16.xpose.msra.mxu0 0
          %5164 = vmatprep.subr.bf16.mxu0 0
          %5165 = vmatpush1.bf16.xpose.msra.mxu0 0
          %5166 = vmatprep.subr.bf16.mxu0 0
          %5167 = vmatpush1.bf16.xpose.msra.mxu0 0
          %5168 = vmatprep.subr.bf16.mxu0 0
          %5169 = vmatpush1.bf16.xpose.msra.mxu0 0
          %5170 = vmatprep.subr.bf16.mxu0 0
          %5171 = vmatpush1.bf16.xpose.msra.mxu0 0
          %5172 = vmatprep.subr.bf16.mxu0 0
          %5173 = vmatpush1.bf16.xpose.msra.mxu0 0
          %5174 = vmatprep.subr.bf16.mxu0 0
          %5175 = vmatpush1.bf16.xpose.msra.mxu0 0
          %5176 = vmatprep.mubr.bf16.mxu0 0
          %5177 = vmatmul.mubr.bf16.gmra.mrb[0].mxu0 %v5136
          %v5178 = vpop.f32.mrb[0].mxu0
          %v5179 = vadd.f32 0.0, %v5178
          %v5180 = vpop.f32.mrb[0].mxu0
          %v5181 = vpop.f32.mrb[0].mxu0
          %v5182 = vadd.f32 0.0, %v5181
          %v5183 = vpop.f32.mrb[0].mxu0
          %5184 = vdwg.mxu0
          %v5186 = vsel %vm2042, %v5127, 0
          %v5189 = vsel %vm2042, %v5091, 0
          %v5192 = vsel %vm2042, %v5092, 0
          %5194 = vmatprep.subr.bf16.mxu0 0
          %5195 = vmatpush1.bf16.xpose.msra.mxu0 %v5189
          %5196 = vmatprep.subr.bf16.mxu0 0
          %5197 = vmatpush1.bf16.xpose.msra.mxu0 %v5192
          %5198 = vmatprep.subr.bf16.mxu0 0
          %5199 = vmatpush1.bf16.xpose.msra.mxu0 0
          %5200 = vmatprep.subr.bf16.mxu0 0
          %5201 = vmatpush1.bf16.xpose.msra.mxu0 0
          %5202 = vmatprep.subr.bf16.mxu0 0
          %5203 = vmatpush1.bf16.xpose.msra.mxu0 0
          %5204 = vmatprep.subr.bf16.mxu0 0
          %5205 = vmatpush1.bf16.xpose.msra.mxu0 0
          %5206 = vmatprep.subr.bf16.mxu0 0
          %5207 = vmatpush1.bf16.xpose.msra.mxu0 0
          %5208 = vmatprep.subr.bf16.mxu0 0
          %5209 = vmatpush1.bf16.xpose.msra.mxu0 0
          %5210 = vmatprep.subr.bf16.mxu0 0
          %5211 = vmatpush1.bf16.xpose.msra.mxu0 0
          %5212 = vmatprep.subr.bf16.mxu0 0
          %5213 = vmatpush1.bf16.xpose.msra.mxu0 0
          %5214 = vmatprep.subr.bf16.mxu0 0
          %5215 = vmatpush1.bf16.xpose.msra.mxu0 0
          %5216 = vmatprep.subr.bf16.mxu0 0
          %5217 = vmatpush1.bf16.xpose.msra.mxu0 0
          %5218 = vmatprep.subr.bf16.mxu0 0
          %5219 = vmatpush1.bf16.xpose.msra.mxu0 0
          %5220 = vmatprep.subr.bf16.mxu0 0
          %5221 = vmatpush1.bf16.xpose.msra.mxu0 0
          %5222 = vmatprep.subr.bf16.mxu0 0
          %5223 = vmatpush1.bf16.xpose.msra.mxu0 0
          %5224 = vmatprep.subr.bf16.mxu0 0
          %5225 = vmatpush1.bf16.xpose.msra.mxu0 0
          %5226 = vmatprep.mubr.bf16.mxu0 0
          %5227 = vmatmul.mubr.bf16.gmra.mrb[0].mxu0 %v5186
          %v5228 = vpop.f32.mrb[0].mxu0
          %v5229 = vadd.f32 0.0, %v5228
          %v5230 = vpop.f32.mrb[0].mxu0
          %v5231 = vpop.f32.mrb[0].mxu0
          %v5232 = vadd.f32 0.0, %v5231
          %v5233 = vpop.f32.mrb[0].mxu0
          %5234 = vdwg.mxu0
          %5235 = vxpose.xlu0.b32.start [1/16] %v5179, 128
          %5236 = vxpose.xlu0.b32.cont [2/16] %v5182, 128
          %5237 = vxpose.xlu0.b32.cont [3/16] 0.0, 128
          %5238 = vxpose.xlu0.b32.cont [4/16] 0.0, 128
          %5239 = vxpose.xlu0.b32.cont [5/16] 0.0, 128
          %5240 = vxpose.xlu0.b32.cont [6/16] 0.0, 128
          %5241 = vxpose.xlu0.b32.cont [7/16] 0.0, 128
          %5242 = vxpose.xlu0.b32.cont [8/16] 0.0, 128
          %5243 = vxpose.xlu0.b32.cont [9/16] 0.0, 128
          %5244 = vxpose.xlu0.b32.cont [10/16] 0.0, 128
          %5245 = vxpose.xlu0.b32.cont [11/16] 0.0, 128
          %5246 = vxpose.xlu0.b32.cont [12/16] 0.0, 128
          %5247 = vxpose.xlu0.b32.cont [13/16] 0.0, 128
          %5248 = vxpose.xlu0.b32.cont [14/16] 0.0, 128
          %5249 = vxpose.xlu0.b32.cont [15/16] 0.0, 128
          %5250 = vxpose.xlu0.b32.end [16/16] 0.0, 128
          %v5251 = vpop.trf.xlu0
          %v5252 = vpop.trf.xlu0
          %v5253 = vpop.trf.xlu0
          %v5254 = vpop.trf.xlu0
          %v5255 = vpop.trf.xlu0
          %v5256 = vpop.trf.xlu0
          %v5257 = vpop.trf.xlu0
          %v5258 = vpop.trf.xlu0
          %v5259 = vpop.trf.xlu0
          %v5260 = vpop.trf.xlu0
          %v5261 = vpop.trf.xlu0
          %v5262 = vpop.trf.xlu0
          %v5263 = vpop.trf.xlu0
          %v5264 = vpop.trf.xlu0
          %v5265 = vpop.trf.xlu0
          %v5266 = vpop.trf.xlu0
          %5267 = vxpose.xlu0.b32.start [1/16] %v5229, 128
          %5268 = vxpose.xlu0.b32.cont [2/16] %v5232, 128
          %5269 = vxpose.xlu0.b32.cont [3/16] 0.0, 128
          %5270 = vxpose.xlu0.b32.cont [4/16] 0.0, 128
          %5271 = vxpose.xlu0.b32.cont [5/16] 0.0, 128
          %5272 = vxpose.xlu0.b32.cont [6/16] 0.0, 128
          %5273 = vxpose.xlu0.b32.cont [7/16] 0.0, 128
          %5274 = vxpose.xlu0.b32.cont [8/16] 0.0, 128
          %5275 = vxpose.xlu0.b32.cont [9/16] 0.0, 128
          %5276 = vxpose.xlu0.b32.cont [10/16] 0.0, 128
          %5277 = vxpose.xlu0.b32.cont [11/16] 0.0, 128
          %5278 = vxpose.xlu0.b32.cont [12/16] 0.0, 128
          %5279 = vxpose.xlu0.b32.cont [13/16] 0.0, 128
          %5280 = vxpose.xlu0.b32.cont [14/16] 0.0, 128
          %5281 = vxpose.xlu0.b32.cont [15/16] 0.0, 128
          %5282 = vxpose.xlu0.b32.end [16/16] 0.0, 128
          %v5283 = vpop.trf.xlu0
          %v5284 = vpop.trf.xlu0
          %v5285 = vpop.trf.xlu0
          %v5286 = vpop.trf.xlu0
          %v5287 = vpop.trf.xlu0
          %v5288 = vpop.trf.xlu0
          %v5289 = vpop.trf.xlu0
          %v5290 = vpop.trf.xlu0
          %v5291 = vpop.trf.xlu0
          %v5292 = vpop.trf.xlu0
          %v5293 = vpop.trf.xlu0
          %v5294 = vpop.trf.xlu0
          %v5295 = vpop.trf.xlu0
          %v5296 = vpop.trf.xlu0
          %v5297 = vpop.trf.xlu0
          %v5298 = vpop.trf.xlu0
          %v5299 = vcombine.high %v5251, 0.0
          %v5301 = vunpack.c.l.s4 1983009808
          %v5302 = vunpack.c.0.s8 %v5301
          %v5303 = vlaneseq
          %v5304 = vshrl.u32 %v5303, 7
          %v5305 = vsub.s32 %v5302, %v5304
          %v5306 = vrot.slane %v5251, %v5305
          %v5308 = vunpack.c.l.s4 1983009808
          %v5309 = vunpack.c.0.s8 %v5308
          %v5310 = vlaneseq
          %v5311 = vshrl.u32 %v5310, 7
          %v5312 = vsub.s32 %v5309, %v5311
          %v5313 = vrot.slane %v5299, %v5312
          %v5314 = vcombine.high %v5283, 0.0
          %v5316 = vunpack.c.l.s4 1983009808
          %v5317 = vunpack.c.0.s8 %v5316
          %v5318 = vlaneseq
          %v5319 = vshrl.u32 %v5318, 7
          %v5320 = vsub.s32 %v5317, %v5319
          %v5321 = vrot.slane %v5283, %v5320
          %v5323 = vunpack.c.l.s4 1983009808
          %v5324 = vunpack.c.0.s8 %v5323
          %v5325 = vlaneseq
          %v5326 = vshrl.u32 %v5325, 7
          %v5327 = vsub.s32 %v5324, %v5326
          %v5328 = vrot.slane %v5314, %v5327
          %v5329 = vcombine.low %v5306, %v5321
          %v5330 = vcombine.high %v5306, %v5321
          %v5332 = vunpack.c.l.s4 1934713408
          %v5333 = vunpack.c.0.s8 %v5332
          %v5334 = vlaneseq
          %v5335 = vshrl.u32 %v5334, 7
          %v5336 = vsub.s32 %v5333, %v5335
          %v5337 = vrot.slane %v5329, %v5336
          %v5339 = vunpack.c.l.s4 1934713408
          %v5340 = vunpack.c.0.s8 %v5339
          %v5341 = vlaneseq
          %v5342 = vshrl.u32 %v5341, 7
          %v5343 = vsub.s32 %v5340, %v5342
          %v5344 = vrot.slane %v5330, %v5343
          %v5345 = vcombine.low %v5313, %v5328
          %v5346 = vcombine.high %v5313, %v5328
          %v5348 = vunpack.c.l.s4 1934713408
          %v5349 = vunpack.c.0.s8 %v5348
          %v5350 = vlaneseq
          %v5351 = vshrl.u32 %v5350, 7
          %v5352 = vsub.s32 %v5349, %v5351
          %v5353 = vrot.slane %v5345, %v5352
          %v5355 = vunpack.c.l.s4 1934713408
          %v5356 = vunpack.c.0.s8 %v5355
          %v5357 = vlaneseq
          %v5358 = vshrl.u32 %v5357, 7
          %v5359 = vsub.s32 %v5356, %v5358
          %v5360 = vrot.slane %v5346, %v5359
          %v5361 = vcombine.high %v5337, 0.0
          %v5362 = vcombine.high %v5344, 0.0
          %v5363 = vcombine.high %v5353, 0.0
          %v5364 = vcombine.high %v5360, 0.0
          %v5365 = vcombine.high %v5252, 0.0
          %v5367 = vunpack.c.l.s4 1983009808
          %v5368 = vunpack.c.0.s8 %v5367
          %v5369 = vlaneseq
          %v5370 = vshrl.u32 %v5369, 7
          %v5371 = vsub.s32 %v5368, %v5370
          %v5372 = vrot.slane %v5252, %v5371
          %v5374 = vunpack.c.l.s4 1983009808
          %v5375 = vunpack.c.0.s8 %v5374
          %v5376 = vlaneseq
          %v5377 = vshrl.u32 %v5376, 7
          %v5378 = vsub.s32 %v5375, %v5377
          %v5379 = vrot.slane %v5365, %v5378
          %v5380 = vcombine.high %v5284, 0.0
          %v5382 = vunpack.c.l.s4 1983009808
          %v5383 = vunpack.c.0.s8 %v5382
          %v5384 = vlaneseq
          %v5385 = vshrl.u32 %v5384, 7
          %v5386 = vsub.s32 %v5383, %v5385
          %v5387 = vrot.slane %v5284, %v5386
          %v5389 = vunpack.c.l.s4 1983009808
          %v5390 = vunpack.c.0.s8 %v5389
          %v5391 = vlaneseq
          %v5392 = vshrl.u32 %v5391, 7
          %v5393 = vsub.s32 %v5390, %v5392
          %v5394 = vrot.slane %v5380, %v5393
          %v5395 = vcombine.low %v5372, %v5387
          %v5396 = vcombine.high %v5372, %v5387
          %v5398 = vunpack.c.l.s4 1934713408
          %v5399 = vunpack.c.0.s8 %v5398
          %v5400 = vlaneseq
          %v5401 = vshrl.u32 %v5400, 7
          %v5402 = vsub.s32 %v5399, %v5401
          %v5403 = vrot.slane %v5395, %v5402
          %v5405 = vunpack.c.l.s4 1934713408
          %v5406 = vunpack.c.0.s8 %v5405
          %v5407 = vlaneseq
          %v5408 = vshrl.u32 %v5407, 7
          %v5409 = vsub.s32 %v5406, %v5408
          %v5410 = vrot.slane %v5396, %v5409
          %v5411 = vcombine.low %v5379, %v5394
          %v5412 = vcombine.high %v5379, %v5394
          %v5414 = vunpack.c.l.s4 1934713408
          %v5415 = vunpack.c.0.s8 %v5414
          %v5416 = vlaneseq
          %v5417 = vshrl.u32 %v5416, 7
          %v5418 = vsub.s32 %v5415, %v5417
          %v5419 = vrot.slane %v5411, %v5418
          %v5421 = vunpack.c.l.s4 1934713408
          %v5422 = vunpack.c.0.s8 %v5421
          %v5423 = vlaneseq
          %v5424 = vshrl.u32 %v5423, 7
          %v5425 = vsub.s32 %v5422, %v5424
          %v5426 = vrot.slane %v5412, %v5425
          %v5427 = vcombine.high %v5403, 0.0
          %v5428 = vcombine.high %v5410, 0.0
          %v5429 = vcombine.high %v5419, 0.0
          %v5430 = vcombine.high %v5426, 0.0
          %v5431 = vcombine.high %v5253, 0.0
          %v5433 = vunpack.c.l.s4 1983009808
          %v5434 = vunpack.c.0.s8 %v5433
          %v5435 = vlaneseq
          %v5436 = vshrl.u32 %v5435, 7
          %v5437 = vsub.s32 %v5434, %v5436
          %v5438 = vrot.slane %v5253, %v5437
          %v5440 = vunpack.c.l.s4 1983009808
          %v5441 = vunpack.c.0.s8 %v5440
          %v5442 = vlaneseq
          %v5443 = vshrl.u32 %v5442, 7
          %v5444 = vsub.s32 %v5441, %v5443
          %v5445 = vrot.slane %v5431, %v5444
          %v5446 = vcombine.high %v5285, 0.0
          %v5448 = vunpack.c.l.s4 1983009808
          %v5449 = vunpack.c.0.s8 %v5448
          %v5450 = vlaneseq
          %v5451 = vshrl.u32 %v5450, 7
          %v5452 = vsub.s32 %v5449, %v5451
          %v5453 = vrot.slane %v5285, %v5452
          %v5455 = vunpack.c.l.s4 1983009808
          %v5456 = vunpack.c.0.s8 %v5455
          %v5457 = vlaneseq
          %v5458 = vshrl.u32 %v5457, 7
          %v5459 = vsub.s32 %v5456, %v5458
          %v5460 = vrot.slane %v5446, %v5459
          %v5461 = vcombine.low %v5438, %v5453
          %v5462 = vcombine.high %v5438, %v5453
          %v5464 = vunpack.c.l.s4 1934713408
          %v5465 = vunpack.c.0.s8 %v5464
          %v5466 = vlaneseq
          %v5467 = vshrl.u32 %v5466, 7
          %v5468 = vsub.s32 %v5465, %v5467
          %v5469 = vrot.slane %v5461, %v5468
          %v5471 = vunpack.c.l.s4 1934713408
          %v5472 = vunpack.c.0.s8 %v5471
          %v5473 = vlaneseq
          %v5474 = vshrl.u32 %v5473, 7
          %v5475 = vsub.s32 %v5472, %v5474
          %v5476 = vrot.slane %v5462, %v5475
          %v5477 = vcombine.low %v5445, %v5460
          %v5478 = vcombine.high %v5445, %v5460
          %v5480 = vunpack.c.l.s4 1934713408
          %v5481 = vunpack.c.0.s8 %v5480
          %v5482 = vlaneseq
          %v5483 = vshrl.u32 %v5482, 7
          %v5484 = vsub.s32 %v5481, %v5483
          %v5485 = vrot.slane %v5477, %v5484
          %v5487 = vunpack.c.l.s4 1934713408
          %v5488 = vunpack.c.0.s8 %v5487
          %v5489 = vlaneseq
          %v5490 = vshrl.u32 %v5489, 7
          %v5491 = vsub.s32 %v5488, %v5490
          %v5492 = vrot.slane %v5478, %v5491
          %v5493 = vcombine.high %v5469, 0.0
          %v5494 = vcombine.high %v5476, 0.0
          %v5495 = vcombine.high %v5485, 0.0
          %v5496 = vcombine.high %v5492, 0.0
          %v5503 = vlaneseq
          %v5504 = vshrl.u32 %v5503, 7
          %v5505 = vsub.s32 %v2508, %v5504
          %v5506 = vrot.slane %v5083, %v5505
          %v5507 = vlaneseq
          %v5508 = vshrl.u32 %v5507, 7
          %v5509 = vsub.s32 %v2513, %v5508
          %v5510 = vrot.slane %v5084, %v5509
          %v5511 = vsel %vm2518, %v5510, %v5506
          %v5512 = vlaneseq
          %v5513 = vshrl.u32 %v5512, 7
          %v5514 = vsub.s32 %v2520, %v5513
          %v5515 = vrot.slane %v5085, %v5514
          %v5516 = vsel %vm2525, %v5515, %v5511
          %v5517 = vlaneseq
          %v5518 = vshrl.u32 %v5517, 7
          %v5519 = vsub.s32 %v2508, %v5518
          %v5520 = vrot.slane %v5086, %v5519
          %v5521 = vlaneseq
          %v5522 = vshrl.u32 %v5521, 7
          %v5523 = vsub.s32 %v2513, %v5522
          %v5524 = vrot.slane %v5087, %v5523
          %v5525 = vsel %vm2518, %v5524, %v5520
          %v5526 = vlaneseq
          %v5527 = vshrl.u32 %v5526, 7
          %v5528 = vsub.s32 %v2520, %v5527
          %v5529 = vrot.slane %v5088, %v5528
          %v5530 = vsel %vm2525, %v5529, %v5525
          %v5531 = vsel %vm2541, %v5530, %v5516
          %5533 = vxpose.xlu0.b32.start [1/16] %v5531, 128
          %5534 = vxpose.xlu0.b32.cont [2/16] 0.0, 128
          %5535 = vxpose.xlu0.b32.cont [3/16] 0.0, 128
          %5536 = vxpose.xlu0.b32.cont [4/16] 0.0, 128
          %5537 = vxpose.xlu0.b32.cont [5/16] 0.0, 128
          %5538 = vxpose.xlu0.b32.cont [6/16] 0.0, 128
          %5539 = vxpose.xlu0.b32.cont [7/16] 0.0, 128
          %5540 = vxpose.xlu0.b32.cont [8/16] 0.0, 128
          %5541 = vxpose.xlu0.b32.cont [9/16] 0.0, 128
          %5542 = vxpose.xlu0.b32.cont [10/16] 0.0, 128
          %5543 = vxpose.xlu0.b32.cont [11/16] 0.0, 128
          %5544 = vxpose.xlu0.b32.cont [12/16] 0.0, 128
          %5545 = vxpose.xlu0.b32.cont [13/16] 0.0, 128
          %5546 = vxpose.xlu0.b32.cont [14/16] 0.0, 128
          %5547 = vxpose.xlu0.b32.cont [15/16] 0.0, 128
          %5548 = vxpose.xlu0.b32.end [16/16] 0.0, 128
          %v5549 = vpop.trf.xlu0
          %v5550 = vpop.trf.xlu0
          %v5551 = vpop.trf.xlu0
          %v5552 = vpop.trf.xlu0
          %v5553 = vpop.trf.xlu0
          %v5554 = vpop.trf.xlu0
          %v5555 = vpop.trf.xlu0
          %v5556 = vpop.trf.xlu0
          %v5557 = vpop.trf.xlu0
          %v5558 = vpop.trf.xlu0
          %v5559 = vpop.trf.xlu0
          %v5560 = vpop.trf.xlu0
          %v5561 = vpop.trf.xlu0
          %v5562 = vpop.trf.xlu0
          %v5563 = vpop.trf.xlu0
          %v5564 = vpop.trf.xlu0
          %v5565 = vlaneseq
          %v5566 = vshrl.u32 %v5565, 7
          %v5567 = vsub.s32 0, %v5566
          %v5568 = vrot.slane %v5549, %v5567
          %5570 = vbcast.lane.b32.xlu0 %v5568, 256
          %v5571 = vpop.permute.xlu0 %5570
          %v5572 = vlaneseq
          %v5573 = vshrl.u32 %v5572, 7
          %v5574 = vsub.s32 1, %v5573
          %v5575 = vrot.slane %v5549, %v5574
          %5577 = vbcast.lane.b32.xlu0 %v5575, 256
          %v5578 = vpop.permute.xlu0 %5577
          %v5579 = vlaneseq
          %v5580 = vshrl.u32 %v5579, 7
          %v5581 = vsub.s32 2, %v5580
          %v5582 = vrot.slane %v5549, %v5581
          %5584 = vbcast.lane.b32.xlu0 %v5582, 256
          %v5585 = vpop.permute.xlu0 %5584
          %v5586 = vlaneseq
          %v5587 = vshrl.u32 %v5586, 7
          %v5588 = vsub.s32 3, %v5587
          %v5589 = vrot.slane %v5549, %v5588
          %5591 = vbcast.lane.b32.xlu0 %v5589, 256
          %v5592 = vpop.permute.xlu0 %5591
          %v5593 = vlaneseq
          %v5594 = vshrl.u32 %v5593, 7
          %v5595 = vsub.s32 4, %v5594
          %v5596 = vrot.slane %v5549, %v5595
          %5598 = vbcast.lane.b32.xlu0 %v5596, 256
          %v5599 = vpop.permute.xlu0 %5598
          %v5600 = vlaneseq
          %v5601 = vshrl.u32 %v5600, 7
          %v5602 = vsub.s32 5, %v5601
          %v5603 = vrot.slane %v5549, %v5602
          %5605 = vbcast.lane.b32.xlu0 %v5603, 256
          %v5606 = vpop.permute.xlu0 %5605
          %v5607 = vlaneseq
          %v5608 = vshrl.u32 %v5607, 7
          %v5609 = vsub.s32 6, %v5608
          %v5610 = vrot.slane %v5549, %v5609
          %5612 = vbcast.lane.b32.xlu0 %v5610, 256
          %v5613 = vpop.permute.xlu0 %5612
          %v5614 = vlaneseq
          %v5615 = vshrl.u32 %v5614, 7
          %v5616 = vsub.s32 7, %v5615
          %v5617 = vrot.slane %v5549, %v5616
          %5619 = vbcast.lane.b32.xlu0 %v5617, 256
          %v5620 = vpop.permute.xlu0 %5619
          %v5621 = vlaneseq
          %v5622 = vshrl.u32 %v5621, 7
          %v5623 = vsub.s32 0, %v5622
          %v5624 = vrot.slane %v5550, %v5623
          %5626 = vbcast.lane.b32.xlu0 %v5624, 256
          %v5627 = vpop.permute.xlu0 %5626
          %v5628 = vlaneseq
          %v5629 = vshrl.u32 %v5628, 7
          %v5630 = vsub.s32 1, %v5629
          %v5631 = vrot.slane %v5550, %v5630
          %5633 = vbcast.lane.b32.xlu0 %v5631, 256
          %v5634 = vpop.permute.xlu0 %5633
          %v5635 = vlaneseq
          %v5636 = vshrl.u32 %v5635, 7
          %v5637 = vsub.s32 2, %v5636
          %v5638 = vrot.slane %v5550, %v5637
          %5640 = vbcast.lane.b32.xlu0 %v5638, 256
          %v5641 = vpop.permute.xlu0 %5640
          %v5642 = vlaneseq
          %v5643 = vshrl.u32 %v5642, 7
          %v5644 = vsub.s32 3, %v5643
          %v5645 = vrot.slane %v5550, %v5644
          %5647 = vbcast.lane.b32.xlu0 %v5645, 256
          %v5648 = vpop.permute.xlu0 %5647
          %v5649 = vlaneseq
          %v5650 = vshrl.u32 %v5649, 7
          %v5651 = vsub.s32 4, %v5650
          %v5652 = vrot.slane %v5550, %v5651
          %5654 = vbcast.lane.b32.xlu0 %v5652, 256
          %v5655 = vpop.permute.xlu0 %5654
          %v5656 = vlaneseq
          %v5657 = vshrl.u32 %v5656, 7
          %v5658 = vsub.s32 5, %v5657
          %v5659 = vrot.slane %v5550, %v5658
          %5661 = vbcast.lane.b32.xlu0 %v5659, 256
          %v5662 = vpop.permute.xlu0 %5661
          %v5663 = vlaneseq
          %v5664 = vshrl.u32 %v5663, 7
          %v5665 = vsub.s32 6, %v5664
          %v5666 = vrot.slane %v5550, %v5665
          %5668 = vbcast.lane.b32.xlu0 %v5666, 256
          %v5669 = vpop.permute.xlu0 %5668
          %v5670 = vlaneseq
          %v5671 = vshrl.u32 %v5670, 7
          %v5672 = vsub.s32 7, %v5671
          %v5673 = vrot.slane %v5550, %v5672
          %5675 = vbcast.lane.b32.xlu0 %v5673, 256
          %v5676 = vpop.permute.xlu0 %5675
          %v5677 = vlaneseq
          %v5678 = vshrl.u32 %v5677, 7
          %v5679 = vsub.s32 0, %v5678
          %v5680 = vrot.slane %v5551, %v5679
          %5682 = vbcast.lane.b32.xlu0 %v5680, 256
          %v5683 = vpop.permute.xlu0 %5682
          %v5684 = vlaneseq
          %v5685 = vshrl.u32 %v5684, 7
          %v5686 = vsub.s32 1, %v5685
          %v5687 = vrot.slane %v5551, %v5686
          %5689 = vbcast.lane.b32.xlu0 %v5687, 256
          %v5690 = vpop.permute.xlu0 %5689
          %v5691 = vlaneseq
          %v5692 = vshrl.u32 %v5691, 7
          %v5693 = vsub.s32 2, %v5692
          %v5694 = vrot.slane %v5551, %v5693
          %5696 = vbcast.lane.b32.xlu0 %v5694, 256
          %v5697 = vpop.permute.xlu0 %5696
          %v5698 = vlaneseq
          %v5699 = vshrl.u32 %v5698, 7
          %v5700 = vsub.s32 3, %v5699
          %v5701 = vrot.slane %v5551, %v5700
          %5703 = vbcast.lane.b32.xlu0 %v5701, 256
          %v5704 = vpop.permute.xlu0 %5703
          %v5705 = vlaneseq
          %v5706 = vshrl.u32 %v5705, 7
          %v5707 = vsub.s32 4, %v5706
          %v5708 = vrot.slane %v5551, %v5707
          %5710 = vbcast.lane.b32.xlu0 %v5708, 256
          %v5711 = vpop.permute.xlu0 %5710
          %v5712 = vlaneseq
          %v5713 = vshrl.u32 %v5712, 7
          %v5714 = vsub.s32 5, %v5713
          %v5715 = vrot.slane %v5551, %v5714
          %5717 = vbcast.lane.b32.xlu0 %v5715, 256
          %v5718 = vpop.permute.xlu0 %5717
          %v5719 = vlaneseq
          %v5720 = vshrl.u32 %v5719, 7
          %v5721 = vsub.s32 6, %v5720
          %v5722 = vrot.slane %v5551, %v5721
          %5724 = vbcast.lane.b32.xlu0 %v5722, 256
          %v5725 = vpop.permute.xlu0 %5724
          %v5726 = vlaneseq
          %v5727 = vshrl.u32 %v5726, 7
          %v5728 = vsub.s32 7, %v5727
          %v5729 = vrot.slane %v5551, %v5728
          %5731 = vbcast.lane.b32.xlu0 %v5729, 256
          %v5732 = vpop.permute.xlu0 %5731
          %v5733 = vmul.f32 %v5337, %v5571
          %v5734 = vmul.f32 %v5361, %v5578
          %v5735 = vmul.f32 %v5344, %v5585
          %v5736 = vmul.f32 %v5362, %v5592
          %v5737 = vmul.f32 %v5353, %v5599
          %v5738 = vmul.f32 %v5363, %v5606
          %v5739 = vmul.f32 %v5360, %v5613
          %v5740 = vmul.f32 %v5364, %v5620
          %v5741 = vmul.f32 %v5403, %v5627
          %v5742 = vmul.f32 %v5427, %v5634
          %v5743 = vmul.f32 %v5410, %v5641
          %v5744 = vmul.f32 %v5428, %v5648
          %v5745 = vmul.f32 %v5419, %v5655
          %v5746 = vmul.f32 %v5429, %v5662
          %v5747 = vmul.f32 %v5426, %v5669
          %v5748 = vmul.f32 %v5430, %v5676
          %v5749 = vmul.f32 %v5469, %v5683
          %v5750 = vmul.f32 %v5493, %v5690
          %v5751 = vmul.f32 %v5476, %v5697
          %v5752 = vmul.f32 %v5494, %v5704
          %v5753 = vmul.f32 %v5485, %v5711
          %v5754 = vmul.f32 %v5495, %v5718
          %v5755 = vmul.f32 %v5492, %v5725
          %v5756 = vmul.f32 %v5496, %v5732
          %v5757 = vcombine.low %v5733, %v5735
          %v5759 = vunpack.c.l.s4 1983009808
          %v5760 = vunpack.c.0.s8 %v5759
          %v5761 = vlaneseq
          %v5762 = vshrl.u32 %v5761, 7
          %v5763 = vsub.s32 %v5760, %v5762
          %v5764 = vrot.slane %v5757, %v5763
          %v5765 = vcombine.low %v5734, %v5736
          %v5767 = vunpack.c.l.s4 1983009808
          %v5768 = vunpack.c.0.s8 %v5767
          %v5769 = vlaneseq
          %v5770 = vshrl.u32 %v5769, 7
          %v5771 = vsub.s32 %v5768, %v5770
          %v5772 = vrot.slane %v5765, %v5771
          %v5773 = vcombine.low %v5737, %v5739
          %v5775 = vunpack.c.l.s4 1983009808
          %v5776 = vunpack.c.0.s8 %v5775
          %v5777 = vlaneseq
          %v5778 = vshrl.u32 %v5777, 7
          %v5779 = vsub.s32 %v5776, %v5778
          %v5780 = vrot.slane %v5773, %v5779
          %v5781 = vcombine.low %v5738, %v5740
          %v5783 = vunpack.c.l.s4 1983009808
          %v5784 = vunpack.c.0.s8 %v5783
          %v5785 = vlaneseq
          %v5786 = vshrl.u32 %v5785, 7
          %v5787 = vsub.s32 %v5784, %v5786
          %v5788 = vrot.slane %v5781, %v5787
          %v5789 = vcombine.low %v5764, %v5772
          %v5791 = vunpack.c.l.s4 1934713408
          %v5792 = vunpack.c.0.s8 %v5791
          %v5793 = vlaneseq
          %v5794 = vshrl.u32 %v5793, 7
          %v5795 = vsub.s32 %v5792, %v5794
          %v5796 = vrot.slane %v5789, %v5795
          %v5797 = vcombine.low %v5780, %v5788
          %v5799 = vunpack.c.l.s4 1934713408
          %v5800 = vunpack.c.0.s8 %v5799
          %v5801 = vlaneseq
          %v5802 = vshrl.u32 %v5801, 7
          %v5803 = vsub.s32 %v5800, %v5802
          %v5804 = vrot.slane %v5797, %v5803
          %v5805 = vcombine.low %v5796, %v5804
          %v5806 = vcombine.high %v5796, %v5804
          %v5807 = vcombine.low %v5741, %v5743
          %v5809 = vunpack.c.l.s4 1983009808
          %v5810 = vunpack.c.0.s8 %v5809
          %v5811 = vlaneseq
          %v5812 = vshrl.u32 %v5811, 7
          %v5813 = vsub.s32 %v5810, %v5812
          %v5814 = vrot.slane %v5807, %v5813
          %v5815 = vcombine.low %v5742, %v5744
          %v5817 = vunpack.c.l.s4 1983009808
          %v5818 = vunpack.c.0.s8 %v5817
          %v5819 = vlaneseq
          %v5820 = vshrl.u32 %v5819, 7
          %v5821 = vsub.s32 %v5818, %v5820
          %v5822 = vrot.slane %v5815, %v5821
          %v5823 = vcombine.low %v5745, %v5747
          %v5825 = vunpack.c.l.s4 1983009808
          %v5826 = vunpack.c.0.s8 %v5825
          %v5827 = vlaneseq
          %v5828 = vshrl.u32 %v5827, 7
          %v5829 = vsub.s32 %v5826, %v5828
          %v5830 = vrot.slane %v5823, %v5829
          %v5831 = vcombine.low %v5746, %v5748
          %v5833 = vunpack.c.l.s4 1983009808
          %v5834 = vunpack.c.0.s8 %v5833
          %v5835 = vlaneseq
          %v5836 = vshrl.u32 %v5835, 7
          %v5837 = vsub.s32 %v5834, %v5836
          %v5838 = vrot.slane %v5831, %v5837
          %v5839 = vcombine.low %v5814, %v5822
          %v5841 = vunpack.c.l.s4 1934713408
          %v5842 = vunpack.c.0.s8 %v5841
          %v5843 = vlaneseq
          %v5844 = vshrl.u32 %v5843, 7
          %v5845 = vsub.s32 %v5842, %v5844
          %v5846 = vrot.slane %v5839, %v5845
          %v5847 = vcombine.low %v5830, %v5838
          %v5849 = vunpack.c.l.s4 1934713408
          %v5850 = vunpack.c.0.s8 %v5849
          %v5851 = vlaneseq
          %v5852 = vshrl.u32 %v5851, 7
          %v5853 = vsub.s32 %v5850, %v5852
          %v5854 = vrot.slane %v5847, %v5853
          %v5855 = vcombine.low %v5846, %v5854
          %v5856 = vcombine.high %v5846, %v5854
          %v5857 = vcombine.low %v5749, %v5751
          %v5859 = vunpack.c.l.s4 1983009808
          %v5860 = vunpack.c.0.s8 %v5859
          %v5861 = vlaneseq
          %v5862 = vshrl.u32 %v5861, 7
          %v5863 = vsub.s32 %v5860, %v5862
          %v5864 = vrot.slane %v5857, %v5863
          %v5865 = vcombine.low %v5750, %v5752
          %v5867 = vunpack.c.l.s4 1983009808
          %v5868 = vunpack.c.0.s8 %v5867
          %v5869 = vlaneseq
          %v5870 = vshrl.u32 %v5869, 7
          %v5871 = vsub.s32 %v5868, %v5870
          %v5872 = vrot.slane %v5865, %v5871
          %v5873 = vcombine.low %v5753, %v5755
          %v5875 = vunpack.c.l.s4 1983009808
          %v5876 = vunpack.c.0.s8 %v5875
          %v5877 = vlaneseq
          %v5878 = vshrl.u32 %v5877, 7
          %v5879 = vsub.s32 %v5876, %v5878
          %v5880 = vrot.slane %v5873, %v5879
          %v5881 = vcombine.low %v5754, %v5756
          %v5883 = vunpack.c.l.s4 1983009808
          %v5884 = vunpack.c.0.s8 %v5883
          %v5885 = vlaneseq
          %v5886 = vshrl.u32 %v5885, 7
          %v5887 = vsub.s32 %v5884, %v5886
          %v5888 = vrot.slane %v5881, %v5887
          %v5889 = vcombine.low %v5864, %v5872
          %v5891 = vunpack.c.l.s4 1934713408
          %v5892 = vunpack.c.0.s8 %v5891
          %v5893 = vlaneseq
          %v5894 = vshrl.u32 %v5893, 7
          %v5895 = vsub.s32 %v5892, %v5894
          %v5896 = vrot.slane %v5889, %v5895
          %v5897 = vcombine.low %v5880, %v5888
          %v5899 = vunpack.c.l.s4 1934713408
          %v5900 = vunpack.c.0.s8 %v5899
          %v5901 = vlaneseq
          %v5902 = vshrl.u32 %v5901, 7
          %v5903 = vsub.s32 %v5900, %v5902
          %v5904 = vrot.slane %v5897, %v5903
          %v5905 = vcombine.low %v5896, %v5904
          %v5906 = vcombine.high %v5896, %v5904
          %5910 = vrot.lane.b32.xlu0 %v5806, 16
          %v5911 = vpop.permute.xlu0 %5910
          %5912 = vrot.lane.b32.xlu0 %v5856, 16
          %v5913 = vpop.permute.xlu0 %5912
          %5914 = vrot.lane.b32.xlu0 %v5906, 16
          %v5915 = vpop.permute.xlu0 %5914
          %v5919 = vsel %vm1933, %v5805, %v5911
          %v5920 = vsel %vm1933, %v5855, %v5913
          %v5921 = vsel %vm1933, %v5905, %v5915
          %v5922 = vpack.c.bf16 %v5920, %v5919
          %v5923 = vpack.c.bf16 %v5921, %v5921
          %v5926 = vrot.slane %v5922, 4
          %v5927 = vrot.slane %v5923, 4
          %v5928 = vsel %vm4439, %v5926, %v5927
          %vm5931 = vcmask 261124
          %5932 = vst.msk [vmem:[#allocation3 + $0x8] sm:$0xf0] %vm5931, %v5926
          %5933 = vst.msk [vmem:[#allocation3 + $0x10] sm:$0xff] %vm2935, %v5928
          %5934 = vrot.lane.b32.xlu0 %v4442, 96
          %v5935 = vpop.permute.xlu0 %5934
          %5936 = vrot.lane.b32.xlu0 %v4441, 96
          %v5937 = vpop.permute.xlu0 %5936
          %5938 = vrot.lane.b32.xlu0 %v4445, 96
          %v5939 = vpop.permute.xlu0 %5938
          %5940 = vrot.lane.b32.xlu0 %v4444, 96
          %v5941 = vpop.permute.xlu0 %5940
          %v5944 = vcombine.high %v5935, 0
          %v5946 = vunpack.c.l.s4 1983009808
          %v5947 = vunpack.c.0.s8 %v5946
          %v5948 = vlaneseq
          %v5949 = vshrl.u32 %v5948, 7
          %v5950 = vsub.s32 %v5947, %v5949
          %v5951 = vrot.slane %v5935, %v5950
          %v5953 = vunpack.c.l.s4 1983009808
          %v5954 = vunpack.c.0.s8 %v5953
          %v5955 = vlaneseq
          %v5956 = vshrl.u32 %v5955, 7
          %v5957 = vsub.s32 %v5954, %v5956
          %v5958 = vrot.slane %v5944, %v5957
          %v5959 = vcombine.high %v5951, 0
          %v5961 = vunpack.c.l.s4 1934713408
          %v5962 = vunpack.c.0.s8 %v5961
          %v5963 = vlaneseq
          %v5964 = vshrl.u32 %v5963, 7
          %v5965 = vsub.s32 %v5962, %v5964
          %v5966 = vrot.slane %v5951, %v5965
          %v5968 = vunpack.c.l.s4 1934713408
          %v5969 = vunpack.c.0.s8 %v5968
          %v5970 = vlaneseq
          %v5971 = vshrl.u32 %v5970, 7
          %v5972 = vsub.s32 %v5969, %v5971
          %v5973 = vrot.slane %v5959, %v5972
          %v5974 = vcombine.high %v5958, 0
          %v5976 = vunpack.c.l.s4 1934713408
          %v5977 = vunpack.c.0.s8 %v5976
          %v5978 = vlaneseq
          %v5979 = vshrl.u32 %v5978, 7
          %v5980 = vsub.s32 %v5977, %v5979
          %v5981 = vrot.slane %v5958, %v5980
          %v5983 = vunpack.c.l.s4 1934713408
          %v5984 = vunpack.c.0.s8 %v5983
          %v5985 = vlaneseq
          %v5986 = vshrl.u32 %v5985, 7
          %v5987 = vsub.s32 %v5984, %v5986
          %v5988 = vrot.slane %v5974, %v5987
          %v5989 = vcombine.high %v5966, 0
          %v5990 = vcombine.high %v5973, 0
          %v5991 = vcombine.high %v5981, 0
          %v5992 = vcombine.high %v5988, 0
          %v5993 = vcombine.high %v5939, 0
          %v5995 = vunpack.c.l.s4 1983009808
          %v5996 = vunpack.c.0.s8 %v5995
          %v5997 = vlaneseq
          %v5998 = vshrl.u32 %v5997, 7
          %v5999 = vsub.s32 %v5996, %v5998
          %v6000 = vrot.slane %v5939, %v5999
          %v6002 = vunpack.c.l.s4 1983009808
          %v6003 = vunpack.c.0.s8 %v6002
          %v6004 = vlaneseq
          %v6005 = vshrl.u32 %v6004, 7
          %v6006 = vsub.s32 %v6003, %v6005
          %v6007 = vrot.slane %v5993, %v6006
          %v6008 = vcombine.high %v6000, 0
          %v6010 = vunpack.c.l.s4 1934713408
          %v6011 = vunpack.c.0.s8 %v6010
          %v6012 = vlaneseq
          %v6013 = vshrl.u32 %v6012, 7
          %v6014 = vsub.s32 %v6011, %v6013
          %v6015 = vrot.slane %v6000, %v6014
          %v6017 = vunpack.c.l.s4 1934713408
          %v6018 = vunpack.c.0.s8 %v6017
          %v6019 = vlaneseq
          %v6020 = vshrl.u32 %v6019, 7
          %v6021 = vsub.s32 %v6018, %v6020
          %v6022 = vrot.slane %v6008, %v6021
          %v6023 = vcombine.high %v6007, 0
          %v6025 = vunpack.c.l.s4 1934713408
          %v6026 = vunpack.c.0.s8 %v6025
          %v6027 = vlaneseq
          %v6028 = vshrl.u32 %v6027, 7
          %v6029 = vsub.s32 %v6026, %v6028
          %v6030 = vrot.slane %v6007, %v6029
          %v6032 = vunpack.c.l.s4 1934713408
          %v6033 = vunpack.c.0.s8 %v6032
          %v6034 = vlaneseq
          %v6035 = vshrl.u32 %v6034, 7
          %v6036 = vsub.s32 %v6033, %v6035
          %v6037 = vrot.slane %v6023, %v6036
          %v6038 = vcombine.high %v6015, 0
          %v6039 = vcombine.high %v6022, 0
          %v6040 = vcombine.high %v6030, 0
          %v6041 = vcombine.high %v6037, 0
          %v6044 = vunpack.c.l.s4 1983009808
          %v6045 = vunpack.c.0.s8 %v6044
          %v6046 = vlaneseq
          %v6047 = vshrl.u32 %v6046, 7
          %v6048 = vsub.s32 %v6045, %v6047
          %v6049 = vrot.slane %v5937, %v6048
          %v6050 = vcombine.high %v6049, 0
          %v6052 = vunpack.c.l.s4 1934713408
          %v6053 = vunpack.c.0.s8 %v6052
          %v6054 = vlaneseq
          %v6055 = vshrl.u32 %v6054, 7
          %v6056 = vsub.s32 %v6053, %v6055
          %v6057 = vrot.slane %v6049, %v6056
          %v6059 = vunpack.c.l.s4 1934713408
          %v6060 = vunpack.c.0.s8 %v6059
          %v6061 = vlaneseq
          %v6062 = vshrl.u32 %v6061, 7
          %v6063 = vsub.s32 %v6060, %v6062
          %v6064 = vrot.slane %v6050, %v6063
          %v6065 = vcombine.high %v6057, 0
          %v6066 = vcombine.high %v6064, 0
          %v6069 = vunpack.c.l.s4 1983009808
          %v6070 = vunpack.c.0.s8 %v6069
          %v6071 = vlaneseq
          %v6072 = vshrl.u32 %v6071, 7
          %v6073 = vsub.s32 %v6070, %v6072
          %v6074 = vrot.slane %v5941, %v6073
          %v6075 = vcombine.high %v6074, 0
          %v6077 = vunpack.c.l.s4 1934713408
          %v6078 = vunpack.c.0.s8 %v6077
          %v6079 = vlaneseq
          %v6080 = vshrl.u32 %v6079, 7
          %v6081 = vsub.s32 %v6078, %v6080
          %v6082 = vrot.slane %v6074, %v6081
          %v6084 = vunpack.c.l.s4 1934713408
          %v6085 = vunpack.c.0.s8 %v6084
          %v6086 = vlaneseq
          %v6087 = vshrl.u32 %v6086, 7
          %v6088 = vsub.s32 %v6085, %v6087
          %v6089 = vrot.slane %v6075, %v6088
          %v6090 = vcombine.high %v6082, 0
          %v6091 = vcombine.high %v6089, 0
          %v6094 = vpack.i.b16 %v6015, %v5966
          %v6096 = vshrl.u32 %v5966, 16
          %v6097 = vshrl.u32 %v6015, 16
          %v6098 = vpack.i.b16 %v6097, %v6096
          %v6102 = vpack.i.b16 %v6038, %v5989
          %v6104 = vshrl.u32 %v5989, 16
          %v6105 = vshrl.u32 %v6038, 16
          %v6106 = vpack.i.b16 %v6105, %v6104
          %v6110 = vpack.i.b16 %v6022, %v5973
          %v6112 = vshrl.u32 %v5973, 16
          %v6113 = vshrl.u32 %v6022, 16
          %v6114 = vpack.i.b16 %v6113, %v6112
          %v6118 = vpack.i.b16 %v6039, %v5990
          %v6120 = vshrl.u32 %v5990, 16
          %v6121 = vshrl.u32 %v6039, 16
          %v6122 = vpack.i.b16 %v6121, %v6120
          %v6126 = vpack.i.b16 %v6030, %v5981
          %v6128 = vshrl.u32 %v5981, 16
          %v6129 = vshrl.u32 %v6030, 16
          %v6130 = vpack.i.b16 %v6129, %v6128
          %v6134 = vpack.i.b16 %v6040, %v5991
          %v6136 = vshrl.u32 %v5991, 16
          %v6137 = vshrl.u32 %v6040, 16
          %v6138 = vpack.i.b16 %v6137, %v6136
          %v6142 = vpack.i.b16 %v6037, %v5988
          %v6144 = vshrl.u32 %v5988, 16
          %v6145 = vshrl.u32 %v6037, 16
          %v6146 = vpack.i.b16 %v6145, %v6144
          %v6150 = vpack.i.b16 %v6041, %v5992
          %v6152 = vshrl.u32 %v5992, 16
          %v6153 = vshrl.u32 %v6041, 16
          %v6154 = vpack.i.b16 %v6153, %v6152
          %v6158 = vpack.i.b16 %v6082, %v6057
          %v6160 = vshrl.u32 %v6057, 16
          %v6161 = vshrl.u32 %v6082, 16
          %v6162 = vpack.i.b16 %v6161, %v6160
          %v6166 = vpack.i.b16 %v6090, %v6065
          %v6168 = vshrl.u32 %v6065, 16
          %v6169 = vshrl.u32 %v6090, 16
          %v6170 = vpack.i.b16 %v6169, %v6168
          %v6174 = vpack.i.b16 %v6089, %v6064
          %v6176 = vshrl.u32 %v6064, 16
          %v6177 = vshrl.u32 %v6089, 16
          %v6178 = vpack.i.b16 %v6177, %v6176
          %v6182 = vpack.i.b16 %v6091, %v6066
          %v6184 = vshrl.u32 %v6066, 16
          %v6185 = vshrl.u32 %v6091, 16
          %v6186 = vpack.i.b16 %v6185, %v6184
          %v6188 = vmul.bf16 %v6094, 1048592000
          %v6189 = vmul.bf16 %v6098, 1048592000
          %v6190 = vmul.bf16 %v6102, 1048592000
          %v6191 = vmul.bf16 %v6106, 1048592000
          %v6192 = vmul.bf16 %v6110, 1048592000
          %v6193 = vmul.bf16 %v6114, 1048592000
          %v6194 = vmul.bf16 %v6118, 1048592000
          %v6195 = vmul.bf16 %v6122, 1048592000
          %v6196 = vmul.bf16 %v6126, 1048592000
          %v6197 = vmul.bf16 %v6130, 1048592000
          %v6198 = vmul.bf16 %v6134, 1048592000
          %v6199 = vmul.bf16 %v6138, 1048592000
          %v6200 = vmul.bf16 %v6142, 1048592000
          %v6201 = vmul.bf16 %v6146, 1048592000
          %v6202 = vmul.bf16 %v6150, 1048592000
          %v6203 = vmul.bf16 %v6154, 1048592000
          %v6204 = vmul.bf16 %v6158, 1048592000
          %v6205 = vmul.bf16 %v6162, 1048592000
          %v6206 = vmul.bf16 %v6166, 1048592000
          %v6207 = vmul.bf16 %v6170, 1048592000
          %v6208 = vmul.bf16 %v6174, 1048592000
          %v6209 = vmul.bf16 %v6178, 1048592000
          %v6210 = vmul.bf16 %v6182, 1048592000
          %v6211 = vmul.bf16 %v6186, 1048592000
          %v6212 = vcombine.low %v6188, %v6192
          %v6214 = vunpack.c.l.s4 1983009808
          %v6215 = vunpack.c.0.s8 %v6214
          %v6216 = vlaneseq
          %v6217 = vshrl.u32 %v6216, 7
          %v6218 = vsub.s32 %v6215, %v6217
          %v6219 = vrot.slane %v6212, %v6218
          %v6220 = vcombine.low %v6190, %v6194
          %v6222 = vunpack.c.l.s4 1983009808
          %v6223 = vunpack.c.0.s8 %v6222
          %v6224 = vlaneseq
          %v6225 = vshrl.u32 %v6224, 7
          %v6226 = vsub.s32 %v6223, %v6225
          %v6227 = vrot.slane %v6220, %v6226
          %v6228 = vcombine.low %v6196, %v6200
          %v6230 = vunpack.c.l.s4 1983009808
          %v6231 = vunpack.c.0.s8 %v6230
          %v6232 = vlaneseq
          %v6233 = vshrl.u32 %v6232, 7
          %v6234 = vsub.s32 %v6231, %v6233
          %v6235 = vrot.slane %v6228, %v6234
          %v6236 = vcombine.low %v6198, %v6202
          %v6238 = vunpack.c.l.s4 1983009808
          %v6239 = vunpack.c.0.s8 %v6238
          %v6240 = vlaneseq
          %v6241 = vshrl.u32 %v6240, 7
          %v6242 = vsub.s32 %v6239, %v6241
          %v6243 = vrot.slane %v6236, %v6242
          %v6244 = vcombine.low %v6219, %v6227
          %v6246 = vunpack.c.l.s4 1934713408
          %v6247 = vunpack.c.0.s8 %v6246
          %v6248 = vlaneseq
          %v6249 = vshrl.u32 %v6248, 7
          %v6250 = vsub.s32 %v6247, %v6249
          %v6251 = vrot.slane %v6244, %v6250
          %v6252 = vcombine.low %v6235, %v6243
          %v6254 = vunpack.c.l.s4 1934713408
          %v6255 = vunpack.c.0.s8 %v6254
          %v6256 = vlaneseq
          %v6257 = vshrl.u32 %v6256, 7
          %v6258 = vsub.s32 %v6255, %v6257
          %v6259 = vrot.slane %v6252, %v6258
          %v6260 = vcombine.low %v6251, %v6259
          %v6261 = vcombine.low %v6189, %v6193
          %v6263 = vunpack.c.l.s4 1983009808
          %v6264 = vunpack.c.0.s8 %v6263
          %v6265 = vlaneseq
          %v6266 = vshrl.u32 %v6265, 7
          %v6267 = vsub.s32 %v6264, %v6266
          %v6268 = vrot.slane %v6261, %v6267
          %v6269 = vcombine.low %v6191, %v6195
          %v6271 = vunpack.c.l.s4 1983009808
          %v6272 = vunpack.c.0.s8 %v6271
          %v6273 = vlaneseq
          %v6274 = vshrl.u32 %v6273, 7
          %v6275 = vsub.s32 %v6272, %v6274
          %v6276 = vrot.slane %v6269, %v6275
          %v6277 = vcombine.low %v6197, %v6201
          %v6279 = vunpack.c.l.s4 1983009808
          %v6280 = vunpack.c.0.s8 %v6279
          %v6281 = vlaneseq
          %v6282 = vshrl.u32 %v6281, 7
          %v6283 = vsub.s32 %v6280, %v6282
          %v6284 = vrot.slane %v6277, %v6283
          %v6285 = vcombine.low %v6199, %v6203
          %v6287 = vunpack.c.l.s4 1983009808
          %v6288 = vunpack.c.0.s8 %v6287
          %v6289 = vlaneseq
          %v6290 = vshrl.u32 %v6289, 7
          %v6291 = vsub.s32 %v6288, %v6290
          %v6292 = vrot.slane %v6285, %v6291
          %v6293 = vcombine.low %v6268, %v6276
          %v6295 = vunpack.c.l.s4 1934713408
          %v6296 = vunpack.c.0.s8 %v6295
          %v6297 = vlaneseq
          %v6298 = vshrl.u32 %v6297, 7
          %v6299 = vsub.s32 %v6296, %v6298
          %v6300 = vrot.slane %v6293, %v6299
          %v6301 = vcombine.low %v6284, %v6292
          %v6303 = vunpack.c.l.s4 1934713408
          %v6304 = vunpack.c.0.s8 %v6303
          %v6305 = vlaneseq
          %v6306 = vshrl.u32 %v6305, 7
          %v6307 = vsub.s32 %v6304, %v6306
          %v6308 = vrot.slane %v6301, %v6307
          %v6309 = vcombine.low %v6300, %v6308
          %v6310 = vcombine.low %v6204, %v6208
          %v6312 = vunpack.c.l.s4 1983009808
          %v6313 = vunpack.c.0.s8 %v6312
          %v6314 = vlaneseq
          %v6315 = vshrl.u32 %v6314, 7
          %v6316 = vsub.s32 %v6313, %v6315
          %v6317 = vrot.slane %v6310, %v6316
          %v6318 = vcombine.low %v6206, %v6210
          %v6320 = vunpack.c.l.s4 1983009808
          %v6321 = vunpack.c.0.s8 %v6320
          %v6322 = vlaneseq
          %v6323 = vshrl.u32 %v6322, 7
          %v6324 = vsub.s32 %v6321, %v6323
          %v6325 = vrot.slane %v6318, %v6324
          %v6326 = vcombine.low %v6317, %v6325
          %v6328 = vunpack.c.l.s4 1934713408
          %v6329 = vunpack.c.0.s8 %v6328
          %v6330 = vlaneseq
          %v6331 = vshrl.u32 %v6330, 7
          %v6332 = vsub.s32 %v6329, %v6331
          %v6333 = vrot.slane %v6326, %v6332
          %v6334 = vcombine.low %v6205, %v6209
          %v6336 = vunpack.c.l.s4 1983009808
          %v6337 = vunpack.c.0.s8 %v6336
          %v6338 = vlaneseq
          %v6339 = vshrl.u32 %v6338, 7
          %v6340 = vsub.s32 %v6337, %v6339
          %v6341 = vrot.slane %v6334, %v6340
          %v6342 = vcombine.low %v6207, %v6211
          %v6344 = vunpack.c.l.s4 1983009808
          %v6345 = vunpack.c.0.s8 %v6344
          %v6346 = vlaneseq
          %v6347 = vshrl.u32 %v6346, 7
          %v6348 = vsub.s32 %v6345, %v6347
          %v6349 = vrot.slane %v6342, %v6348
          %v6350 = vcombine.low %v6341, %v6349
          %v6352 = vunpack.c.l.s4 1934713408
          %v6353 = vunpack.c.0.s8 %v6352
          %v6354 = vlaneseq
          %v6355 = vshrl.u32 %v6354, 7
          %v6356 = vsub.s32 %v6353, %v6355
          %v6357 = vrot.slane %v6350, %v6356
          %v6360 = vpack.i.b16 %v6309, %v6260
          %v6361 = vshrl.u32 %v6260, 16
          %v6362 = vshrl.u32 %v6309, 16
          %v6363 = vpack.i.b16 %v6362, %v6361
          %v6366 = vpack.i.b16 %v6357, %v6333
          %v6367 = vshrl.u32 %v6333, 16
          %v6368 = vshrl.u32 %v6357, 16
          %v6369 = vpack.i.b16 %v6368, %v6367
          %6370 = vrot.lane.b32.xlu0 %v4442, 32
          %v6371 = vpop.permute.xlu0 %6370
          %6372 = vrot.lane.b32.xlu0 %v4441, 32
          %v6373 = vpop.permute.xlu0 %6372
          %6374 = vrot.lane.b32.xlu0 %v4445, 32
          %v6375 = vpop.permute.xlu0 %6374
          %6376 = vrot.lane.b32.xlu0 %v4444, 32
          %v6377 = vpop.permute.xlu0 %6376
          %6382 = vxpose.xlu0.c.b16.start [1/8] %v6371, 128
          %6383 = vxpose.xlu0.c.b16.cont [2/8] %v6373, 128
          %6384 = vxpose.xlu0.c.b16.cont [3/8] 0, 128
          %6385 = vxpose.xlu0.c.b16.cont [4/8] 0, 128
          %6386 = vxpose.xlu0.c.b16.cont [5/8] 0, 128
          %6387 = vxpose.xlu0.c.b16.cont [6/8] 0, 128
          %6388 = vxpose.xlu0.c.b16.cont [7/8] 0, 128
          %6389 = vxpose.xlu0.c.b16.end [8/8] 0, 128
          %v6390 = vpop.trf.xlu0
          %v6391 = vpop.trf.xlu0
          %v6392 = vpop.trf.xlu0
          %v6393 = vpop.trf.xlu0
          %v6394 = vpop.trf.xlu0
          %v6395 = vpop.trf.xlu0
          %v6396 = vpop.trf.xlu0
          %v6397 = vpop.trf.xlu0
          %6398 = vxpose.xlu0.c.b16.start [1/8] %v6375, 128
          %6399 = vxpose.xlu0.c.b16.cont [2/8] %v6377, 128
          %6400 = vxpose.xlu0.c.b16.cont [3/8] 0, 128
          %6401 = vxpose.xlu0.c.b16.cont [4/8] 0, 128
          %6402 = vxpose.xlu0.c.b16.cont [5/8] 0, 128
          %6403 = vxpose.xlu0.c.b16.cont [6/8] 0, 128
          %6404 = vxpose.xlu0.c.b16.cont [7/8] 0, 128
          %6405 = vxpose.xlu0.c.b16.end [8/8] 0, 128
          %v6406 = vpop.trf.xlu0
          %v6407 = vpop.trf.xlu0
          %v6408 = vpop.trf.xlu0
          %v6409 = vpop.trf.xlu0
          %v6410 = vpop.trf.xlu0
          %v6411 = vpop.trf.xlu0
          %v6412 = vpop.trf.xlu0
          %v6413 = vpop.trf.xlu0
          %v6415 = vsel %vm1933, %v6360, 0
          %v6418 = vsel %vm1933, %v6366, 0
          %6420 = vmatprep.subr.bf16.mxu0 0
          %6421 = vmatpush1.bf16.msra.mxu0 %v6390
          %6422 = vmatprep.subr.bf16.mxu0 0
          %6423 = vmatpush1.bf16.msra.mxu0 0
          %6424 = vmatprep.subr.bf16.mxu0 0
          %6425 = vmatpush1.bf16.msra.mxu0 0
          %6426 = vmatprep.subr.bf16.mxu0 0
          %6427 = vmatpush1.bf16.msra.mxu0 0
          %6428 = vmatprep.subr.bf16.mxu0 0
          %6429 = vmatpush1.bf16.msra.mxu0 0
          %6430 = vmatprep.subr.bf16.mxu0 0
          %6431 = vmatpush1.bf16.msra.mxu0 0
          %6432 = vmatprep.subr.bf16.mxu0 0
          %6433 = vmatpush1.bf16.msra.mxu0 0
          %6434 = vmatprep.subr.bf16.mxu0 0
          %6435 = vmatpush1.bf16.msra.mxu0 0
          %6436 = vmatprep.subr.bf16.mxu0 0
          %6437 = vmatpush1.bf16.msra.mxu0 0
          %6438 = vmatprep.subr.bf16.mxu0 0
          %6439 = vmatpush1.bf16.msra.mxu0 0
          %6440 = vmatprep.subr.bf16.mxu0 0
          %6441 = vmatpush1.bf16.msra.mxu0 0
          %6442 = vmatprep.subr.bf16.mxu0 0
          %6443 = vmatpush1.bf16.msra.mxu0 0
          %6444 = vmatprep.subr.bf16.mxu0 0
          %6445 = vmatpush1.bf16.msra.mxu0 0
          %6446 = vmatprep.subr.bf16.mxu0 0
          %6447 = vmatpush1.bf16.msra.mxu0 0
          %6448 = vmatprep.subr.bf16.mxu0 0
          %6449 = vmatpush1.bf16.msra.mxu0 0
          %6450 = vmatprep.subr.bf16.mxu0 0
          %6451 = vmatpush1.bf16.msra.mxu0 0
          %6452 = vmatprep.mubr.bf16.mxu0 0
          %6453 = vmatmul.mubr.bf16.gmra.mrb[0].mxu0 %v6415
          %v6454 = vpop.f32.mrb[0].mxu0
          %v6455 = vadd.f32 0.0, %v6454
          %v6456 = vpop.f32.mrb[0].mxu0
          %v6457 = vpop.f32.mrb[0].mxu0
          %v6458 = vadd.f32 0.0, %v6457
          %v6459 = vpop.f32.mrb[0].mxu0
          %6460 = vmatprep.mubr.bf16.mxu0 0
          %6461 = vmatmul.mubr.bf16.gmra.mrb[0].mxu0 %v6418
          %v6462 = vpop.f32.mrb[0].mxu0
          %v6463 = vadd.f32 0.0, %v6462
          %v6464 = vpop.f32.mrb[0].mxu0
          %v6465 = vpop.f32.mrb[0].mxu0
          %v6466 = vpop.f32.mrb[0].mxu0
          %6467 = vdwg.mxu0
          %v6469 = vsel %vm1933, %v6363, 0
          %v6472 = vsel %vm1933, %v6369, 0
          %6474 = vmatprep.subr.bf16.mxu0 0
          %6475 = vmatpush1.bf16.msra.mxu0 %v6406
          %6476 = vmatprep.subr.bf16.mxu0 0
          %6477 = vmatpush1.bf16.msra.mxu0 0
          %6478 = vmatprep.subr.bf16.mxu0 0
          %6479 = vmatpush1.bf16.msra.mxu0 0
          %6480 = vmatprep.subr.bf16.mxu0 0
          %6481 = vmatpush1.bf16.msra.mxu0 0
          %6482 = vmatprep.subr.bf16.mxu0 0
          %6483 = vmatpush1.bf16.msra.mxu0 0
          %6484 = vmatprep.subr.bf16.mxu0 0
          %6485 = vmatpush1.bf16.msra.mxu0 0
          %6486 = vmatprep.subr.bf16.mxu0 0
          %6487 = vmatpush1.bf16.msra.mxu0 0
          %6488 = vmatprep.subr.bf16.mxu0 0
          %6489 = vmatpush1.bf16.msra.mxu0 0
          %6490 = vmatprep.subr.bf16.mxu0 0
          %6491 = vmatpush1.bf16.msra.mxu0 0
          %6492 = vmatprep.subr.bf16.mxu0 0
          %6493 = vmatpush1.bf16.msra.mxu0 0
          %6494 = vmatprep.subr.bf16.mxu0 0
          %6495 = vmatpush1.bf16.msra.mxu0 0
          %6496 = vmatprep.subr.bf16.mxu0 0
          %6497 = vmatpush1.bf16.msra.mxu0 0
          %6498 = vmatprep.subr.bf16.mxu0 0
          %6499 = vmatpush1.bf16.msra.mxu0 0
          %6500 = vmatprep.subr.bf16.mxu0 0
          %6501 = vmatpush1.bf16.msra.mxu0 0
          %6502 = vmatprep.subr.bf16.mxu0 0
          %6503 = vmatpush1.bf16.msra.mxu0 0
          %6504 = vmatprep.subr.bf16.mxu0 0
          %6505 = vmatpush1.bf16.msra.mxu0 0
          %6506 = vmatprep.mubr.bf16.mxu0 0
          %6507 = vmatmul.mubr.bf16.gmra.mrb[0].mxu0 %v6469
          %v6508 = vpop.f32.mrb[0].mxu0
          %v6509 = vadd.f32 0.0, %v6508
          %v6510 = vpop.f32.mrb[0].mxu0
          %v6511 = vpop.f32.mrb[0].mxu0
          %v6512 = vadd.f32 0.0, %v6511
          %v6513 = vpop.f32.mrb[0].mxu0
          %6514 = vmatprep.mubr.bf16.mxu0 0
          %6515 = vmatmul.mubr.bf16.gmra.mrb[0].mxu0 %v6472
          %v6516 = vpop.f32.mrb[0].mxu0
          %v6517 = vadd.f32 0.0, %v6516
          %v6518 = vpop.f32.mrb[0].mxu0
          %v6519 = vpop.f32.mrb[0].mxu0
          %v6520 = vpop.f32.mrb[0].mxu0
          %6521 = vdwg.mxu0
          %v6522 = vsel %vm2042, %v6455, -inf
          %6523 = vmax.xlane.f32.xlu0 %v6522
          %v6524 = vpop.xlane.xlu0 %6523
          %v6525 = vsel %vm2042, %v6458, -inf
          %6526 = vmax.xlane.f32.xlu0 %v6525
          %v6527 = vpop.xlane.xlu0 %6526
          %v6528 = vsel %vm2042, %v6463, -inf
          %6529 = vmax.xlane.f32.xlu0 %v6528
          %v6530 = vpop.xlane.xlu0 %6529
          %v6531 = vsel %vm2042, %v6509, -inf
          %6532 = vmax.xlane.f32.xlu0 %v6531
          %v6533 = vpop.xlane.xlu0 %6532
          %v6534 = vsel %vm2042, %v6512, -inf
          %6535 = vmax.xlane.f32.xlu0 %v6534
          %v6536 = vpop.xlane.xlu0 %6535
          %v6537 = vsel %vm2042, %v6517, -inf
          %6538 = vmax.xlane.f32.xlu0 %v6537
          %v6539 = vpop.xlane.xlu0 %6538
          %v6540 = vsub.f32 %v6455, %v6524
          %v6541 = vsub.f32 %v6458, %v6527
          %v6542 = vsub.f32 %v6463, %v6530
          %v6543 = vsub.f32 %v6509, %v6533
          %v6544 = vsub.f32 %v6512, %v6536
          %v6545 = vsub.f32 %v6517, %v6539
          %v6546 = vmul.f32 %v6540, 1.442695
          %v6547 = vpow.pop %v6546
          %v6548 = vmul.f32 %v6541, 1.442695
          %v6549 = vpow.pop %v6548
          %v6550 = vmul.f32 %v6542, 1.442695
          %v6551 = vpow.pop %v6550
          %v6552 = vmul.f32 %v6543, 1.442695
          %v6553 = vpow.pop %v6552
          %v6554 = vmul.f32 %v6544, 1.442695
          %v6555 = vpow.pop %v6554
          %v6556 = vmul.f32 %v6545, 1.442695
          %v6557 = vpow.pop %v6556
          %v6558 = vsel %vm2042, %v6547, 0.0
          %6559 = vadd.xlane.f32.xlu0 %v6558
          %v6560 = vpop.xlane.xlu0 %6559
          %v6561 = vsel %vm2042, %v6549, 0.0
          %6562 = vadd.xlane.f32.xlu0 %v6561
          %v6563 = vpop.xlane.xlu0 %6562
          %v6564 = vsel %vm2042, %v6551, 0.0
          %6565 = vadd.xlane.f32.xlu0 %v6564
          %v6566 = vpop.xlane.xlu0 %6565
          %v6567 = vsel %vm2042, %v6553, 0.0
          %6568 = vadd.xlane.f32.xlu0 %v6567
          %v6569 = vpop.xlane.xlu0 %6568
          %v6570 = vsel %vm2042, %v6555, 0.0
          %6571 = vadd.xlane.f32.xlu0 %v6570
          %v6572 = vpop.xlane.xlu0 %6571
          %v6573 = vsel %vm2042, %v6557, 0.0
          %6574 = vadd.xlane.f32.xlu0 %v6573
          %v6575 = vpop.xlane.xlu0 %6574
          %v6576 = vrcp.pop %v6560
          %v6577 = vrcp.pop %v6563
          %v6578 = vrcp.pop %v6566
          %v6579 = vrcp.pop %v6569
          %v6580 = vrcp.pop %v6572
          %v6581 = vrcp.pop %v6575
          %v6582 = vpack.c.bf16 %v6549, %v6547
          %v6583 = vpack.c.bf16 %v6551, %v6551
          %v6584 = vpack.c.bf16 %v6555, %v6553
          %v6585 = vpack.c.bf16 %v6557, %v6557
          %6586 = vrot.lane.b32.xlu0 %v5095, 96
          %v6587 = vpop.permute.xlu0 %6586
          %6588 = vrot.lane.b32.xlu0 %v5094, 96
          %v6589 = vpop.permute.xlu0 %6588
          %6590 = vrot.lane.b32.xlu0 %v5098, 96
          %v6591 = vpop.permute.xlu0 %6590
          %6592 = vrot.lane.b32.xlu0 %v5097, 96
          %v6593 = vpop.permute.xlu0 %6592
          %6598 = vxpose.xlu0.c.b16.start [1/8] %v6587, 128
          %6599 = vxpose.xlu0.c.b16.cont [2/8] %v6589, 128
          %6600 = vxpose.xlu0.c.b16.cont [3/8] 0, 128
          %6601 = vxpose.xlu0.c.b16.cont [4/8] 0, 128
          %6602 = vxpose.xlu0.c.b16.cont [5/8] 0, 128
          %6603 = vxpose.xlu0.c.b16.cont [6/8] 0, 128
          %6604 = vxpose.xlu0.c.b16.cont [7/8] 0, 128
          %6605 = vxpose.xlu0.c.b16.end [8/8] 0, 128
          %v6606 = vpop.trf.xlu0
          %v6607 = vpop.trf.xlu0
          %v6608 = vpop.trf.xlu0
          %v6609 = vpop.trf.xlu0
          %v6610 = vpop.trf.xlu0
          %v6611 = vpop.trf.xlu0
          %v6612 = vpop.trf.xlu0
          %v6613 = vpop.trf.xlu0
          %6614 = vxpose.xlu0.c.b16.start [1/8] %v6591, 128
          %6615 = vxpose.xlu0.c.b16.cont [2/8] %v6593, 128
          %6616 = vxpose.xlu0.c.b16.cont [3/8] 0, 128
          %6617 = vxpose.xlu0.c.b16.cont [4/8] 0, 128
          %6618 = vxpose.xlu0.c.b16.cont [5/8] 0, 128
          %6619 = vxpose.xlu0.c.b16.cont [6/8] 0, 128
          %6620 = vxpose.xlu0.c.b16.cont [7/8] 0, 128
          %6621 = vxpose.xlu0.c.b16.end [8/8] 0, 128
          %v6622 = vpop.trf.xlu0
          %v6623 = vpop.trf.xlu0
          %v6624 = vpop.trf.xlu0
          %v6625 = vpop.trf.xlu0
          %v6626 = vpop.trf.xlu0
          %v6627 = vpop.trf.xlu0
          %v6628 = vpop.trf.xlu0
          %v6629 = vpop.trf.xlu0
          %v6631 = vsel %vm2042, %v6606, 0
          %v6634 = vsel %vm2042, %v6582, 0
          %v6637 = vsel %vm2042, %v6583, 0
          %6639 = vmatprep.subr.bf16.mxu0 0
          %6640 = vmatpush1.bf16.xpose.msra.mxu0 %v6634
          %6641 = vmatprep.subr.bf16.mxu0 0
          %6642 = vmatpush1.bf16.xpose.msra.mxu0 %v6637
          %6643 = vmatprep.subr.bf16.mxu0 0
          %6644 = vmatpush1.bf16.xpose.msra.mxu0 0
          %6645 = vmatprep.subr.bf16.mxu0 0
          %6646 = vmatpush1.bf16.xpose.msra.mxu0 0
          %6647 = vmatprep.subr.bf16.mxu0 0
          %6648 = vmatpush1.bf16.xpose.msra.mxu0 0
          %6649 = vmatprep.subr.bf16.mxu0 0
          %6650 = vmatpush1.bf16.xpose.msra.mxu0 0
          %6651 = vmatprep.subr.bf16.mxu0 0
          %6652 = vmatpush1.bf16.xpose.msra.mxu0 0
          %6653 = vmatprep.subr.bf16.mxu0 0
          %6654 = vmatpush1.bf16.xpose.msra.mxu0 0
          %6655 = vmatprep.subr.bf16.mxu0 0
          %6656 = vmatpush1.bf16.xpose.msra.mxu0 0
          %6657 = vmatprep.subr.bf16.mxu0 0
          %6658 = vmatpush1.bf16.xpose.msra.mxu0 0
          %6659 = vmatprep.subr.bf16.mxu0 0
          %6660 = vmatpush1.bf16.xpose.msra.mxu0 0
          %6661 = vmatprep.subr.bf16.mxu0 0
          %6662 = vmatpush1.bf16.xpose.msra.mxu0 0
          %6663 = vmatprep.subr.bf16.mxu0 0
          %6664 = vmatpush1.bf16.xpose.msra.mxu0 0
          %6665 = vmatprep.subr.bf16.mxu0 0
          %6666 = vmatpush1.bf16.xpose.msra.mxu0 0
          %6667 = vmatprep.subr.bf16.mxu0 0
          %6668 = vmatpush1.bf16.xpose.msra.mxu0 0
          %6669 = vmatprep.subr.bf16.mxu0 0
          %6670 = vmatpush1.bf16.xpose.msra.mxu0 0
          %6671 = vmatprep.mubr.bf16.mxu0 0
          %6672 = vmatmul.mubr.bf16.gmra.mrb[0].mxu0 %v6631
          %v6673 = vpop.f32.mrb[0].mxu0
          %v6674 = vadd.f32 0.0, %v6673
          %v6675 = vpop.f32.mrb[0].mxu0
          %v6676 = vpop.f32.mrb[0].mxu0
          %v6677 = vadd.f32 0.0, %v6676
          %v6678 = vpop.f32.mrb[0].mxu0
          %6679 = vdwg.mxu0
          %v6681 = vsel %vm2042, %v6622, 0
          %v6684 = vsel %vm2042, %v6584, 0
          %v6687 = vsel %vm2042, %v6585, 0
          %6689 = vmatprep.subr.bf16.mxu0 0
          %6690 = vmatpush1.bf16.xpose.msra.mxu0 %v6684
          %6691 = vmatprep.subr.bf16.mxu0 0
          %6692 = vmatpush1.bf16.xpose.msra.mxu0 %v6687
          %6693 = vmatprep.subr.bf16.mxu0 0
          %6694 = vmatpush1.bf16.xpose.msra.mxu0 0
          %6695 = vmatprep.subr.bf16.mxu0 0
          %6696 = vmatpush1.bf16.xpose.msra.mxu0 0
          %6697 = vmatprep.subr.bf16.mxu0 0
          %6698 = vmatpush1.bf16.xpose.msra.mxu0 0
          %6699 = vmatprep.subr.bf16.mxu0 0
          %6700 = vmatpush1.bf16.xpose.msra.mxu0 0
          %6701 = vmatprep.subr.bf16.mxu0 0
          %6702 = vmatpush1.bf16.xpose.msra.mxu0 0
          %6703 = vmatprep.subr.bf16.mxu0 0
          %6704 = vmatpush1.bf16.xpose.msra.mxu0 0
          %6705 = vmatprep.subr.bf16.mxu0 0
          %6706 = vmatpush1.bf16.xpose.msra.mxu0 0
          %6707 = vmatprep.subr.bf16.mxu0 0
          %6708 = vmatpush1.bf16.xpose.msra.mxu0 0
          %6709 = vmatprep.subr.bf16.mxu0 0
          %6710 = vmatpush1.bf16.xpose.msra.mxu0 0
          %6711 = vmatprep.subr.bf16.mxu0 0
          %6712 = vmatpush1.bf16.xpose.msra.mxu0 0
          %6713 = vmatprep.subr.bf16.mxu0 0
          %6714 = vmatpush1.bf16.xpose.msra.mxu0 0
          %6715 = vmatprep.subr.bf16.mxu0 0
          %6716 = vmatpush1.bf16.xpose.msra.mxu0 0
          %6717 = vmatprep.subr.bf16.mxu0 0
          %6718 = vmatpush1.bf16.xpose.msra.mxu0 0
          %6719 = vmatprep.subr.bf16.mxu0 0
          %6720 = vmatpush1.bf16.xpose.msra.mxu0 0
          %6721 = vmatprep.mubr.bf16.mxu0 0
          %6722 = vmatmul.mubr.bf16.gmra.mrb[0].mxu0 %v6681
          %v6723 = vpop.f32.mrb[0].mxu0
          %v6724 = vadd.f32 0.0, %v6723
          %v6725 = vpop.f32.mrb[0].mxu0
          %v6726 = vpop.f32.mrb[0].mxu0
          %v6727 = vadd.f32 0.0, %v6726
          %v6728 = vpop.f32.mrb[0].mxu0
          %6729 = vdwg.mxu0
          %6730 = vxpose.xlu0.b32.start [1/16] %v6674, 128
          %6731 = vxpose.xlu0.b32.cont [2/16] %v6677, 128
          %6732 = vxpose.xlu0.b32.cont [3/16] 0.0, 128
          %6733 = vxpose.xlu0.b32.cont [4/16] 0.0, 128
          %6734 = vxpose.xlu0.b32.cont [5/16] 0.0, 128
          %6735 = vxpose.xlu0.b32.cont [6/16] 0.0, 128
          %6736 = vxpose.xlu0.b32.cont [7/16] 0.0, 128
          %6737 = vxpose.xlu0.b32.cont [8/16] 0.0, 128
          %6738 = vxpose.xlu0.b32.cont [9/16] 0.0, 128
          %6739 = vxpose.xlu0.b32.cont [10/16] 0.0, 128
          %6740 = vxpose.xlu0.b32.cont [11/16] 0.0, 128
          %6741 = vxpose.xlu0.b32.cont [12/16] 0.0, 128
          %6742 = vxpose.xlu0.b32.cont [13/16] 0.0, 128
          %6743 = vxpose.xlu0.b32.cont [14/16] 0.0, 128
          %6744 = vxpose.xlu0.b32.cont [15/16] 0.0, 128
          %6745 = vxpose.xlu0.b32.end [16/16] 0.0, 128
          %v6746 = vpop.trf.xlu0
          %v6747 = vpop.trf.xlu0
          %v6748 = vpop.trf.xlu0
          %v6749 = vpop.trf.xlu0
          %v6750 = vpop.trf.xlu0
          %v6751 = vpop.trf.xlu0
          %v6752 = vpop.trf.xlu0
          %v6753 = vpop.trf.xlu0
          %v6754 = vpop.trf.xlu0
          %v6755 = vpop.trf.xlu0
          %v6756 = vpop.trf.xlu0
          %v6757 = vpop.trf.xlu0
          %v6758 = vpop.trf.xlu0
          %v6759 = vpop.trf.xlu0
          %v6760 = vpop.trf.xlu0
          %v6761 = vpop.trf.xlu0
          %6762 = vxpose.xlu0.b32.start [1/16] %v6724, 128
          %6763 = vxpose.xlu0.b32.cont [2/16] %v6727, 128
          %6764 = vxpose.xlu0.b32.cont [3/16] 0.0, 128
          %6765 = vxpose.xlu0.b32.cont [4/16] 0.0, 128
          %6766 = vxpose.xlu0.b32.cont [5/16] 0.0, 128
          %6767 = vxpose.xlu0.b32.cont [6/16] 0.0, 128
          %6768 = vxpose.xlu0.b32.cont [7/16] 0.0, 128
          %6769 = vxpose.xlu0.b32.cont [8/16] 0.0, 128
          %6770 = vxpose.xlu0.b32.cont [9/16] 0.0, 128
          %6771 = vxpose.xlu0.b32.cont [10/16] 0.0, 128
          %6772 = vxpose.xlu0.b32.cont [11/16] 0.0, 128
          %6773 = vxpose.xlu0.b32.cont [12/16] 0.0, 128
          %6774 = vxpose.xlu0.b32.cont [13/16] 0.0, 128
          %6775 = vxpose.xlu0.b32.cont [14/16] 0.0, 128
          %6776 = vxpose.xlu0.b32.cont [15/16] 0.0, 128
          %6777 = vxpose.xlu0.b32.end [16/16] 0.0, 128
          %v6778 = vpop.trf.xlu0
          %v6779 = vpop.trf.xlu0
          %v6780 = vpop.trf.xlu0
          %v6781 = vpop.trf.xlu0
          %v6782 = vpop.trf.xlu0
          %v6783 = vpop.trf.xlu0
          %v6784 = vpop.trf.xlu0
          %v6785 = vpop.trf.xlu0
          %v6786 = vpop.trf.xlu0
          %v6787 = vpop.trf.xlu0
          %v6788 = vpop.trf.xlu0
          %v6789 = vpop.trf.xlu0
          %v6790 = vpop.trf.xlu0
          %v6791 = vpop.trf.xlu0
          %v6792 = vpop.trf.xlu0
          %v6793 = vpop.trf.xlu0
          %v6794 = vcombine.high %v6746, 0.0
          %v6796 = vunpack.c.l.s4 1983009808
          %v6797 = vunpack.c.0.s8 %v6796
          %v6798 = vlaneseq
          %v6799 = vshrl.u32 %v6798, 7
          %v6800 = vsub.s32 %v6797, %v6799
          %v6801 = vrot.slane %v6746, %v6800
          %v6803 = vunpack.c.l.s4 1983009808
          %v6804 = vunpack.c.0.s8 %v6803
          %v6805 = vlaneseq
          %v6806 = vshrl.u32 %v6805, 7
          %v6807 = vsub.s32 %v6804, %v6806
          %v6808 = vrot.slane %v6794, %v6807
          %v6809 = vcombine.high %v6778, 0.0
          %v6811 = vunpack.c.l.s4 1983009808
          %v6812 = vunpack.c.0.s8 %v6811
          %v6813 = vlaneseq
          %v6814 = vshrl.u32 %v6813, 7
          %v6815 = vsub.s32 %v6812, %v6814
          %v6816 = vrot.slane %v6778, %v6815
          %v6818 = vunpack.c.l.s4 1983009808
          %v6819 = vunpack.c.0.s8 %v6818
          %v6820 = vlaneseq
          %v6821 = vshrl.u32 %v6820, 7
          %v6822 = vsub.s32 %v6819, %v6821
          %v6823 = vrot.slane %v6809, %v6822
          %v6824 = vcombine.low %v6801, %v6816
          %v6825 = vcombine.high %v6801, %v6816
          %v6827 = vunpack.c.l.s4 1934713408
          %v6828 = vunpack.c.0.s8 %v6827
          %v6829 = vlaneseq
          %v6830 = vshrl.u32 %v6829, 7
          %v6831 = vsub.s32 %v6828, %v6830
          %v6832 = vrot.slane %v6824, %v6831
          %v6834 = vunpack.c.l.s4 1934713408
          %v6835 = vunpack.c.0.s8 %v6834
          %v6836 = vlaneseq
          %v6837 = vshrl.u32 %v6836, 7
          %v6838 = vsub.s32 %v6835, %v6837
          %v6839 = vrot.slane %v6825, %v6838
          %v6840 = vcombine.low %v6808, %v6823
          %v6841 = vcombine.high %v6808, %v6823
          %v6843 = vunpack.c.l.s4 1934713408
          %v6844 = vunpack.c.0.s8 %v6843
          %v6845 = vlaneseq
          %v6846 = vshrl.u32 %v6845, 7
          %v6847 = vsub.s32 %v6844, %v6846
          %v6848 = vrot.slane %v6840, %v6847
          %v6850 = vunpack.c.l.s4 1934713408
          %v6851 = vunpack.c.0.s8 %v6850
          %v6852 = vlaneseq
          %v6853 = vshrl.u32 %v6852, 7
          %v6854 = vsub.s32 %v6851, %v6853
          %v6855 = vrot.slane %v6841, %v6854
          %v6856 = vcombine.high %v6832, 0.0
          %v6857 = vcombine.high %v6839, 0.0
          %v6858 = vcombine.high %v6848, 0.0
          %v6859 = vcombine.high %v6855, 0.0
          %v6860 = vcombine.high %v6747, 0.0
          %v6862 = vunpack.c.l.s4 1983009808
          %v6863 = vunpack.c.0.s8 %v6862
          %v6864 = vlaneseq
          %v6865 = vshrl.u32 %v6864, 7
          %v6866 = vsub.s32 %v6863, %v6865
          %v6867 = vrot.slane %v6747, %v6866
          %v6869 = vunpack.c.l.s4 1983009808
          %v6870 = vunpack.c.0.s8 %v6869
          %v6871 = vlaneseq
          %v6872 = vshrl.u32 %v6871, 7
          %v6873 = vsub.s32 %v6870, %v6872
          %v6874 = vrot.slane %v6860, %v6873
          %v6875 = vcombine.high %v6779, 0.0
          %v6877 = vunpack.c.l.s4 1983009808
          %v6878 = vunpack.c.0.s8 %v6877
          %v6879 = vlaneseq
          %v6880 = vshrl.u32 %v6879, 7
          %v6881 = vsub.s32 %v6878, %v6880
          %v6882 = vrot.slane %v6779, %v6881
          %v6884 = vunpack.c.l.s4 1983009808
          %v6885 = vunpack.c.0.s8 %v6884
          %v6886 = vlaneseq
          %v6887 = vshrl.u32 %v6886, 7
          %v6888 = vsub.s32 %v6885, %v6887
          %v6889 = vrot.slane %v6875, %v6888
          %v6890 = vcombine.low %v6867, %v6882
          %v6891 = vcombine.high %v6867, %v6882
          %v6893 = vunpack.c.l.s4 1934713408
          %v6894 = vunpack.c.0.s8 %v6893
          %v6895 = vlaneseq
          %v6896 = vshrl.u32 %v6895, 7
          %v6897 = vsub.s32 %v6894, %v6896
          %v6898 = vrot.slane %v6890, %v6897
          %v6900 = vunpack.c.l.s4 1934713408
          %v6901 = vunpack.c.0.s8 %v6900
          %v6902 = vlaneseq
          %v6903 = vshrl.u32 %v6902, 7
          %v6904 = vsub.s32 %v6901, %v6903
          %v6905 = vrot.slane %v6891, %v6904
          %v6906 = vcombine.low %v6874, %v6889
          %v6907 = vcombine.high %v6874, %v6889
          %v6909 = vunpack.c.l.s4 1934713408
          %v6910 = vunpack.c.0.s8 %v6909
          %v6911 = vlaneseq
          %v6912 = vshrl.u32 %v6911, 7
          %v6913 = vsub.s32 %v6910, %v6912
          %v6914 = vrot.slane %v6906, %v6913
          %v6916 = vunpack.c.l.s4 1934713408
          %v6917 = vunpack.c.0.s8 %v6916
          %v6918 = vlaneseq
          %v6919 = vshrl.u32 %v6918, 7
          %v6920 = vsub.s32 %v6917, %v6919
          %v6921 = vrot.slane %v6907, %v6920
          %v6922 = vcombine.high %v6898, 0.0
          %v6923 = vcombine.high %v6905, 0.0
          %v6924 = vcombine.high %v6914, 0.0
          %v6925 = vcombine.high %v6921, 0.0
          %v6926 = vcombine.high %v6748, 0.0
          %v6928 = vunpack.c.l.s4 1983009808
          %v6929 = vunpack.c.0.s8 %v6928
          %v6930 = vlaneseq
          %v6931 = vshrl.u32 %v6930, 7
          %v6932 = vsub.s32 %v6929, %v6931
          %v6933 = vrot.slane %v6748, %v6932
          %v6935 = vunpack.c.l.s4 1983009808
          %v6936 = vunpack.c.0.s8 %v6935
          %v6937 = vlaneseq
          %v6938 = vshrl.u32 %v6937, 7
          %v6939 = vsub.s32 %v6936, %v6938
          %v6940 = vrot.slane %v6926, %v6939
          %v6941 = vcombine.high %v6780, 0.0
          %v6943 = vunpack.c.l.s4 1983009808
          %v6944 = vunpack.c.0.s8 %v6943
          %v6945 = vlaneseq
          %v6946 = vshrl.u32 %v6945, 7
          %v6947 = vsub.s32 %v6944, %v6946
          %v6948 = vrot.slane %v6780, %v6947
          %v6950 = vunpack.c.l.s4 1983009808
          %v6951 = vunpack.c.0.s8 %v6950
          %v6952 = vlaneseq
          %v6953 = vshrl.u32 %v6952, 7
          %v6954 = vsub.s32 %v6951, %v6953
          %v6955 = vrot.slane %v6941, %v6954
          %v6956 = vcombine.low %v6933, %v6948
          %v6957 = vcombine.high %v6933, %v6948
          %v6959 = vunpack.c.l.s4 1934713408
          %v6960 = vunpack.c.0.s8 %v6959
          %v6961 = vlaneseq
          %v6962 = vshrl.u32 %v6961, 7
          %v6963 = vsub.s32 %v6960, %v6962
          %v6964 = vrot.slane %v6956, %v6963
          %v6966 = vunpack.c.l.s4 1934713408
          %v6967 = vunpack.c.0.s8 %v6966
          %v6968 = vlaneseq
          %v6969 = vshrl.u32 %v6968, 7
          %v6970 = vsub.s32 %v6967, %v6969
          %v6971 = vrot.slane %v6957, %v6970
          %v6972 = vcombine.low %v6940, %v6955
          %v6973 = vcombine.high %v6940, %v6955
          %v6975 = vunpack.c.l.s4 1934713408
          %v6976 = vunpack.c.0.s8 %v6975
          %v6977 = vlaneseq
          %v6978 = vshrl.u32 %v6977, 7
          %v6979 = vsub.s32 %v6976, %v6978
          %v6980 = vrot.slane %v6972, %v6979
          %v6982 = vunpack.c.l.s4 1934713408
          %v6983 = vunpack.c.0.s8 %v6982
          %v6984 = vlaneseq
          %v6985 = vshrl.u32 %v6984, 7
          %v6986 = vsub.s32 %v6983, %v6985
          %v6987 = vrot.slane %v6973, %v6986
          %v6988 = vcombine.high %v6964, 0.0
          %v6989 = vcombine.high %v6971, 0.0
          %v6990 = vcombine.high %v6980, 0.0
          %v6991 = vcombine.high %v6987, 0.0
          %v6998 = vlaneseq
          %v6999 = vshrl.u32 %v6998, 7
          %v7000 = vsub.s32 %v2508, %v6999
          %v7001 = vrot.slane %v6576, %v7000
          %v7002 = vlaneseq
          %v7003 = vshrl.u32 %v7002, 7
          %v7004 = vsub.s32 %v2513, %v7003
          %v7005 = vrot.slane %v6577, %v7004
          %v7006 = vsel %vm2518, %v7005, %v7001
          %v7007 = vlaneseq
          %v7008 = vshrl.u32 %v7007, 7
          %v7009 = vsub.s32 %v2520, %v7008
          %v7010 = vrot.slane %v6578, %v7009
          %v7011 = vsel %vm2525, %v7010, %v7006
          %v7012 = vlaneseq
          %v7013 = vshrl.u32 %v7012, 7
          %v7014 = vsub.s32 %v2508, %v7013
          %v7015 = vrot.slane %v6579, %v7014
          %v7016 = vlaneseq
          %v7017 = vshrl.u32 %v7016, 7
          %v7018 = vsub.s32 %v2513, %v7017
          %v7019 = vrot.slane %v6580, %v7018
          %v7020 = vsel %vm2518, %v7019, %v7015
          %v7021 = vlaneseq
          %v7022 = vshrl.u32 %v7021, 7
          %v7023 = vsub.s32 %v2520, %v7022
          %v7024 = vrot.slane %v6581, %v7023
          %v7025 = vsel %vm2525, %v7024, %v7020
          %v7026 = vsel %vm2541, %v7025, %v7011
          %7028 = vxpose.xlu0.b32.start [1/16] %v7026, 128
          %7029 = vxpose.xlu0.b32.cont [2/16] 0.0, 128
          %7030 = vxpose.xlu0.b32.cont [3/16] 0.0, 128
          %7031 = vxpose.xlu0.b32.cont [4/16] 0.0, 128
          %7032 = vxpose.xlu0.b32.cont [5/16] 0.0, 128
          %7033 = vxpose.xlu0.b32.cont [6/16] 0.0, 128
          %7034 = vxpose.xlu0.b32.cont [7/16] 0.0, 128
          %7035 = vxpose.xlu0.b32.cont [8/16] 0.0, 128
          %7036 = vxpose.xlu0.b32.cont [9/16] 0.0, 128
          %7037 = vxpose.xlu0.b32.cont [10/16] 0.0, 128
          %7038 = vxpose.xlu0.b32.cont [11/16] 0.0, 128
          %7039 = vxpose.xlu0.b32.cont [12/16] 0.0, 128
          %7040 = vxpose.xlu0.b32.cont [13/16] 0.0, 128
          %7041 = vxpose.xlu0.b32.cont [14/16] 0.0, 128
          %7042 = vxpose.xlu0.b32.cont [15/16] 0.0, 128
          %7043 = vxpose.xlu0.b32.end [16/16] 0.0, 128
          %v7044 = vpop.trf.xlu0
          %v7045 = vpop.trf.xlu0
          %v7046 = vpop.trf.xlu0
          %v7047 = vpop.trf.xlu0
          %v7048 = vpop.trf.xlu0
          %v7049 = vpop.trf.xlu0
          %v7050 = vpop.trf.xlu0
          %v7051 = vpop.trf.xlu0
          %v7052 = vpop.trf.xlu0
          %v7053 = vpop.trf.xlu0
          %v7054 = vpop.trf.xlu0
          %v7055 = vpop.trf.xlu0
          %v7056 = vpop.trf.xlu0
          %v7057 = vpop.trf.xlu0
          %v7058 = vpop.trf.xlu0
          %v7059 = vpop.trf.xlu0
          %v7060 = vlaneseq
          %v7061 = vshrl.u32 %v7060, 7
          %v7062 = vsub.s32 0, %v7061
          %v7063 = vrot.slane %v7044, %v7062
          %7065 = vbcast.lane.b32.xlu0 %v7063, 256
          %v7066 = vpop.permute.xlu0 %7065
          %v7067 = vlaneseq
          %v7068 = vshrl.u32 %v7067, 7
          %v7069 = vsub.s32 1, %v7068
          %v7070 = vrot.slane %v7044, %v7069
          %7072 = vbcast.lane.b32.xlu0 %v7070, 256
          %v7073 = vpop.permute.xlu0 %7072
          %v7074 = vlaneseq
          %v7075 = vshrl.u32 %v7074, 7
          %v7076 = vsub.s32 2, %v7075
          %v7077 = vrot.slane %v7044, %v7076
          %7079 = vbcast.lane.b32.xlu0 %v7077, 256
          %v7080 = vpop.permute.xlu0 %7079
          %v7081 = vlaneseq
          %v7082 = vshrl.u32 %v7081, 7
          %v7083 = vsub.s32 3, %v7082
          %v7084 = vrot.slane %v7044, %v7083
          %7086 = vbcast.lane.b32.xlu0 %v7084, 256
          %v7087 = vpop.permute.xlu0 %7086
          %v7088 = vlaneseq
          %v7089 = vshrl.u32 %v7088, 7
          %v7090 = vsub.s32 4, %v7089
          %v7091 = vrot.slane %v7044, %v7090
          %7093 = vbcast.lane.b32.xlu0 %v7091, 256
          %v7094 = vpop.permute.xlu0 %7093
          %v7095 = vlaneseq
          %v7096 = vshrl.u32 %v7095, 7
          %v7097 = vsub.s32 5, %v7096
          %v7098 = vrot.slane %v7044, %v7097
          %7100 = vbcast.lane.b32.xlu0 %v7098, 256
          %v7101 = vpop.permute.xlu0 %7100
          %v7102 = vlaneseq
          %v7103 = vshrl.u32 %v7102, 7
          %v7104 = vsub.s32 6, %v7103
          %v7105 = vrot.slane %v7044, %v7104
          %7107 = vbcast.lane.b32.xlu0 %v7105, 256
          %v7108 = vpop.permute.xlu0 %7107
          %v7109 = vlaneseq
          %v7110 = vshrl.u32 %v7109, 7
          %v7111 = vsub.s32 7, %v7110
          %v7112 = vrot.slane %v7044, %v7111
          %7114 = vbcast.lane.b32.xlu0 %v7112, 256
          %v7115 = vpop.permute.xlu0 %7114
          %v7116 = vlaneseq
          %v7117 = vshrl.u32 %v7116, 7
          %v7118 = vsub.s32 0, %v7117
          %v7119 = vrot.slane %v7045, %v7118
          %7121 = vbcast.lane.b32.xlu0 %v7119, 256
          %v7122 = vpop.permute.xlu0 %7121
          %v7123 = vlaneseq
          %v7124 = vshrl.u32 %v7123, 7
          %v7125 = vsub.s32 1, %v7124
          %v7126 = vrot.slane %v7045, %v7125
          %7128 = vbcast.lane.b32.xlu0 %v7126, 256
          %v7129 = vpop.permute.xlu0 %7128
          %v7130 = vlaneseq
          %v7131 = vshrl.u32 %v7130, 7
          %v7132 = vsub.s32 2, %v7131
          %v7133 = vrot.slane %v7045, %v7132
          %7135 = vbcast.lane.b32.xlu0 %v7133, 256
          %v7136 = vpop.permute.xlu0 %7135
          %v7137 = vlaneseq
          %v7138 = vshrl.u32 %v7137, 7
          %v7139 = vsub.s32 3, %v7138
          %v7140 = vrot.slane %v7045, %v7139
          %7142 = vbcast.lane.b32.xlu0 %v7140, 256
          %v7143 = vpop.permute.xlu0 %7142
          %v7144 = vlaneseq
          %v7145 = vshrl.u32 %v7144, 7
          %v7146 = vsub.s32 4, %v7145
          %v7147 = vrot.slane %v7045, %v7146
          %7149 = vbcast.lane.b32.xlu0 %v7147, 256
          %v7150 = vpop.permute.xlu0 %7149
          %v7151 = vlaneseq
          %v7152 = vshrl.u32 %v7151, 7
          %v7153 = vsub.s32 5, %v7152
          %v7154 = vrot.slane %v7045, %v7153
          %7156 = vbcast.lane.b32.xlu0 %v7154, 256
          %v7157 = vpop.permute.xlu0 %7156
          %v7158 = vlaneseq
          %v7159 = vshrl.u32 %v7158, 7
          %v7160 = vsub.s32 6, %v7159
          %v7161 = vrot.slane %v7045, %v7160
          %7163 = vbcast.lane.b32.xlu0 %v7161, 256
          %v7164 = vpop.permute.xlu0 %7163
          %v7165 = vlaneseq
          %v7166 = vshrl.u32 %v7165, 7
          %v7167 = vsub.s32 7, %v7166
          %v7168 = vrot.slane %v7045, %v7167
          %7170 = vbcast.lane.b32.xlu0 %v7168, 256
          %v7171 = vpop.permute.xlu0 %7170
          %v7172 = vlaneseq
          %v7173 = vshrl.u32 %v7172, 7
          %v7174 = vsub.s32 0, %v7173
          %v7175 = vrot.slane %v7046, %v7174
          %7177 = vbcast.lane.b32.xlu0 %v7175, 256
          %v7178 = vpop.permute.xlu0 %7177
          %v7179 = vlaneseq
          %v7180 = vshrl.u32 %v7179, 7
          %v7181 = vsub.s32 1, %v7180
          %v7182 = vrot.slane %v7046, %v7181
          %7184 = vbcast.lane.b32.xlu0 %v7182, 256
          %v7185 = vpop.permute.xlu0 %7184
          %v7186 = vlaneseq
          %v7187 = vshrl.u32 %v7186, 7
          %v7188 = vsub.s32 2, %v7187
          %v7189 = vrot.slane %v7046, %v7188
          %7191 = vbcast.lane.b32.xlu0 %v7189, 256
          %v7192 = vpop.permute.xlu0 %7191
          %v7193 = vlaneseq
          %v7194 = vshrl.u32 %v7193, 7
          %v7195 = vsub.s32 3, %v7194
          %v7196 = vrot.slane %v7046, %v7195
          %7198 = vbcast.lane.b32.xlu0 %v7196, 256
          %v7199 = vpop.permute.xlu0 %7198
          %v7200 = vlaneseq
          %v7201 = vshrl.u32 %v7200, 7
          %v7202 = vsub.s32 4, %v7201
          %v7203 = vrot.slane %v7046, %v7202
          %7205 = vbcast.lane.b32.xlu0 %v7203, 256
          %v7206 = vpop.permute.xlu0 %7205
          %v7207 = vlaneseq
          %v7208 = vshrl.u32 %v7207, 7
          %v7209 = vsub.s32 5, %v7208
          %v7210 = vrot.slane %v7046, %v7209
          %7212 = vbcast.lane.b32.xlu0 %v7210, 256
          %v7213 = vpop.permute.xlu0 %7212
          %v7214 = vlaneseq
          %v7215 = vshrl.u32 %v7214, 7
          %v7216 = vsub.s32 6, %v7215
          %v7217 = vrot.slane %v7046, %v7216
          %7219 = vbcast.lane.b32.xlu0 %v7217, 256
          %v7220 = vpop.permute.xlu0 %7219
          %v7221 = vlaneseq
          %v7222 = vshrl.u32 %v7221, 7
          %v7223 = vsub.s32 7, %v7222
          %v7224 = vrot.slane %v7046, %v7223
          %7226 = vbcast.lane.b32.xlu0 %v7224, 256
          %v7227 = vpop.permute.xlu0 %7226
          %v7228 = vmul.f32 %v6832, %v7066
          %v7229 = vmul.f32 %v6856, %v7073
          %v7230 = vmul.f32 %v6839, %v7080
          %v7231 = vmul.f32 %v6857, %v7087
          %v7232 = vmul.f32 %v6848, %v7094
          %v7233 = vmul.f32 %v6858, %v7101
          %v7234 = vmul.f32 %v6855, %v7108
          %v7235 = vmul.f32 %v6859, %v7115
          %v7236 = vmul.f32 %v6898, %v7122
          %v7237 = vmul.f32 %v6922, %v7129
          %v7238 = vmul.f32 %v6905, %v7136
          %v7239 = vmul.f32 %v6923, %v7143
          %v7240 = vmul.f32 %v6914, %v7150
          %v7241 = vmul.f32 %v6924, %v7157
          %v7242 = vmul.f32 %v6921, %v7164
          %v7243 = vmul.f32 %v6925, %v7171
          %v7244 = vmul.f32 %v6964, %v7178
          %v7245 = vmul.f32 %v6988, %v7185
          %v7246 = vmul.f32 %v6971, %v7192
          %v7247 = vmul.f32 %v6989, %v7199
          %v7248 = vmul.f32 %v6980, %v7206
          %v7249 = vmul.f32 %v6990, %v7213
          %v7250 = vmul.f32 %v6987, %v7220
          %v7251 = vmul.f32 %v6991, %v7227
          %v7252 = vcombine.low %v7228, %v7230
          %v7254 = vunpack.c.l.s4 1983009808
          %v7255 = vunpack.c.0.s8 %v7254
          %v7256 = vlaneseq
          %v7257 = vshrl.u32 %v7256, 7
          %v7258 = vsub.s32 %v7255, %v7257
          %v7259 = vrot.slane %v7252, %v7258
          %v7260 = vcombine.low %v7229, %v7231
          %v7262 = vunpack.c.l.s4 1983009808
          %v7263 = vunpack.c.0.s8 %v7262
          %v7264 = vlaneseq
          %v7265 = vshrl.u32 %v7264, 7
          %v7266 = vsub.s32 %v7263, %v7265
          %v7267 = vrot.slane %v7260, %v7266
          %v7268 = vcombine.low %v7232, %v7234
          %v7270 = vunpack.c.l.s4 1983009808
          %v7271 = vunpack.c.0.s8 %v7270
          %v7272 = vlaneseq
          %v7273 = vshrl.u32 %v7272, 7
          %v7274 = vsub.s32 %v7271, %v7273
          %v7275 = vrot.slane %v7268, %v7274
          %v7276 = vcombine.low %v7233, %v7235
          %v7278 = vunpack.c.l.s4 1983009808
          %v7279 = vunpack.c.0.s8 %v7278
          %v7280 = vlaneseq
          %v7281 = vshrl.u32 %v7280, 7
          %v7282 = vsub.s32 %v7279, %v7281
          %v7283 = vrot.slane %v7276, %v7282
          %v7284 = vcombine.low %v7259, %v7267
          %v7286 = vunpack.c.l.s4 1934713408
          %v7287 = vunpack.c.0.s8 %v7286
          %v7288 = vlaneseq
          %v7289 = vshrl.u32 %v7288, 7
          %v7290 = vsub.s32 %v7287, %v7289
          %v7291 = vrot.slane %v7284, %v7290
          %v7292 = vcombine.low %v7275, %v7283
          %v7294 = vunpack.c.l.s4 1934713408
          %v7295 = vunpack.c.0.s8 %v7294
          %v7296 = vlaneseq
          %v7297 = vshrl.u32 %v7296, 7
          %v7298 = vsub.s32 %v7295, %v7297
          %v7299 = vrot.slane %v7292, %v7298
          %v7300 = vcombine.low %v7291, %v7299
          %v7301 = vcombine.high %v7291, %v7299
          %v7302 = vcombine.low %v7236, %v7238
          %v7304 = vunpack.c.l.s4 1983009808
          %v7305 = vunpack.c.0.s8 %v7304
          %v7306 = vlaneseq
          %v7307 = vshrl.u32 %v7306, 7
          %v7308 = vsub.s32 %v7305, %v7307
          %v7309 = vrot.slane %v7302, %v7308
          %v7310 = vcombine.low %v7237, %v7239
          %v7312 = vunpack.c.l.s4 1983009808
          %v7313 = vunpack.c.0.s8 %v7312
          %v7314 = vlaneseq
          %v7315 = vshrl.u32 %v7314, 7
          %v7316 = vsub.s32 %v7313, %v7315
          %v7317 = vrot.slane %v7310, %v7316
          %v7318 = vcombine.low %v7240, %v7242
          %v7320 = vunpack.c.l.s4 1983009808
          %v7321 = vunpack.c.0.s8 %v7320
          %v7322 = vlaneseq
          %v7323 = vshrl.u32 %v7322, 7
          %v7324 = vsub.s32 %v7321, %v7323
          %v7325 = vrot.slane %v7318, %v7324
          %v7326 = vcombine.low %v7241, %v7243
          %v7328 = vunpack.c.l.s4 1983009808
          %v7329 = vunpack.c.0.s8 %v7328
          %v7330 = vlaneseq
          %v7331 = vshrl.u32 %v7330, 7
          %v7332 = vsub.s32 %v7329, %v7331
          %v7333 = vrot.slane %v7326, %v7332
          %v7334 = vcombine.low %v7309, %v7317
          %v7336 = vunpack.c.l.s4 1934713408
          %v7337 = vunpack.c.0.s8 %v7336
          %v7338 = vlaneseq
          %v7339 = vshrl.u32 %v7338, 7
          %v7340 = vsub.s32 %v7337, %v7339
          %v7341 = vrot.slane %v7334, %v7340
          %v7342 = vcombine.low %v7325, %v7333
          %v7344 = vunpack.c.l.s4 1934713408
          %v7345 = vunpack.c.0.s8 %v7344
          %v7346 = vlaneseq
          %v7347 = vshrl.u32 %v7346, 7
          %v7348 = vsub.s32 %v7345, %v7347
          %v7349 = vrot.slane %v7342, %v7348
          %v7350 = vcombine.low %v7341, %v7349
          %v7351 = vcombine.high %v7341, %v7349
          %v7352 = vcombine.low %v7244, %v7246
          %v7354 = vunpack.c.l.s4 1983009808
          %v7355 = vunpack.c.0.s8 %v7354
          %v7356 = vlaneseq
          %v7357 = vshrl.u32 %v7356, 7
          %v7358 = vsub.s32 %v7355, %v7357
          %v7359 = vrot.slane %v7352, %v7358
          %v7360 = vcombine.low %v7245, %v7247
          %v7362 = vunpack.c.l.s4 1983009808
          %v7363 = vunpack.c.0.s8 %v7362
          %v7364 = vlaneseq
          %v7365 = vshrl.u32 %v7364, 7
          %v7366 = vsub.s32 %v7363, %v7365
          %v7367 = vrot.slane %v7360, %v7366
          %v7368 = vcombine.low %v7248, %v7250
          %v7370 = vunpack.c.l.s4 1983009808
          %v7371 = vunpack.c.0.s8 %v7370
          %v7372 = vlaneseq
          %v7373 = vshrl.u32 %v7372, 7
          %v7374 = vsub.s32 %v7371, %v7373
          %v7375 = vrot.slane %v7368, %v7374
          %v7376 = vcombine.low %v7249, %v7251
          %v7378 = vunpack.c.l.s4 1983009808
          %v7379 = vunpack.c.0.s8 %v7378
          %v7380 = vlaneseq
          %v7381 = vshrl.u32 %v7380, 7
          %v7382 = vsub.s32 %v7379, %v7381
          %v7383 = vrot.slane %v7376, %v7382
          %v7384 = vcombine.low %v7359, %v7367
          %v7386 = vunpack.c.l.s4 1934713408
          %v7387 = vunpack.c.0.s8 %v7386
          %v7388 = vlaneseq
          %v7389 = vshrl.u32 %v7388, 7
          %v7390 = vsub.s32 %v7387, %v7389
          %v7391 = vrot.slane %v7384, %v7390
          %v7392 = vcombine.low %v7375, %v7383
          %v7394 = vunpack.c.l.s4 1934713408
          %v7395 = vunpack.c.0.s8 %v7394
          %v7396 = vlaneseq
          %v7397 = vshrl.u32 %v7396, 7
          %v7398 = vsub.s32 %v7395, %v7397
          %v7399 = vrot.slane %v7392, %v7398
          %v7400 = vcombine.low %v7391, %v7399
          %v7401 = vcombine.high %v7391, %v7399
          %7405 = vrot.lane.b32.xlu0 %v7301, 16
          %v7406 = vpop.permute.xlu0 %7405
          %7407 = vrot.lane.b32.xlu0 %v7351, 16
          %v7408 = vpop.permute.xlu0 %7407
          %7409 = vrot.lane.b32.xlu0 %v7401, 16
          %v7410 = vpop.permute.xlu0 %7409
          %v7414 = vsel %vm1933, %v7300, %v7406
          %v7415 = vsel %vm1933, %v7350, %v7408
          %v7416 = vsel %vm1933, %v7400, %v7410
          %v7417 = vpack.c.bf16 %v7415, %v7414
          %v7418 = vpack.c.bf16 %v7416, %v7416
          %v7421 = vrot.slane %v7417, 4
          %v7422 = vrot.slane %v7418, 4
          %v7423 = vsel %vm4439, %v7421, %v7422
          %7424 = vrot.lane.b32.xlu0 %v7421, 32
          %v7425 = vpop.permute.xlu0 %7424
          %7426 = vrot.lane.b32.xlu0 %v7423, 32
          %v7427 = vpop.permute.xlu0 %7426
          %vm7430 = vcmask 523524
          %7431 = vst.msk [vmem:[#allocation3 + $0x8] sm:$0xf0] %vm7430, %v7425
          %7432 = vst.msk [vmem:[#allocation3 + $0x10] sm:$0xff] %vm4432, %v7427
          %v7433 = vld [vmem:[#allocation3] sm:$0xff]
          %v7434 = vld [vmem:[#allocation3 + $0x8] sm:$0xff]
          %v7435 = vld [vmem:[#allocation3 + $0x10] sm:$0xff]
          %v7436 = vld [vmem:[%s995] sm:$0xf]
          %v7437 = vld [vmem:[%s995 + $0x4] sm:$0xf]
          %v7438 = vld [vmem:[%s995 + $0x8] sm:$0xf]
          %v7439 = vld [vmem:[%s995 + $0xc] sm:$0xf]
          %v7440 = vld [vmem:[%s995 + $0x10] sm:$0xf]
          %v7441 = vld [vmem:[%s995 + $0x14] sm:$0xf]
          %v7442 = vld [vmem:[%s995 + $0x18] sm:$0xf]
          %v7443 = vld [vmem:[%s995 + $0x1c] sm:$0xf]
          %v7444 = vld [vmem:[%s998] sm:$0x1]
          %v7446 = vlaneseq
          %v7447 = vshrl.u32 %v7446, 7
          %v7448 = vsub.s32 0, %v7447
          %v7449 = vrot.slane %v7444, %v7448
          %v7459 = vunpack.c.l.b16 %v7436
          %v7460 = vunpack.c.l.b16 %v7437
          %v7461 = vunpack.c.l.b16 %v7438
          %v7462 = vunpack.c.l.b16 %v7439
          %v7463 = vunpack.c.l.b16 %v7440
          %v7464 = vunpack.c.l.b16 %v7441
          %v7465 = vunpack.c.l.b16 %v7442
          %v7466 = vunpack.c.l.b16 %v7443
          %v7467 = vpack.c.b16 %v7460, %v7459
          %v7468 = vpack.c.b16 %v7462, %v7461
          %v7469 = vpack.c.b16 %v7464, %v7463
          %v7470 = vpack.c.b16 %v7466, %v7465
          %v7476 = vsel %vm1204, %v7433, 0
          %v7479 = vsel %vm1204, %v7434, 0
          %v7482 = vsel %vm1204, %v7435, 0
          %7484 = vmatprep.subr.bf16.mxu0 0
          %7485 = vmatpush1.bf16.msra.mxu0 %v7467
          %7486 = vmatprep.subr.bf16.mxu0 0
          %7487 = vmatpush1.bf16.msra.mxu0 %v7468
          %7488 = vmatprep.subr.bf16.mxu0 0
          %7489 = vmatpush1.bf16.msra.mxu0 %v7469
          %7490 = vmatprep.subr.bf16.mxu0 0
          %7491 = vmatpush1.bf16.msra.mxu0 %v7470
          %7492 = vmatprep.subr.bf16.mxu0 0
          %7493 = vmatpush1.bf16.msra.mxu0 0
          %7494 = vmatprep.subr.bf16.mxu0 0
          %7495 = vmatpush1.bf16.msra.mxu0 0
          %7496 = vmatprep.subr.bf16.mxu0 0
          %7497 = vmatpush1.bf16.msra.mxu0 0
          %7498 = vmatprep.subr.bf16.mxu0 0
          %7499 = vmatpush1.bf16.msra.mxu0 0
          %7500 = vmatprep.subr.bf16.mxu0 0
          %7501 = vmatpush1.bf16.msra.mxu0 0
          %7502 = vmatprep.subr.bf16.mxu0 0
          %7503 = vmatpush1.bf16.msra.mxu0 0
          %7504 = vmatprep.subr.bf16.mxu0 0
          %7505 = vmatpush1.bf16.msra.mxu0 0
          %7506 = vmatprep.subr.bf16.mxu0 0
          %7507 = vmatpush1.bf16.msra.mxu0 0
          %7508 = vmatprep.subr.bf16.mxu0 0
          %7509 = vmatpush1.bf16.msra.mxu0 0
          %7510 = vmatprep.subr.bf16.mxu0 0
          %7511 = vmatpush1.bf16.msra.mxu0 0
          %7512 = vmatprep.subr.bf16.mxu0 0
          %7513 = vmatpush1.bf16.msra.mxu0 0
          %7514 = vmatprep.subr.bf16.mxu0 0
          %7515 = vmatpush1.bf16.msra.mxu0 0
          %7516 = vmatprep.mubr.bf16.mxu0 0
          %7517 = vmatmul.mubr.bf16.gmra.mrb[0].mxu0 %v7476
          %v7518 = vpop.f32.mrb[0].mxu0
          %v7519 = vadd.f32 %v7449, %v7518
          %v7520 = vpop.f32.mrb[0].mxu0
          %v7521 = vpop.f32.mrb[0].mxu0
          %v7522 = vadd.f32 %v7449, %v7521
          %v7523 = vpop.f32.mrb[0].mxu0
          %7524 = vmatprep.mubr.bf16.mxu0 0
          %7525 = vmatmul.mubr.bf16.gmra.mrb[0].mxu0 %v7479
          %v7526 = vpop.f32.mrb[0].mxu0
          %v7527 = vadd.f32 %v7449, %v7526
          %v7528 = vpop.f32.mrb[0].mxu0
          %v7529 = vpop.f32.mrb[0].mxu0
          %v7530 = vadd.f32 %v7449, %v7529
          %v7531 = vpop.f32.mrb[0].mxu0
          %7532 = vmatprep.mubr.bf16.mxu0 0
          %7533 = vmatmul.mubr.bf16.gmra.mrb[0].mxu0 %v7482
          %v7534 = vpop.f32.mrb[0].mxu0
          %v7535 = vadd.f32 %v7449, %v7534
          %v7536 = vpop.f32.mrb[0].mxu0
          %v7537 = vpop.f32.mrb[0].mxu0
          %v7538 = vadd.f32 %v7449, %v7537
          %v7539 = vpop.f32.mrb[0].mxu0
          %7540 = vdwg.mxu0
          %v7541 = vadd.f32 %v1196, %v7519
          %v7542 = vadd.f32 %v1197, %v7522
          %v7543 = vadd.f32 %v1198, %v7527
          %v7544 = vadd.f32 %v1199, %v7530
          %v7545 = vadd.f32 %v1200, %v7535
          %v7546 = vadd.f32 %v1201, %v7538
          %v7547 = vld [vmem:[%s1001] sm:$0x1]
          %v7548 = vld [vmem:[%s1004] sm:$0x1]
          %v7549 = vsel %vm1204, %v7541, 0.0
          %7550 = vadd.xlane.f32.xlu0 %v7549
          %v7551 = vpop.xlane.xlu0 %7550
          %v7552 = vsel %vm1204, %v7542, 0.0
          %7553 = vadd.xlane.f32.xlu0 %v7552
          %v7554 = vpop.xlane.xlu0 %7553
          %v7555 = vsel %vm1204, %v7543, 0.0
          %7556 = vadd.xlane.f32.xlu0 %v7555
          %v7557 = vpop.xlane.xlu0 %7556
          %v7558 = vsel %vm1204, %v7544, 0.0
          %7559 = vadd.xlane.f32.xlu0 %v7558
          %v7560 = vpop.xlane.xlu0 %7559
          %v7561 = vsel %vm1204, %v7545, 0.0
          %7562 = vadd.xlane.f32.xlu0 %v7561
          %v7563 = vpop.xlane.xlu0 %7562
          %v7564 = vsel %vm1204, %v7546, 0.0
          %7565 = vadd.xlane.f32.xlu0 %v7564
          %v7566 = vpop.xlane.xlu0 %7565
          %v7567 = vmul.f32 %v7551, %v1223
          %v7568 = vmul.f32 %v7554, %v1223
          %v7569 = vmul.f32 %v7557, %v1223
          %v7570 = vmul.f32 %v7560, %v1223
          %v7571 = vmul.f32 %v7563, %v1223
          %v7572 = vmul.f32 %v7566, %v1223
          %v7573 = vsub.f32 %v7541, %v7567
          %v7574 = vsub.f32 %v7542, %v7568
          %v7575 = vsub.f32 %v7543, %v7569
          %v7576 = vsub.f32 %v7544, %v7570
          %v7577 = vsub.f32 %v7545, %v7571
          %v7578 = vsub.f32 %v7546, %v7572
          %v7579 = vmul.f32 %v7573, %v7573
          %v7580 = vmul.f32 %v7574, %v7574
          %v7581 = vmul.f32 %v7575, %v7575
          %v7582 = vmul.f32 %v7576, %v7576
          %v7583 = vmul.f32 %v7577, %v7577
          %v7584 = vmul.f32 %v7578, %v7578
          %v7585 = vsel %vm1204, %v7579, 0.0
          %7586 = vadd.xlane.f32.xlu0 %v7585
          %v7587 = vpop.xlane.xlu0 %7586
          %v7588 = vsel %vm1204, %v7580, 0.0
          %7589 = vadd.xlane.f32.xlu0 %v7588
          %v7590 = vpop.xlane.xlu0 %7589
          %v7591 = vsel %vm1204, %v7581, 0.0
          %7592 = vadd.xlane.f32.xlu0 %v7591
          %v7593 = vpop.xlane.xlu0 %7592
          %v7594 = vsel %vm1204, %v7582, 0.0
          %7595 = vadd.xlane.f32.xlu0 %v7594
          %v7596 = vpop.xlane.xlu0 %7595
          %v7597 = vsel %vm1204, %v7583, 0.0
          %7598 = vadd.xlane.f32.xlu0 %v7597
          %v7599 = vpop.xlane.xlu0 %7598
          %v7600 = vsel %vm1204, %v7584, 0.0
          %7601 = vadd.xlane.f32.xlu0 %v7600
          %v7602 = vpop.xlane.xlu0 %7601
          %v7603 = vmul.f32 %v7587, %v1223
          %v7604 = vmul.f32 %v7590, %v1223
          %v7605 = vmul.f32 %v7593, %v1223
          %v7606 = vmul.f32 %v7596, %v1223
          %v7607 = vmul.f32 %v7599, %v1223
          %v7608 = vmul.f32 %v7602, %v1223
          %v7609 = vadd.f32 %v7603, 1e-05
          %v7610 = vadd.f32 %v7604, 1e-05
          %v7611 = vadd.f32 %v7605, 1e-05
          %v7612 = vadd.f32 %v7606, 1e-05
          %v7613 = vadd.f32 %v7607, 1e-05
          %v7614 = vadd.f32 %v7608, 1e-05
          %v7615 = vrsqrt.pop %v7609
          %v7616 = vrsqrt.pop %v7610
          %v7617 = vrsqrt.pop %v7611
          %v7618 = vrsqrt.pop %v7612
          %v7619 = vrsqrt.pop %v7613
          %v7620 = vrsqrt.pop %v7614
          %v7621 = vmul.f32 %v7573, %v7615
          %v7622 = vmul.f32 %v7574, %v7616
          %v7623 = vmul.f32 %v7575, %v7617
          %v7624 = vmul.f32 %v7576, %v7618
          %v7625 = vmul.f32 %v7577, %v7619
          %v7626 = vmul.f32 %v7578, %v7620
          %v7628 = vlaneseq
          %v7629 = vshrl.u32 %v7628, 7
          %v7630 = vsub.s32 0, %v7629
          %v7631 = vrot.slane %v7547, %v7630
          %v7633 = vmul.f32 %v7621, %v7631
          %v7634 = vmul.f32 %v7622, %v7631
          %v7635 = vmul.f32 %v7623, %v7631
          %v7636 = vmul.f32 %v7624, %v7631
          %v7637 = vmul.f32 %v7625, %v7631
          %v7638 = vmul.f32 %v7626, %v7631
          %v7640 = vlaneseq
          %v7641 = vshrl.u32 %v7640, 7
          %v7642 = vsub.s32 0, %v7641
          %v7643 = vrot.slane %v7548, %v7642
          %v7645 = vadd.f32 %v7633, %v7643
          %v7646 = vadd.f32 %v7634, %v7643
          %v7647 = vadd.f32 %v7635, %v7643
          %v7648 = vadd.f32 %v7636, %v7643
          %v7649 = vadd.f32 %v7637, %v7643
          %v7650 = vadd.f32 %v7638, %v7643
          %v7651 = vpack.c.bf16 %v7646, %v7645
          %v7652 = vpack.c.bf16 %v7648, %v7647
          %v7653 = vpack.c.bf16 %v7650, %v7649
          %7654 = vst.msk [vmem:[#allocation3] sm:$0xff] %vm1204, %v7651
          %7655 = vst.msk [vmem:[#allocation3 + $0x8] sm:$0xff] %vm1204, %v7652
          %7656 = vst.msk [vmem:[#allocation3 + $0x10] sm:$0xff] %vm1204, %v7653
          %v7657 = vld [vmem:[%s1024] sm:$0x1]
          %v7659 = vlaneseq
          %v7660 = vshrl.u32 %v7659, 7
          %v7661 = vsub.s32 0, %v7660
          %v7662 = vrot.slane %v7657, %v7661
          %v7664 = vadd.f32 %v7541, %v7662
          %v7665 = vadd.f32 %v7542, %v7662
          %v7666 = vadd.f32 %v7543, %v7662
          %v7667 = vadd.f32 %v7544, %v7662
          %v7668 = vadd.f32 %v7545, %v7662
          %v7669 = vadd.f32 %v7546, %v7662
          %7670 = vst.msk [vmem:[#allocation2] sm:$0xff] %vm1204, %v7664
          %7671 = vst.msk [vmem:[#allocation2 + $0x8] sm:$0xff] %vm1204, %v7665
          %7672 = vst.msk [vmem:[#allocation2 + $0x10] sm:$0xff] %vm1204, %v7666
          %7673 = vst.msk [vmem:[#allocation2 + $0x18] sm:$0xff] %vm1204, %v7667
          %7674 = vst.msk [vmem:[#allocation2 + $0x20] sm:$0xff] %vm1204, %v7668
          %7675 = vst.msk [vmem:[#allocation2 + $0x28] sm:$0xff] %vm1204, %v7669
        $region165: #{tpu_custom_call.1} parent=144 // pred_fallthru
          _
        %v7676 = vld [vmem:[#allocation3] sm:$0xff]
        %v7677 = vld [vmem:[#allocation3 + $0x8] sm:$0xff]
        %v7678 = vld [vmem:[#allocation3 + $0x10] sm:$0xff]
        %v7679 = vld [vmem:[%s861] sm:$0xf]
        %v7680 = vld [vmem:[%s861 + $0x4] sm:$0xf]
        %v7681 = vld [vmem:[%s861 + $0x8] sm:$0xf]
        %v7682 = vld [vmem:[%s861 + $0xc] sm:$0xf]
        %v7683 = vld [vmem:[%s861 + $0x10] sm:$0xf]
        %v7684 = vld [vmem:[%s861 + $0x14] sm:$0xf]
        %v7685 = vld [vmem:[%s861 + $0x18] sm:$0xf]
        %v7686 = vld [vmem:[%s861 + $0x1c] sm:$0xf]
        %v7687 = vld [vmem:[%s1011] sm:$0x1]
        %v7689 = vlaneseq
        %v7690 = vshrl.u32 %v7689, 7
        %v7691 = vsub.s32 0, %v7690
        %v7692 = vrot.slane %v7687, %v7691
        %v7702 = vunpack.c.l.b16 %v7679
        %v7703 = vunpack.c.l.b16 %v7680
        %v7704 = vunpack.c.l.b16 %v7681
        %v7705 = vunpack.c.l.b16 %v7682
        %v7706 = vunpack.c.l.b16 %v7683
        %v7707 = vunpack.c.l.b16 %v7684
        %v7708 = vunpack.c.l.b16 %v7685
        %v7709 = vunpack.c.l.b16 %v7686
        %v7710 = vpack.c.b16 %v7703, %v7702
        %v7711 = vpack.c.b16 %v7705, %v7704
        %v7712 = vpack.c.b16 %v7707, %v7706
        %v7713 = vpack.c.b16 %v7709, %v7708
        %vm7718 = vcmask 523264
        %v7720 = vsel %vm7718, %v7676, 0
        %v7723 = vsel %vm7718, %v7677, 0
        %v7726 = vsel %vm7718, %v7678, 0
        %7728 = vmatprep.subr.bf16.mxu0 0
        %7729 = vmatpush1.bf16.msra.mxu0 %v7710
        %7730 = vmatprep.subr.bf16.mxu0 0
        %7731 = vmatpush1.bf16.msra.mxu0 %v7711
        %7732 = vmatprep.subr.bf16.mxu0 0
        %7733 = vmatpush1.bf16.msra.mxu0 %v7712
        %7734 = vmatprep.subr.bf16.mxu0 0
        %7735 = vmatpush1.bf16.msra.mxu0 %v7713
        %7736 = vmatprep.subr.bf16.mxu0 0
        %7737 = vmatpush1.bf16.msra.mxu0 0
        %7738 = vmatprep.subr.bf16.mxu0 0
        %7739 = vmatpush1.bf16.msra.mxu0 0
        %7740 = vmatprep.subr.bf16.mxu0 0
        %7741 = vmatpush1.bf16.msra.mxu0 0
        %7742 = vmatprep.subr.bf16.mxu0 0
        %7743 = vmatpush1.bf16.msra.mxu0 0
        %7744 = vmatprep.subr.bf16.mxu0 0
        %7745 = vmatpush1.bf16.msra.mxu0 0
        %7746 = vmatprep.subr.bf16.mxu0 0
        %7747 = vmatpush1.bf16.msra.mxu0 0
        %7748 = vmatprep.subr.bf16.mxu0 0
        %7749 = vmatpush1.bf16.msra.mxu0 0
        %7750 = vmatprep.subr.bf16.mxu0 0
        %7751 = vmatpush1.bf16.msra.mxu0 0
        %7752 = vmatprep.subr.bf16.mxu0 0
        %7753 = vmatpush1.bf16.msra.mxu0 0
        %7754 = vmatprep.subr.bf16.mxu0 0
        %7755 = vmatpush1.bf16.msra.mxu0 0
        %7756 = vmatprep.subr.bf16.mxu0 0
        %7757 = vmatpush1.bf16.msra.mxu0 0
        %7758 = vmatprep.subr.bf16.mxu0 0
        %7759 = vmatpush1.bf16.msra.mxu0 0
        %7760 = vmatprep.mubr.bf16.mxu0 0
        %7761 = vmatmul.mubr.bf16.gmra.mrb[0].mxu0 %v7720
        %v7762 = vpop.f32.mrb[0].mxu0
        %v7763 = vadd.f32 %v7692, %v7762
        %v7764 = vpop.f32.mrb[0].mxu0
        %v7765 = vpop.f32.mrb[0].mxu0
        %v7766 = vadd.f32 %v7692, %v7765
        %v7767 = vpop.f32.mrb[0].mxu0
        %7768 = vmatprep.mubr.bf16.mxu0 0
        %7769 = vmatmul.mubr.bf16.gmra.mrb[0].mxu0 %v7723
        %v7770 = vpop.f32.mrb[0].mxu0
        %v7771 = vadd.f32 %v7692, %v7770
        %v7772 = vpop.f32.mrb[0].mxu0
        %v7773 = vpop.f32.mrb[0].mxu0
        %v7774 = vadd.f32 %v7692, %v7773
        %v7775 = vpop.f32.mrb[0].mxu0
        %7776 = vmatprep.mubr.bf16.mxu0 0
        %7777 = vmatmul.mubr.bf16.gmra.mrb[0].mxu0 %v7726
        %v7778 = vpop.f32.mrb[0].mxu0
        %v7779 = vadd.f32 %v7692, %v7778
        %v7780 = vpop.f32.mrb[0].mxu0
        %v7781 = vpop.f32.mrb[0].mxu0
        %v7782 = vadd.f32 %v7692, %v7781
        %v7783 = vpop.f32.mrb[0].mxu0
        %7784 = vdwg.mxu0
        %v7785 = vmul.f32 %v7763, %v7763
        %v7786 = vmul.f32 %v7766, %v7766
        %v7787 = vmul.f32 %v7771, %v7771
        %v7788 = vmul.f32 %v7774, %v7774
        %v7789 = vmul.f32 %v7779, %v7779
        %v7790 = vmul.f32 %v7782, %v7782
        %v7791 = vmul.f32 %v7763, %v7785
        %v7792 = vmul.f32 %v7766, %v7786
        %v7793 = vmul.f32 %v7771, %v7787
        %v7794 = vmul.f32 %v7774, %v7788
        %v7795 = vmul.f32 %v7779, %v7789
        %v7796 = vmul.f32 %v7782, %v7790
        %v7797 = vmul.f32 %v7791, 0.044715
        %v7798 = vmul.f32 %v7792, 0.044715
        %v7799 = vmul.f32 %v7793, 0.044715
        %v7800 = vmul.f32 %v7794, 0.044715
        %v7801 = vmul.f32 %v7795, 0.044715
        %v7802 = vmul.f32 %v7796, 0.044715
        %v7803 = vadd.f32 %v7763, %v7797
        %v7804 = vadd.f32 %v7766, %v7798
        %v7805 = vadd.f32 %v7771, %v7799
        %v7806 = vadd.f32 %v7774, %v7800
        %v7807 = vadd.f32 %v7779, %v7801
        %v7808 = vadd.f32 %v7782, %v7802
        %v7809 = vmul.f32 %v7803, 0.7978846
        %v7810 = vmul.f32 %v7804, 0.7978846
        %v7811 = vmul.f32 %v7805, 0.7978846
        %v7812 = vmul.f32 %v7806, 0.7978846
        %v7813 = vmul.f32 %v7807, 0.7978846
        %v7814 = vmul.f32 %v7808, 0.7978846
        %v7815 = vtanh.pop %v7809
        %v7816 = vtanh.pop %v7810
        %v7817 = vtanh.pop %v7811
        %v7818 = vtanh.pop %v7812
        %v7819 = vtanh.pop %v7813
        %v7820 = vtanh.pop %v7814
        %v7821 = vadd.f32 %v7815, 1.0
        %v7822 = vadd.f32 %v7816, 1.0
        %v7823 = vadd.f32 %v7817, 1.0
        %v7824 = vadd.f32 %v7818, 1.0
        %v7825 = vadd.f32 %v7819, 1.0
        %v7826 = vadd.f32 %v7820, 1.0
        %v7827 = vmul.f32 %v7821, 0.5
        %v7828 = vmul.f32 %v7822, 0.5
        %v7829 = vmul.f32 %v7823, 0.5
        %v7830 = vmul.f32 %v7824, 0.5
        %v7831 = vmul.f32 %v7825, 0.5
        %v7832 = vmul.f32 %v7826, 0.5
        %v7833 = vmul.f32 %v7763, %v7827
        %v7834 = vmul.f32 %v7766, %v7828
        %v7835 = vmul.f32 %v7771, %v7829
        %v7836 = vmul.f32 %v7774, %v7830
        %v7837 = vmul.f32 %v7779, %v7831
        %v7838 = vmul.f32 %v7782, %v7832
        %v7839 = vld [vmem:[#allocation2] sm:$0xff]
        %v7840 = vld [vmem:[#allocation2 + $0x8] sm:$0xff]
        %v7841 = vld [vmem:[#allocation2 + $0x10] sm:$0xff]
        %v7842 = vld [vmem:[#allocation2 + $0x18] sm:$0xff]
        %v7843 = vld [vmem:[#allocation2 + $0x20] sm:$0xff]
        %v7844 = vld [vmem:[#allocation2 + $0x28] sm:$0xff]
        %v7845 = vpack.c.bf16 %v7834, %v7833
        %v7846 = vpack.c.bf16 %v7836, %v7835
        %v7847 = vpack.c.bf16 %v7838, %v7837
        %v7848 = vld [vmem:[%s1020] sm:$0xf]
        %v7849 = vld [vmem:[%s1020 + $0x4] sm:$0xf]
        %v7850 = vld [vmem:[%s1020 + $0x8] sm:$0xf]
        %v7851 = vld [vmem:[%s1020 + $0xc] sm:$0xf]
        %v7852 = vld [vmem:[%s1020 + $0x10] sm:$0xf]
        %v7853 = vld [vmem:[%s1020 + $0x14] sm:$0xf]
        %v7854 = vld [vmem:[%s1020 + $0x18] sm:$0xf]
        %v7855 = vld [vmem:[%s1020 + $0x1c] sm:$0xf]
        %v7856 = vld [vmem:[%s1020 + $0x20] sm:$0xf]
        %v7857 = vld [vmem:[%s1020 + $0x24] sm:$0xf]
        %v7858 = vld [vmem:[%s1020 + $0x28] sm:$0xf]
        %v7859 = vld [vmem:[%s1020 + $0x2c] sm:$0xf]
        %v7860 = vld [vmem:[%s1020 + $0x30] sm:$0xf]
        %v7861 = vld [vmem:[%s1020 + $0x34] sm:$0xf]
        %v7862 = vld [vmem:[%s1020 + $0x38] sm:$0xf]
        %v7863 = vld [vmem:[%s1020 + $0x3c] sm:$0xf]
        %v7880 = vunpack.c.l.b16 %v7848
        %v7881 = vunpack.c.l.b16 %v7849
        %v7882 = vunpack.c.l.b16 %v7850
        %v7883 = vunpack.c.l.b16 %v7851
        %v7884 = vunpack.c.l.b16 %v7852
        %v7885 = vunpack.c.l.b16 %v7853
        %v7886 = vunpack.c.l.b16 %v7854
        %v7887 = vunpack.c.l.b16 %v7855
        %v7888 = vunpack.c.l.b16 %v7856
        %v7889 = vunpack.c.l.b16 %v7857
        %v7890 = vunpack.c.l.b16 %v7858
        %v7891 = vunpack.c.l.b16 %v7859
        %v7892 = vunpack.c.l.b16 %v7860
        %v7893 = vunpack.c.l.b16 %v7861
        %v7894 = vunpack.c.l.b16 %v7862
        %v7895 = vunpack.c.l.b16 %v7863
        %v7896 = vpack.c.b16 %v7881, %v7880
        %v7897 = vpack.c.b16 %v7883, %v7882
        %v7898 = vpack.c.b16 %v7885, %v7884
        %v7899 = vpack.c.b16 %v7887, %v7886
        %v7900 = vpack.c.b16 %v7889, %v7888
        %v7901 = vpack.c.b16 %v7891, %v7890
        %v7902 = vpack.c.b16 %v7893, %v7892
        %v7903 = vpack.c.b16 %v7895, %v7894
        %7912 = vmatprep.subr.bf16.mxu0 0
        %7913 = vmatpush1.bf16.msra.mxu0 %v7896
        %7914 = vmatprep.subr.bf16.mxu0 0
        %7915 = vmatpush1.bf16.msra.mxu0 %v7897
        %7916 = vmatprep.subr.bf16.mxu0 0
        %7917 = vmatpush1.bf16.msra.mxu0 %v7898
        %7918 = vmatprep.subr.bf16.mxu0 0
        %7919 = vmatpush1.bf16.msra.mxu0 %v7899
        %7920 = vmatprep.subr.bf16.mxu0 0
        %7921 = vmatpush1.bf16.msra.mxu0 %v7900
        %7922 = vmatprep.subr.bf16.mxu0 0
        %7923 = vmatpush1.bf16.msra.mxu0 %v7901
        %7924 = vmatprep.subr.bf16.mxu0 0
        %7925 = vmatpush1.bf16.msra.mxu0 %v7902
        %7926 = vmatprep.subr.bf16.mxu0 0
        %7927 = vmatpush1.bf16.msra.mxu0 %v7903
        %7928 = vmatprep.subr.bf16.mxu0 0
        %7929 = vmatpush1.bf16.msra.mxu0 0
        %7930 = vmatprep.subr.bf16.mxu0 0
        %7931 = vmatpush1.bf16.msra.mxu0 0
        %7932 = vmatprep.subr.bf16.mxu0 0
        %7933 = vmatpush1.bf16.msra.mxu0 0
        %7934 = vmatprep.subr.bf16.mxu0 0
        %7935 = vmatpush1.bf16.msra.mxu0 0
        %7936 = vmatprep.subr.bf16.mxu0 0
        %7937 = vmatpush1.bf16.msra.mxu0 0
        %7938 = vmatprep.subr.bf16.mxu0 0
        %7939 = vmatpush1.bf16.msra.mxu0 0
        %7940 = vmatprep.subr.bf16.mxu0 0
        %7941 = vmatpush1.bf16.msra.mxu0 0
        %7942 = vmatprep.subr.bf16.mxu0 0
        %7943 = vmatpush1.bf16.msra.mxu0 0
        %7944 = vmatprep.mubr.bf16.mxu0 0
        %7945 = vmatmul.mubr.bf16.gmra.mrb[0].mxu0 %v7845
        %v7946 = vpop.f32.mrb[0].mxu0
        %v7947 = vadd.f32 0.0, %v7946
        %v7948 = vpop.f32.mrb[0].mxu0
        %v7949 = vpop.f32.mrb[0].mxu0
        %v7950 = vadd.f32 0.0, %v7949
        %v7951 = vpop.f32.mrb[0].mxu0
        %7952 = vmatprep.mubr.bf16.mxu0 0
        %7953 = vmatmul.mubr.bf16.gmra.mrb[0].mxu0 %v7846
        %v7954 = vpop.f32.mrb[0].mxu0
        %v7955 = vadd.f32 0.0, %v7954
        %v7956 = vpop.f32.mrb[0].mxu0
        %v7957 = vpop.f32.mrb[0].mxu0
        %v7958 = vadd.f32 0.0, %v7957
        %v7959 = vpop.f32.mrb[0].mxu0
        %7960 = vmatprep.mubr.bf16.mxu0 0
        %7961 = vmatmul.mubr.bf16.gmra.mrb[0].mxu0 %v7847
        %v7962 = vpop.f32.mrb[0].mxu0
        %v7963 = vadd.f32 0.0, %v7962
        %v7964 = vpop.f32.mrb[0].mxu0
        %v7965 = vpop.f32.mrb[0].mxu0
        %v7966 = vadd.f32 0.0, %v7965
        %v7967 = vpop.f32.mrb[0].mxu0
        %7968 = vdwg.mxu0
        %v7969 = vadd.f32 %v7839, %v7947
        %v7970 = vadd.f32 %v7840, %v7950
        %v7971 = vadd.f32 %v7841, %v7955
        %v7972 = vadd.f32 %v7842, %v7958
        %v7973 = vadd.f32 %v7843, %v7963
        %v7974 = vadd.f32 %v7844, %v7966
        %7975 = vst.msk [vmem:[#allocation2] sm:$0xff] %vm7718, %v7969
        %7976 = vst.msk [vmem:[#allocation2 + $0x8] sm:$0xff] %vm7718, %v7970
        %7977 = vst.msk [vmem:[#allocation2 + $0x10] sm:$0xff] %vm7718, %v7971
        %7978 = vst.msk [vmem:[#allocation2 + $0x18] sm:$0xff] %vm7718, %v7972
        %7979 = vst.msk [vmem:[#allocation2 + $0x20] sm:$0xff] %vm7718, %v7973
        %7980 = vst.msk [vmem:[#allocation2 + $0x28] sm:$0xff] %vm7718, %v7974
        %p7981 = scmp.eq.s32.totalorder %s42, 1
        %p7982 = scmp.eq.s32.totalorder %s43, 1
        %p7983 = pnand %p7981, %p7982
        %p7984 = pneg %p7983
        // Predicated region
        $region166: #{tpu_custom_call.1} parent=144 // pred_check
          _
        $region167: #{tpu_custom_call.1} parent=144 // pred_check_branch
          %7986 = sbr.rel (%p7983) target = $region169
        $region168: #{tpu_custom_call.1} parent=144 // pred_region
          %v7987 = vld [vmem:[#allocation2] sm:$0xff]
          %v7988 = vld [vmem:[#allocation2 + $0x8] sm:$0xff]
          %v7989 = vld [vmem:[#allocation2 + $0x10] sm:$0xff]
          %v7990 = vld [vmem:[%s16] sm:$0x1]
          %v7991 = vld [vmem:[%s17] sm:$0x1]
          %v7992 = vsel %vm7718, %v7987, 0.0
          %7993 = vadd.xlane.f32.xlu0 %v7992
          %v7994 = vpop.xlane.xlu0 %7993
          %v7995 = vsel %vm7718, %v7988, 0.0
          %7996 = vadd.xlane.f32.xlu0 %v7995
          %v7997 = vpop.xlane.xlu0 %7996
          %v7998 = vsel %vm7718, %v7989, 0.0
          %7999 = vadd.xlane.f32.xlu0 %v7998
          %v8000 = vpop.xlane.xlu0 %7999
          %v8001 = vrcp.pop 64.0
          %v8002 = vmul.f32 %v7994, %v8001
          %v8003 = vmul.f32 %v7997, %v8001
          %v8004 = vmul.f32 %v8000, %v8001
          %v8005 = vsub.f32 %v7987, %v8002
          %v8006 = vsub.f32 %v7988, %v8003
          %v8007 = vsub.f32 %v7989, %v8004
          %v8008 = vmul.f32 %v8005, %v8005
          %v8009 = vmul.f32 %v8006, %v8006
          %v8010 = vmul.f32 %v8007, %v8007
          %v8011 = vsel %vm7718, %v8008, 0.0
          %8012 = vadd.xlane.f32.xlu0 %v8011
          %v8013 = vpop.xlane.xlu0 %8012
          %v8014 = vsel %vm7718, %v8009, 0.0
          %8015 = vadd.xlane.f32.xlu0 %v8014
          %v8016 = vpop.xlane.xlu0 %8015
          %v8017 = vsel %vm7718, %v8010, 0.0
          %8018 = vadd.xlane.f32.xlu0 %v8017
          %v8019 = vpop.xlane.xlu0 %8018
          %v8020 = vmul.f32 %v8013, %v8001
          %v8021 = vmul.f32 %v8016, %v8001
          %v8022 = vmul.f32 %v8019, %v8001
          %v8023 = vadd.f32 %v8020, 1e-05
          %v8024 = vadd.f32 %v8021, 1e-05
          %v8025 = vadd.f32 %v8022, 1e-05
          %v8026 = vrsqrt.pop %v8023
          %v8027 = vrsqrt.pop %v8024
          %v8028 = vrsqrt.pop %v8025
          %v8029 = vmul.f32 %v8005, %v8026
          %v8030 = vmul.f32 %v8006, %v8027
          %v8031 = vmul.f32 %v8007, %v8028
          %v8033 = vlaneseq
          %v8034 = vshrl.u32 %v8033, 7
          %v8035 = vsub.s32 0, %v8034
          %v8036 = vrot.slane %v7990, %v8035
          %v8038 = vmul.f32 %v8029, %v8036
          %v8039 = vmul.f32 %v8030, %v8036
          %v8040 = vmul.f32 %v8031, %v8036
          %v8042 = vlaneseq
          %v8043 = vshrl.u32 %v8042, 7
          %v8044 = vsub.s32 0, %v8043
          %v8045 = vrot.slane %v7991, %v8044
          %v8047 = vadd.f32 %v8038, %v8045
          %v8048 = vadd.f32 %v8039, %v8045
          %v8049 = vadd.f32 %v8040, %v8045
          %v8050 = vpack.c.bf16 %v8048, %v8047
          %v8051 = vld [vmem:[%s18] sm:$0xf]
          %v8052 = vld [vmem:[%s18 + $0x4] sm:$0xf]
          %v8053 = vld [vmem:[%s18 + $0x8] sm:$0xf]
          %v8054 = vld [vmem:[%s18 + $0xc] sm:$0xf]
          %v8055 = vld [vmem:[%s18 + $0x10] sm:$0xf]
          %v8056 = vld [vmem:[%s18 + $0x14] sm:$0xf]
          %v8057 = vld [vmem:[%s18 + $0x18] sm:$0xf]
          %v8058 = vld [vmem:[%s18 + $0x1c] sm:$0xf]
          %v8067 = vunpack.c.l.b16 %v8051
          %v8068 = vunpack.c.l.b16 %v8052
          %v8069 = vunpack.c.l.b16 %v8053
          %v8070 = vunpack.c.l.b16 %v8054
          %v8071 = vunpack.c.l.b16 %v8055
          %v8072 = vunpack.c.l.b16 %v8056
          %v8073 = vunpack.c.l.b16 %v8057
          %v8074 = vunpack.c.l.b16 %v8058
          %v8075 = vpack.c.b16 %v8068, %v8067
          %v8076 = vpack.c.b16 %v8070, %v8069
          %v8077 = vpack.c.b16 %v8072, %v8071
          %v8078 = vpack.c.b16 %v8074, %v8073
          %v8084 = vsel %vm7718, %v8050, 0
          %8086 = vmatprep.subr.bf16.mxu0 0
          %8087 = vmatpush1.bf16.msra.mxu0 %v8075
          %8088 = vmatprep.subr.bf16.mxu0 0
          %8089 = vmatpush1.bf16.msra.mxu0 %v8076
          %8090 = vmatprep.subr.bf16.mxu0 0
          %8091 = vmatpush1.bf16.msra.mxu0 %v8077
          %8092 = vmatprep.subr.bf16.mxu0 0
          %8093 = vmatpush1.bf16.msra.mxu0 %v8078
          %8094 = vmatprep.subr.bf16.mxu0 0
          %8095 = vmatpush1.bf16.msra.mxu0 0
          %8096 = vmatprep.subr.bf16.mxu0 0
          %8097 = vmatpush1.bf16.msra.mxu0 0
          %8098 = vmatprep.subr.bf16.mxu0 0
          %8099 = vmatpush1.bf16.msra.mxu0 0
          %8100 = vmatprep.subr.bf16.mxu0 0
          %8101 = vmatpush1.bf16.msra.mxu0 0
          %8102 = vmatprep.subr.bf16.mxu0 0
          %8103 = vmatpush1.bf16.msra.mxu0 0
          %8104 = vmatprep.subr.bf16.mxu0 0
          %8105 = vmatpush1.bf16.msra.mxu0 0
          %8106 = vmatprep.subr.bf16.mxu0 0
          %8107 = vmatpush1.bf16.msra.mxu0 0
          %8108 = vmatprep.subr.bf16.mxu0 0
          %8109 = vmatpush1.bf16.msra.mxu0 0
          %8110 = vmatprep.subr.bf16.mxu0 0
          %8111 = vmatpush1.bf16.msra.mxu0 0
          %8112 = vmatprep.subr.bf16.mxu0 0
          %8113 = vmatpush1.bf16.msra.mxu0 0
          %8114 = vmatprep.subr.bf16.mxu0 0
          %8115 = vmatpush1.bf16.msra.mxu0 0
          %8116 = vmatprep.subr.bf16.mxu0 0
          %8117 = vmatpush1.bf16.msra.mxu0 0
          %8118 = vmatprep.mubr.bf16.mxu0 0
          %8119 = vmatmul.mubr.bf16.gmra.mrb[0].mxu0 %v8084
          %v8120 = vpop.f32.mrb[0].mxu0
          %v8121 = vadd.f32 0.0, %v8120
          %v8122 = vpop.f32.mrb[0].mxu0
          %v8123 = vpop.f32.mrb[0].mxu0
          %v8124 = vadd.f32 0.0, %v8123
          %v8125 = vpop.f32.mrb[0].mxu0
          %8126 = vdwg.mxu0
          %v8127 = vpack.c.bf16 %v8049, %v8049
          %v8128 = vld [vmem:[%s19] sm:$0xf]
          %v8129 = vld [vmem:[%s19 + $0x4] sm:$0xf]
          %v8130 = vld [vmem:[%s19 + $0x8] sm:$0xf]
          %v8131 = vld [vmem:[%s19 + $0xc] sm:$0xf]
          %v8132 = vld [vmem:[%s19 + $0x10] sm:$0xf]
          %v8133 = vld [vmem:[%s19 + $0x14] sm:$0xf]
          %v8134 = vld [vmem:[%s19 + $0x18] sm:$0xf]
          %v8135 = vld [vmem:[%s19 + $0x1c] sm:$0xf]
          %v8144 = vunpack.c.l.b16 %v8128
          %v8145 = vunpack.c.l.b16 %v8129
          %v8146 = vunpack.c.l.b16 %v8130
          %v8147 = vunpack.c.l.b16 %v8131
          %v8148 = vunpack.c.l.b16 %v8132
          %v8149 = vunpack.c.l.b16 %v8133
          %v8150 = vunpack.c.l.b16 %v8134
          %v8151 = vunpack.c.l.b16 %v8135
          %v8152 = vpack.c.b16 %v8145, %v8144
          %v8153 = vpack.c.b16 %v8147, %v8146
          %v8154 = vpack.c.b16 %v8149, %v8148
          %v8155 = vpack.c.b16 %v8151, %v8150
          %v8161 = vsel %vm7718, %v8127, 0
          %8163 = vmatprep.subr.bf16.mxu0 0
          %8164 = vmatpush1.bf16.msra.mxu0 %v8152
          %8165 = vmatprep.subr.bf16.mxu0 0
          %8166 = vmatpush1.bf16.msra.mxu0 %v8153
          %8167 = vmatprep.subr.bf16.mxu0 0
          %8168 = vmatpush1.bf16.msra.mxu0 %v8154
          %8169 = vmatprep.subr.bf16.mxu0 0
          %8170 = vmatpush1.bf16.msra.mxu0 %v8155
          %8171 = vmatprep.subr.bf16.mxu0 0
          %8172 = vmatpush1.bf16.msra.mxu0 0
          %8173 = vmatprep.subr.bf16.mxu0 0
          %8174 = vmatpush1.bf16.msra.mxu0 0
          %8175 = vmatprep.subr.bf16.mxu0 0
          %8176 = vmatpush1.bf16.msra.mxu0 0
          %8177 = vmatprep.subr.bf16.mxu0 0
          %8178 = vmatpush1.bf16.msra.mxu0 0
          %8179 = vmatprep.subr.bf16.mxu0 0
          %8180 = vmatpush1.bf16.msra.mxu0 0
          %8181 = vmatprep.subr.bf16.mxu0 0
          %8182 = vmatpush1.bf16.msra.mxu0 0
          %8183 = vmatprep.subr.bf16.mxu0 0
          %8184 = vmatpush1.bf16.msra.mxu0 0
          %8185 = vmatprep.subr.bf16.mxu0 0
          %8186 = vmatpush1.bf16.msra.mxu0 0
          %8187 = vmatprep.subr.bf16.mxu0 0
          %8188 = vmatpush1.bf16.msra.mxu0 0
          %8189 = vmatprep.subr.bf16.mxu0 0
          %8190 = vmatpush1.bf16.msra.mxu0 0
          %8191 = vmatprep.subr.bf16.mxu0 0
          %8192 = vmatpush1.bf16.msra.mxu0 0
          %8193 = vmatprep.subr.bf16.mxu0 0
          %8194 = vmatpush1.bf16.msra.mxu0 0
          %8195 = vmatprep.mubr.bf16.mxu0 0
          %8196 = vmatmul.mubr.bf16.gmra.mrb[0].mxu0 %v8161
          %v8197 = vpop.f32.mrb[0].mxu0
          %v8198 = vadd.f32 0.0, %v8197
          %v8199 = vpop.f32.mrb[0].mxu0
          %v8200 = vpop.f32.mrb[0].mxu0
          %v8201 = vpop.f32.mrb[0].mxu0
          %8202 = vdwg.mxu0
          %v8203 = vmul.f32 %v8121, %v8121
          %v8204 = vmul.f32 %v8124, %v8124
          %v8205 = vsel %vm7718, %v8203, 0.0
          %8206 = vadd.xlane.f32.xlu0 %v8205
          %v8207 = vpop.xlane.xlu0 %8206
          %v8208 = vsel %vm7718, %v8204, 0.0
          %8209 = vadd.xlane.f32.xlu0 %v8208
          %v8210 = vpop.xlane.xlu0 %8209
          %v8211 = vrsqrt.pop %v8207
          %v8212 = vrsqrt.pop %v8210
          %v8213 = vmul.f32 %v8121, %v8211
          %v8214 = vmul.f32 %v8124, %v8212
          %v8215 = vmul.f32 %v8198, %v8198
          %v8216 = vsel %vm7718, %v8215, 0.0
          %8217 = vadd.xlane.f32.xlu0 %v8216
          %v8218 = vpop.xlane.xlu0 %8217
          %v8219 = vrsqrt.pop %v8218
          %v8220 = vmul.f32 %v8198, %v8219
          %v8221 = vpack.c.bf16 %v8220, %v8220
          %v8222 = vpack.c.bf16 %v8214, %v8213
          %v8224 = vsel %vm7718, %v8221, 0
          %v8227 = vsel %vm7718, %v8222, 0
          %8229 = vmatprep.subr.bf16.mxu0 0
          %8230 = vmatpush1.bf16.xpose.msra.mxu0 %v8227
          %8231 = vmatprep.subr.bf16.mxu0 0
          %8232 = vmatpush1.bf16.xpose.msra.mxu0 0
          %8233 = vmatprep.subr.bf16.mxu0 0
          %8234 = vmatpush1.bf16.xpose.msra.mxu0 0
          %8235 = vmatprep.subr.bf16.mxu0 0
          %8236 = vmatpush1.bf16.xpose.msra.mxu0 0
          %8237 = vmatprep.subr.bf16.mxu0 0
          %8238 = vmatpush1.bf16.xpose.msra.mxu0 0
          %8239 = vmatprep.subr.bf16.mxu0 0
          %8240 = vmatpush1.bf16.xpose.msra.mxu0 0
          %8241 = vmatprep.subr.bf16.mxu0 0
          %8242 = vmatpush1.bf16.xpose.msra.mxu0 0
          %8243 = vmatprep.subr.bf16.mxu0 0
          %8244 = vmatpush1.bf16.xpose.msra.mxu0 0
          %8245 = vmatprep.subr.bf16.mxu0 0
          %8246 = vmatpush1.bf16.xpose.msra.mxu0 0
          %8247 = vmatprep.subr.bf16.mxu0 0
          %8248 = vmatpush1.bf16.xpose.msra.mxu0 0
          %8249 = vmatprep.subr.bf16.mxu0 0
          %8250 = vmatpush1.bf16.xpose.msra.mxu0 0
          %8251 = vmatprep.subr.bf16.mxu0 0
          %8252 = vmatpush1.bf16.xpose.msra.mxu0 0
          %8253 = vmatprep.subr.bf16.mxu0 0
          %8254 = vmatpush1.bf16.xpose.msra.mxu0 0
          %8255 = vmatprep.subr.bf16.mxu0 0
          %8256 = vmatpush1.bf16.xpose.msra.mxu0 0
          %8257 = vmatprep.subr.bf16.mxu0 0
          %8258 = vmatpush1.bf16.xpose.msra.mxu0 0
          %8259 = vmatprep.subr.bf16.mxu0 0
          %8260 = vmatpush1.bf16.xpose.msra.mxu0 0
          %8261 = vmatprep.mubr.bf16.mxu0 0
          %8262 = vmatmul.mubr.bf16.gmra.mrb[0].mxu0 %v8224
          %v8263 = vpop.f32.mrb[0].mxu0
          %v8264 = vadd.f32 0.0, %v8263
          %v8265 = vpop.f32.mrb[0].mxu0
          %v8266 = vpop.f32.mrb[0].mxu0
          %v8267 = vpop.f32.mrb[0].mxu0
          %8268 = vdwg.mxu0
          %v8269 = vmul.f32 %v8264, 0.5
          %vm8270 = vcmask 130048
          %v8271 = vsel %vm8270, %v8269, 0.0
          %v8272 = vrot.slane %v8271, 4
          %v8273 = vadd.f32 %v8271, %v8272
          %v8274 = vrot.slane %v8273, 2
          %v8275 = vadd.f32 %v8273, %v8274
          %v8276 = vrot.slane %v8275, 1
          %v8277 = vadd.f32 %v8275, %v8276
          %v8278 = vrcp.pop 8.0
          %v8279 = vmul.f32 %v8277, %v8278
          %v8280 = vsub.f32 %v8269, %v8279
          %v8281 = vmul.f32 %v8280, %v8280
          %v8282 = vsel %vm8270, %v8281, 0.0
          %v8283 = vrot.slane %v8282, 4
          %v8284 = vadd.f32 %v8282, %v8283
          %v8285 = vrot.slane %v8284, 2
          %v8286 = vadd.f32 %v8284, %v8285
          %v8287 = vrot.slane %v8286, 1
          %v8288 = vadd.f32 %v8286, %v8287
          %v8289 = vmul.f32 %v8288, %v8278
          %v8290 = vadd.f32 %v8289, 1e-05
          %v8291 = vrsqrt.pop %v8290
          %v8292 = vmul.f32 %v8280, %v8291
          %v8293 = vld [vmem:[%s20] sm:$0xff]
          %8295 = vset.pattern.permute.xlu0 0
          %8296 = vperm.xlu0 %8295, %v8293
          %v8297 = vpop.permute.xlu0 %8296
          %v8299 = vmul.f32 %v8292, %v8297
          %v8300 = vld [vmem:[%s21] sm:$0xff]
          %8302 = vset.pattern.permute.xlu0 0
          %8303 = vperm.xlu0 %8302, %v8300
          %v8304 = vpop.permute.xlu0 %8303
          %v8306 = vadd.f32 %v8299, %v8304
          %8307 = vst.msk [vmem:[#allocation10] sm:$0xff] %vm8270, %v8306
          %v8308 = vld [vmem:[#allocation2 + $0x18] sm:$0xff]
          %v8309 = vld [vmem:[#allocation2 + $0x20] sm:$0xff]
          %v8310 = vld [vmem:[#allocation2 + $0x28] sm:$0xff]
          %v8311 = vld [vmem:[%s16] sm:$0x1]
          %v8312 = vld [vmem:[%s17] sm:$0x1]
          %v8313 = vsel %vm7718, %v8308, 0.0
          %8314 = vadd.xlane.f32.xlu0 %v8313
          %v8315 = vpop.xlane.xlu0 %8314
          %v8316 = vsel %vm7718, %v8309, 0.0
          %8317 = vadd.xlane.f32.xlu0 %v8316
          %v8318 = vpop.xlane.xlu0 %8317
          %v8319 = vsel %vm7718, %v8310, 0.0
          %8320 = vadd.xlane.f32.xlu0 %v8319
          %v8321 = vpop.xlane.xlu0 %8320
          %v8322 = vmul.f32 %v8315, %v8001
          %v8323 = vmul.f32 %v8318, %v8001
          %v8324 = vmul.f32 %v8321, %v8001
          %v8325 = vsub.f32 %v8308, %v8322
          %v8326 = vsub.f32 %v8309, %v8323
          %v8327 = vsub.f32 %v8310, %v8324
          %v8328 = vmul.f32 %v8325, %v8325
          %v8329 = vmul.f32 %v8326, %v8326
          %v8330 = vmul.f32 %v8327, %v8327
          %v8331 = vsel %vm7718, %v8328, 0.0
          %8332 = vadd.xlane.f32.xlu0 %v8331
          %v8333 = vpop.xlane.xlu0 %8332
          %v8334 = vsel %vm7718, %v8329, 0.0
          %8335 = vadd.xlane.f32.xlu0 %v8334
          %v8336 = vpop.xlane.xlu0 %8335
          %v8337 = vsel %vm7718, %v8330, 0.0
          %8338 = vadd.xlane.f32.xlu0 %v8337
          %v8339 = vpop.xlane.xlu0 %8338
          %v8340 = vmul.f32 %v8333, %v8001
          %v8341 = vmul.f32 %v8336, %v8001
          %v8342 = vmul.f32 %v8339, %v8001
          %v8343 = vadd.f32 %v8340, 1e-05
          %v8344 = vadd.f32 %v8341, 1e-05
          %v8345 = vadd.f32 %v8342, 1e-05
          %v8346 = vrsqrt.pop %v8343
          %v8347 = vrsqrt.pop %v8344
          %v8348 = vrsqrt.pop %v8345
          %v8349 = vmul.f32 %v8325, %v8346
          %v8350 = vmul.f32 %v8326, %v8347
          %v8351 = vmul.f32 %v8327, %v8348
          %v8353 = vlaneseq
          %v8354 = vshrl.u32 %v8353, 7
          %v8355 = vsub.s32 0, %v8354
          %v8356 = vrot.slane %v8311, %v8355
          %v8358 = vmul.f32 %v8349, %v8356
          %v8359 = vmul.f32 %v8350, %v8356
          %v8360 = vmul.f32 %v8351, %v8356
          %v8362 = vlaneseq
          %v8363 = vshrl.u32 %v8362, 7
          %v8364 = vsub.s32 0, %v8363
          %v8365 = vrot.slane %v8312, %v8364
          %v8367 = vadd.f32 %v8358, %v8365
          %v8368 = vadd.f32 %v8359, %v8365
          %v8369 = vadd.f32 %v8360, %v8365
          %v8370 = vpack.c.bf16 %v8368, %v8367
          %v8371 = vld [vmem:[%s18] sm:$0xf]
          %v8372 = vld [vmem:[%s18 + $0x4] sm:$0xf]
          %v8373 = vld [vmem:[%s18 + $0x8] sm:$0xf]
          %v8374 = vld [vmem:[%s18 + $0xc] sm:$0xf]
          %v8375 = vld [vmem:[%s18 + $0x10] sm:$0xf]
          %v8376 = vld [vmem:[%s18 + $0x14] sm:$0xf]
          %v8377 = vld [vmem:[%s18 + $0x18] sm:$0xf]
          %v8378 = vld [vmem:[%s18 + $0x1c] sm:$0xf]
          %v8387 = vunpack.c.l.b16 %v8371
          %v8388 = vunpack.c.l.b16 %v8372
          %v8389 = vunpack.c.l.b16 %v8373
          %v8390 = vunpack.c.l.b16 %v8374
          %v8391 = vunpack.c.l.b16 %v8375
          %v8392 = vunpack.c.l.b16 %v8376
          %v8393 = vunpack.c.l.b16 %v8377
          %v8394 = vunpack.c.l.b16 %v8378
          %v8395 = vpack.c.b16 %v8388, %v8387
          %v8396 = vpack.c.b16 %v8390, %v8389
          %v8397 = vpack.c.b16 %v8392, %v8391
          %v8398 = vpack.c.b16 %v8394, %v8393
          %v8404 = vsel %vm7718, %v8370, 0
          %8406 = vmatprep.subr.bf16.mxu0 0
          %8407 = vmatpush1.bf16.msra.mxu0 %v8395
          %8408 = vmatprep.subr.bf16.mxu0 0
          %8409 = vmatpush1.bf16.msra.mxu0 %v8396
          %8410 = vmatprep.subr.bf16.mxu0 0
          %8411 = vmatpush1.bf16.msra.mxu0 %v8397
          %8412 = vmatprep.subr.bf16.mxu0 0
          %8413 = vmatpush1.bf16.msra.mxu0 %v8398
          %8414 = vmatprep.subr.bf16.mxu0 0
          %8415 = vmatpush1.bf16.msra.mxu0 0
          %8416 = vmatprep.subr.bf16.mxu0 0
          %8417 = vmatpush1.bf16.msra.mxu0 0
          %8418 = vmatprep.subr.bf16.mxu0 0
          %8419 = vmatpush1.bf16.msra.mxu0 0
          %8420 = vmatprep.subr.bf16.mxu0 0
          %8421 = vmatpush1.bf16.msra.mxu0 0
          %8422 = vmatprep.subr.bf16.mxu0 0
          %8423 = vmatpush1.bf16.msra.mxu0 0
          %8424 = vmatprep.subr.bf16.mxu0 0
          %8425 = vmatpush1.bf16.msra.mxu0 0
          %8426 = vmatprep.subr.bf16.mxu0 0
          %8427 = vmatpush1.bf16.msra.mxu0 0
          %8428 = vmatprep.subr.bf16.mxu0 0
          %8429 = vmatpush1.bf16.msra.mxu0 0
          %8430 = vmatprep.subr.bf16.mxu0 0
          %8431 = vmatpush1.bf16.msra.mxu0 0
          %8432 = vmatprep.subr.bf16.mxu0 0
          %8433 = vmatpush1.bf16.msra.mxu0 0
          %8434 = vmatprep.subr.bf16.mxu0 0
          %8435 = vmatpush1.bf16.msra.mxu0 0
          %8436 = vmatprep.subr.bf16.mxu0 0
          %8437 = vmatpush1.bf16.msra.mxu0 0
          %8438 = vmatprep.mubr.bf16.mxu0 0
          %8439 = vmatmul.mubr.bf16.gmra.mrb[0].mxu0 %v8404
          %v8440 = vpop.f32.mrb[0].mxu0
          %v8441 = vadd.f32 0.0, %v8440
          %v8442 = vpop.f32.mrb[0].mxu0
          %v8443 = vpop.f32.mrb[0].mxu0
          %v8444 = vadd.f32 0.0, %v8443
          %v8445 = vpop.f32.mrb[0].mxu0
          %8446 = vdwg.mxu0
          %v8447 = vpack.c.bf16 %v8369, %v8369
          %v8448 = vld [vmem:[%s19] sm:$0xf]
          %v8449 = vld [vmem:[%s19 + $0x4] sm:$0xf]
          %v8450 = vld [vmem:[%s19 + $0x8] sm:$0xf]
          %v8451 = vld [vmem:[%s19 + $0xc] sm:$0xf]
          %v8452 = vld [vmem:[%s19 + $0x10] sm:$0xf]
          %v8453 = vld [vmem:[%s19 + $0x14] sm:$0xf]
          %v8454 = vld [vmem:[%s19 + $0x18] sm:$0xf]
          %v8455 = vld [vmem:[%s19 + $0x1c] sm:$0xf]
          %v8464 = vunpack.c.l.b16 %v8448
          %v8465 = vunpack.c.l.b16 %v8449
          %v8466 = vunpack.c.l.b16 %v8450
          %v8467 = vunpack.c.l.b16 %v8451
          %v8468 = vunpack.c.l.b16 %v8452
          %v8469 = vunpack.c.l.b16 %v8453
          %v8470 = vunpack.c.l.b16 %v8454
          %v8471 = vunpack.c.l.b16 %v8455
          %v8472 = vpack.c.b16 %v8465, %v8464
          %v8473 = vpack.c.b16 %v8467, %v8466
          %v8474 = vpack.c.b16 %v8469, %v8468
          %v8475 = vpack.c.b16 %v8471, %v8470
          %v8481 = vsel %vm7718, %v8447, 0
          %8483 = vmatprep.subr.bf16.mxu0 0
          %8484 = vmatpush1.bf16.msra.mxu0 %v8472
          %8485 = vmatprep.subr.bf16.mxu0 0
          %8486 = vmatpush1.bf16.msra.mxu0 %v8473
          %8487 = vmatprep.subr.bf16.mxu0 0
          %8488 = vmatpush1.bf16.msra.mxu0 %v8474
          %8489 = vmatprep.subr.bf16.mxu0 0
          %8490 = vmatpush1.bf16.msra.mxu0 %v8475
          %8491 = vmatprep.subr.bf16.mxu0 0
          %8492 = vmatpush1.bf16.msra.mxu0 0
          %8493 = vmatprep.subr.bf16.mxu0 0
          %8494 = vmatpush1.bf16.msra.mxu0 0
          %8495 = vmatprep.subr.bf16.mxu0 0
          %8496 = vmatpush1.bf16.msra.mxu0 0
          %8497 = vmatprep.subr.bf16.mxu0 0
          %8498 = vmatpush1.bf16.msra.mxu0 0
          %8499 = vmatprep.subr.bf16.mxu0 0
          %8500 = vmatpush1.bf16.msra.mxu0 0
          %8501 = vmatprep.subr.bf16.mxu0 0
          %8502 = vmatpush1.bf16.msra.mxu0 0
          %8503 = vmatprep.subr.bf16.mxu0 0
          %8504 = vmatpush1.bf16.msra.mxu0 0
          %8505 = vmatprep.subr.bf16.mxu0 0
          %8506 = vmatpush1.bf16.msra.mxu0 0
          %8507 = vmatprep.subr.bf16.mxu0 0
          %8508 = vmatpush1.bf16.msra.mxu0 0
          %8509 = vmatprep.subr.bf16.mxu0 0
          %8510 = vmatpush1.bf16.msra.mxu0 0
          %8511 = vmatprep.subr.bf16.mxu0 0
          %8512 = vmatpush1.bf16.msra.mxu0 0
          %8513 = vmatprep.subr.bf16.mxu0 0
          %8514 = vmatpush1.bf16.msra.mxu0 0
          %8515 = vmatprep.mubr.bf16.mxu0 0
          %8516 = vmatmul.mubr.bf16.gmra.mrb[0].mxu0 %v8481
          %v8517 = vpop.f32.mrb[0].mxu0
          %v8518 = vadd.f32 0.0, %v8517
          %v8519 = vpop.f32.mrb[0].mxu0
          %v8520 = vpop.f32.mrb[0].mxu0
          %v8521 = vpop.f32.mrb[0].mxu0
          %8522 = vdwg.mxu0
          %v8523 = vmul.f32 %v8441, %v8441
          %v8524 = vmul.f32 %v8444, %v8444
          %v8525 = vsel %vm7718, %v8523, 0.0
          %8526 = vadd.xlane.f32.xlu0 %v8525
          %v8527 = vpop.xlane.xlu0 %8526
          %v8528 = vsel %vm7718, %v8524, 0.0
          %8529 = vadd.xlane.f32.xlu0 %v8528
          %v8530 = vpop.xlane.xlu0 %8529
          %v8531 = vrsqrt.pop %v8527
          %v8532 = vrsqrt.pop %v8530
          %v8533 = vmul.f32 %v8441, %v8531
          %v8534 = vmul.f32 %v8444, %v8532
          %v8535 = vmul.f32 %v8518, %v8518
          %v8536 = vsel %vm7718, %v8535, 0.0
          %8537 = vadd.xlane.f32.xlu0 %v8536
          %v8538 = vpop.xlane.xlu0 %8537
          %v8539 = vrsqrt.pop %v8538
          %v8540 = vmul.f32 %v8518, %v8539
          %v8541 = vpack.c.bf16 %v8540, %v8540
          %v8542 = vpack.c.bf16 %v8534, %v8533
          %v8544 = vsel %vm7718, %v8541, 0
          %v8547 = vsel %vm7718, %v8542, 0
          %8549 = vmatprep.subr.bf16.mxu0 0
          %8550 = vmatpush1.bf16.xpose.msra.mxu0 %v8547
          %8551 = vmatprep.subr.bf16.mxu0 0
          %8552 = vmatpush1.bf16.xpose.msra.mxu0 0
          %8553 = vmatprep.subr.bf16.mxu0 0
          %8554 = vmatpush1.bf16.xpose.msra.mxu0 0
          %8555 = vmatprep.subr.bf16.mxu0 0
          %8556 = vmatpush1.bf16.xpose.msra.mxu0 0
          %8557 = vmatprep.subr.bf16.mxu0 0
          %8558 = vmatpush1.bf16.xpose.msra.mxu0 0
          %8559 = vmatprep.subr.bf16.mxu0 0
          %8560 = vmatpush1.bf16.xpose.msra.mxu0 0
          %8561 = vmatprep.subr.bf16.mxu0 0
          %8562 = vmatpush1.bf16.xpose.msra.mxu0 0
          %8563 = vmatprep.subr.bf16.mxu0 0
          %8564 = vmatpush1.bf16.xpose.msra.mxu0 0
          %8565 = vmatprep.subr.bf16.mxu0 0
          %8566 = vmatpush1.bf16.xpose.msra.mxu0 0
          %8567 = vmatprep.subr.bf16.mxu0 0
          %8568 = vmatpush1.bf16.xpose.msra.mxu0 0
          %8569 = vmatprep.subr.bf16.mxu0 0
          %8570 = vmatpush1.bf16.xpose.msra.mxu0 0
          %8571 = vmatprep.subr.bf16.mxu0 0
          %8572 = vmatpush1.bf16.xpose.msra.mxu0 0
          %8573 = vmatprep.subr.bf16.mxu0 0
          %8574 = vmatpush1.bf16.xpose.msra.mxu0 0
          %8575 = vmatprep.subr.bf16.mxu0 0
          %8576 = vmatpush1.bf16.xpose.msra.mxu0 0
          %8577 = vmatprep.subr.bf16.mxu0 0
          %8578 = vmatpush1.bf16.xpose.msra.mxu0 0
          %8579 = vmatprep.subr.bf16.mxu0 0
          %8580 = vmatpush1.bf16.xpose.msra.mxu0 0
          %8581 = vmatprep.mubr.bf16.mxu0 0
          %8582 = vmatmul.mubr.bf16.gmra.mrb[0].mxu0 %v8544
          %v8583 = vpop.f32.mrb[0].mxu0
          %v8584 = vadd.f32 0.0, %v8583
          %v8585 = vpop.f32.mrb[0].mxu0
          %v8586 = vpop.f32.mrb[0].mxu0
          %v8587 = vpop.f32.mrb[0].mxu0
          %8588 = vdwg.mxu0
          %v8589 = vmul.f32 %v8584, 0.5
          %v8590 = vsel %vm8270, %v8589, 0.0
          %v8591 = vrot.slane %v8590, 4
          %v8592 = vadd.f32 %v8590, %v8591
          %v8593 = vrot.slane %v8592, 2
          %v8594 = vadd.f32 %v8592, %v8593
          %v8595 = vrot.slane %v8594, 1
          %v8596 = vadd.f32 %v8594, %v8595
          %v8597 = vmul.f32 %v8596, %v8278
          %v8598 = vsub.f32 %v8589, %v8597
          %v8599 = vmul.f32 %v8598, %v8598
          %v8600 = vsel %vm8270, %v8599, 0.0
          %v8601 = vrot.slane %v8600, 4
          %v8602 = vadd.f32 %v8600, %v8601
          %v8603 = vrot.slane %v8602, 2
          %v8604 = vadd.f32 %v8602, %v8603
          %v8605 = vrot.slane %v8604, 1
          %v8606 = vadd.f32 %v8604, %v8605
          %v8607 = vmul.f32 %v8606, %v8278
          %v8608 = vadd.f32 %v8607, 1e-05
          %v8609 = vrsqrt.pop %v8608
          %v8610 = vmul.f32 %v8598, %v8609
          %v8611 = vld [vmem:[%s20] sm:$0xff]
          %8613 = vset.pattern.permute.xlu0 0
          %8614 = vperm.xlu0 %8613, %v8611
          %v8615 = vpop.permute.xlu0 %8614
          %v8617 = vmul.f32 %v8610, %v8615
          %v8618 = vld [vmem:[%s21] sm:$0xff]
          %8620 = vset.pattern.permute.xlu0 0
          %8621 = vperm.xlu0 %8620, %v8618
          %v8622 = vpop.permute.xlu0 %8621
          %v8624 = vadd.f32 %v8617, %v8622
          %s8625 = scalar_lea.vmem [#allocation10], 8
          %8626 = vst.msk [vmem:[%s8625] sm:$0xff] %vm8270, %v8624
        $region169: #{tpu_custom_call.1} parent=144 // pred_fallthru
          _
        // Predicated region
        $region170: #{tpu_custom_call.1} parent=144 // pred_check
          %p8627 = pneg %p606
        $region171: #{tpu_custom_call.1} parent=144 // pred_check_branch
          %8629 = sbr.rel (%p8627) target = $region173
        $region172: #{tpu_custom_call.1} parent=144 // pred_region
          %s8630 = smul.u32 2, %s41
          %s8632 = ssub.s32 256, 256
          %8633 = vsyncadd [#allocation6], %s8632
          %s8634 = smul.addr %s8630, 128
          %s8635 = scalar_lea.hbm %s22, %s8634
          %s8636 = sshll.u32 [#allocation10], 4
          %s8637 = int_to_ptr.vmem [resolvable:$true] %s8636
          %8642 = dma.vmem_to_hbm [thread:$0]  %s8637, 256, %s8635, [#allocation6], 128, 128, 8
        $region173: #{tpu_custom_call.1} parent=144 // pred_fallthru
          _
        // Predicated region
        $region174: #{tpu_custom_call.1} parent=144 // pred_check
          %p8643 = pneg %p606
        $region175: #{tpu_custom_call.1} parent=144 // pred_check_branch
          %8645 = sbr.rel (%p8643) target = $region177
        $region176: #{tpu_custom_call.1} parent=144 // pred_region
          %8646 = dma.done [#allocation6], 256
        $region177: #{tpu_custom_call.1} parent=144 // pred_fallthru
          _
      $region145: #{tpu_custom_call.1} parent=5 // pred_fallthru
        _
      %p8647 = scmp.le.s32.totalorder 2, %s31
      // Predicated region
      $region178: #{tpu_custom_call.1} parent=5 // pred_check
        %p8648 = pneg %p8647
      $region179: #{tpu_custom_call.1} parent=5 // pred_check_branch
        %8650 = sbr.rel (%p8648) target = $region181
      $region180: #{tpu_custom_call.1} parent=5 // pred_region
        %s8651 = ssub.s32 %s31, 2
      $region181: #{tpu_custom_call.1} parent=5 // pred_fallthru
        _
    $region6: #{tpu_custom_call.1} parent=1 // loop_footer
      %s35 = sadd.s32 1, %s31
    $region7: #{tpu_custom_call.1} parent=1 // loop_footer_branch
      %30 = sbr.rel target = $region3
    $region8: #{tpu_custom_call.1} parent=1 // loop_exit
      _
    %8652 = vsyncpa [#allocation5], 1
    %s8653 = scalar_lea.sflag [#allocation5], 1
    %8654 = vsyncpa %s8653, 1
    %8655 = vsyncpa [#allocation8], 1
    %8656 = vsyncpa [#allocation6], 1
    %s8657 = scalar_lea.sflag [#allocation6], 1
    %8658 = vsyncpa %s8657, 1

</llo_original>
